<compile_context>
chip_gen: v7x
topology: tpu7x:2x2x1
jax: 0.10.0
libtpu: 0.0.40
codegen_flags: <defaults>
</compile_context>

<pallas_src>
import functools

import numpy as np
import jax
import jax.numpy as jnp
from jax import lax
from jax.experimental import pallas as pl
from jax.experimental.pallas import tpu as pltpu

LANE = 128
MXU_DTYPE = jnp.bfloat16      # matmul operand dtype (f32 accumulation)
STORE_DTYPE = jnp.bfloat16    # inter-layer activations in HBM
_STORE_BYTES = np.dtype(STORE_DTYPE).itemsize


def _round_up(x, m):
    return (x + m - 1) // m * m


def _vmem_limits():
    """Generation-aware VMEM limit + per-strip working-set budget."""
    cap = 128 * 1024 * 1024
    try:
        info = pltpu.get_tpu_info()
        cap = int(getattr(info, "vmem_capacity_bytes", None) or cap)
    except Exception:
        pass
    limit = int(min(cap * 3 // 4, 96 * 1024 * 1024))   # ~96MiB v5e/v6e, ~48MiB v7x
    return limit, limit // 3


def _est_strip_bytes(th, W, cin_p, cout_p, in_bytes, out_bytes):
    strip = (th + 2) * W * cin_p
    body = th * W
    return (2 * strip * in_bytes                 # double-buffered DMA strip
            + strip * (4 + 3 * 2)                # f32 activated value + 3 bf16 shifted ops
            + body * cout_p * (4 + 2 * out_bytes)  # f32 acc + double-buffered y block
            + 9 * cin_p * cout_p * 2             # resident bf16 weights
            + 64 * 1024)                         # vectors / stats / slack


def _pick_strip_rows(H, W, cin_p, cout_p, in_bytes, out_bytes, budget):
    """Largest row-strip TH dividing H that fits the budget (prefer >=2 strips
    so the intra-image DMA double-buffering has something to overlap)."""
    cands = [t for t in range(1, H + 1) if H % t == 0]
    fit = [t for t in cands
           if _est_strip_bytes(t, W, cin_p, cout_p, in_bytes, out_bytes) <= budget]
    if not fit:
        return 1
    multi = [t for t in fit if H // t >= 2]
    return max(multi) if multi else max(fit)


def _pick_rows(H, row_bytes, budget):
    cands = [t for t in range(1, H + 1) if H % t == 0 and t * row_bytes <= budget]
    return max(cands) if cands else 1


# ----------------------------------------------------------------------------
# Fused conv kernel:
#   [optional scale/shift+ReLU of the previous BN on the input strip]
#   -> 3x3 conv as 9 accumulated bf16 matmuls (f32 acc) -> +bias
#   -> y strip (bf16), plus per-image per-channel sum / sum-of-squares.
#
#   x_hbm   : (N, H, W, Cin_p)   raw HBM ref (memory_space=ANY), manual DMA
#   w_ref   : (9*Cin_p, Cout_p)  tap-major bf16 weights (resident)
#   b_ref   : (1, Cout_p)        f32 bias
#   sc_ref  : (1, Cin_p)         previous BN scale (unused if not apply_input_act)
#   sh_ref  : (1, Cin_p)         previous BN shift
#   y_ref   : (1, TH, W, Cout_p) conv output strip (pre-BN), STORE_DTYPE
#   sum_ref : (1, 1, Cout_p)     per-image resident accumulator (sum)
#   sq_ref  : (1, 1, Cout_p)     per-image resident accumulator (sum of squares)
#   xbuf    : VMEM (2, TH+2, W, Cin_p) double-buffered strip (+1 halo row each side)
#   sem     : DMA semaphores (2, 3)  [slot, {body, top-halo, bottom-halo}]
# ----------------------------------------------------------------------------
def conv_fused_kernel(x_hbm, w_ref, b_ref, sc_ref, sh_ref,
                      y_ref, sum_ref, sq_ref, xbuf, sem, *, apply_input_act):
    th = xbuf.shape[1] - 2
    W = xbuf.shape[2]
    cin_p = xbuf.shape[3]
    cout_p = sum_ref.shape[-1]

    n = pl.program_id(0)
    s = pl.program_id(1)
    ns = pl.num_programs(1)
    slot = s % 2

    def start_fetch(ss, dslot):
        r0 = ss * th
        pltpu.make_async_copy(x_hbm.at[n, pl.ds(r0, th)],
                              xbuf.at[dslot, pl.ds(1, th)],
                              sem.at[dslot, 0]).start()

        @pl.when(ss > 0)
        def _():
            pltpu.make_async_copy(x_hbm.at[n, pl.ds(r0 - 1, 1)],
                                  xbuf.at[dslot, pl.ds(0, 1)],
                                  sem.at[dslot, 1]).start()

        @pl.when(ss < ns - 1)
        def _():
            pltpu.make_async_copy(x_hbm.at[n, pl.ds(r0 + th, 1)],
                                  xbuf.at[dslot, pl.ds(th + 1, 1)],
                                  sem.at[dslot, 2]).start()

    # First strip of this image: init the per-image stats block + own fetch.
    @pl.when(s == 0)
    def _prime():
        sum_ref[...] = jnp.zeros_like(sum_ref)
        sq_ref[...] = jnp.zeros_like(sq_ref)
        start_fetch(s, slot)

    # Double buffering: issue the next strip's fetch before computing this one.
    @pl.when(s + 1 < ns)
    def _prefetch():
        start_fetch(s + 1, 1 - slot)

    # Wait for this strip's copies (same descriptors as at issue time).
    r0 = s * th
    pltpu.make_async_copy(x_hbm.at[n, pl.ds(r0, th)],
                          xbuf.at[slot, pl.ds(1, th)], sem.at[slot, 0]).wait()

    @pl.when(s > 0)
    def _():
        pltpu.make_async_copy(x_hbm.at[n, pl.ds(r0 - 1, 1)],
                              xbuf.at[slot, pl.ds(0, 1)], sem.at[slot, 1]).wait()

    @pl.when(s < ns - 1)
    def _():
        pltpu.make_async_copy(x_hbm.at[n, pl.ds(r0 + th, 1)],
                              xbuf.at[slot, pl.ds(th + 1, 1)], sem.at[slot, 2]).wait()

    xin = xbuf[slot]                                    # (TH+2, W, Cin_p)

    # Rows outside the image (top of strip 0 / bottom of last strip) were never
    # DMA'd: select them to zero (jnp.where discards the stale branch, so stale
    # Inf/NaN cannot leak).  The mask is applied *after* the input activation,
    # because affine+ReLU maps 0 -> relu(shift) != 0.
    row = lax.broadcasted_iota(jnp.int32, (th + 2, 1, 1), 0)
    keep = ((row >= 1) | (s > 0)) & ((row <= th) | (s < ns - 1))

    if apply_input_act:
        xf = jnp.maximum(xin.astype(jnp.float32) * sc_ref[...] + sh_ref[...], 0.0)
        xc = jnp.where(keep, xf, 0.0).astype(MXU_DTYPE)
    else:
        xc = jnp.where(keep, xin, jnp.zeros_like(xin)).astype(MXU_DTYPE)

    # +-1 column shifts for the kw taps (true zero padding at the image edge).
    zcol = jnp.zeros((th + 2, 1, cin_p), MXU_DTYPE)
    xl = jnp.concatenate([zcol, xc[:, :W - 1, :]], axis=1)   # col j -> x[:, j-1]
    xr = jnp.concatenate([xc[:, 1:, :], zcol], axis=1)       # col j -> x[:, j+1]

    m_full = (th + 2) * W
    ops = (xl.reshape(m_full, cin_p),          # kw = 0
           xc.reshape(m_full, cin_p),          # kw = 1
           xr.reshape(m_full, cin_p))          # kw = 2

    # 9 accumulated MXU matmuls (bf16 operands, f32 accumulation); the LHS of
    # tap (kh, kw) is rows [kh*W, kh*W + TH*W) of the flattened shifted strip.
    acc = jnp.zeros((th * W, cout_p), jnp.float32)
    for kh in range(3):
        base = kh * W
        for kw in range(3):
            t = kh * 3 + kw
            acc = acc + jnp.dot(ops[kw][base:base + th * W, :],
                                w_ref[t * cin_p:(t + 1) * cin_p, :],
                                preferred_element_type=jnp.float32)
    acc = acc + b_ref[...]

    # BatchNorm batch statistics (per-image partial sums, resident over s).
    sum_ref[...] += jnp.sum(acc, axis=0, keepdims=True).reshape(sum_ref.shape)
    sq_ref[...] += jnp.sum(acc * acc, axis=0, keepdims=True).reshape(sq_ref.shape)

    y_ref[...] = acc.reshape(1, th, W, cout_p).astype(y_ref.dtype)


def _fused_conv(x, w, b, sc, sh, *, th, apply_input_act, out_dtype, vmem_limit):
    N, H, W, cin_p = x.shape
    cout_p = w.shape[-1]
    ns = H // th
    kern = functools.partial(conv_fused_kernel, apply_input_act=apply_input_act)
    return pl.pallas_call(
        kern,
        out_shape=(
            jax.ShapeDtypeStruct((N, H, W, cout_p), out_dtype),   # y (pre-BN)
            jax.ShapeDtypeStruct((N, 1, cout_p), jnp.float32),    # per-image sum
            jax.ShapeDtypeStruct((N, 1, cout_p), jnp.float32),    # per-image sum sq
        ),
        grid=(N, ns),
        in_specs=[
            pl.BlockSpec(memory_space=pl.ANY),                        # x stays in HBM
            pl.BlockSpec((9 * cin_p, cout_p), lambda n, s: (0, 0)),   # resident weights
            pl.BlockSpec((1, cout_p), lambda n, s: (0, 0)),
            pl.BlockSpec((1, cin_p), lambda n, s: (0, 0)),
            pl.BlockSpec((1, cin_p), lambda n, s: (0, 0)),
        ],
        out_specs=(
            pl.BlockSpec((1, th, W, cout_p), lambda n, s: (n, s, 0, 0)),
            pl.BlockSpec((1, 1, cout_p), lambda n, s: (n, 0, 0)),
            pl.BlockSpec((1, 1, cout_p), lambda n, s: (n, 0, 0)),
        ),
        scratch_shapes=[
            pltpu.VMEM((2, th + 2, W, cin_p), x.dtype),
            pltpu.SemaphoreType.DMA((2, 3)),
        ],
        # N is parallel (per-image stats blocks + per-image DMA pipeline make it
        # safe to shard over v7x's two cores); the strip axis carries the
        # resident stats accumulator and the double-buffered DMA -> arbitrary.
        compiler_params=pltpu.CompilerParams(
            dimension_semantics=("parallel", "arbitrary"),
            vmem_limit_bytes=vmem_limit),
    )(x, w, b, sc, sh)


# ----------------------------------------------------------------------------
# Final fused BN scale/shift + ReLU (only after the second conv); also fuses
# the channel un-pad: only the real Cout channels are written to HBM.
# ----------------------------------------------------------------------------
def bn_act_kernel(y_ref, sc_ref, sh_ref, o_ref):
    cout = o_ref.shape[-1]
    y = y_ref[...][..., :cout].astype(jnp.float32)
    o_ref[...] = jnp.maximum(y * sc_ref[...] + sh_ref[...], 0.0)


def _bn_act(y, sc, sh, cout, *, th, vmem_limit):
    N, H, W, cp = y.shape
    return pl.pallas_call(
        bn_act_kernel,
        out_shape=jax.ShapeDtypeStruct((N, H, W, cout), jnp.float32),
        grid=(N, H // th),
        in_specs=[
            pl.BlockSpec((1, th, W, cp), lambda n, s: (n, s, 0, 0)),
            pl.BlockSpec((1, cout), lambda n, s: (0, 0)),
            pl.BlockSpec((1, cout), lambda n, s: (0, 0)),
        ],
        out_specs=pl.BlockSpec((1, th, W, cout), lambda n, s: (n, s, 0, 0)),
        compiler_params=pltpu.CompilerParams(
            dimension_semantics=("parallel", "parallel"),
            vmem_limit_bytes=vmem_limit),
    )(y, sc, sh)


# ----------------------------------------------------------------------------
# Host-side helpers (tiny (C,)-sized math only).
# ----------------------------------------------------------------------------
def _bn_scale_shift(ch_sum, ch_sq, count, gamma_p, beta_p, eps):
    s = jnp.sum(ch_sum, axis=0).reshape(-1)         # reduce per-image partial sums
    q = jnp.sum(ch_sq, axis=0).reshape(-1)
    cnt = jnp.asarray(count, jnp.float32)
    mean = s / cnt
    var = jnp.maximum(q / cnt - mean * mean, 0.0)   # biased var (PyTorch BN training)
    scale = gamma_p * lax.rsqrt(var + eps)
    shift = beta_p - mean * scale
    return scale.reshape(1, -1), shift.reshape(1, -1)


def _prep_conv_weight(w_hwio, cin_p, cout_p):
    kh, kw, cin, cout = w_hwio.shape
    w = jnp.pad(w_hwio, ((0, 0), (0, 0), (0, cin_p - cin), (0, cout_p - cout)))
    # row = (kh*3 + kw)*cin_p + ci  (matches the in-kernel tap slicing)
    return w.reshape(kh * kw * cin_p, cout_p).astype(MXU_DTYPE)


def _pad_vec(v, cp):
    return jnp.pad(v.astype(jnp.float32), (0, cp - v.shape[0]))


# ----------------------------------------------------------------------------
# DoubleConv forward (NCHW in / NCHW out, matching the PyTorch module).
# ----------------------------------------------------------------------------
@jax.jit
def double_conv(x_nchw, params, eps=1e-5):
    N, Cin, H, W = x_nchw.shape
    Cout = params["w1"].shape[-1]
    cin_p = _round_up(Cin, LANE)
    cout_p = _round_up(Cout, LANE)

    vmem_limit, strip_budget = _vmem_limits()
    th1 = _pick_strip_rows(H, W, cin_p, cout_p, _STORE_BYTES, _STORE_BYTES, strip_budget)
    th2 = _pick_strip_rows(H, W, cout_p, cout_p, _STORE_BYTES, _STORE_BYTES, strip_budget)

    # NCHW -> NHWC, bf16, channels zero-padded to a lane-dense multiple of 128.
    # TODO(synk): fold this transpose/pad into the first conv's input DMA, and
    # skip the Cin->128 pad for tiny Cin by packing (kh,kw,Cin) into the K dim.
    x = jnp.transpose(x_nchw, (0, 2, 3, 1)).astype(STORE_DTYPE)
    x = jnp.pad(x, ((0, 0), (0, 0), (0, 0), (0, cin_p - Cin)))

    w1 = _prep_conv_weight(params["w1"], cin_p, cout_p)
    b1 = _pad_vec(params["b1"], cout_p).reshape(1, cout_p)
    w2 = _prep_conv_weight(params["w2"], cout_p, cout_p)
    b2 = _pad_vec(params["b2"], cout_p).reshape(1, cout_p)
    g1 = _pad_vec(params["gamma1"], cout_p)
    be1 = _pad_vec(params["beta1"], cout_p)
    g2 = _pad_vec(params["gamma2"], cout_p)
    be2 = _pad_vec(params["beta2"], cout_p)

    one_in = jnp.ones((1, cin_p), jnp.float32)
    zero_in = jnp.zeros((1, cin_p), jnp.float32)

    # conv1 + fused BN1 batch statistics
    y1, s1, q1 = _fused_conv(x, w1, b1, one_in, zero_in, th=th1,
                             apply_input_act=False, out_dtype=STORE_DTYPE,
                             vmem_limit=vmem_limit)
    sc1, sh1 = _bn_scale_shift(s1, q1, N * H * W, g1, be1, eps)

    # BN1+ReLU fused into conv2's input read; conv2 + fused BN2 batch statistics
    y2, s2, q2 = _fused_conv(y1, w2, b2, sc1, sh1, th=th2,
                             apply_input_act=True, out_dtype=STORE_DTYPE,
                             vmem_limit=vmem_limit)
    sc2, sh2 = _bn_scale_shift(s2, q2, N * H * W, g2, be2, eps)

    # final BN2 + ReLU with fused channel un-pad, larger elementwise tile
    thb = _pick_rows(H, W * (cout_p * 2 * 2 + Cout * 4 * 2), strip_budget)
    out = _bn_act(y2, sc2[:, :Cout], sh2[:, :Cout], Cout, th=thb,
                  vmem_limit=vmem_limit)

    # TODO(synk): fuse the NHWC->NCHW transpose into _bn_act when W % 128 == 0.
    # TODO(synk): BatchNorm running_mean/running_var buffer updates (training-time
    # side effect) are not materialized; they do not affect the forward output.
    return jnp.transpose(out, (0, 3, 1, 2)).astype(x_nchw.dtype)


# ----------------------------------------------------------------------------
# Pure-JAX reference (same math, NCHW, f32) for correctness check.
# ----------------------------------------------------------------------------
def ref_double_conv(x, params, eps=1e-5):
    def block(x, w, b, g, be):
        y = lax.conv_general_dilated(
            x, w, window_strides=(1, 1), padding="SAME",
            dimension_numbers=("NCHW", "HWIO", "NCHW"),
            precision=lax.Precision.HIGHEST)
        y = y + b.reshape(1, -1, 1, 1)
        mean = jnp.mean(y, axis=(0, 2, 3), keepdims=True)
        var = jnp.mean((y - mean) ** 2, axis=(0, 2, 3), keepdims=True)
        y = (y - mean) * lax.rsqrt(var + eps)
        y = y * g.reshape(1, -1, 1, 1) + be.reshape(1, -1, 1, 1)
        return jnp.maximum(y, 0.0)

    x = block(x, params["w1"], params["b1"], params["gamma1"], params["beta1"])
    x = block(x, params["w2"], params["b2"], params["gamma2"], params["beta2"])
    return x


if __name__ == "__main__":
    key = jax.random.PRNGKey(0)
    k = jax.random.split(key, 6)

    N, Cin, Cout, H, W = 2, 4, 8, 16, 16

    x = jax.random.normal(k[0], (N, Cin, H, W), jnp.float32)
    params = {
        "w1": jax.random.normal(k[1], (3, 3, Cin, Cout), jnp.float32) * 0.1,
        "b1": jax.random.normal(k[2], (Cout,), jnp.float32) * 0.1,
        "gamma1": jnp.ones((Cout,), jnp.float32),
        "beta1": jnp.zeros((Cout,), jnp.float32),
        "w2": jax.random.normal(k[3], (3, 3, Cout, Cout), jnp.float32) * 0.1,
        "b2": jax.random.normal(k[4], (Cout,), jnp.float32) * 0.1,
        "gamma2": jnp.ones((Cout,), jnp.float32),
        "beta2": jnp.zeros((Cout,), jnp.float32),
    }

    out = jax.block_until_ready(double_conv(x, params))
    assert out.shape == (N, Cout, H, W), out.shape

    ref = ref_double_conv(x, params)
    err_max = float(jnp.max(jnp.abs(out - ref)))
    err_mean = float(jnp.mean(jnp.abs(out - ref)))
    # bf16 MXU operands + bf16 inter-layer activations -> ~1e-2-level abs error
    # vs. the f32 HIGHEST-precision reference; real bugs show up as O(1) errors.
    assert err_max < 1.5e-1 and err_mean < 3e-2, (err_max, err_mean)

    print("KERNEL_OK")
</pallas_src>

<mosaic_0001>
module attributes {stable_mosaic.version = 11 : i64} {
  func.func @conv_fused_kernel(%arg0: i32, %arg1: i32, %arg2: memref<2x16x16x128xbf16, #tpu.memory_space<any>>, %arg3: memref<1152x128xbf16, #tpu.memory_space<vmem>>, %arg4: memref<1x128xf32, #tpu.memory_space<vmem>>, %arg5: memref<1x128xf32, #tpu.memory_space<vmem>>, %arg6: memref<1x128xf32, #tpu.memory_space<vmem>>, %arg7: memref<1x8x16x128xbf16, #tpu.memory_space<vmem>>, %arg8: memref<1x1x128xf32, #tpu.memory_space<vmem>>, %arg9: memref<1x1x128xf32, #tpu.memory_space<vmem>>, %arg10: memref<2x10x16x128xbf16, #tpu.memory_space<vmem>>, %arg11: memref<2x3x!tpu.dma_semaphore, #tpu.memory_space<semaphore_mem>>) attributes {dimension_semantics = [#tpu.dimension_semantics<parallel>, #tpu.dimension_semantics<arbitrary>], iteration_bounds = array<i64: 2, 2>, scalar_prefetch = 0 : i64, scratch_operands = 2 : i64, tpu.core_type = #tpu.core_type<tc>, window_params = [{}, {pipeline_mode = #tpu.pipeline_mode<synchronous>, transform_indices = @transform_1, window_bounds = array<i64: 1152, 128>}, {pipeline_mode = #tpu.pipeline_mode<synchronous>, transform_indices = @transform_2, window_bounds = array<i64: 1, 128>}, {pipeline_mode = #tpu.pipeline_mode<synchronous>, transform_indices = @transform_3, window_bounds = array<i64: 1, 128>}, {pipeline_mode = #tpu.pipeline_mode<synchronous>, transform_indices = @transform_4, window_bounds = array<i64: 1, 128>}, {transform_indices = @transform_5, window_bounds = array<i64: 1, 8, 16, 128>}, {transform_indices = @transform_6, window_bounds = array<i64: 1, 1, 128>}, {transform_indices = @transform_7, window_bounds = array<i64: 1, 1, 128>}]} {
    %c2_i32 = arith.constant 2 : i32
    %c0_i32 = arith.constant 0 : i32
    %0 = arith.cmpi eq, %c2_i32, %c0_i32 : i32
    %c1_i32 = arith.constant 1 : i32
    %1 = arith.select %0, %c1_i32, %c2_i32 : i32
    %2 = arith.remsi %arg1, %1 : i32
    %c0_i32_0 = arith.constant 0 : i32
    %3 = arith.cmpi ne, %2, %c0_i32_0 : i32
    %c0_i32_1 = arith.constant 0 : i32
    %4 = arith.cmpi slt, %2, %c0_i32_1 : i32
    %c0_i32_2 = arith.constant 0 : i32
    %5 = arith.cmpi slt, %1, %c0_i32_2 : i32
    %6 = arith.xori %4, %5 : i1
    %7 = arith.andi %6, %3 : i1
    %8 = arith.addi %2, %1 : i32
    %9 = arith.select %7, %8, %2 : i32
    %c0_i32_3 = arith.constant 0 : i32
    %10 = arith.cmpi eq, %arg1, %c0_i32_3 : i32
    %11 = arith.extui %10 : i1 to i32
    %c0_i32_4 = arith.constant 0 : i32
    %12 = arith.cmpi ne, %11, %c0_i32_4 : i32
    scf.if %12 {
      %cst_65 = arith.constant 0.000000e+00 : f32
      %113 = vector.broadcast %cst_65 : f32 to vector<1x1x128xf32>
      %c0_66 = arith.constant 0 : index
      %c0_67 = arith.constant 0 : index
      %c0_68 = arith.constant 0 : index
      %114 = vector.load %arg8[%c0_66, %c0_67, %c0_68] : memref<1x1x128xf32, #tpu.memory_space<vmem>>, vector<1x1x128xf32>
      tpu.vector_store %arg8[%c0_66, %c0_67, %c0_68], %113 {strides = array<i32>} : memref<1x1x128xf32, #tpu.memory_space<vmem>>, vector<1x1x128xf32>,
      %cst_69 = arith.constant 0.000000e+00 : f32
      %115 = vector.broadcast %cst_69 : f32 to vector<1x1x128xf32>
      %c0_70 = arith.constant 0 : index
      %c0_71 = arith.constant 0 : index
      %c0_72 = arith.constant 0 : index
      %116 = vector.load %arg9[%c0_70, %c0_71, %c0_72] : memref<1x1x128xf32, #tpu.memory_space<vmem>>, vector<1x1x128xf32>
      tpu.vector_store %arg9[%c0_70, %c0_71, %c0_72], %115 {strides = array<i32>} : memref<1x1x128xf32, #tpu.memory_space<vmem>>, vector<1x1x128xf32>,
      %c8_i32_73 = arith.constant 8 : i32
      %117 = arith.muli %arg1, %c8_i32_73 : i32
      %c0_i32_74 = arith.constant 0 : i32
      %c0_i32_75 = arith.constant 0 : i32
      %c0_i32_76 = arith.constant 0 : i32
      %118 = tpu.memref_slice %arg2[%arg0, %117, %c0_i32_75, %c0_i32_76] : memref<2x16x16x128xbf16, #tpu.memory_space<any>> -> memref<1x8x16x128xbf16, #tpu.memory_space<any>>
      %119 = tpu.memref_squeeze %118 : memref<1x8x16x128xbf16, #tpu.memory_space<any>> -> memref<8x16x128xbf16, #tpu.memory_space<any>>
      %c1_i32_77 = arith.constant 1 : i32
      %c0_i32_78 = arith.constant 0 : i32
      %c0_i32_79 = arith.constant 0 : i32
      %120 = tpu.memref_slice %arg10[%9, %c1_i32_77, %c0_i32_78, %c0_i32_79] : memref<2x10x16x128xbf16, #tpu.memory_space<vmem>> -> memref<1x8x16x128xbf16, #tpu.memory_space<vmem>>
      %121 = tpu.memref_squeeze %120 : memref<1x8x16x128xbf16, #tpu.memory_space<vmem>> -> memref<8x16x128xbf16, #tpu.memory_space<vmem>>
      %122 = tpu.memref_slice %arg11[%9, %c0_i32_74] : memref<2x3x!tpu.dma_semaphore, #tpu.memory_space<semaphore_mem>> -> memref<1x1x!tpu.dma_semaphore, #tpu.memory_space<semaphore_mem>>
      %123 = tpu.memref_squeeze %122 : memref<1x1x!tpu.dma_semaphore, #tpu.memory_space<semaphore_mem>> -> memref<!tpu.dma_semaphore, #tpu.memory_space<semaphore_mem>>
      tpu.enqueue_dma source(%119 : memref<8x16x128xbf16, #tpu.memory_space<any>>) target(%121 : memref<8x16x128xbf16, #tpu.memory_space<vmem>>) target_semaphore(%123 : memref<!tpu.dma_semaphore, #tpu.memory_space<semaphore_mem>>)
      %c0_i32_80 = arith.constant 0 : i32
      %124 = arith.cmpi sgt, %arg1, %c0_i32_80 : i32
      %125 = arith.extui %124 : i1 to i32
      %c0_i32_81 = arith.constant 0 : i32
      %126 = arith.cmpi ne, %125, %c0_i32_81 : i32
      scf.if %126 {
        %c1_i32_84 = arith.constant 1 : i32
        %130 = arith.subi %117, %c1_i32_84 : i32
        %c1_i32_85 = arith.constant 1 : i32
        %c0_i32_86 = arith.constant 0 : i32
        %c0_i32_87 = arith.constant 0 : i32
        %131 = tpu.memref_slice %arg2[%arg0, %130, %c0_i32_86, %c0_i32_87] : memref<2x16x16x128xbf16, #tpu.memory_space<any>> -> memref<1x1x16x128xbf16, #tpu.memory_space<any>>
        %132 = tpu.memref_squeeze %131 : memref<1x1x16x128xbf16, #tpu.memory_space<any>> -> memref<1x16x128xbf16, #tpu.memory_space<any>>
        %c0_i32_88 = arith.constant 0 : i32
        %c0_i32_89 = arith.constant 0 : i32
        %c0_i32_90 = arith.constant 0 : i32
        %133 = tpu.memref_slice %arg10[%9, %c0_i32_88, %c0_i32_89, %c0_i32_90] : memref<2x10x16x128xbf16, #tpu.memory_space<vmem>> -> memref<1x1x16x128xbf16, #tpu.memory_space<vmem>>
        %134 = tpu.memref_squeeze %133 : memref<1x1x16x128xbf16, #tpu.memory_space<vmem>> -> memref<1x16x128xbf16, #tpu.memory_space<vmem>>
        %135 = tpu.memref_slice %arg11[%9, %c1_i32_85] : memref<2x3x!tpu.dma_semaphore, #tpu.memory_space<semaphore_mem>> -> memref<1x1x!tpu.dma_semaphore, #tpu.memory_space<semaphore_mem>>
        %136 = tpu.memref_squeeze %135 : memref<1x1x!tpu.dma_semaphore, #tpu.memory_space<semaphore_mem>> -> memref<!tpu.dma_semaphore, #tpu.memory_space<semaphore_mem>>
        tpu.enqueue_dma source(%132 : memref<1x16x128xbf16, #tpu.memory_space<any>>) target(%134 : memref<1x16x128xbf16, #tpu.memory_space<vmem>>) target_semaphore(%136 : memref<!tpu.dma_semaphore, #tpu.memory_space<semaphore_mem>>)
      } else {
      }
      %c1_i32_82 = arith.constant 1 : i32
      %127 = arith.cmpi slt, %arg1, %c1_i32_82 : i32
      %128 = arith.extui %127 : i1 to i32
      %c0_i32_83 = arith.constant 0 : i32
      %129 = arith.cmpi ne, %128, %c0_i32_83 : i32
      scf.if %129 {
        %c8_i32_84 = arith.constant 8 : i32
        %130 = arith.addi %117, %c8_i32_84 : i32
        %c2_i32_85 = arith.constant 2 : i32
        %c0_i32_86 = arith.constant 0 : i32
        %c0_i32_87 = arith.constant 0 : i32
        %131 = tpu.memref_slice %arg2[%arg0, %130, %c0_i32_86, %c0_i32_87] : memref<2x16x16x128xbf16, #tpu.memory_space<any>> -> memref<1x1x16x128xbf16, #tpu.memory_space<any>>
        %132 = tpu.memref_squeeze %131 : memref<1x1x16x128xbf16, #tpu.memory_space<any>> -> memref<1x16x128xbf16, #tpu.memory_space<any>>
        %c9_i32 = arith.constant 9 : i32
        %c0_i32_88 = arith.constant 0 : i32
        %c0_i32_89 = arith.constant 0 : i32
        %133 = tpu.memref_slice %arg10[%9, %c9_i32, %c0_i32_88, %c0_i32_89] : memref<2x10x16x128xbf16, #tpu.memory_space<vmem>> -> memref<1x1x16x128xbf16, #tpu.memory_space<vmem>>
        %134 = tpu.memref_squeeze %133 : memref<1x1x16x128xbf16, #tpu.memory_space<vmem>> -> memref<1x16x128xbf16, #tpu.memory_space<vmem>>
        %135 = tpu.memref_slice %arg11[%9, %c2_i32_85] : memref<2x3x!tpu.dma_semaphore, #tpu.memory_space<semaphore_mem>> -> memref<1x1x!tpu.dma_semaphore, #tpu.memory_space<semaphore_mem>>
        %136 = tpu.memref_squeeze %135 : memref<1x1x!tpu.dma_semaphore, #tpu.memory_space<semaphore_mem>> -> memref<!tpu.dma_semaphore, #tpu.memory_space<semaphore_mem>>
        tpu.enqueue_dma source(%132 : memref<1x16x128xbf16, #tpu.memory_space<any>>) target(%134 : memref<1x16x128xbf16, #tpu.memory_space<vmem>>) target_semaphore(%136 : memref<!tpu.dma_semaphore, #tpu.memory_space<semaphore_mem>>)
      } else {
      }
    } else {
    }
    %c1_i32_5 = arith.constant 1 : i32
    %13 = arith.addi %arg1, %c1_i32_5 : i32
    %c2_i32_6 = arith.constant 2 : i32
    %14 = arith.cmpi slt, %13, %c2_i32_6 : i32
    %15 = arith.extui %14 : i1 to i32
    %c0_i32_7 = arith.constant 0 : i32
    %16 = arith.cmpi ne, %15, %c0_i32_7 : i32
    scf.if %16 {
      %c1_i32_65 = arith.constant 1 : i32
      %113 = arith.addi %arg1, %c1_i32_65 : i32
      %c1_i32_66 = arith.constant 1 : i32
      %114 = arith.subi %c1_i32_66, %9 : i32
      %c8_i32_67 = arith.constant 8 : i32
      %115 = arith.muli %113, %c8_i32_67 : i32
      %c0_i32_68 = arith.constant 0 : i32
      %c0_i32_69 = arith.constant 0 : i32
      %c0_i32_70 = arith.constant 0 : i32
      %116 = tpu.memref_slice %arg2[%arg0, %115, %c0_i32_69, %c0_i32_70] : memref<2x16x16x128xbf16, #tpu.memory_space<any>> -> memref<1x8x16x128xbf16, #tpu.memory_space<any>>
      %117 = tpu.memref_squeeze %116 : memref<1x8x16x128xbf16, #tpu.memory_space<any>> -> memref<8x16x128xbf16, #tpu.memory_space<any>>
      %c1_i32_71 = arith.constant 1 : i32
      %c0_i32_72 = arith.constant 0 : i32
      %c0_i32_73 = arith.constant 0 : i32
      %118 = tpu.memref_slice %arg10[%114, %c1_i32_71, %c0_i32_72, %c0_i32_73] : memref<2x10x16x128xbf16, #tpu.memory_space<vmem>> -> memref<1x8x16x128xbf16, #tpu.memory_space<vmem>>
      %119 = tpu.memref_squeeze %118 : memref<1x8x16x128xbf16, #tpu.memory_space<vmem>> -> memref<8x16x128xbf16, #tpu.memory_space<vmem>>
      %120 = tpu.memref_slice %arg11[%114, %c0_i32_68] : memref<2x3x!tpu.dma_semaphore, #tpu.memory_space<semaphore_mem>> -> memref<1x1x!tpu.dma_semaphore, #tpu.memory_space<semaphore_mem>>
      %121 = tpu.memref_squeeze %120 : memref<1x1x!tpu.dma_semaphore, #tpu.memory_space<semaphore_mem>> -> memref<!tpu.dma_semaphore, #tpu.memory_space<semaphore_mem>>
      tpu.enqueue_dma source(%117 : memref<8x16x128xbf16, #tpu.memory_space<any>>) target(%119 : memref<8x16x128xbf16, #tpu.memory_space<vmem>>) target_semaphore(%121 : memref<!tpu.dma_semaphore, #tpu.memory_space<semaphore_mem>>)
      %c0_i32_74 = arith.constant 0 : i32
      %122 = arith.cmpi sgt, %113, %c0_i32_74 : i32
      %123 = arith.extui %122 : i1 to i32
      %c0_i32_75 = arith.constant 0 : i32
      %124 = arith.cmpi ne, %123, %c0_i32_75 : i32
      scf.if %124 {
        %c1_i32_78 = arith.constant 1 : i32
        %128 = arith.subi %115, %c1_i32_78 : i32
        %c1_i32_79 = arith.constant 1 : i32
        %c0_i32_80 = arith.constant 0 : i32
        %c0_i32_81 = arith.constant 0 : i32
        %129 = tpu.memref_slice %arg2[%arg0, %128, %c0_i32_80, %c0_i32_81] : memref<2x16x16x128xbf16, #tpu.memory_space<any>> -> memref<1x1x16x128xbf16, #tpu.memory_space<any>>
        %130 = tpu.memref_squeeze %129 : memref<1x1x16x128xbf16, #tpu.memory_space<any>> -> memref<1x16x128xbf16, #tpu.memory_space<any>>
        %c0_i32_82 = arith.constant 0 : i32
        %c0_i32_83 = arith.constant 0 : i32
        %c0_i32_84 = arith.constant 0 : i32
        %131 = tpu.memref_slice %arg10[%114, %c0_i32_82, %c0_i32_83, %c0_i32_84] : memref<2x10x16x128xbf16, #tpu.memory_space<vmem>> -> memref<1x1x16x128xbf16, #tpu.memory_space<vmem>>
        %132 = tpu.memref_squeeze %131 : memref<1x1x16x128xbf16, #tpu.memory_space<vmem>> -> memref<1x16x128xbf16, #tpu.memory_space<vmem>>
        %133 = tpu.memref_slice %arg11[%114, %c1_i32_79] : memref<2x3x!tpu.dma_semaphore, #tpu.memory_space<semaphore_mem>> -> memref<1x1x!tpu.dma_semaphore, #tpu.memory_space<semaphore_mem>>
        %134 = tpu.memref_squeeze %133 : memref<1x1x!tpu.dma_semaphore, #tpu.memory_space<semaphore_mem>> -> memref<!tpu.dma_semaphore, #tpu.memory_space<semaphore_mem>>
        tpu.enqueue_dma source(%130 : memref<1x16x128xbf16, #tpu.memory_space<any>>) target(%132 : memref<1x16x128xbf16, #tpu.memory_space<vmem>>) target_semaphore(%134 : memref<!tpu.dma_semaphore, #tpu.memory_space<semaphore_mem>>)
      } else {
      }
      %c1_i32_76 = arith.constant 1 : i32
      %125 = arith.cmpi slt, %113, %c1_i32_76 : i32
      %126 = arith.extui %125 : i1 to i32
      %c0_i32_77 = arith.constant 0 : i32
      %127 = arith.cmpi ne, %126, %c0_i32_77 : i32
      scf.if %127 {
        %c8_i32_78 = arith.constant 8 : i32
        %128 = arith.addi %115, %c8_i32_78 : i32
        %c2_i32_79 = arith.constant 2 : i32
        %c0_i32_80 = arith.constant 0 : i32
        %c0_i32_81 = arith.constant 0 : i32
        %129 = tpu.memref_slice %arg2[%arg0, %128, %c0_i32_80, %c0_i32_81] : memref<2x16x16x128xbf16, #tpu.memory_space<any>> -> memref<1x1x16x128xbf16, #tpu.memory_space<any>>
        %130 = tpu.memref_squeeze %129 : memref<1x1x16x128xbf16, #tpu.memory_space<any>> -> memref<1x16x128xbf16, #tpu.memory_space<any>>
        %c9_i32 = arith.constant 9 : i32
        %c0_i32_82 = arith.constant 0 : i32
        %c0_i32_83 = arith.constant 0 : i32
        %131 = tpu.memref_slice %arg10[%114, %c9_i32, %c0_i32_82, %c0_i32_83] : memref<2x10x16x128xbf16, #tpu.memory_space<vmem>> -> memref<1x1x16x128xbf16, #tpu.memory_space<vmem>>
        %132 = tpu.memref_squeeze %131 : memref<1x1x16x128xbf16, #tpu.memory_space<vmem>> -> memref<1x16x128xbf16, #tpu.memory_space<vmem>>
        %133 = tpu.memref_slice %arg11[%114, %c2_i32_79] : memref<2x3x!tpu.dma_semaphore, #tpu.memory_space<semaphore_mem>> -> memref<1x1x!tpu.dma_semaphore, #tpu.memory_space<semaphore_mem>>
        %134 = tpu.memref_squeeze %133 : memref<1x1x!tpu.dma_semaphore, #tpu.memory_space<semaphore_mem>> -> memref<!tpu.dma_semaphore, #tpu.memory_space<semaphore_mem>>
        tpu.enqueue_dma source(%130 : memref<1x16x128xbf16, #tpu.memory_space<any>>) target(%132 : memref<1x16x128xbf16, #tpu.memory_space<vmem>>) target_semaphore(%134 : memref<!tpu.dma_semaphore, #tpu.memory_space<semaphore_mem>>)
      } else {
      }
    } else {
    }
    %c8_i32 = arith.constant 8 : i32
    %17 = arith.muli %arg1, %c8_i32 : i32
    %c0_i32_8 = arith.constant 0 : i32
    %c0_i32_9 = arith.constant 0 : i32
    %c0_i32_10 = arith.constant 0 : i32
    %18 = tpu.memref_slice %arg2[%arg0, %17, %c0_i32_9, %c0_i32_10] : memref<2x16x16x128xbf16, #tpu.memory_space<any>> -> memref<1x8x16x128xbf16, #tpu.memory_space<any>>
    %19 = tpu.memref_squeeze %18 : memref<1x8x16x128xbf16, #tpu.memory_space<any>> -> memref<8x16x128xbf16, #tpu.memory_space<any>>
    %c1_i32_11 = arith.constant 1 : i32
    %c0_i32_12 = arith.constant 0 : i32
    %c0_i32_13 = arith.constant 0 : i32
    %20 = tpu.memref_slice %arg10[%9, %c1_i32_11, %c0_i32_12, %c0_i32_13] : memref<2x10x16x128xbf16, #tpu.memory_space<vmem>> -> memref<1x8x16x128xbf16, #tpu.memory_space<vmem>>
    %21 = tpu.memref_squeeze %20 : memref<1x8x16x128xbf16, #tpu.memory_space<vmem>> -> memref<8x16x128xbf16, #tpu.memory_space<vmem>>
    %22 = tpu.memref_slice %arg11[%9, %c0_i32_8] : memref<2x3x!tpu.dma_semaphore, #tpu.memory_space<semaphore_mem>> -> memref<1x1x!tpu.dma_semaphore, #tpu.memory_space<semaphore_mem>>
    %23 = tpu.memref_squeeze %22 : memref<1x1x!tpu.dma_semaphore, #tpu.memory_space<semaphore_mem>> -> memref<!tpu.dma_semaphore, #tpu.memory_space<semaphore_mem>>
    tpu.wait_dma2 semaphore(%23 : memref<!tpu.dma_semaphore, #tpu.memory_space<semaphore_mem>>) src(%19 : memref<8x16x128xbf16, #tpu.memory_space<any>>) dst(%21 : memref<8x16x128xbf16, #tpu.memory_space<vmem>>)
    %c0_i32_14 = arith.constant 0 : i32
    %24 = arith.cmpi sgt, %arg1, %c0_i32_14 : i32
    %25 = arith.extui %24 : i1 to i32
    %c0_i32_15 = arith.constant 0 : i32
    %26 = arith.cmpi ne, %25, %c0_i32_15 : i32
    scf.if %26 {
      %c1_i32_65 = arith.constant 1 : i32
      %113 = arith.subi %17, %c1_i32_65 : i32
      %c1_i32_66 = arith.constant 1 : i32
      %c0_i32_67 = arith.constant 0 : i32
      %c0_i32_68 = arith.constant 0 : i32
      %114 = tpu.memref_slice %arg2[%arg0, %113, %c0_i32_67, %c0_i32_68] : memref<2x16x16x128xbf16, #tpu.memory_space<any>> -> memref<1x1x16x128xbf16, #tpu.memory_space<any>>
      %115 = tpu.memref_squeeze %114 : memref<1x1x16x128xbf16, #tpu.memory_space<any>> -> memref<1x16x128xbf16, #tpu.memory_space<any>>
      %c0_i32_69 = arith.constant 0 : i32
      %c0_i32_70 = arith.constant 0 : i32
      %c0_i32_71 = arith.constant 0 : i32
      %116 = tpu.memref_slice %arg10[%9, %c0_i32_69, %c0_i32_70, %c0_i32_71] : memref<2x10x16x128xbf16, #tpu.memory_space<vmem>> -> memref<1x1x16x128xbf16, #tpu.memory_space<vmem>>
      %117 = tpu.memref_squeeze %116 : memref<1x1x16x128xbf16, #tpu.memory_space<vmem>> -> memref<1x16x128xbf16, #tpu.memory_space<vmem>>
      %118 = tpu.memref_slice %arg11[%9, %c1_i32_66] : memref<2x3x!tpu.dma_semaphore, #tpu.memory_space<semaphore_mem>> -> memref<1x1x!tpu.dma_semaphore, #tpu.memory_space<semaphore_mem>>
      %119 = tpu.memref_squeeze %118 : memref<1x1x!tpu.dma_semaphore, #tpu.memory_space<semaphore_mem>> -> memref<!tpu.dma_semaphore, #tpu.memory_space<semaphore_mem>>
      tpu.wait_dma2 semaphore(%119 : memref<!tpu.dma_semaphore, #tpu.memory_space<semaphore_mem>>) src(%115 : memref<1x16x128xbf16, #tpu.memory_space<any>>) dst(%117 : memref<1x16x128xbf16, #tpu.memory_space<vmem>>)
    } else {
    }
    %c1_i32_16 = arith.constant 1 : i32
    %27 = arith.cmpi slt, %arg1, %c1_i32_16 : i32
    %28 = arith.extui %27 : i1 to i32
    %c0_i32_17 = arith.constant 0 : i32
    %29 = arith.cmpi ne, %28, %c0_i32_17 : i32
    scf.if %29 {
      %c8_i32_65 = arith.constant 8 : i32
      %113 = arith.addi %17, %c8_i32_65 : i32
      %c2_i32_66 = arith.constant 2 : i32
      %c0_i32_67 = arith.constant 0 : i32
      %c0_i32_68 = arith.constant 0 : i32
      %114 = tpu.memref_slice %arg2[%arg0, %113, %c0_i32_67, %c0_i32_68] : memref<2x16x16x128xbf16, #tpu.memory_space<any>> -> memref<1x1x16x128xbf16, #tpu.memory_space<any>>
      %115 = tpu.memref_squeeze %114 : memref<1x1x16x128xbf16, #tpu.memory_space<any>> -> memref<1x16x128xbf16, #tpu.memory_space<any>>
      %c9_i32 = arith.constant 9 : i32
      %c0_i32_69 = arith.constant 0 : i32
      %c0_i32_70 = arith.constant 0 : i32
      %116 = tpu.memref_slice %arg10[%9, %c9_i32, %c0_i32_69, %c0_i32_70] : memref<2x10x16x128xbf16, #tpu.memory_space<vmem>> -> memref<1x1x16x128xbf16, #tpu.memory_space<vmem>>
      %117 = tpu.memref_squeeze %116 : memref<1x1x16x128xbf16, #tpu.memory_space<vmem>> -> memref<1x16x128xbf16, #tpu.memory_space<vmem>>
      %118 = tpu.memref_slice %arg11[%9, %c2_i32_66] : memref<2x3x!tpu.dma_semaphore, #tpu.memory_space<semaphore_mem>> -> memref<1x1x!tpu.dma_semaphore, #tpu.memory_space<semaphore_mem>>
      %119 = tpu.memref_squeeze %118 : memref<1x1x!tpu.dma_semaphore, #tpu.memory_space<semaphore_mem>> -> memref<!tpu.dma_semaphore, #tpu.memory_space<semaphore_mem>>
      tpu.wait_dma2 semaphore(%119 : memref<!tpu.dma_semaphore, #tpu.memory_space<semaphore_mem>>) src(%115 : memref<1x16x128xbf16, #tpu.memory_space<any>>) dst(%117 : memref<1x16x128xbf16, #tpu.memory_space<vmem>>)
    } else {
    }
    %30 = arith.index_cast %9 : i32 to index
    %c0 = arith.constant 0 : index
    %c0_18 = arith.constant 0 : index
    %c0_19 = arith.constant 0 : index
    %31 = vector.load %arg10[%30, %c0, %c0_18, %c0_19] : memref<2x10x16x128xbf16, #tpu.memory_space<vmem>>, vector<1x10x16x128xbf16>
    %32 = vector.shape_cast %31 : vector<1x10x16x128xbf16> to vector<10x16x128xbf16>
    %33 = tpu.iota {dimensions = array<i32: 0>} : vector<10x1x1xi32>
    %c1_i32_20 = arith.constant 1 : i32
    %34 = vector.broadcast %c1_i32_20 : i32 to vector<10x1x1xi32>
    %35 = arith.cmpi sge, %33, %34 : vector<10x1x1xi32>
    %c0_i32_21 = arith.constant 0 : i32
    %36 = arith.cmpi sgt, %arg1, %c0_i32_21 : i32
    %37 = vector.broadcast %36 : i1 to vector<10x1x1xi1>
    %38 = arith.ori %35, %37 : vector<10x1x1xi1>
    %c8_i32_22 = arith.constant 8 : i32
    %39 = vector.broadcast %c8_i32_22 : i32 to vector<10x1x1xi32>
    %40 = arith.cmpi sle, %33, %39 : vector<10x1x1xi32>
    %c1_i32_23 = arith.constant 1 : i32
    %41 = arith.cmpi slt, %arg1, %c1_i32_23 : i32
    %42 = vector.broadcast %41 : i1 to vector<10x1x1xi1>
    %43 = arith.ori %40, %42 : vector<10x1x1xi1>
    %44 = arith.andi %38, %43 : vector<10x1x1xi1>
    %cst = arith.constant 0.000000e+00 : bf16
    %45 = vector.broadcast %cst : bf16 to vector<10x16x128xbf16>
    %46 = vector.shape_cast %44 : vector<10x1x1xi1> to vector<10x1x1xi1>
    %47 = vector.broadcast %46 : vector<10x1x1xi1> to vector<10x16x128xi1>
    %48 = arith.select %47, %32, %45 : vector<10x16x128xi1>, vector<10x16x128xbf16>
    %cst_24 = arith.constant 0.000000e+00 : bf16
    %49 = vector.broadcast %cst_24 : bf16 to vector<10x1x128xbf16>
    %50 = vector.extract_strided_slice %48 {offsets = [0, 0, 0], sizes = [10, 15, 128], strides = [1, 1, 1]} : vector<10x16x128xbf16> to vector<10x15x128xbf16>
    %51 = tpu.concatenate %49, %50 in 1 : vector<10x1x128xbf16>, vector<10x15x128xbf16> -> vector<10x16x128xbf16>
    %52 = vector.extract_strided_slice %48 {offsets = [0, 1, 0], sizes = [10, 15, 128], strides = [1, 1, 1]} : vector<10x16x128xbf16> to vector<10x15x128xbf16>
    %53 = tpu.concatenate %52, %49 in 1 : vector<10x15x128xbf16>, vector<10x1x128xbf16> -> vector<10x16x128xbf16>
    %54 = vector.shape_cast %51 : vector<10x16x128xbf16> to vector<160x128xbf16>
    %55 = vector.shape_cast %48 : vector<10x16x128xbf16> to vector<160x128xbf16>
    %56 = vector.shape_cast %53 : vector<10x16x128xbf16> to vector<160x128xbf16>
    %cst_25 = arith.constant 0.000000e+00 : f32
    %57 = vector.broadcast %cst_25 : f32 to vector<128x128xf32>
    %58 = vector.extract_strided_slice %54 {offsets = [0, 0], sizes = [128, 128], strides = [1, 1]} : vector<160x128xbf16> to vector<128x128xbf16>
    %c0_26 = arith.constant 0 : index
    %c0_27 = arith.constant 0 : index
    %59 = vector.load %arg3[%c0_26, %c0_27] : memref<1152x128xbf16, #tpu.memory_space<vmem>>, vector<128x128xbf16>
    %cst_28 = arith.constant dense<0.000000e+00> : vector<128x128xf32>
    %60 = tpu.matmul %58, %59, %cst_28 {dimension_numbers = #tpu.dot_dimension_numbers<[1], [0], [0], [1], [0, 0, 1, 1], [], []>} : vector<128x128xbf16>, vector<128x128xbf16>, vector<128x128xf32> -> vector<128x128xf32>
    %61 = arith.addf %57, %60 : vector<128x128xf32>
    %62 = vector.extract_strided_slice %55 {offsets = [0, 0], sizes = [128, 128], strides = [1, 1]} : vector<160x128xbf16> to vector<128x128xbf16>
    %c128 = arith.constant 128 : index
    %c0_29 = arith.constant 0 : index
    %63 = vector.load %arg3[%c128, %c0_29] : memref<1152x128xbf16, #tpu.memory_space<vmem>>, vector<128x128xbf16>
    %cst_30 = arith.constant dense<0.000000e+00> : vector<128x128xf32>
    %64 = tpu.matmul %62, %63, %cst_30 {dimension_numbers = #tpu.dot_dimension_numbers<[1], [0], [0], [1], [0, 0, 1, 1], [], []>} : vector<128x128xbf16>, vector<128x128xbf16>, vector<128x128xf32> -> vector<128x128xf32>
    %65 = arith.addf %61, %64 : vector<128x128xf32>
    %66 = vector.extract_strided_slice %56 {offsets = [0, 0], sizes = [128, 128], strides = [1, 1]} : vector<160x128xbf16> to vector<128x128xbf16>
    %c256 = arith.constant 256 : index
    %c0_31 = arith.constant 0 : index
    %67 = vector.load %arg3[%c256, %c0_31] : memref<1152x128xbf16, #tpu.memory_space<vmem>>, vector<128x128xbf16>
    %cst_32 = arith.constant dense<0.000000e+00> : vector<128x128xf32>
    %68 = tpu.matmul %66, %67, %cst_32 {dimension_numbers = #tpu.dot_dimension_numbers<[1], [0], [0], [1], [0, 0, 1, 1], [], []>} : vector<128x128xbf16>, vector<128x128xbf16>, vector<128x128xf32> -> vector<128x128xf32>
    %69 = arith.addf %65, %68 : vector<128x128xf32>
    %70 = vector.extract_strided_slice %54 {offsets = [16, 0], sizes = [128, 128], strides = [1, 1]} : vector<160x128xbf16> to vector<128x128xbf16>
    %c384 = arith.constant 384 : index
    %c0_33 = arith.constant 0 : index
    %71 = vector.load %arg3[%c384, %c0_33] : memref<1152x128xbf16, #tpu.memory_space<vmem>>, vector<128x128xbf16>
    %cst_34 = arith.constant dense<0.000000e+00> : vector<128x128xf32>
    %72 = tpu.matmul %70, %71, %cst_34 {dimension_numbers = #tpu.dot_dimension_numbers<[1], [0], [0], [1], [0, 0, 1, 1], [], []>} : vector<128x128xbf16>, vector<128x128xbf16>, vector<128x128xf32> -> vector<128x128xf32>
    %73 = arith.addf %69, %72 : vector<128x128xf32>
    %74 = vector.extract_strided_slice %55 {offsets = [16, 0], sizes = [128, 128], strides = [1, 1]} : vector<160x128xbf16> to vector<128x128xbf16>
    %c512 = arith.constant 512 : index
    %c0_35 = arith.constant 0 : index
    %75 = vector.load %arg3[%c512, %c0_35] : memref<1152x128xbf16, #tpu.memory_space<vmem>>, vector<128x128xbf16>
    %cst_36 = arith.constant dense<0.000000e+00> : vector<128x128xf32>
    %76 = tpu.matmul %74, %75, %cst_36 {dimension_numbers = #tpu.dot_dimension_numbers<[1], [0], [0], [1], [0, 0, 1, 1], [], []>} : vector<128x128xbf16>, vector<128x128xbf16>, vector<128x128xf32> -> vector<128x128xf32>
    %77 = arith.addf %73, %76 : vector<128x128xf32>
    %78 = vector.extract_strided_slice %56 {offsets = [16, 0], sizes = [128, 128], strides = [1, 1]} : vector<160x128xbf16> to vector<128x128xbf16>
    %c640 = arith.constant 640 : index
    %c0_37 = arith.constant 0 : index
    %79 = vector.load %arg3[%c640, %c0_37] : memref<1152x128xbf16, #tpu.memory_space<vmem>>, vector<128x128xbf16>
    %cst_38 = arith.constant dense<0.000000e+00> : vector<128x128xf32>
    %80 = tpu.matmul %78, %79, %cst_38 {dimension_numbers = #tpu.dot_dimension_numbers<[1], [0], [0], [1], [0, 0, 1, 1], [], []>} : vector<128x128xbf16>, vector<128x128xbf16>, vector<128x128xf32> -> vector<128x128xf32>
    %81 = arith.addf %77, %80 : vector<128x128xf32>
    %82 = vector.extract_strided_slice %54 {offsets = [32, 0], sizes = [128, 128], strides = [1, 1]} : vector<160x128xbf16> to vector<128x128xbf16>
    %c768 = arith.constant 768 : index
    %c0_39 = arith.constant 0 : index
    %83 = vector.load %arg3[%c768, %c0_39] : memref<1152x128xbf16, #tpu.memory_space<vmem>>, vector<128x128xbf16>
    %cst_40 = arith.constant dense<0.000000e+00> : vector<128x128xf32>
    %84 = tpu.matmul %82, %83, %cst_40 {dimension_numbers = #tpu.dot_dimension_numbers<[1], [0], [0], [1], [0, 0, 1, 1], [], []>} : vector<128x128xbf16>, vector<128x128xbf16>, vector<128x128xf32> -> vector<128x128xf32>
    %85 = arith.addf %81, %84 : vector<128x128xf32>
    %86 = vector.extract_strided_slice %55 {offsets = [32, 0], sizes = [128, 128], strides = [1, 1]} : vector<160x128xbf16> to vector<128x128xbf16>
    %c896 = arith.constant 896 : index
    %c0_41 = arith.constant 0 : index
    %87 = vector.load %arg3[%c896, %c0_41] : memref<1152x128xbf16, #tpu.memory_space<vmem>>, vector<128x128xbf16>
    %cst_42 = arith.constant dense<0.000000e+00> : vector<128x128xf32>
    %88 = tpu.matmul %86, %87, %cst_42 {dimension_numbers = #tpu.dot_dimension_numbers<[1], [0], [0], [1], [0, 0, 1, 1], [], []>} : vector<128x128xbf16>, vector<128x128xbf16>, vector<128x128xf32> -> vector<128x128xf32>
    %89 = arith.addf %85, %88 : vector<128x128xf32>
    %90 = vector.extract_strided_slice %56 {offsets = [32, 0], sizes = [128, 128], strides = [1, 1]} : vector<160x128xbf16> to vector<128x128xbf16>
    %c1024 = arith.constant 1024 : index
    %c0_43 = arith.constant 0 : index
    %91 = vector.load %arg3[%c1024, %c0_43] : memref<1152x128xbf16, #tpu.memory_space<vmem>>, vector<128x128xbf16>
    %cst_44 = arith.constant dense<0.000000e+00> : vector<128x128xf32>
    %92 = tpu.matmul %90, %91, %cst_44 {dimension_numbers = #tpu.dot_dimension_numbers<[1], [0], [0], [1], [0, 0, 1, 1], [], []>} : vector<128x128xbf16>, vector<128x128xbf16>, vector<128x128xf32> -> vector<128x128xf32>
    %93 = arith.addf %89, %92 : vector<128x128xf32>
    %c0_45 = arith.constant 0 : index
    %c0_46 = arith.constant 0 : index
    %94 = vector.load %arg4[%c0_45, %c0_46] : memref<1x128xf32, #tpu.memory_space<vmem>>, vector<1x128xf32>
    %95 = vector.broadcast %94 : vector<1x128xf32> to vector<128x128xf32>
    %96 = arith.addf %93, %95 : vector<128x128xf32>
    %c0_47 = arith.constant 0 : index
    %c0_48 = arith.constant 0 : index
    %c0_49 = arith.constant 0 : index
    %97 = vector.load %arg8[%c0_47, %c0_48, %c0_49] : memref<1x1x128xf32, #tpu.memory_space<vmem>>, vector<1x1x128xf32>
    %cst_50 = arith.constant dense<0.000000e+00> : vector<128xf32>
    %98 = vector.multi_reduction <add>, %96, %cst_50 [0] : vector<128x128xf32> to vector<128xf32>
    %99 = vector.shape_cast %98 : vector<128xf32> to vector<1x128xf32>
    %100 = vector.shape_cast %99 : vector<1x128xf32> to vector<1x1x128xf32>
    %101 = arith.addf %97, %100 : vector<1x1x128xf32>
    %c0_51 = arith.constant 0 : index
    %c0_52 = arith.constant 0 : index
    %c0_53 = arith.constant 0 : index
    %102 = vector.load %arg8[%c0_51, %c0_52, %c0_53] : memref<1x1x128xf32, #tpu.memory_space<vmem>>, vector<1x1x128xf32>
    tpu.vector_store %arg8[%c0_51, %c0_52, %c0_53], %101 {strides = array<i32>} : memref<1x1x128xf32, #tpu.memory_space<vmem>>, vector<1x1x128xf32>,
    %c0_54 = arith.constant 0 : index
    %c0_55 = arith.constant 0 : index
    %c0_56 = arith.constant 0 : index
    %103 = vector.load %arg9[%c0_54, %c0_55, %c0_56] : memref<1x1x128xf32, #tpu.memory_space<vmem>>, vector<1x1x128xf32>
    %104 = arith.mulf %96, %96 : vector<128x128xf32>
    %cst_57 = arith.constant dense<0.000000e+00> : vector<128xf32>
    %105 = vector.multi_reduction <add>, %104, %cst_57 [0] : vector<128x128xf32> to vector<128xf32>
    %106 = vector.shape_cast %105 : vector<128xf32> to vector<1x128xf32>
    %107 = vector.shape_cast %106 : vector<1x128xf32> to vector<1x1x128xf32>
    %108 = arith.addf %103, %107 : vector<1x1x128xf32>
    %c0_58 = arith.constant 0 : index
    %c0_59 = arith.constant 0 : index
    %c0_60 = arith.constant 0 : index
    %109 = vector.load %arg9[%c0_58, %c0_59, %c0_60] : memref<1x1x128xf32, #tpu.memory_space<vmem>>, vector<1x1x128xf32>
    tpu.vector_store %arg9[%c0_58, %c0_59, %c0_60], %108 {strides = array<i32>} : memref<1x1x128xf32, #tpu.memory_space<vmem>>, vector<1x1x128xf32>,
    %110 = vector.shape_cast %96 : vector<128x128xf32> to vector<1x8x16x128xf32>
    %111 = arith.truncf %110 : vector<1x8x16x128xf32> to vector<1x8x16x128xbf16>
    %c0_61 = arith.constant 0 : index
    %c0_62 = arith.constant 0 : index
    %c0_63 = arith.constant 0 : index
    %c0_64 = arith.constant 0 : index
    %112 = vector.load %arg7[%c0_61, %c0_62, %c0_63, %c0_64] : memref<1x8x16x128xbf16, #tpu.memory_space<vmem>>, vector<1x8x16x128xbf16>
    tpu.vector_store %arg7[%c0_61, %c0_62, %c0_63, %c0_64], %111 {strides = array<i32>} : memref<1x8x16x128xbf16, #tpu.memory_space<vmem>>, vector<1x8x16x128xbf16>,
    return
  }
  func.func @transform_1(%arg0: i32, %arg1: i32) -> (i32, i32) {
    %c0_i32 = arith.constant 0 : i32
    %c0_i32_0 = arith.constant 0 : i32
    %c0_i32_1 = arith.constant 0 : i32
    return %c0_i32, %c0_i32_0 : i32, i32
  }
  func.func @transform_2(%arg0: i32, %arg1: i32) -> (i32, i32) {
    %c0_i32 = arith.constant 0 : i32
    %c0_i32_0 = arith.constant 0 : i32
    %c0_i32_1 = arith.constant 0 : i32
    return %c0_i32, %c0_i32_0 : i32, i32
  }
  func.func @transform_3(%arg0: i32, %arg1: i32) -> (i32, i32) {
    %c0_i32 = arith.constant 0 : i32
    %c0_i32_0 = arith.constant 0 : i32
    %c0_i32_1 = arith.constant 0 : i32
    return %c0_i32, %c0_i32_0 : i32, i32
  }
  func.func @transform_4(%arg0: i32, %arg1: i32) -> (i32, i32) {
    %c0_i32 = arith.constant 0 : i32
    %c0_i32_0 = arith.constant 0 : i32
    %c0_i32_1 = arith.constant 0 : i32
    return %c0_i32, %c0_i32_0 : i32, i32
  }
  func.func @transform_5(%arg0: i32, %arg1: i32) -> (i32, i32, i32, i32) {
    %c0_i32 = arith.constant 0 : i32
    %c0_i32_0 = arith.constant 0 : i32
    %c0_i32_1 = arith.constant 0 : i32
    return %arg0, %arg1, %c0_i32, %c0_i32_0 : i32, i32, i32, i32
  }
  func.func @transform_6(%arg0: i32, %arg1: i32) -> (i32, i32, i32) {
    %c0_i32 = arith.constant 0 : i32
    %c0_i32_0 = arith.constant 0 : i32
    %c0_i32_1 = arith.constant 0 : i32
    return %arg0, %c0_i32, %c0_i32_0 : i32, i32, i32
  }
  func.func @transform_7(%arg0: i32, %arg1: i32) -> (i32, i32, i32) {
    %c0_i32 = arith.constant 0 : i32
    %c0_i32_0 = arith.constant 0 : i32
    %c0_i32_1 = arith.constant 0 : i32
    return %arg0, %c0_i32, %c0_i32_0 : i32, i32, i32
  }
}

module attributes {stable_mosaic.version = 11 : i64} {
  func.func @conv_fused_kernel(%arg0: i32, %arg1: i32, %arg2: memref<2x16x16x128xbf16, #tpu.memory_space<any>>, %arg3: memref<1152x128xbf16, #tpu.memory_space<vmem>>, %arg4: memref<1x128xf32, #tpu.memory_space<vmem>>, %arg5: memref<1x128xf32, #tpu.memory_space<vmem>>, %arg6: memref<1x128xf32, #tpu.memory_space<vmem>>, %arg7: memref<1x8x16x128xbf16, #tpu.memory_space<vmem>>, %arg8: memref<1x1x128xf32, #tpu.memory_space<vmem>>, %arg9: memref<1x1x128xf32, #tpu.memory_space<vmem>>, %arg10: memref<2x10x16x128xbf16, #tpu.memory_space<vmem>>, %arg11: memref<2x3x!tpu.dma_semaphore, #tpu.memory_space<semaphore_mem>>) attributes {dimension_semantics = [#tpu.dimension_semantics<parallel>, #tpu.dimension_semantics<arbitrary>], iteration_bounds = array<i64: 2, 2>, scalar_prefetch = 0 : i64, scratch_operands = 2 : i64, tpu.core_type = #tpu.core_type<tc>, window_params = [{}, {pipeline_mode = #tpu.pipeline_mode<synchronous>, transform_indices = @transform_1, window_bounds = array<i64: 1152, 128>}, {pipeline_mode = #tpu.pipeline_mode<synchronous>, transform_indices = @transform_2, window_bounds = array<i64: 1, 128>}, {pipeline_mode = #tpu.pipeline_mode<synchronous>, transform_indices = @transform_3, window_bounds = array<i64: 1, 128>}, {pipeline_mode = #tpu.pipeline_mode<synchronous>, transform_indices = @transform_4, window_bounds = array<i64: 1, 128>}, {transform_indices = @transform_5, window_bounds = array<i64: 1, 8, 16, 128>}, {transform_indices = @transform_6, window_bounds = array<i64: 1, 1, 128>}, {transform_indices = @transform_7, window_bounds = array<i64: 1, 1, 128>}]} {
    %c2_i32 = arith.constant 2 : i32
    %c0_i32 = arith.constant 0 : i32
    %0 = arith.cmpi eq, %c2_i32, %c0_i32 : i32
    %c1_i32 = arith.constant 1 : i32
    %1 = arith.select %0, %c1_i32, %c2_i32 : i32
    %2 = arith.remsi %arg1, %1 : i32
    %c0_i32_0 = arith.constant 0 : i32
    %3 = arith.cmpi ne, %2, %c0_i32_0 : i32
    %c0_i32_1 = arith.constant 0 : i32
    %4 = arith.cmpi slt, %2, %c0_i32_1 : i32
    %c0_i32_2 = arith.constant 0 : i32
    %5 = arith.cmpi slt, %1, %c0_i32_2 : i32
    %6 = arith.xori %4, %5 : i1
    %7 = arith.andi %6, %3 : i1
    %8 = arith.addi %2, %1 : i32
    %9 = arith.select %7, %8, %2 : i32
    %c0_i32_3 = arith.constant 0 : i32
    %10 = arith.cmpi eq, %arg1, %c0_i32_3 : i32
    %11 = arith.extui %10 : i1 to i32
    %c0_i32_4 = arith.constant 0 : i32
    %12 = arith.cmpi ne, %11, %c0_i32_4 : i32
    scf.if %12 {
      %cst_70 = arith.constant 0.000000e+00 : f32
      %125 = vector.broadcast %cst_70 : f32 to vector<1x1x128xf32>
      %c0_71 = arith.constant 0 : index
      %c0_72 = arith.constant 0 : index
      %c0_73 = arith.constant 0 : index
      %126 = vector.load %arg8[%c0_71, %c0_72, %c0_73] : memref<1x1x128xf32, #tpu.memory_space<vmem>>, vector<1x1x128xf32>
      tpu.vector_store %arg8[%c0_71, %c0_72, %c0_73], %125 {strides = array<i32>} : memref<1x1x128xf32, #tpu.memory_space<vmem>>, vector<1x1x128xf32>,
      %cst_74 = arith.constant 0.000000e+00 : f32
      %127 = vector.broadcast %cst_74 : f32 to vector<1x1x128xf32>
      %c0_75 = arith.constant 0 : index
      %c0_76 = arith.constant 0 : index
      %c0_77 = arith.constant 0 : index
      %128 = vector.load %arg9[%c0_75, %c0_76, %c0_77] : memref<1x1x128xf32, #tpu.memory_space<vmem>>, vector<1x1x128xf32>
      tpu.vector_store %arg9[%c0_75, %c0_76, %c0_77], %127 {strides = array<i32>} : memref<1x1x128xf32, #tpu.memory_space<vmem>>, vector<1x1x128xf32>,
      %c8_i32_78 = arith.constant 8 : i32
      %129 = arith.muli %arg1, %c8_i32_78 : i32
      %c0_i32_79 = arith.constant 0 : i32
      %c0_i32_80 = arith.constant 0 : i32
      %c0_i32_81 = arith.constant 0 : i32
      %130 = tpu.memref_slice %arg2[%arg0, %129, %c0_i32_80, %c0_i32_81] : memref<2x16x16x128xbf16, #tpu.memory_space<any>> -> memref<1x8x16x128xbf16, #tpu.memory_space<any>>
      %131 = tpu.memref_squeeze %130 : memref<1x8x16x128xbf16, #tpu.memory_space<any>> -> memref<8x16x128xbf16, #tpu.memory_space<any>>
      %c1_i32_82 = arith.constant 1 : i32
      %c0_i32_83 = arith.constant 0 : i32
      %c0_i32_84 = arith.constant 0 : i32
      %132 = tpu.memref_slice %arg10[%9, %c1_i32_82, %c0_i32_83, %c0_i32_84] : memref<2x10x16x128xbf16, #tpu.memory_space<vmem>> -> memref<1x8x16x128xbf16, #tpu.memory_space<vmem>>
      %133 = tpu.memref_squeeze %132 : memref<1x8x16x128xbf16, #tpu.memory_space<vmem>> -> memref<8x16x128xbf16, #tpu.memory_space<vmem>>
      %134 = tpu.memref_slice %arg11[%9, %c0_i32_79] : memref<2x3x!tpu.dma_semaphore, #tpu.memory_space<semaphore_mem>> -> memref<1x1x!tpu.dma_semaphore, #tpu.memory_space<semaphore_mem>>
      %135 = tpu.memref_squeeze %134 : memref<1x1x!tpu.dma_semaphore, #tpu.memory_space<semaphore_mem>> -> memref<!tpu.dma_semaphore, #tpu.memory_space<semaphore_mem>>
      tpu.enqueue_dma source(%131 : memref<8x16x128xbf16, #tpu.memory_space<any>>) target(%133 : memref<8x16x128xbf16, #tpu.memory_space<vmem>>) target_semaphore(%135 : memref<!tpu.dma_semaphore, #tpu.memory_space<semaphore_mem>>)
      %c0_i32_85 = arith.constant 0 : i32
      %136 = arith.cmpi sgt, %arg1, %c0_i32_85 : i32
      %137 = arith.extui %136 : i1 to i32
      %c0_i32_86 = arith.constant 0 : i32
      %138 = arith.cmpi ne, %137, %c0_i32_86 : i32
      scf.if %138 {
        %c1_i32_89 = arith.constant 1 : i32
        %142 = arith.subi %129, %c1_i32_89 : i32
        %c1_i32_90 = arith.constant 1 : i32
        %c0_i32_91 = arith.constant 0 : i32
        %c0_i32_92 = arith.constant 0 : i32
        %143 = tpu.memref_slice %arg2[%arg0, %142, %c0_i32_91, %c0_i32_92] : memref<2x16x16x128xbf16, #tpu.memory_space<any>> -> memref<1x1x16x128xbf16, #tpu.memory_space<any>>
        %144 = tpu.memref_squeeze %143 : memref<1x1x16x128xbf16, #tpu.memory_space<any>> -> memref<1x16x128xbf16, #tpu.memory_space<any>>
        %c0_i32_93 = arith.constant 0 : i32
        %c0_i32_94 = arith.constant 0 : i32
        %c0_i32_95 = arith.constant 0 : i32
        %145 = tpu.memref_slice %arg10[%9, %c0_i32_93, %c0_i32_94, %c0_i32_95] : memref<2x10x16x128xbf16, #tpu.memory_space<vmem>> -> memref<1x1x16x128xbf16, #tpu.memory_space<vmem>>
        %146 = tpu.memref_squeeze %145 : memref<1x1x16x128xbf16, #tpu.memory_space<vmem>> -> memref<1x16x128xbf16, #tpu.memory_space<vmem>>
        %147 = tpu.memref_slice %arg11[%9, %c1_i32_90] : memref<2x3x!tpu.dma_semaphore, #tpu.memory_space<semaphore_mem>> -> memref<1x1x!tpu.dma_semaphore, #tpu.memory_space<semaphore_mem>>
        %148 = tpu.memref_squeeze %147 : memref<1x1x!tpu.dma_semaphore, #tpu.memory_space<semaphore_mem>> -> memref<!tpu.dma_semaphore, #tpu.memory_space<semaphore_mem>>
        tpu.enqueue_dma source(%144 : memref<1x16x128xbf16, #tpu.memory_space<any>>) target(%146 : memref<1x16x128xbf16, #tpu.memory_space<vmem>>) target_semaphore(%148 : memref<!tpu.dma_semaphore, #tpu.memory_space<semaphore_mem>>)
      } else {
      }
      %c1_i32_87 = arith.constant 1 : i32
      %139 = arith.cmpi slt, %arg1, %c1_i32_87 : i32
      %140 = arith.extui %139 : i1 to i32
      %c0_i32_88 = arith.constant 0 : i32
      %141 = arith.cmpi ne, %140, %c0_i32_88 : i32
      scf.if %141 {
        %c8_i32_89 = arith.constant 8 : i32
        %142 = arith.addi %129, %c8_i32_89 : i32
        %c2_i32_90 = arith.constant 2 : i32
        %c0_i32_91 = arith.constant 0 : i32
        %c0_i32_92 = arith.constant 0 : i32
        %143 = tpu.memref_slice %arg2[%arg0, %142, %c0_i32_91, %c0_i32_92] : memref<2x16x16x128xbf16, #tpu.memory_space<any>> -> memref<1x1x16x128xbf16, #tpu.memory_space<any>>
        %144 = tpu.memref_squeeze %143 : memref<1x1x16x128xbf16, #tpu.memory_space<any>> -> memref<1x16x128xbf16, #tpu.memory_space<any>>
        %c9_i32 = arith.constant 9 : i32
        %c0_i32_93 = arith.constant 0 : i32
        %c0_i32_94 = arith.constant 0 : i32
        %145 = tpu.memref_slice %arg10[%9, %c9_i32, %c0_i32_93, %c0_i32_94] : memref<2x10x16x128xbf16, #tpu.memory_space<vmem>> -> memref<1x1x16x128xbf16, #tpu.memory_space<vmem>>
        %146 = tpu.memref_squeeze %145 : memref<1x1x16x128xbf16, #tpu.memory_space<vmem>> -> memref<1x16x128xbf16, #tpu.memory_space<vmem>>
        %147 = tpu.memref_slice %arg11[%9, %c2_i32_90] : memref<2x3x!tpu.dma_semaphore, #tpu.memory_space<semaphore_mem>> -> memref<1x1x!tpu.dma_semaphore, #tpu.memory_space<semaphore_mem>>
        %148 = tpu.memref_squeeze %147 : memref<1x1x!tpu.dma_semaphore, #tpu.memory_space<semaphore_mem>> -> memref<!tpu.dma_semaphore, #tpu.memory_space<semaphore_mem>>
        tpu.enqueue_dma source(%144 : memref<1x16x128xbf16, #tpu.memory_space<any>>) target(%146 : memref<1x16x128xbf16, #tpu.memory_space<vmem>>) target_semaphore(%148 : memref<!tpu.dma_semaphore, #tpu.memory_space<semaphore_mem>>)
      } else {
      }
    } else {
    }
    %c1_i32_5 = arith.constant 1 : i32
    %13 = arith.addi %arg1, %c1_i32_5 : i32
    %c2_i32_6 = arith.constant 2 : i32
    %14 = arith.cmpi slt, %13, %c2_i32_6 : i32
    %15 = arith.extui %14 : i1 to i32
    %c0_i32_7 = arith.constant 0 : i32
    %16 = arith.cmpi ne, %15, %c0_i32_7 : i32
    scf.if %16 {
      %c1_i32_70 = arith.constant 1 : i32
      %125 = arith.addi %arg1, %c1_i32_70 : i32
      %c1_i32_71 = arith.constant 1 : i32
      %126 = arith.subi %c1_i32_71, %9 : i32
      %c8_i32_72 = arith.constant 8 : i32
      %127 = arith.muli %125, %c8_i32_72 : i32
      %c0_i32_73 = arith.constant 0 : i32
      %c0_i32_74 = arith.constant 0 : i32
      %c0_i32_75 = arith.constant 0 : i32
      %128 = tpu.memref_slice %arg2[%arg0, %127, %c0_i32_74, %c0_i32_75] : memref<2x16x16x128xbf16, #tpu.memory_space<any>> -> memref<1x8x16x128xbf16, #tpu.memory_space<any>>
      %129 = tpu.memref_squeeze %128 : memref<1x8x16x128xbf16, #tpu.memory_space<any>> -> memref<8x16x128xbf16, #tpu.memory_space<any>>
      %c1_i32_76 = arith.constant 1 : i32
      %c0_i32_77 = arith.constant 0 : i32
      %c0_i32_78 = arith.constant 0 : i32
      %130 = tpu.memref_slice %arg10[%126, %c1_i32_76, %c0_i32_77, %c0_i32_78] : memref<2x10x16x128xbf16, #tpu.memory_space<vmem>> -> memref<1x8x16x128xbf16, #tpu.memory_space<vmem>>
      %131 = tpu.memref_squeeze %130 : memref<1x8x16x128xbf16, #tpu.memory_space<vmem>> -> memref<8x16x128xbf16, #tpu.memory_space<vmem>>
      %132 = tpu.memref_slice %arg11[%126, %c0_i32_73] : memref<2x3x!tpu.dma_semaphore, #tpu.memory_space<semaphore_mem>> -> memref<1x1x!tpu.dma_semaphore, #tpu.memory_space<semaphore_mem>>
      %133 = tpu.memref_squeeze %132 : memref<1x1x!tpu.dma_semaphore, #tpu.memory_space<semaphore_mem>> -> memref<!tpu.dma_semaphore, #tpu.memory_space<semaphore_mem>>
      tpu.enqueue_dma source(%129 : memref<8x16x128xbf16, #tpu.memory_space<any>>) target(%131 : memref<8x16x128xbf16, #tpu.memory_space<vmem>>) target_semaphore(%133 : memref<!tpu.dma_semaphore, #tpu.memory_space<semaphore_mem>>)
      %c0_i32_79 = arith.constant 0 : i32
      %134 = arith.cmpi sgt, %125, %c0_i32_79 : i32
      %135 = arith.extui %134 : i1 to i32
      %c0_i32_80 = arith.constant 0 : i32
      %136 = arith.cmpi ne, %135, %c0_i32_80 : i32
      scf.if %136 {
        %c1_i32_83 = arith.constant 1 : i32
        %140 = arith.subi %127, %c1_i32_83 : i32
        %c1_i32_84 = arith.constant 1 : i32
        %c0_i32_85 = arith.constant 0 : i32
        %c0_i32_86 = arith.constant 0 : i32
        %141 = tpu.memref_slice %arg2[%arg0, %140, %c0_i32_85, %c0_i32_86] : memref<2x16x16x128xbf16, #tpu.memory_space<any>> -> memref<1x1x16x128xbf16, #tpu.memory_space<any>>
        %142 = tpu.memref_squeeze %141 : memref<1x1x16x128xbf16, #tpu.memory_space<any>> -> memref<1x16x128xbf16, #tpu.memory_space<any>>
        %c0_i32_87 = arith.constant 0 : i32
        %c0_i32_88 = arith.constant 0 : i32
        %c0_i32_89 = arith.constant 0 : i32
        %143 = tpu.memref_slice %arg10[%126, %c0_i32_87, %c0_i32_88, %c0_i32_89] : memref<2x10x16x128xbf16, #tpu.memory_space<vmem>> -> memref<1x1x16x128xbf16, #tpu.memory_space<vmem>>
        %144 = tpu.memref_squeeze %143 : memref<1x1x16x128xbf16, #tpu.memory_space<vmem>> -> memref<1x16x128xbf16, #tpu.memory_space<vmem>>
        %145 = tpu.memref_slice %arg11[%126, %c1_i32_84] : memref<2x3x!tpu.dma_semaphore, #tpu.memory_space<semaphore_mem>> -> memref<1x1x!tpu.dma_semaphore, #tpu.memory_space<semaphore_mem>>
        %146 = tpu.memref_squeeze %145 : memref<1x1x!tpu.dma_semaphore, #tpu.memory_space<semaphore_mem>> -> memref<!tpu.dma_semaphore, #tpu.memory_space<semaphore_mem>>
        tpu.enqueue_dma source(%142 : memref<1x16x128xbf16, #tpu.memory_space<any>>) target(%144 : memref<1x16x128xbf16, #tpu.memory_space<vmem>>) target_semaphore(%146 : memref<!tpu.dma_semaphore, #tpu.memory_space<semaphore_mem>>)
      } else {
      }
      %c1_i32_81 = arith.constant 1 : i32
      %137 = arith.cmpi slt, %125, %c1_i32_81 : i32
      %138 = arith.extui %137 : i1 to i32
      %c0_i32_82 = arith.constant 0 : i32
      %139 = arith.cmpi ne, %138, %c0_i32_82 : i32
      scf.if %139 {
        %c8_i32_83 = arith.constant 8 : i32
        %140 = arith.addi %127, %c8_i32_83 : i32
        %c2_i32_84 = arith.constant 2 : i32
        %c0_i32_85 = arith.constant 0 : i32
        %c0_i32_86 = arith.constant 0 : i32
        %141 = tpu.memref_slice %arg2[%arg0, %140, %c0_i32_85, %c0_i32_86] : memref<2x16x16x128xbf16, #tpu.memory_space<any>> -> memref<1x1x16x128xbf16, #tpu.memory_space<any>>
        %142 = tpu.memref_squeeze %141 : memref<1x1x16x128xbf16, #tpu.memory_space<any>> -> memref<1x16x128xbf16, #tpu.memory_space<any>>
        %c9_i32 = arith.constant 9 : i32
        %c0_i32_87 = arith.constant 0 : i32
        %c0_i32_88 = arith.constant 0 : i32
        %143 = tpu.memref_slice %arg10[%126, %c9_i32, %c0_i32_87, %c0_i32_88] : memref<2x10x16x128xbf16, #tpu.memory_space<vmem>> -> memref<1x1x16x128xbf16, #tpu.memory_space<vmem>>
        %144 = tpu.memref_squeeze %143 : memref<1x1x16x128xbf16, #tpu.memory_space<vmem>> -> memref<1x16x128xbf16, #tpu.memory_space<vmem>>
        %145 = tpu.memref_slice %arg11[%126, %c2_i32_84] : memref<2x3x!tpu.dma_semaphore, #tpu.memory_space<semaphore_mem>> -> memref<1x1x!tpu.dma_semaphore, #tpu.memory_space<semaphore_mem>>
        %146 = tpu.memref_squeeze %145 : memref<1x1x!tpu.dma_semaphore, #tpu.memory_space<semaphore_mem>> -> memref<!tpu.dma_semaphore, #tpu.memory_space<semaphore_mem>>
        tpu.enqueue_dma source(%142 : memref<1x16x128xbf16, #tpu.memory_space<any>>) target(%144 : memref<1x16x128xbf16, #tpu.memory_space<vmem>>) target_semaphore(%146 : memref<!tpu.dma_semaphore, #tpu.memory_space<semaphore_mem>>)
      } else {
      }
    } else {
    }
    %c8_i32 = arith.constant 8 : i32
    %17 = arith.muli %arg1, %c8_i32 : i32
    %c0_i32_8 = arith.constant 0 : i32
    %c0_i32_9 = arith.constant 0 : i32
    %c0_i32_10 = arith.constant 0 : i32
    %18 = tpu.memref_slice %arg2[%arg0, %17, %c0_i32_9, %c0_i32_10] : memref<2x16x16x128xbf16, #tpu.memory_space<any>> -> memref<1x8x16x128xbf16, #tpu.memory_space<any>>
    %19 = tpu.memref_squeeze %18 : memref<1x8x16x128xbf16, #tpu.memory_space<any>> -> memref<8x16x128xbf16, #tpu.memory_space<any>>
    %c1_i32_11 = arith.constant 1 : i32
    %c0_i32_12 = arith.constant 0 : i32
    %c0_i32_13 = arith.constant 0 : i32
    %20 = tpu.memref_slice %arg10[%9, %c1_i32_11, %c0_i32_12, %c0_i32_13] : memref<2x10x16x128xbf16, #tpu.memory_space<vmem>> -> memref<1x8x16x128xbf16, #tpu.memory_space<vmem>>
    %21 = tpu.memref_squeeze %20 : memref<1x8x16x128xbf16, #tpu.memory_space<vmem>> -> memref<8x16x128xbf16, #tpu.memory_space<vmem>>
    %22 = tpu.memref_slice %arg11[%9, %c0_i32_8] : memref<2x3x!tpu.dma_semaphore, #tpu.memory_space<semaphore_mem>> -> memref<1x1x!tpu.dma_semaphore, #tpu.memory_space<semaphore_mem>>
    %23 = tpu.memref_squeeze %22 : memref<1x1x!tpu.dma_semaphore, #tpu.memory_space<semaphore_mem>> -> memref<!tpu.dma_semaphore, #tpu.memory_space<semaphore_mem>>
    tpu.wait_dma2 semaphore(%23 : memref<!tpu.dma_semaphore, #tpu.memory_space<semaphore_mem>>) src(%19 : memref<8x16x128xbf16, #tpu.memory_space<any>>) dst(%21 : memref<8x16x128xbf16, #tpu.memory_space<vmem>>)
    %c0_i32_14 = arith.constant 0 : i32
    %24 = arith.cmpi sgt, %arg1, %c0_i32_14 : i32
    %25 = arith.extui %24 : i1 to i32
    %c0_i32_15 = arith.constant 0 : i32
    %26 = arith.cmpi ne, %25, %c0_i32_15 : i32
    scf.if %26 {
      %c1_i32_70 = arith.constant 1 : i32
      %125 = arith.subi %17, %c1_i32_70 : i32
      %c1_i32_71 = arith.constant 1 : i32
      %c0_i32_72 = arith.constant 0 : i32
      %c0_i32_73 = arith.constant 0 : i32
      %126 = tpu.memref_slice %arg2[%arg0, %125, %c0_i32_72, %c0_i32_73] : memref<2x16x16x128xbf16, #tpu.memory_space<any>> -> memref<1x1x16x128xbf16, #tpu.memory_space<any>>
      %127 = tpu.memref_squeeze %126 : memref<1x1x16x128xbf16, #tpu.memory_space<any>> -> memref<1x16x128xbf16, #tpu.memory_space<any>>
      %c0_i32_74 = arith.constant 0 : i32
      %c0_i32_75 = arith.constant 0 : i32
      %c0_i32_76 = arith.constant 0 : i32
      %128 = tpu.memref_slice %arg10[%9, %c0_i32_74, %c0_i32_75, %c0_i32_76] : memref<2x10x16x128xbf16, #tpu.memory_space<vmem>> -> memref<1x1x16x128xbf16, #tpu.memory_space<vmem>>
      %129 = tpu.memref_squeeze %128 : memref<1x1x16x128xbf16, #tpu.memory_space<vmem>> -> memref<1x16x128xbf16, #tpu.memory_space<vmem>>
      %130 = tpu.memref_slice %arg11[%9, %c1_i32_71] : memref<2x3x!tpu.dma_semaphore, #tpu.memory_space<semaphore_mem>> -> memref<1x1x!tpu.dma_semaphore, #tpu.memory_space<semaphore_mem>>
      %131 = tpu.memref_squeeze %130 : memref<1x1x!tpu.dma_semaphore, #tpu.memory_space<semaphore_mem>> -> memref<!tpu.dma_semaphore, #tpu.memory_space<semaphore_mem>>
      tpu.wait_dma2 semaphore(%131 : memref<!tpu.dma_semaphore, #tpu.memory_space<semaphore_mem>>) src(%127 : memref<1x16x128xbf16, #tpu.memory_space<any>>) dst(%129 : memref<1x16x128xbf16, #tpu.memory_space<vmem>>)
    } else {
    }
    %c1_i32_16 = arith.constant 1 : i32
    %27 = arith.cmpi slt, %arg1, %c1_i32_16 : i32
    %28 = arith.extui %27 : i1 to i32
    %c0_i32_17 = arith.constant 0 : i32
    %29 = arith.cmpi ne, %28, %c0_i32_17 : i32
    scf.if %29 {
      %c8_i32_70 = arith.constant 8 : i32
      %125 = arith.addi %17, %c8_i32_70 : i32
      %c2_i32_71 = arith.constant 2 : i32
      %c0_i32_72 = arith.constant 0 : i32
      %c0_i32_73 = arith.constant 0 : i32
      %126 = tpu.memref_slice %arg2[%arg0, %125, %c0_i32_72, %c0_i32_73] : memref<2x16x16x128xbf16, #tpu.memory_space<any>> -> memref<1x1x16x128xbf16, #tpu.memory_space<any>>
      %127 = tpu.memref_squeeze %126 : memref<1x1x16x128xbf16, #tpu.memory_space<any>> -> memref<1x16x128xbf16, #tpu.memory_space<any>>
      %c9_i32 = arith.constant 9 : i32
      %c0_i32_74 = arith.constant 0 : i32
      %c0_i32_75 = arith.constant 0 : i32
      %128 = tpu.memref_slice %arg10[%9, %c9_i32, %c0_i32_74, %c0_i32_75] : memref<2x10x16x128xbf16, #tpu.memory_space<vmem>> -> memref<1x1x16x128xbf16, #tpu.memory_space<vmem>>
      %129 = tpu.memref_squeeze %128 : memref<1x1x16x128xbf16, #tpu.memory_space<vmem>> -> memref<1x16x128xbf16, #tpu.memory_space<vmem>>
      %130 = tpu.memref_slice %arg11[%9, %c2_i32_71] : memref<2x3x!tpu.dma_semaphore, #tpu.memory_space<semaphore_mem>> -> memref<1x1x!tpu.dma_semaphore, #tpu.memory_space<semaphore_mem>>
      %131 = tpu.memref_squeeze %130 : memref<1x1x!tpu.dma_semaphore, #tpu.memory_space<semaphore_mem>> -> memref<!tpu.dma_semaphore, #tpu.memory_space<semaphore_mem>>
      tpu.wait_dma2 semaphore(%131 : memref<!tpu.dma_semaphore, #tpu.memory_space<semaphore_mem>>) src(%127 : memref<1x16x128xbf16, #tpu.memory_space<any>>) dst(%129 : memref<1x16x128xbf16, #tpu.memory_space<vmem>>)
    } else {
    }
    %30 = arith.index_cast %9 : i32 to index
    %c0 = arith.constant 0 : index
    %c0_18 = arith.constant 0 : index
    %c0_19 = arith.constant 0 : index
    %31 = vector.load %arg10[%30, %c0, %c0_18, %c0_19] : memref<2x10x16x128xbf16, #tpu.memory_space<vmem>>, vector<1x10x16x128xbf16>
    %32 = vector.shape_cast %31 : vector<1x10x16x128xbf16> to vector<10x16x128xbf16>
    %33 = tpu.iota {dimensions = array<i32: 0>} : vector<10x1x1xi32>
    %c1_i32_20 = arith.constant 1 : i32
    %34 = vector.broadcast %c1_i32_20 : i32 to vector<10x1x1xi32>
    %35 = arith.cmpi sge, %33, %34 : vector<10x1x1xi32>
    %c0_i32_21 = arith.constant 0 : i32
    %36 = arith.cmpi sgt, %arg1, %c0_i32_21 : i32
    %37 = vector.broadcast %36 : i1 to vector<10x1x1xi1>
    %38 = arith.ori %35, %37 : vector<10x1x1xi1>
    %c8_i32_22 = arith.constant 8 : i32
    %39 = vector.broadcast %c8_i32_22 : i32 to vector<10x1x1xi32>
    %40 = arith.cmpi sle, %33, %39 : vector<10x1x1xi32>
    %c1_i32_23 = arith.constant 1 : i32
    %41 = arith.cmpi slt, %arg1, %c1_i32_23 : i32
    %42 = vector.broadcast %41 : i1 to vector<10x1x1xi1>
    %43 = arith.ori %40, %42 : vector<10x1x1xi1>
    %44 = arith.andi %38, %43 : vector<10x1x1xi1>
    %45 = arith.extf %32 : vector<10x16x128xbf16> to vector<10x16x128xf32>
    %c0_24 = arith.constant 0 : index
    %c0_25 = arith.constant 0 : index
    %46 = vector.load %arg5[%c0_24, %c0_25] : memref<1x128xf32, #tpu.memory_space<vmem>>, vector<1x128xf32>
    %47 = vector.shape_cast %46 : vector<1x128xf32> to vector<1x1x128xf32>
    %48 = vector.broadcast %47 : vector<1x1x128xf32> to vector<10x16x128xf32>
    %49 = arith.mulf %45, %48 : vector<10x16x128xf32>
    %c0_26 = arith.constant 0 : index
    %c0_27 = arith.constant 0 : index
    %50 = vector.load %arg6[%c0_26, %c0_27] : memref<1x128xf32, #tpu.memory_space<vmem>>, vector<1x128xf32>
    %51 = vector.shape_cast %50 : vector<1x128xf32> to vector<1x1x128xf32>
    %52 = vector.broadcast %51 : vector<1x1x128xf32> to vector<10x16x128xf32>
    %53 = arith.addf %49, %52 : vector<10x16x128xf32>
    %cst = arith.constant 0.000000e+00 : f32
    %54 = vector.broadcast %cst : f32 to vector<10x16x128xf32>
    %55 = arith.maximumf %53, %54 : vector<10x16x128xf32>
    %cst_28 = arith.constant 0.000000e+00 : f32
    %56 = vector.shape_cast %44 : vector<10x1x1xi1> to vector<10x1x1xi1>
    %57 = vector.broadcast %56 : vector<10x1x1xi1> to vector<10x16x128xi1>
    %58 = vector.broadcast %cst_28 : f32 to vector<10x16x128xf32>
    %59 = arith.select %57, %55, %58 : vector<10x16x128xi1>, vector<10x16x128xf32>
    %60 = arith.truncf %59 : vector<10x16x128xf32> to vector<10x16x128xbf16>
    %cst_29 = arith.constant 0.000000e+00 : bf16
    %61 = vector.broadcast %cst_29 : bf16 to vector<10x1x128xbf16>
    %62 = vector.extract_strided_slice %60 {offsets = [0, 0, 0], sizes = [10, 15, 128], strides = [1, 1, 1]} : vector<10x16x128xbf16> to vector<10x15x128xbf16>
    %63 = tpu.concatenate %61, %62 in 1 : vector<10x1x128xbf16>, vector<10x15x128xbf16> -> vector<10x16x128xbf16>
    %64 = vector.extract_strided_slice %60 {offsets = [0, 1, 0], sizes = [10, 15, 128], strides = [1, 1, 1]} : vector<10x16x128xbf16> to vector<10x15x128xbf16>
    %65 = tpu.concatenate %64, %61 in 1 : vector<10x15x128xbf16>, vector<10x1x128xbf16> -> vector<10x16x128xbf16>
    %66 = vector.shape_cast %63 : vector<10x16x128xbf16> to vector<160x128xbf16>
    %67 = vector.shape_cast %60 : vector<10x16x128xbf16> to vector<160x128xbf16>
    %68 = vector.shape_cast %65 : vector<10x16x128xbf16> to vector<160x128xbf16>
    %cst_30 = arith.constant 0.000000e+00 : f32
    %69 = vector.broadcast %cst_30 : f32 to vector<128x128xf32>
    %70 = vector.extract_strided_slice %66 {offsets = [0, 0], sizes = [128, 128], strides = [1, 1]} : vector<160x128xbf16> to vector<128x128xbf16>
    %c0_31 = arith.constant 0 : index
    %c0_32 = arith.constant 0 : index
    %71 = vector.load %arg3[%c0_31, %c0_32] : memref<1152x128xbf16, #tpu.memory_space<vmem>>, vector<128x128xbf16>
    %cst_33 = arith.constant dense<0.000000e+00> : vector<128x128xf32>
    %72 = tpu.matmul %70, %71, %cst_33 {dimension_numbers = #tpu.dot_dimension_numbers<[1], [0], [0], [1], [0, 0, 1, 1], [], []>} : vector<128x128xbf16>, vector<128x128xbf16>, vector<128x128xf32> -> vector<128x128xf32>
    %73 = arith.addf %69, %72 : vector<128x128xf32>
    %74 = vector.extract_strided_slice %67 {offsets = [0, 0], sizes = [128, 128], strides = [1, 1]} : vector<160x128xbf16> to vector<128x128xbf16>
    %c128 = arith.constant 128 : index
    %c0_34 = arith.constant 0 : index
    %75 = vector.load %arg3[%c128, %c0_34] : memref<1152x128xbf16, #tpu.memory_space<vmem>>, vector<128x128xbf16>
    %cst_35 = arith.constant dense<0.000000e+00> : vector<128x128xf32>
    %76 = tpu.matmul %74, %75, %cst_35 {dimension_numbers = #tpu.dot_dimension_numbers<[1], [0], [0], [1], [0, 0, 1, 1], [], []>} : vector<128x128xbf16>, vector<128x128xbf16>, vector<128x128xf32> -> vector<128x128xf32>
    %77 = arith.addf %73, %76 : vector<128x128xf32>
    %78 = vector.extract_strided_slice %68 {offsets = [0, 0], sizes = [128, 128], strides = [1, 1]} : vector<160x128xbf16> to vector<128x128xbf16>
    %c256 = arith.constant 256 : index
    %c0_36 = arith.constant 0 : index
    %79 = vector.load %arg3[%c256, %c0_36] : memref<1152x128xbf16, #tpu.memory_space<vmem>>, vector<128x128xbf16>
    %cst_37 = arith.constant dense<0.000000e+00> : vector<128x128xf32>
    %80 = tpu.matmul %78, %79, %cst_37 {dimension_numbers = #tpu.dot_dimension_numbers<[1], [0], [0], [1], [0, 0, 1, 1], [], []>} : vector<128x128xbf16>, vector<128x128xbf16>, vector<128x128xf32> -> vector<128x128xf32>
    %81 = arith.addf %77, %80 : vector<128x128xf32>
    %82 = vector.extract_strided_slice %66 {offsets = [16, 0], sizes = [128, 128], strides = [1, 1]} : vector<160x128xbf16> to vector<128x128xbf16>
    %c384 = arith.constant 384 : index
    %c0_38 = arith.constant 0 : index
    %83 = vector.load %arg3[%c384, %c0_38] : memref<1152x128xbf16, #tpu.memory_space<vmem>>, vector<128x128xbf16>
    %cst_39 = arith.constant dense<0.000000e+00> : vector<128x128xf32>
    %84 = tpu.matmul %82, %83, %cst_39 {dimension_numbers = #tpu.dot_dimension_numbers<[1], [0], [0], [1], [0, 0, 1, 1], [], []>} : vector<128x128xbf16>, vector<128x128xbf16>, vector<128x128xf32> -> vector<128x128xf32>
    %85 = arith.addf %81, %84 : vector<128x128xf32>
    %86 = vector.extract_strided_slice %67 {offsets = [16, 0], sizes = [128, 128], strides = [1, 1]} : vector<160x128xbf16> to vector<128x128xbf16>
    %c512 = arith.constant 512 : index
    %c0_40 = arith.constant 0 : index
    %87 = vector.load %arg3[%c512, %c0_40] : memref<1152x128xbf16, #tpu.memory_space<vmem>>, vector<128x128xbf16>
    %cst_41 = arith.constant dense<0.000000e+00> : vector<128x128xf32>
    %88 = tpu.matmul %86, %87, %cst_41 {dimension_numbers = #tpu.dot_dimension_numbers<[1], [0], [0], [1], [0, 0, 1, 1], [], []>} : vector<128x128xbf16>, vector<128x128xbf16>, vector<128x128xf32> -> vector<128x128xf32>
    %89 = arith.addf %85, %88 : vector<128x128xf32>
    %90 = vector.extract_strided_slice %68 {offsets = [16, 0], sizes = [128, 128], strides = [1, 1]} : vector<160x128xbf16> to vector<128x128xbf16>
    %c640 = arith.constant 640 : index
    %c0_42 = arith.constant 0 : index
    %91 = vector.load %arg3[%c640, %c0_42] : memref<1152x128xbf16, #tpu.memory_space<vmem>>, vector<128x128xbf16>
    %cst_43 = arith.constant dense<0.000000e+00> : vector<128x128xf32>
    %92 = tpu.matmul %90, %91, %cst_43 {dimension_numbers = #tpu.dot_dimension_numbers<[1], [0], [0], [1], [0, 0, 1, 1], [], []>} : vector<128x128xbf16>, vector<128x128xbf16>, vector<128x128xf32> -> vector<128x128xf32>
    %93 = arith.addf %89, %92 : vector<128x128xf32>
    %94 = vector.extract_strided_slice %66 {offsets = [32, 0], sizes = [128, 128], strides = [1, 1]} : vector<160x128xbf16> to vector<128x128xbf16>
    %c768 = arith.constant 768 : index
    %c0_44 = arith.constant 0 : index
    %95 = vector.load %arg3[%c768, %c0_44] : memref<1152x128xbf16, #tpu.memory_space<vmem>>, vector<128x128xbf16>
    %cst_45 = arith.constant dense<0.000000e+00> : vector<128x128xf32>
    %96 = tpu.matmul %94, %95, %cst_45 {dimension_numbers = #tpu.dot_dimension_numbers<[1], [0], [0], [1], [0, 0, 1, 1], [], []>} : vector<128x128xbf16>, vector<128x128xbf16>, vector<128x128xf32> -> vector<128x128xf32>
    %97 = arith.addf %93, %96 : vector<128x128xf32>
    %98 = vector.extract_strided_slice %67 {offsets = [32, 0], sizes = [128, 128], strides = [1, 1]} : vector<160x128xbf16> to vector<128x128xbf16>
    %c896 = arith.constant 896 : index
    %c0_46 = arith.constant 0 : index
    %99 = vector.load %arg3[%c896, %c0_46] : memref<1152x128xbf16, #tpu.memory_space<vmem>>, vector<128x128xbf16>
    %cst_47 = arith.constant dense<0.000000e+00> : vector<128x128xf32>
    %100 = tpu.matmul %98, %99, %cst_47 {dimension_numbers = #tpu.dot_dimension_numbers<[1], [0], [0], [1], [0, 0, 1, 1], [], []>} : vector<128x128xbf16>, vector<128x128xbf16>, vector<128x128xf32> -> vector<128x128xf32>
    %101 = arith.addf %97, %100 : vector<128x128xf32>
    %102 = vector.extract_strided_slice %68 {offsets = [32, 0], sizes = [128, 128], strides = [1, 1]} : vector<160x128xbf16> to vector<128x128xbf16>
    %c1024 = arith.constant 1024 : index
    %c0_48 = arith.constant 0 : index
    %103 = vector.load %arg3[%c1024, %c0_48] : memref<1152x128xbf16, #tpu.memory_space<vmem>>, vector<128x128xbf16>
    %cst_49 = arith.constant dense<0.000000e+00> : vector<128x128xf32>
    %104 = tpu.matmul %102, %103, %cst_49 {dimension_numbers = #tpu.dot_dimension_numbers<[1], [0], [0], [1], [0, 0, 1, 1], [], []>} : vector<128x128xbf16>, vector<128x128xbf16>, vector<128x128xf32> -> vector<128x128xf32>
    %105 = arith.addf %101, %104 : vector<128x128xf32>
    %c0_50 = arith.constant 0 : index
    %c0_51 = arith.constant 0 : index
    %106 = vector.load %arg4[%c0_50, %c0_51] : memref<1x128xf32, #tpu.memory_space<vmem>>, vector<1x128xf32>
    %107 = vector.broadcast %106 : vector<1x128xf32> to vector<128x128xf32>
    %108 = arith.addf %105, %107 : vector<128x128xf32>
    %c0_52 = arith.constant 0 : index
    %c0_53 = arith.constant 0 : index
    %c0_54 = arith.constant 0 : index
    %109 = vector.load %arg8[%c0_52, %c0_53, %c0_54] : memref<1x1x128xf32, #tpu.memory_space<vmem>>, vector<1x1x128xf32>
    %cst_55 = arith.constant dense<0.000000e+00> : vector<128xf32>
    %110 = vector.multi_reduction <add>, %108, %cst_55 [0] : vector<128x128xf32> to vector<128xf32>
    %111 = vector.shape_cast %110 : vector<128xf32> to vector<1x128xf32>
    %112 = vector.shape_cast %111 : vector<1x128xf32> to vector<1x1x128xf32>
    %113 = arith.addf %109, %112 : vector<1x1x128xf32>
    %c0_56 = arith.constant 0 : index
    %c0_57 = arith.constant 0 : index
    %c0_58 = arith.constant 0 : index
    %114 = vector.load %arg8[%c0_56, %c0_57, %c0_58] : memref<1x1x128xf32, #tpu.memory_space<vmem>>, vector<1x1x128xf32>
    tpu.vector_store %arg8[%c0_56, %c0_57, %c0_58], %113 {strides = array<i32>} : memref<1x1x128xf32, #tpu.memory_space<vmem>>, vector<1x1x128xf32>,
    %c0_59 = arith.constant 0 : index
    %c0_60 = arith.constant 0 : index
    %c0_61 = arith.constant 0 : index
    %115 = vector.load %arg9[%c0_59, %c0_60, %c0_61] : memref<1x1x128xf32, #tpu.memory_space<vmem>>, vector<1x1x128xf32>
    %116 = arith.mulf %108, %108 : vector<128x128xf32>
    %cst_62 = arith.constant dense<0.000000e+00> : vector<128xf32>
    %117 = vector.multi_reduction <add>, %116, %cst_62 [0] : vector<128x128xf32> to vector<128xf32>
    %118 = vector.shape_cast %117 : vector<128xf32> to vector<1x128xf32>
    %119 = vector.shape_cast %118 : vector<1x128xf32> to vector<1x1x128xf32>
    %120 = arith.addf %115, %119 : vector<1x1x128xf32>
    %c0_63 = arith.constant 0 : index
    %c0_64 = arith.constant 0 : index
    %c0_65 = arith.constant 0 : index
    %121 = vector.load %arg9[%c0_63, %c0_64, %c0_65] : memref<1x1x128xf32, #tpu.memory_space<vmem>>, vector<1x1x128xf32>
    tpu.vector_store %arg9[%c0_63, %c0_64, %c0_65], %120 {strides = array<i32>} : memref<1x1x128xf32, #tpu.memory_space<vmem>>, vector<1x1x128xf32>,
    %122 = vector.shape_cast %108 : vector<128x128xf32> to vector<1x8x16x128xf32>
    %123 = arith.truncf %122 : vector<1x8x16x128xf32> to vector<1x8x16x128xbf16>
    %c0_66 = arith.constant 0 : index
    %c0_67 = arith.constant 0 : index
    %c0_68 = arith.constant 0 : index
    %c0_69 = arith.constant 0 : index
    %124 = vector.load %arg7[%c0_66, %c0_67, %c0_68, %c0_69] : memref<1x8x16x128xbf16, #tpu.memory_space<vmem>>, vector<1x8x16x128xbf16>
    tpu.vector_store %arg7[%c0_66, %c0_67, %c0_68, %c0_69], %123 {strides = array<i32>} : memref<1x8x16x128xbf16, #tpu.memory_space<vmem>>, vector<1x8x16x128xbf16>,
    return
  }
  func.func @transform_1(%arg0: i32, %arg1: i32) -> (i32, i32) {
    %c0_i32 = arith.constant 0 : i32
    %c0_i32_0 = arith.constant 0 : i32
    %c0_i32_1 = arith.constant 0 : i32
    return %c0_i32, %c0_i32_0 : i32, i32
  }
  func.func @transform_2(%arg0: i32, %arg1: i32) -> (i32, i32) {
    %c0_i32 = arith.constant 0 : i32
    %c0_i32_0 = arith.constant 0 : i32
    %c0_i32_1 = arith.constant 0 : i32
    return %c0_i32, %c0_i32_0 : i32, i32
  }
  func.func @transform_3(%arg0: i32, %arg1: i32) -> (i32, i32) {
    %c0_i32 = arith.constant 0 : i32
    %c0_i32_0 = arith.constant 0 : i32
    %c0_i32_1 = arith.constant 0 : i32
    return %c0_i32, %c0_i32_0 : i32, i32
  }
  func.func @transform_4(%arg0: i32, %arg1: i32) -> (i32, i32) {
    %c0_i32 = arith.constant 0 : i32
    %c0_i32_0 = arith.constant 0 : i32
    %c0_i32_1 = arith.constant 0 : i32
    return %c0_i32, %c0_i32_0 : i32, i32
  }
  func.func @transform_5(%arg0: i32, %arg1: i32) -> (i32, i32, i32, i32) {
    %c0_i32 = arith.constant 0 : i32
    %c0_i32_0 = arith.constant 0 : i32
    %c0_i32_1 = arith.constant 0 : i32
    return %arg0, %arg1, %c0_i32, %c0_i32_0 : i32, i32, i32, i32
  }
  func.func @transform_6(%arg0: i32, %arg1: i32) -> (i32, i32, i32) {
    %c0_i32 = arith.constant 0 : i32
    %c0_i32_0 = arith.constant 0 : i32
    %c0_i32_1 = arith.constant 0 : i32
    return %arg0, %c0_i32, %c0_i32_0 : i32, i32, i32
  }
  func.func @transform_7(%arg0: i32, %arg1: i32) -> (i32, i32, i32) {
    %c0_i32 = arith.constant 0 : i32
    %c0_i32_0 = arith.constant 0 : i32
    %c0_i32_1 = arith.constant 0 : i32
    return %arg0, %c0_i32, %c0_i32_0 : i32, i32, i32
  }
}

module attributes {stable_mosaic.version = 11 : i64} {
  func.func @bn_act_kernel(%arg0: i32, %arg1: i32, %arg2: memref<1x16x16x128xbf16, #tpu.memory_space<vmem>>, %arg3: memref<1x8xf32, #tpu.memory_space<vmem>>, %arg4: memref<1x8xf32, #tpu.memory_space<vmem>>, %arg5: memref<1x16x16x8xf32, #tpu.memory_space<vmem>>) attributes {dimension_semantics = [#tpu.dimension_semantics<parallel>, #tpu.dimension_semantics<parallel>], iteration_bounds = array<i64: 2, 1>, scalar_prefetch = 0 : i64, scratch_operands = 0 : i64, tpu.core_type = #tpu.core_type<tc>, window_params = [{transform_indices = @transform_0, window_bounds = array<i64: 1, 16, 16, 128>}, {pipeline_mode = #tpu.pipeline_mode<synchronous>, transform_indices = @transform_1, window_bounds = array<i64: 1, 8>}, {pipeline_mode = #tpu.pipeline_mode<synchronous>, transform_indices = @transform_2, window_bounds = array<i64: 1, 8>}, {transform_indices = @transform_3, window_bounds = array<i64: 1, 16, 16, 8>}]} {
    %c0 = arith.constant 0 : index
    %c0_0 = arith.constant 0 : index
    %c0_1 = arith.constant 0 : index
    %c0_2 = arith.constant 0 : index
    %0 = vector.load %arg2[%c0, %c0_0, %c0_1, %c0_2] : memref<1x16x16x128xbf16, #tpu.memory_space<vmem>>, vector<1x16x16x128xbf16>
    %1 = vector.extract_strided_slice %0 {offsets = [0, 0, 0, 0], sizes = [1, 16, 16, 8], strides = [1, 1, 1, 1]} : vector<1x16x16x128xbf16> to vector<1x16x16x8xbf16>
    %2 = arith.extf %1 : vector<1x16x16x8xbf16> to vector<1x16x16x8xf32>
    %c0_3 = arith.constant 0 : index
    %c0_4 = arith.constant 0 : index
    %3 = vector.load %arg3[%c0_3, %c0_4] : memref<1x8xf32, #tpu.memory_space<vmem>>, vector<1x8xf32>
    %4 = vector.shape_cast %3 : vector<1x8xf32> to vector<1x1x1x8xf32>
    %5 = vector.broadcast %4 : vector<1x1x1x8xf32> to vector<1x16x16x8xf32>
    %6 = arith.mulf %2, %5 : vector<1x16x16x8xf32>
    %c0_5 = arith.constant 0 : index
    %c0_6 = arith.constant 0 : index
    %7 = vector.load %arg4[%c0_5, %c0_6] : memref<1x8xf32, #tpu.memory_space<vmem>>, vector<1x8xf32>
    %8 = vector.shape_cast %7 : vector<1x8xf32> to vector<1x1x1x8xf32>
    %9 = vector.broadcast %8 : vector<1x1x1x8xf32> to vector<1x16x16x8xf32>
    %10 = arith.addf %6, %9 : vector<1x16x16x8xf32>
    %cst = arith.constant 0.000000e+00 : f32
    %11 = vector.broadcast %cst : f32 to vector<1x16x16x8xf32>
    %12 = arith.maximumf %10, %11 : vector<1x16x16x8xf32>
    %c0_7 = arith.constant 0 : index
    %c0_8 = arith.constant 0 : index
    %c0_9 = arith.constant 0 : index
    %c0_10 = arith.constant 0 : index
    %13 = vector.load %arg5[%c0_7, %c0_8, %c0_9, %c0_10] : memref<1x16x16x8xf32, #tpu.memory_space<vmem>>, vector<1x16x16x8xf32>
    tpu.vector_store %arg5[%c0_7, %c0_8, %c0_9, %c0_10], %12 {strides = array<i32>} : memref<1x16x16x8xf32, #tpu.memory_space<vmem>>, vector<1x16x16x8xf32>,
    return
  }
  func.func @transform_0(%arg0: i32, %arg1: i32) -> (i32, i32, i32, i32) {
    %c0_i32 = arith.constant 0 : i32
    %c0_i32_0 = arith.constant 0 : i32
    %c0_i32_1 = arith.constant 0 : i32
    return %arg0, %arg1, %c0_i32, %c0_i32_0 : i32, i32, i32, i32
  }
  func.func @transform_1(%arg0: i32, %arg1: i32) -> (i32, i32) {
    %c0_i32 = arith.constant 0 : i32
    %c0_i32_0 = arith.constant 0 : i32
    %c0_i32_1 = arith.constant 0 : i32
    return %c0_i32, %c0_i32_0 : i32, i32
  }
  func.func @transform_2(%arg0: i32, %arg1: i32) -> (i32, i32) {
    %c0_i32 = arith.constant 0 : i32
    %c0_i32_0 = arith.constant 0 : i32
    %c0_i32_1 = arith.constant 0 : i32
    return %c0_i32, %c0_i32_0 : i32, i32
  }
  func.func @transform_3(%arg0: i32, %arg1: i32) -> (i32, i32, i32, i32) {
    %c0_i32 = arith.constant 0 : i32
    %c0_i32_0 = arith.constant 0 : i32
    %c0_i32_1 = arith.constant 0 : i32
    return %arg0, %arg1, %c0_i32, %c0_i32_0 : i32, i32, i32, i32
  }
}

</mosaic_0001>

<llo_original>
// kernel: double_conv.5
$region0: #{double_conv.5}
  #allocation0 [shape = 'u32[]', space=smem, size = 0x4, offset = 0x4, fixed_abs, tag = 'smem constant byte address 0x4 - core index']
  #allocation1 [shape = 'u32[144,128]{1,0:T(1,128)}', space=vmem, size = 0x12000, scoped, tag = 'internal scratch']
  %s0 = inlined_call_operand.hbm [shape: bf16[2,16,16,128], index: 0, kind: input, shape index: {}]
  %s1 = inlined_call_operand.hbm [shape: f32[1,8], index: 1, kind: input, shape index: {}]
  %s2 = inlined_call_operand.hbm [shape: f32[1,8], index: 2, kind: input, shape index: {}]
  %s3 = inlined_call_operand.hbm [shape: f32[2,16,16,8], index: 3, kind: output, shape index: {}]
  %s4 = sld [smem:[#allocation0]]
  $region57: #{double_conv.5} parent=0
    _
  %s6 = ssub.s32 1, %s4
  %s7 = scalar_select 0, %s6, %s4
  $region1: #{double_conv.5} parent=0
    #allocation2 [shape = 'u8[131072]{0}', space=vmem, size = 0x20000, scoped, tag = 'input window, operand 0']
    #allocation3 [shape = 's32[2]{0}', space=sflag, size = 0x8, scoped, tag = 'scoped memory for double_conv.5']
    #allocation4 [shape = 's32[2]{0}', space=sflag, size = 0x8, scoped, tag = 'scoped memory for double_conv.5']
    #allocation5 [shape = 'u8[512]{0}', space=vmem, size = 0x400, scoped, tag = 'input window, operand 1, single buffered']
    #allocation6 [shape = 's32[1]{0}', space=sflag, size = 0x4, scoped, tag = 'scoped memory for double_conv.5']
    #allocation7 [shape = 'u8[512]{0}', space=vmem, size = 0x400, scoped, tag = 'input window, operand 2, single buffered']
    #allocation8 [shape = 'u8[262144]{0}', space=vmem, size = 0x40000, scoped, tag = 'output window, operand 0']
    %8 = vsyncpa [#allocation3], 0
    %s9 = scalar_lea.sflag [#allocation3], 1
    %10 = vsyncpa %s9, 0
    %11 = vsyncpa [#allocation6], 0
    %12 = vsyncpa [#allocation4], 0
    %s13 = scalar_lea.sflag [#allocation4], 1
    %14 = vsyncpa %s13, 0
    loop: start=0, step=1, limit=4
    $region2: #{double_conv.5} parent=1 // loop_pre_header
      _
    $region3: #{double_conv.5} parent=1 // loop_header
      %s16 = sphi 0, %s20
      %p17 = scmp.ge.s32.totalorder %s16, 4
      %s23 = sphi 0, %s35
      %s24 = sphi 0, %s31
      %s25 = sphi 0, %s23
      %s26 = sphi 0, %s24
      %s27 = sphi 0, %s25
      %s28 = sphi 0, %s26
      %s40 = sphi 0, %s42
      %s43 = sphi 0, %s40
      %s44 = sphi 0, %s43
      %s60 = sphi 0, %s44
      %s64 = sphi 0, %s64
      %s66 = sphi 0, %s64
      %s67 = sphi 0, %s66
      %s81 = sphi 0, %s67
      %s85 = sphi 0, %s85
      %s87 = sphi 0, %s85
      %s88 = sphi 0, %s87
      %s102 = sphi 0, %s88
      %s110 = sphi 0, %s112
      %s113 = sphi 0, %s110
      %s114 = sphi 0, %s113
      %s130 = sphi 0, %s114
    $region4: #{double_conv.5} parent=1 // loop_header_branch
      %19 = sbr.rel (%p17) target = $region8
    $region5: #{double_conv.5} parent=1 // loop_body
      %s21 = ssub.s32 %s16, 1
      %s22 = ssub.s32 %s16, 2
      %s29 = sadd.s32 1, %s24
      %p30 = scmp.ge.s32.totalorder %s29, 1
      %s31 = scalar_select %p30, 0, %s29
      %s32 = sadd.s32 1, %s23
      %s33 = scalar_select %p30, %s32, %s23
      %p34 = scmp.ge.s32.totalorder %s33, 2
      %s35 = scalar_select %p34, 0, %s33
      %s36 = ssub.s32 %s23, %s35
      %s37 = ssub.s32 %s24, %s31
      %s38 = sor.u32 %s36, %s37
      %p39 = scmp.eq.s32.totalorder %s38, 0
      %s41 = sadd.s32 %s40, 1
      %s42 = scalar_select %p39, %s40, %s41
      %p45 = pneg %p39
      %p46 = scmp.eq.s32.totalorder %s16, 1
      %p47 = por %p45, %p46
      %p48 = scmp.ne.s32.totalorder %s40, %s43
      %p49 = scmp.eq.s32.totalorder %s16, 0
      %p50 = por %p48, %p49
      %p51 = scmp.ne.s32.totalorder %s40, %s43
      %p52 = scmp.eq.s32.totalorder %s21, 1
      %p53 = por %p51, %p52
      %p54 = scmp.ne.s32.totalorder %s43, %s44
      %p55 = scmp.eq.s32.totalorder %s21, 0
      %p56 = por %p54, %p55
      %p57 = scmp.ne.s32.totalorder %s43, %s44
      %p58 = scmp.eq.s32.totalorder %s22, 1
      %p59 = por %p57, %p58
      %p61 = scmp.ne.s32.totalorder %s44, %s60
      %p62 = scmp.eq.s32.totalorder %s22, 0
      %p63 = por %p61, %p62
      %s65 = sadd.s32 %s64, 1
      %p68 = scmp.eq.s32.totalorder %s16, 1
      %p69 = scmp.ne.s32.totalorder %s64, %s66
      %p70 = scmp.eq.s32.totalorder %s16, 0
      %p71 = por %p69, %p70
      %p72 = scmp.ne.s32.totalorder %s64, %s66
      %p73 = scmp.eq.s32.totalorder %s21, 1
      %p74 = por %p72, %p73
      %p75 = scmp.ne.s32.totalorder %s66, %s67
      %p76 = scmp.eq.s32.totalorder %s21, 0
      %p77 = por %p75, %p76
      %p78 = scmp.ne.s32.totalorder %s66, %s67
      %p79 = scmp.eq.s32.totalorder %s22, 1
      %p80 = por %p78, %p79
      %p82 = scmp.ne.s32.totalorder %s67, %s81
      %p83 = scmp.eq.s32.totalorder %s22, 0
      %p84 = por %p82, %p83
      %s86 = sadd.s32 %s85, 1
      %p89 = scmp.eq.s32.totalorder %s16, 1
      %p90 = scmp.ne.s32.totalorder %s85, %s87
      %p91 = scmp.eq.s32.totalorder %s16, 0
      %p92 = por %p90, %p91
      %p93 = scmp.ne.s32.totalorder %s85, %s87
      %p94 = scmp.eq.s32.totalorder %s21, 1
      %p95 = por %p93, %p94
      %p96 = scmp.ne.s32.totalorder %s87, %s88
      %p97 = scmp.eq.s32.totalorder %s21, 0
      %p98 = por %p96, %p97
      %p99 = scmp.ne.s32.totalorder %s87, %s88
      %p100 = scmp.eq.s32.totalorder %s22, 1
      %p101 = por %p99, %p100
      %p103 = scmp.ne.s32.totalorder %s88, %s102
      %p104 = scmp.eq.s32.totalorder %s22, 0
      %p105 = por %p103, %p104
      %s106 = ssub.s32 %s23, %s35
      %s107 = ssub.s32 %s24, %s31
      %s108 = sor.u32 %s106, %s107
      %p109 = scmp.eq.s32.totalorder %s108, 0
      %s111 = sadd.s32 %s110, 1
      %s112 = scalar_select %p109, %s110, %s111
      %p115 = pneg %p109
      %p116 = scmp.eq.s32.totalorder %s16, 1
      %p117 = por %p115, %p116
      %p118 = scmp.ne.s32.totalorder %s110, %s113
      %p119 = scmp.eq.s32.totalorder %s16, 0
      %p120 = por %p118, %p119
      %p121 = scmp.ne.s32.totalorder %s110, %s113
      %p122 = scmp.eq.s32.totalorder %s21, 1
      %p123 = por %p121, %p122
      %p124 = scmp.ne.s32.totalorder %s113, %s114
      %p125 = scmp.eq.s32.totalorder %s21, 0
      %p126 = por %p124, %p125
      %p127 = scmp.ne.s32.totalorder %s113, %s114
      %p128 = scmp.eq.s32.totalorder %s22, 1
      %p129 = por %p127, %p128
      %p131 = scmp.ne.s32.totalorder %s114, %s130
      %p132 = scmp.eq.s32.totalorder %s22, 0
      %p133 = por %p131, %p132
      %p134 = scmp.le.s32.totalorder 1, %s16
      %p135 = scmp.lt.s32.totalorder %s16, 3
      %p136 = pnand %p134, %p135
      %p137 = pneg %p136
      // Predicated region
      $region9: #{double_conv.5} parent=5 // pred_check
        _
      $region10: #{double_conv.5} parent=5 // pred_check_branch
        %139 = sbr.rel (%p136) target = $region12
      $region11: #{double_conv.5} parent=5 // pred_region
        %s140 = ssub.s32 %s16, 1
        // Predicated region
        $region13: #{double_conv.5} parent=11 // pred_check
          %p141 = pneg %p77
        $region14: #{double_conv.5} parent=11 // pred_check_branch
          %143 = sbr.rel (%p141) target = $region16
        $region15: #{double_conv.5} parent=11 // pred_region
          %s145 = ssub.s32 16, 16
          %146 = vsyncadd [#allocation6], %s145
          %s148 = sshll.u32 [#allocation5], 4
          %s149 = int_to_ptr.vmem [resolvable:$true] %s148
          %151 = dma.hbm_to_vmem [thread:$0]  %s1, 16, %s149, [#allocation6]
        $region16: #{double_conv.5} parent=11 // pred_fallthru
          _
        // Predicated region
        $region17: #{double_conv.5} parent=11 // pred_check
          %p152 = pneg %p98
        $region18: #{double_conv.5} parent=11 // pred_check_branch
          %154 = sbr.rel (%p152) target = $region20
        $region19: #{double_conv.5} parent=11 // pred_region
          %s156 = ssub.s32 16, 16
          %157 = vsyncadd [#allocation6], %s156
          %s159 = sshll.u32 [#allocation7], 4
          %s160 = int_to_ptr.vmem [resolvable:$true] %s159
          %162 = dma.hbm_to_vmem [thread:$0]  %s2, 16, %s160, [#allocation6]
        $region20: #{double_conv.5} parent=11 // pred_fallthru
          _
      $region12: #{double_conv.5} parent=5 // pred_fallthru
        _
      %p163 = scmp.lt.s32.totalorder %s16, 2
      // Predicated region
      $region21: #{double_conv.5} parent=5 // pred_check
        %p164 = pneg %p163
      $region22: #{double_conv.5} parent=5 // pred_check_branch
        %166 = sbr.rel (%p164) target = $region24
      $region23: #{double_conv.5} parent=5 // pred_region
        // Predicated region
        $region25: #{double_conv.5} parent=23 // pred_check
          %p167 = pneg %p50
        $region26: #{double_conv.5} parent=23 // pred_check_branch
          %169 = sbr.rel (%p167) target = $region28
        $region27: #{double_conv.5} parent=23 // pred_region
          %s170 = sand.u32 %s40, 1
          %s171 = scalar_lea.sflag [#allocation3], %s170
          %s172 = sand.u32 %s40, 1
          %s173 = smul.addr %s172, 128
          %s174 = scalar_lea.vmem [#allocation2], %s173
          %s175 = smul.u32 16, %s24
          %s177 = ssub.s32 2048, 2048
          %178 = vsyncadd %s171, %s177
          %s179 = smul.addr %s175, 2
          %s180 = smul.addr %s23, 32
          %s181 = sadd.s32 %s179, %s180
          %s182 = smul.addr %s181, 64
          %s183 = scalar_lea.hbm %s0, %s182
          %s184 = sshll.u32 %s174, 4
          %s185 = int_to_ptr.vmem [resolvable:$true] %s184
          %190 = dma.hbm_to_vmem [thread:$0]  %s183, 2048, %s185, %s171, 64, 64, 4
        $region28: #{double_conv.5} parent=23 // pred_fallthru
          _
      $region24: #{double_conv.5} parent=5 // pred_fallthru
        _
      %p191 = scmp.le.s32.totalorder 1, %s16
      %p192 = scmp.lt.s32.totalorder %s16, 3
      %p193 = pnand %p191, %p192
      %p194 = pneg %p193
      // Predicated region
      $region29: #{double_conv.5} parent=5 // pred_check
        _
      $region30: #{double_conv.5} parent=5 // pred_check_branch
        %196 = sbr.rel (%p193) target = $region32
      $region31: #{double_conv.5} parent=5 // pred_region
        %s197 = ssub.s32 %s16, 1
        %s198 = sand.u32 %s43, 1
        %s199 = scalar_lea.sflag [#allocation3], %s198
        %s200 = sand.u32 %s43, 1
        %s201 = smul.addr %s200, 128
        %s202 = scalar_lea.vmem [#allocation2], %s201
        // Predicated region
        $region33: #{double_conv.5} parent=31 // pred_check
          %p203 = pneg %p56
        $region34: #{double_conv.5} parent=31 // pred_check_branch
          %205 = sbr.rel (%p203) target = $region36
        $region35: #{double_conv.5} parent=31 // pred_region
          %206 = dma.done %s199, 2048
        $region36: #{double_conv.5} parent=31 // pred_fallthru
          _
        // Predicated region
        $region37: #{double_conv.5} parent=31 // pred_check
          %p207 = pneg %p77
        $region38: #{double_conv.5} parent=31 // pred_check_branch
          %209 = sbr.rel (%p207) target = $region40
        $region39: #{double_conv.5} parent=31 // pred_region
          %210 = dma.done [#allocation6], 16
        $region40: #{double_conv.5} parent=31 // pred_fallthru
          _
        // Predicated region
        $region41: #{double_conv.5} parent=31 // pred_check
          %p211 = pneg %p98
        $region42: #{double_conv.5} parent=31 // pred_check_branch
          %213 = sbr.rel (%p211) target = $region44
        $region43: #{double_conv.5} parent=31 // pred_region
          %214 = dma.done [#allocation6], 16
        $region44: #{double_conv.5} parent=31 // pred_fallthru
          _
        %s215 = sand.u32 %s43, 1
        %s216 = scalar_lea.sflag [#allocation3], %s215
        %s217 = sand.u32 %s43, 1
        %s218 = smul.addr %s217, 128
        %s219 = scalar_lea.vmem [#allocation2], %s218
        %p220 = pneg %p56
        %p221 = pneg %p53
        %p222 = pneg %p77
        %p223 = pneg %p74
        %p224 = pneg %p98
        %p225 = pneg %p95
        %p226 = pneg %p126
        %p227 = pneg %p123
        %s228 = sand.u32 %s113, 1
        %s229 = scalar_lea.sflag [#allocation4], %s228
        %s230 = sand.u32 %s113, 1
        %s231 = smul.addr %s230, 256
        %s232 = scalar_lea.vmem [#allocation8], %s231
        %s233 = smul.u32 16, %s26
        %s234 = smul.u32 16, %s26
        %v235 = vld [vmem:[%s202] sm:$0xf]
        %v236 = vld [vmem:[%s202 + $0x4] sm:$0xf]
        %v237 = vld [vmem:[%s202 + $0x8] sm:$0xf]
        %v238 = vld [vmem:[%s202 + $0xc] sm:$0xf]
        %v239 = vld [vmem:[%s202 + $0x10] sm:$0xf]
        %v240 = vld [vmem:[%s202 + $0x14] sm:$0xf]
        %v241 = vld [vmem:[%s202 + $0x18] sm:$0xf]
        %v242 = vld [vmem:[%s202 + $0x1c] sm:$0xf]
        %v243 = vld [vmem:[%s202 + $0x20] sm:$0xf]
        %v244 = vld [vmem:[%s202 + $0x24] sm:$0xf]
        %v245 = vld [vmem:[%s202 + $0x28] sm:$0xf]
        %v246 = vld [vmem:[%s202 + $0x2c] sm:$0xf]
        %v247 = vld [vmem:[%s202 + $0x30] sm:$0xf]
        %v248 = vld [vmem:[%s202 + $0x34] sm:$0xf]
        %v249 = vld [vmem:[%s202 + $0x38] sm:$0xf]
        %v250 = vld [vmem:[%s202 + $0x3c] sm:$0xf]
        %v251 = vld [vmem:[%s202 + $0x40] sm:$0xf]
        %v252 = vld [vmem:[%s202 + $0x44] sm:$0xf]
        %v253 = vld [vmem:[%s202 + $0x48] sm:$0xf]
        %v254 = vld [vmem:[%s202 + $0x4c] sm:$0xf]
        %v255 = vld [vmem:[%s202 + $0x50] sm:$0xf]
        %v256 = vld [vmem:[%s202 + $0x54] sm:$0xf]
        %v257 = vld [vmem:[%s202 + $0x58] sm:$0xf]
        %v258 = vld [vmem:[%s202 + $0x5c] sm:$0xf]
        %v259 = vld [vmem:[%s202 + $0x60] sm:$0xf]
        %v260 = vld [vmem:[%s202 + $0x64] sm:$0xf]
        %v261 = vld [vmem:[%s202 + $0x68] sm:$0xf]
        %v262 = vld [vmem:[%s202 + $0x6c] sm:$0xf]
        %v263 = vld [vmem:[%s202 + $0x70] sm:$0xf]
        %v264 = vld [vmem:[%s202 + $0x74] sm:$0xf]
        %v265 = vld [vmem:[%s202 + $0x78] sm:$0xf]
        %v266 = vld [vmem:[%s202 + $0x7c] sm:$0xf]
        %v267 = vunpack.c.l.bf16 %v235
        %v268 = vunpack.c.l.bf16 %v236
        %v269 = vunpack.c.l.bf16 %v237
        %v270 = vunpack.c.l.bf16 %v238
        %v271 = vunpack.c.l.bf16 %v239
        %v272 = vunpack.c.l.bf16 %v240
        %v273 = vunpack.c.l.bf16 %v241
        %v274 = vunpack.c.l.bf16 %v242
        %v275 = vunpack.c.l.bf16 %v243
        %v276 = vunpack.c.l.bf16 %v244
        %v277 = vunpack.c.l.bf16 %v245
        %v278 = vunpack.c.l.bf16 %v246
        %v279 = vunpack.c.l.bf16 %v247
        %v280 = vunpack.c.l.bf16 %v248
        %v281 = vunpack.c.l.bf16 %v249
        %v282 = vunpack.c.l.bf16 %v250
        %v283 = vunpack.c.l.bf16 %v251
        %v284 = vunpack.c.l.bf16 %v252
        %v285 = vunpack.c.l.bf16 %v253
        %v286 = vunpack.c.l.bf16 %v254
        %v287 = vunpack.c.l.bf16 %v255
        %v288 = vunpack.c.l.bf16 %v256
        %v289 = vunpack.c.l.bf16 %v257
        %v290 = vunpack.c.l.bf16 %v258
        %v291 = vunpack.c.l.bf16 %v259
        %v292 = vunpack.c.l.bf16 %v260
        %v293 = vunpack.c.l.bf16 %v261
        %v294 = vunpack.c.l.bf16 %v262
        %v295 = vunpack.c.l.bf16 %v263
        %v296 = vunpack.c.l.bf16 %v264
        %v297 = vunpack.c.l.bf16 %v265
        %v298 = vunpack.c.l.bf16 %v266
        %v299 = vld [vmem:[#allocation5] sm:$0x1]
        %v301 = vlaneseq
        %v302 = vshrl.u32 %v301, 7
        %v303 = vsub.s32 0, %v302
        %v304 = vrot.slane %v299, %v303
        %v306 = vmul.f32 %v267, %v304
        %v307 = vmul.f32 %v268, %v304
        %v308 = vmul.f32 %v269, %v304
        %v309 = vmul.f32 %v270, %v304
        %v310 = vmul.f32 %v271, %v304
        %v311 = vmul.f32 %v272, %v304
        %v312 = vmul.f32 %v273, %v304
        %v313 = vmul.f32 %v274, %v304
        %v314 = vmul.f32 %v275, %v304
        %v315 = vmul.f32 %v276, %v304
        %v316 = vmul.f32 %v277, %v304
        %v317 = vmul.f32 %v278, %v304
        %v318 = vmul.f32 %v279, %v304
        %v319 = vmul.f32 %v280, %v304
        %v320 = vmul.f32 %v281, %v304
        %v321 = vmul.f32 %v282, %v304
        %v322 = vmul.f32 %v283, %v304
        %v323 = vmul.f32 %v284, %v304
        %v324 = vmul.f32 %v285, %v304
        %v325 = vmul.f32 %v286, %v304
        %v326 = vmul.f32 %v287, %v304
        %v327 = vmul.f32 %v288, %v304
        %v328 = vmul.f32 %v289, %v304
        %v329 = vmul.f32 %v290, %v304
        %v330 = vmul.f32 %v291, %v304
        %v331 = vmul.f32 %v292, %v304
        %v332 = vmul.f32 %v293, %v304
        %v333 = vmul.f32 %v294, %v304
        %v334 = vmul.f32 %v295, %v304
        %v335 = vmul.f32 %v296, %v304
        %v336 = vmul.f32 %v297, %v304
        %v337 = vmul.f32 %v298, %v304
        %v338 = vld [vmem:[#allocation7] sm:$0x1]
        %v340 = vlaneseq
        %v341 = vshrl.u32 %v340, 7
        %v342 = vsub.s32 0, %v341
        %v343 = vrot.slane %v338, %v342
        %v345 = vadd.f32 %v306, %v343
        %v346 = vadd.f32 %v307, %v343
        %v347 = vadd.f32 %v308, %v343
        %v348 = vadd.f32 %v309, %v343
        %v349 = vadd.f32 %v310, %v343
        %v350 = vadd.f32 %v311, %v343
        %v351 = vadd.f32 %v312, %v343
        %v352 = vadd.f32 %v313, %v343
        %v353 = vadd.f32 %v314, %v343
        %v354 = vadd.f32 %v315, %v343
        %v355 = vadd.f32 %v316, %v343
        %v356 = vadd.f32 %v317, %v343
        %v357 = vadd.f32 %v318, %v343
        %v358 = vadd.f32 %v319, %v343
        %v359 = vadd.f32 %v320, %v343
        %v360 = vadd.f32 %v321, %v343
        %v361 = vadd.f32 %v322, %v343
        %v362 = vadd.f32 %v323, %v343
        %v363 = vadd.f32 %v324, %v343
        %v364 = vadd.f32 %v325, %v343
        %v365 = vadd.f32 %v326, %v343
        %v366 = vadd.f32 %v327, %v343
        %v367 = vadd.f32 %v328, %v343
        %v368 = vadd.f32 %v329, %v343
        %v369 = vadd.f32 %v330, %v343
        %v370 = vadd.f32 %v331, %v343
        %v371 = vadd.f32 %v332, %v343
        %v372 = vadd.f32 %v333, %v343
        %v373 = vadd.f32 %v334, %v343
        %v374 = vadd.f32 %v335, %v343
        %v375 = vadd.f32 %v336, %v343
        %v376 = vadd.f32 %v337, %v343
        %v377 = vmax.f32 %v345, 0.0
        %v378 = vmax.f32 %v346, 0.0
        %v379 = vmax.f32 %v347, 0.0
        %v380 = vmax.f32 %v348, 0.0
        %v381 = vmax.f32 %v349, 0.0
        %v382 = vmax.f32 %v350, 0.0
        %v383 = vmax.f32 %v351, 0.0
        %v384 = vmax.f32 %v352, 0.0
        %v385 = vmax.f32 %v353, 0.0
        %v386 = vmax.f32 %v354, 0.0
        %v387 = vmax.f32 %v355, 0.0
        %v388 = vmax.f32 %v356, 0.0
        %v389 = vmax.f32 %v357, 0.0
        %v390 = vmax.f32 %v358, 0.0
        %v391 = vmax.f32 %v359, 0.0
        %v392 = vmax.f32 %v360, 0.0
        %v393 = vmax.f32 %v361, 0.0
        %v394 = vmax.f32 %v362, 0.0
        %v395 = vmax.f32 %v363, 0.0
        %v396 = vmax.f32 %v364, 0.0
        %v397 = vmax.f32 %v365, 0.0
        %v398 = vmax.f32 %v366, 0.0
        %v399 = vmax.f32 %v367, 0.0
        %v400 = vmax.f32 %v368, 0.0
        %v401 = vmax.f32 %v369, 0.0
        %v402 = vmax.f32 %v370, 0.0
        %v403 = vmax.f32 %v371, 0.0
        %v404 = vmax.f32 %v372, 0.0
        %v405 = vmax.f32 %v373, 0.0
        %v406 = vmax.f32 %v374, 0.0
        %v407 = vmax.f32 %v375, 0.0
        %v408 = vmax.f32 %v376, 0.0
        %vm409 = vcmask 64512
        %410 = vst.msk [vmem:[%s232] sm:$0xff] %vm409, %v377
        %411 = vst.msk [vmem:[%s232 + $0x8] sm:$0xff] %vm409, %v378
        %412 = vst.msk [vmem:[%s232 + $0x10] sm:$0xff] %vm409, %v379
        %413 = vst.msk [vmem:[%s232 + $0x18] sm:$0xff] %vm409, %v380
        %414 = vst.msk [vmem:[%s232 + $0x20] sm:$0xff] %vm409, %v381
        %415 = vst.msk [vmem:[%s232 + $0x28] sm:$0xff] %vm409, %v382
        %416 = vst.msk [vmem:[%s232 + $0x30] sm:$0xff] %vm409, %v383
        %417 = vst.msk [vmem:[%s232 + $0x38] sm:$0xff] %vm409, %v384
        %418 = vst.msk [vmem:[%s232 + $0x40] sm:$0xff] %vm409, %v385
        %419 = vst.msk [vmem:[%s232 + $0x48] sm:$0xff] %vm409, %v386
        %420 = vst.msk [vmem:[%s232 + $0x50] sm:$0xff] %vm409, %v387
        %421 = vst.msk [vmem:[%s232 + $0x58] sm:$0xff] %vm409, %v388
        %422 = vst.msk [vmem:[%s232 + $0x60] sm:$0xff] %vm409, %v389
        %423 = vst.msk [vmem:[%s232 + $0x68] sm:$0xff] %vm409, %v390
        %424 = vst.msk [vmem:[%s232 + $0x70] sm:$0xff] %vm409, %v391
        %425 = vst.msk [vmem:[%s232 + $0x78] sm:$0xff] %vm409, %v392
        %426 = vst.msk [vmem:[%s232 + $0x80] sm:$0xff] %vm409, %v393
        %427 = vst.msk [vmem:[%s232 + $0x88] sm:$0xff] %vm409, %v394
        %428 = vst.msk [vmem:[%s232 + $0x90] sm:$0xff] %vm409, %v395
        %429 = vst.msk [vmem:[%s232 + $0x98] sm:$0xff] %vm409, %v396
        %430 = vst.msk [vmem:[%s232 + $0xa0] sm:$0xff] %vm409, %v397
        %431 = vst.msk [vmem:[%s232 + $0xa8] sm:$0xff] %vm409, %v398
        %432 = vst.msk [vmem:[%s232 + $0xb0] sm:$0xff] %vm409, %v399
        %433 = vst.msk [vmem:[%s232 + $0xb8] sm:$0xff] %vm409, %v400
        %434 = vst.msk [vmem:[%s232 + $0xc0] sm:$0xff] %vm409, %v401
        %435 = vst.msk [vmem:[%s232 + $0xc8] sm:$0xff] %vm409, %v402
        %436 = vst.msk [vmem:[%s232 + $0xd0] sm:$0xff] %vm409, %v403
        %437 = vst.msk [vmem:[%s232 + $0xd8] sm:$0xff] %vm409, %v404
        %438 = vst.msk [vmem:[%s232 + $0xe0] sm:$0xff] %vm409, %v405
        %439 = vst.msk [vmem:[%s232 + $0xe8] sm:$0xff] %vm409, %v406
        %440 = vst.msk [vmem:[%s232 + $0xf0] sm:$0xff] %vm409, %v407
        %441 = vst.msk [vmem:[%s232 + $0xf8] sm:$0xff] %vm409, %v408
        %s442 = sand.u32 %s113, 1
        %s443 = scalar_lea.sflag [#allocation4], %s442
        %s444 = sand.u32 %s113, 1
        %s445 = smul.addr %s444, 256
        %s446 = scalar_lea.vmem [#allocation8], %s445
        // Predicated region
        $region45: #{double_conv.5} parent=31 // pred_check
          %p447 = pneg %p123
        $region46: #{double_conv.5} parent=31 // pred_check_branch
          %449 = sbr.rel (%p447) target = $region48
        $region47: #{double_conv.5} parent=31 // pred_region
          %s450 = smul.u32 16, %s26
          %s452 = ssub.s32 4096, 4096
          %453 = vsyncadd %s443, %s452
          %s454 = smul.addr %s450, 2
          %s455 = smul.addr %s25, 32
          %s456 = sadd.s32 %s454, %s455
          %s457 = smul.addr %s456, 128
          %s458 = scalar_lea.hbm %s3, %s457
          %s459 = sshll.u32 %s446, 4
          %s460 = int_to_ptr.vmem [resolvable:$true] %s459
          %465 = dma.vmem_to_hbm [thread:$0]  %s460, 4096, %s458, %s443, 128, 128, 8
        $region48: #{double_conv.5} parent=31 // pred_fallthru
          _
      $region32: #{double_conv.5} parent=5 // pred_fallthru
        _
      %p466 = scmp.le.s32.totalorder 2, %s16
      // Predicated region
      $region49: #{double_conv.5} parent=5 // pred_check
        %p467 = pneg %p466
      $region50: #{double_conv.5} parent=5 // pred_check_branch
        %469 = sbr.rel (%p467) target = $region52
      $region51: #{double_conv.5} parent=5 // pred_region
        %s470 = ssub.s32 %s16, 2
        // Predicated region
        $region53: #{double_conv.5} parent=51 // pred_check
          %p471 = pneg %p129
        $region54: #{double_conv.5} parent=51 // pred_check_branch
          %473 = sbr.rel (%p471) target = $region56
        $region55: #{double_conv.5} parent=51 // pred_region
          %s474 = sand.u32 %s114, 1
          %s475 = scalar_lea.sflag [#allocation4], %s474
          %s476 = sand.u32 %s114, 1
          %s477 = smul.addr %s476, 256
          %s478 = scalar_lea.vmem [#allocation8], %s477
          %479 = dma.done %s475, 4096
        $region56: #{double_conv.5} parent=51 // pred_fallthru
          _
      $region52: #{double_conv.5} parent=5 // pred_fallthru
        _
    $region6: #{double_conv.5} parent=1 // loop_footer
      %s20 = sadd.s32 1, %s16
    $region7: #{double_conv.5} parent=1 // loop_footer_branch
      %15 = sbr.rel target = $region3
    $region8: #{double_conv.5} parent=1 // loop_exit
      _
    %480 = vsyncpa [#allocation3], 1
    %s481 = scalar_lea.sflag [#allocation3], 1
    %482 = vsyncpa %s481, 1
    %483 = vsyncpa [#allocation6], 1
    %484 = vsyncpa [#allocation4], 1
    %s485 = scalar_lea.sflag [#allocation4], 1
    %486 = vsyncpa %s485, 1

// kernel: double_conv.3
$region0: #{double_conv.3}
  #allocation0 [shape = 'u32[]', space=smem, size = 0x4, offset = 0x4, fixed_abs, tag = 'smem constant byte address 0x4 - core index']
  #allocation1 [shape = 'u32[144,128]{1,0:T(1,128)}', space=vmem, size = 0x12000, scoped, tag = 'internal scratch']
  #allocation2 [shape = 'bf16[2,10,16,128]{3,2,1,0:T(16,128)(2,1)}', space=vmem, size = 0x14000, scoped, tag = 'scratch operand']
  #allocation3 [shape = 's32[6]{0}', space=sflag, size = 0x18, scoped, tag = 'scratch operand']
  #allocation16 [shape = 's32[]', space=sflag, size = 0x4, offset = 0, fixed_abs, tag = 'sflag constant byte address 0x0 - dummy sync flag']
  #allocation17 [shape = 's32[]', space=sflag, size = 0x4, offset = 0, fixed_abs, tag = 'sflag constant byte address 0x0 - dummy sync flag']
  #allocation18 [shape = 'u32[]', space=smem, size = 0x4, offset = 0x44, fixed_abs, tag = 'smem constant byte address 0x44 - assertion arg 0']
  #allocation19 [shape = 'u32[]', space=smem, size = 0x4, offset = 0x48, fixed_abs, tag = 'smem constant byte address 0x48 - assertion arg 1']
  #allocation20 [shape = 's32[]', space=sflag, size = 0x4, offset = 0, fixed_abs, tag = 'sflag constant byte address 0x0 - dummy sync flag']
  #allocation21 [shape = 's32[]', space=sflag, size = 0x4, offset = 0, fixed_abs, tag = 'sflag constant byte address 0x0 - dummy sync flag']
  #allocation22 [shape = 's32[]', space=sflag, size = 0x4, offset = 0, fixed_abs, tag = 'sflag constant byte address 0x0 - dummy sync flag']
  #allocation23 [shape = 's32[]', space=sflag, size = 0x4, offset = 0, fixed_abs, tag = 'sflag constant byte address 0x0 - dummy sync flag']
  #allocation24 [shape = 's32[]', space=sflag, size = 0x4, offset = 0, fixed_abs, tag = 'sflag constant byte address 0x0 - dummy sync flag']
  #allocation25 [shape = 's32[]', space=sflag, size = 0x4, offset = 0, fixed_abs, tag = 'sflag constant byte address 0x0 - dummy sync flag']
  #allocation26 [shape = 's32[]', space=sflag, size = 0x4, offset = 0, fixed_abs, tag = 'sflag constant byte address 0x0 - dummy sync flag']
  #allocation27 [shape = 's32[]', space=sflag, size = 0x4, offset = 0, fixed_abs, tag = 'sflag constant byte address 0x0 - dummy sync flag']
  #allocation28 [shape = 's32[]', space=sflag, size = 0x4, offset = 0, fixed_abs, tag = 'sflag constant byte address 0x0 - dummy sync flag']
  #allocation29 [shape = 's32[]', space=sflag, size = 0x4, offset = 0, fixed_abs, tag = 'sflag constant byte address 0x0 - dummy sync flag']
  %s0 = inlined_call_operand.hbm [shape: bf16[2,16,16,128], index: 0, kind: input, shape index: {}]
  %s1 = inlined_call_operand.hbm [shape: bf16[1152,128], index: 1, kind: input, shape index: {}]
  %s2 = inlined_call_operand.hbm [shape: f32[1,128], index: 2, kind: input, shape index: {}]
  %s3 = inlined_call_operand.hbm [shape: f32[1,128], index: 3, kind: input, shape index: {}]
  %s4 = inlined_call_operand.hbm [shape: f32[1,128], index: 4, kind: input, shape index: {}]
  %s5 = inlined_call_operand.hbm [shape: bf16[2,16,16,128], index: 5, kind: output, shape index: {0}]
  %s6 = inlined_call_operand.hbm [shape: f32[2,1,128], index: 6, kind: output, shape index: {1}]
  %s7 = inlined_call_operand.hbm [shape: f32[2,1,128], index: 7, kind: output, shape index: {2}]
  %8 = xla_tuple %s5, %s6, %s7
  %s9 = sld [smem:[#allocation0]]
  $region137: #{double_conv.3} parent=0
    _
  %s11 = ssub.s32 1, %s9
  %s12 = scalar_select 0, %s11, %s9
  $region1: #{double_conv.3} parent=0
    #allocation4 [shape = 'u8[294912]{0}', space=vmem, size = 0x48000, scoped, tag = 'input window, operand 1, single buffered']
    #allocation5 [shape = 's32[2]{0}', space=sflag, size = 0x8, scoped, tag = 'scoped memory for double_conv.3']
    #allocation6 [shape = 's32[2]{0}', space=sflag, size = 0x8, scoped, tag = 'scoped memory for double_conv.3']
    #allocation7 [shape = 'u8[512]{0}', space=vmem, size = 0x400, scoped, tag = 'input window, operand 2, single buffered']
    #allocation8 [shape = 's32[1]{0}', space=sflag, size = 0x4, scoped, tag = 'scoped memory for double_conv.3']
    #allocation9 [shape = 'u8[512]{0}', space=vmem, size = 0x400, scoped, tag = 'input window, operand 3, single buffered']
    #allocation10 [shape = 'u8[512]{0}', space=vmem, size = 0x400, scoped, tag = 'input window, operand 4, single buffered']
    #allocation11 [shape = 's32[1]{0}', space=sflag, size = 0x4, scoped, tag = 'scoped memory for double_conv.3']
    #allocation12 [shape = 'u8[65536]{0}', space=vmem, size = 0x10000, scoped, tag = 'output window, operand 0']
    #allocation13 [shape = 'u8[1024]{0}', space=vmem, size = 0x400, scoped, tag = 'output window, operand 1']
    #allocation14 [shape = 's32[2]{0}', space=sflag, size = 0x8, scoped, tag = 'scoped memory for double_conv.3']
    #allocation15 [shape = 'u8[1024]{0}', space=vmem, size = 0x400, scoped, tag = 'output window, operand 2']
    %13 = vsyncpa [#allocation5], 0
    %14 = vsyncpa [#allocation8], 0
    %15 = vsyncpa [#allocation11], 0
    %16 = vsyncpa [#allocation6], 0
    %s17 = scalar_lea.sflag [#allocation6], 1
    %18 = vsyncpa %s17, 0
    %19 = vsyncpa [#allocation14], 0
    %s20 = scalar_lea.sflag [#allocation14], 1
    %21 = vsyncpa %s20, 0
    loop: start=0, step=1, limit=6
    $region2: #{double_conv.3} parent=1 // loop_pre_header
      _
    $region3: #{double_conv.3} parent=1 // loop_header
      %s23 = sphi 0, %s27
      %p24 = scmp.ge.s32.totalorder %s23, 6
      %s30 = sphi 0, %s42
      %s31 = sphi 0, %s38
      %s32 = sphi 0, %s30
      %s33 = sphi 0, %s31
      %s34 = sphi 0, %s32
      %s35 = sphi 0, %s33
      %s43 = sphi 0, %s43
      %s45 = sphi 0, %s43
      %s46 = sphi 0, %s45
      %s60 = sphi 0, %s46
      %s64 = sphi 0, %s64
      %s66 = sphi 0, %s64
      %s67 = sphi 0, %s66
      %s81 = sphi 0, %s67
      %s85 = sphi 0, %s85
      %s87 = sphi 0, %s85
      %s88 = sphi 0, %s87
      %s102 = sphi 0, %s88
      %s106 = sphi 0, %s106
      %s108 = sphi 0, %s106
      %s109 = sphi 0, %s108
      %s123 = sphi 0, %s109
      %s131 = sphi 0, %s133
      %s134 = sphi 0, %s131
      %s135 = sphi 0, %s134
      %s151 = sphi 0, %s135
      %s157 = sphi 0, %s159
      %s160 = sphi 0, %s157
      %s161 = sphi 0, %s160
      %s177 = sphi 0, %s161
      %s183 = sphi 0, %s185
      %s186 = sphi 0, %s183
      %s187 = sphi 0, %s186
      %s203 = sphi 0, %s187
    $region4: #{double_conv.3} parent=1 // loop_header_branch
      %26 = sbr.rel (%p24) target = $region8
    $region5: #{double_conv.3} parent=1 // loop_body
      %s28 = ssub.s32 %s23, 1
      %s29 = ssub.s32 %s23, 2
      %s36 = sadd.s32 1, %s31
      %p37 = scmp.ge.s32.totalorder %s36, 2
      %s38 = scalar_select %p37, 0, %s36
      %s39 = sadd.s32 1, %s30
      %s40 = scalar_select %p37, %s39, %s30
      %p41 = scmp.ge.s32.totalorder %s40, 2
      %s42 = scalar_select %p41, 0, %s40
      %s44 = sadd.s32 %s43, 1
      %p47 = scmp.eq.s32.totalorder %s23, 3
      %p48 = scmp.ne.s32.totalorder %s43, %s45
      %p49 = scmp.eq.s32.totalorder %s23, 0
      %p50 = por %p48, %p49
      %p51 = scmp.ne.s32.totalorder %s43, %s45
      %p52 = scmp.eq.s32.totalorder %s28, 3
      %p53 = por %p51, %p52
      %p54 = scmp.ne.s32.totalorder %s45, %s46
      %p55 = scmp.eq.s32.totalorder %s28, 0
      %p56 = por %p54, %p55
      %p57 = scmp.ne.s32.totalorder %s45, %s46
      %p58 = scmp.eq.s32.totalorder %s29, 3
      %p59 = por %p57, %p58
      %p61 = scmp.ne.s32.totalorder %s46, %s60
      %p62 = scmp.eq.s32.totalorder %s29, 0
      %p63 = por %p61, %p62
      %s65 = sadd.s32 %s64, 1
      %p68 = scmp.eq.s32.totalorder %s23, 3
      %p69 = scmp.ne.s32.totalorder %s64, %s66
      %p70 = scmp.eq.s32.totalorder %s23, 0
      %p71 = por %p69, %p70
      %p72 = scmp.ne.s32.totalorder %s64, %s66
      %p73 = scmp.eq.s32.totalorder %s28, 3
      %p74 = por %p72, %p73
      %p75 = scmp.ne.s32.totalorder %s66, %s67
      %p76 = scmp.eq.s32.totalorder %s28, 0
      %p77 = por %p75, %p76
      %p78 = scmp.ne.s32.totalorder %s66, %s67
      %p79 = scmp.eq.s32.totalorder %s29, 3
      %p80 = por %p78, %p79
      %p82 = scmp.ne.s32.totalorder %s67, %s81
      %p83 = scmp.eq.s32.totalorder %s29, 0
      %p84 = por %p82, %p83
      %s86 = sadd.s32 %s85, 1
      %p89 = scmp.eq.s32.totalorder %s23, 3
      %p90 = scmp.ne.s32.totalorder %s85, %s87
      %p91 = scmp.eq.s32.totalorder %s23, 0
      %p92 = por %p90, %p91
      %p93 = scmp.ne.s32.totalorder %s85, %s87
      %p94 = scmp.eq.s32.totalorder %s28, 3
      %p95 = por %p93, %p94
      %p96 = scmp.ne.s32.totalorder %s87, %s88
      %p97 = scmp.eq.s32.totalorder %s28, 0
      %p98 = por %p96, %p97
      %p99 = scmp.ne.s32.totalorder %s87, %s88
      %p100 = scmp.eq.s32.totalorder %s29, 3
      %p101 = por %p99, %p100
      %p103 = scmp.ne.s32.totalorder %s88, %s102
      %p104 = scmp.eq.s32.totalorder %s29, 0
      %p105 = por %p103, %p104
      %s107 = sadd.s32 %s106, 1
      %p110 = scmp.eq.s32.totalorder %s23, 3
      %p111 = scmp.ne.s32.totalorder %s106, %s108
      %p112 = scmp.eq.s32.totalorder %s23, 0
      %p113 = por %p111, %p112
      %p114 = scmp.ne.s32.totalorder %s106, %s108
      %p115 = scmp.eq.s32.totalorder %s28, 3
      %p116 = por %p114, %p115
      %p117 = scmp.ne.s32.totalorder %s108, %s109
      %p118 = scmp.eq.s32.totalorder %s28, 0
      %p119 = por %p117, %p118
      %p120 = scmp.ne.s32.totalorder %s108, %s109
      %p121 = scmp.eq.s32.totalorder %s29, 3
      %p122 = por %p120, %p121
      %p124 = scmp.ne.s32.totalorder %s109, %s123
      %p125 = scmp.eq.s32.totalorder %s29, 0
      %p126 = por %p124, %p125
      %s127 = ssub.s32 %s30, %s42
      %s128 = ssub.s32 %s31, %s38
      %s129 = sor.u32 %s127, %s128
      %p130 = scmp.eq.s32.totalorder %s129, 0
      %s132 = sadd.s32 %s131, 1
      %s133 = scalar_select %p130, %s131, %s132
      %p136 = pneg %p130
      %p137 = scmp.eq.s32.totalorder %s23, 3
      %p138 = por %p136, %p137
      %p139 = scmp.ne.s32.totalorder %s131, %s134
      %p140 = scmp.eq.s32.totalorder %s23, 0
      %p141 = por %p139, %p140
      %p142 = scmp.ne.s32.totalorder %s131, %s134
      %p143 = scmp.eq.s32.totalorder %s28, 3
      %p144 = por %p142, %p143
      %p145 = scmp.ne.s32.totalorder %s134, %s135
      %p146 = scmp.eq.s32.totalorder %s28, 0
      %p147 = por %p145, %p146
      %p148 = scmp.ne.s32.totalorder %s134, %s135
      %p149 = scmp.eq.s32.totalorder %s29, 3
      %p150 = por %p148, %p149
      %p152 = scmp.ne.s32.totalorder %s135, %s151
      %p153 = scmp.eq.s32.totalorder %s29, 0
      %p154 = por %p152, %p153
      %s155 = ssub.s32 %s30, %s42
      %p156 = scmp.eq.s32.totalorder %s155, 0
      %s158 = sadd.s32 %s157, 1
      %s159 = scalar_select %p156, %s157, %s158
      %p162 = pneg %p156
      %p163 = scmp.eq.s32.totalorder %s23, 3
      %p164 = por %p162, %p163
      %p165 = scmp.ne.s32.totalorder %s157, %s160
      %p166 = scmp.eq.s32.totalorder %s23, 0
      %p167 = por %p165, %p166
      %p168 = scmp.ne.s32.totalorder %s157, %s160
      %p169 = scmp.eq.s32.totalorder %s28, 3
      %p170 = por %p168, %p169
      %p171 = scmp.ne.s32.totalorder %s160, %s161
      %p172 = scmp.eq.s32.totalorder %s28, 0
      %p173 = por %p171, %p172
      %p174 = scmp.ne.s32.totalorder %s160, %s161
      %p175 = scmp.eq.s32.totalorder %s29, 3
      %p176 = por %p174, %p175
      %p178 = scmp.ne.s32.totalorder %s161, %s177
      %p179 = scmp.eq.s32.totalorder %s29, 0
      %p180 = por %p178, %p179
      %s181 = ssub.s32 %s30, %s42
      %p182 = scmp.eq.s32.totalorder %s181, 0
      %s184 = sadd.s32 %s183, 1
      %s185 = scalar_select %p182, %s183, %s184
      %p188 = pneg %p182
      %p189 = scmp.eq.s32.totalorder %s23, 3
      %p190 = por %p188, %p189
      %p191 = scmp.ne.s32.totalorder %s183, %s186
      %p192 = scmp.eq.s32.totalorder %s23, 0
      %p193 = por %p191, %p192
      %p194 = scmp.ne.s32.totalorder %s183, %s186
      %p195 = scmp.eq.s32.totalorder %s28, 3
      %p196 = por %p194, %p195
      %p197 = scmp.ne.s32.totalorder %s186, %s187
      %p198 = scmp.eq.s32.totalorder %s28, 0
      %p199 = por %p197, %p198
      %p200 = scmp.ne.s32.totalorder %s186, %s187
      %p201 = scmp.eq.s32.totalorder %s29, 3
      %p202 = por %p200, %p201
      %p204 = scmp.ne.s32.totalorder %s187, %s203
      %p205 = scmp.eq.s32.totalorder %s29, 0
      %p206 = por %p204, %p205
      %p207 = scmp.le.s32.totalorder 1, %s23
      %p208 = scmp.lt.s32.totalorder %s23, 5
      %p209 = pnand %p207, %p208
      %p210 = pneg %p209
      // Predicated region
      $region9: #{double_conv.3} parent=5 // pred_check
        _
      $region10: #{double_conv.3} parent=5 // pred_check_branch
        %212 = sbr.rel (%p209) target = $region12
      $region11: #{double_conv.3} parent=5 // pred_region
        %s213 = ssub.s32 %s23, 1
        // Predicated region
        $region13: #{double_conv.3} parent=11 // pred_check
          %p214 = pneg %p56
        $region14: #{double_conv.3} parent=11 // pred_check_branch
          %216 = sbr.rel (%p214) target = $region16
        $region15: #{double_conv.3} parent=11 // pred_region
          %s218 = ssub.s32 9216, 9216
          %219 = vsyncadd [#allocation5], %s218
          %s220 = sshll.u32 [#allocation4], 4
          %s221 = int_to_ptr.vmem [resolvable:$true] %s220
          %226 = dma.hbm_to_vmem [thread:$0]  %s1, 9216, %s221, [#allocation5], 64, 64, 4
        $region16: #{double_conv.3} parent=11 // pred_fallthru
          _
        // Predicated region
        $region17: #{double_conv.3} parent=11 // pred_check
          %p227 = pneg %p77
        $region18: #{double_conv.3} parent=11 // pred_check_branch
          %229 = sbr.rel (%p227) target = $region20
        $region19: #{double_conv.3} parent=11 // pred_region
          %s231 = ssub.s32 16, 16
          %232 = vsyncadd [#allocation8], %s231
          %s234 = sshll.u32 [#allocation7], 4
          %s235 = int_to_ptr.vmem [resolvable:$true] %s234
          %237 = dma.hbm_to_vmem [thread:$0]  %s2, 16, %s235, [#allocation8]
        $region20: #{double_conv.3} parent=11 // pred_fallthru
          _
        // Predicated region
        $region21: #{double_conv.3} parent=11 // pred_check
          %p238 = pneg %p98
        $region22: #{double_conv.3} parent=11 // pred_check_branch
          %240 = sbr.rel (%p238) target = $region24
        $region23: #{double_conv.3} parent=11 // pred_region
          %s242 = ssub.s32 16, 16
          %243 = vsyncadd [#allocation8], %s242
          %s245 = sshll.u32 [#allocation9], 4
          %s246 = int_to_ptr.vmem [resolvable:$true] %s245
          %248 = dma.hbm_to_vmem [thread:$0]  %s3, 16, %s246, [#allocation8]
        $region24: #{double_conv.3} parent=11 // pred_fallthru
          _
        // Predicated region
        $region25: #{double_conv.3} parent=11 // pred_check
          %p249 = pneg %p119
        $region26: #{double_conv.3} parent=11 // pred_check_branch
          %251 = sbr.rel (%p249) target = $region28
        $region27: #{double_conv.3} parent=11 // pred_region
          %s253 = ssub.s32 16, 16
          %254 = vsyncadd [#allocation11], %s253
          %s256 = sshll.u32 [#allocation10], 4
          %s257 = int_to_ptr.vmem [resolvable:$true] %s256
          %259 = dma.hbm_to_vmem [thread:$0]  %s4, 16, %s257, [#allocation11]
        $region28: #{double_conv.3} parent=11 // pred_fallthru
          _
      $region12: #{double_conv.3} parent=5 // pred_fallthru
        _
      %p260 = scmp.lt.s32.totalorder %s23, 4
      // Predicated region
      $region29: #{double_conv.3} parent=5 // pred_check
        %p261 = pneg %p260
      $region30: #{double_conv.3} parent=5 // pred_check_branch
        %263 = sbr.rel (%p261) target = $region32
      $region31: #{double_conv.3} parent=5 // pred_region
        _
      $region32: #{double_conv.3} parent=5 // pred_fallthru
        _
      %p264 = scmp.le.s32.totalorder 1, %s23
      %p265 = scmp.lt.s32.totalorder %s23, 5
      %p266 = pnand %p264, %p265
      %p267 = pneg %p266
      // Predicated region
      $region33: #{double_conv.3} parent=5 // pred_check
        _
      $region34: #{double_conv.3} parent=5 // pred_check_branch
        %269 = sbr.rel (%p266) target = $region36
      $region35: #{double_conv.3} parent=5 // pred_region
        %s270 = ssub.s32 %s23, 1
        // Predicated region
        $region37: #{double_conv.3} parent=35 // pred_check
          %p271 = pneg %p56
        $region38: #{double_conv.3} parent=35 // pred_check_branch
          %273 = sbr.rel (%p271) target = $region40
        $region39: #{double_conv.3} parent=35 // pred_region
          %274 = dma.done [#allocation5], 9216
        $region40: #{double_conv.3} parent=35 // pred_fallthru
          _
        // Predicated region
        $region41: #{double_conv.3} parent=35 // pred_check
          %p275 = pneg %p77
        $region42: #{double_conv.3} parent=35 // pred_check_branch
          %277 = sbr.rel (%p275) target = $region44
        $region43: #{double_conv.3} parent=35 // pred_region
          %278 = dma.done [#allocation8], 16
        $region44: #{double_conv.3} parent=35 // pred_fallthru
          _
        // Predicated region
        $region45: #{double_conv.3} parent=35 // pred_check
          %p279 = pneg %p98
        $region46: #{double_conv.3} parent=35 // pred_check_branch
          %281 = sbr.rel (%p279) target = $region48
        $region47: #{double_conv.3} parent=35 // pred_region
          %282 = dma.done [#allocation8], 16
        $region48: #{double_conv.3} parent=35 // pred_fallthru
          _
        // Predicated region
        $region49: #{double_conv.3} parent=35 // pred_check
          %p283 = pneg %p119
        $region50: #{double_conv.3} parent=35 // pred_check_branch
          %285 = sbr.rel (%p283) target = $region52
        $region51: #{double_conv.3} parent=35 // pred_region
          %286 = dma.done [#allocation11], 16
        $region52: #{double_conv.3} parent=35 // pred_fallthru
          _
        %p287 = pneg %p56
        %p288 = pneg %p53
        %p289 = pneg %p77
        %p290 = pneg %p74
        %p291 = pneg %p98
        %p292 = pneg %p95
        %p293 = pneg %p119
        %p294 = pneg %p116
        %p295 = pneg %p147
        %p296 = pneg %p144
        %s297 = sand.u32 %s134, 1
        %s298 = scalar_lea.sflag [#allocation6], %s297
        %s299 = sand.u32 %s134, 1
        %s300 = smul.addr %s299, 64
        %s301 = scalar_lea.vmem [#allocation12], %s300
        %p302 = pneg %p173
        %p303 = pneg %p170
        %s304 = sand.u32 %s28, 1
        %s305 = scalar_lea.sflag [#allocation14], %s304
        %s306 = sand.u32 %s160, 1
        %s307 = scalar_lea.vmem [#allocation13], %s306
        %p308 = pneg %p199
        %p309 = pneg %p196
        %s310 = sand.u32 %s28, 1
        %s311 = scalar_lea.sflag [#allocation14], %s310
        %s312 = sand.u32 %s186, 1
        %s313 = scalar_lea.vmem [#allocation15], %s312
        %s314 = smul.u32 8, %s33
        %p316 = scmp.lt.s32.totalorder %s33, 0
        %s317 = ssub.s32 0, %s33
        %s318 = scalar_select %p316, %s317, %s33
        %s319 = sand.u32 %s318, 1
        %s320 = ssub.s32 0, %s319
        %s321 = scalar_select %p316, %s320, %s319
        %p322 = scmp.ne.s32.totalorder %s321, 0
        %p323 = scmp.lt.s32.totalorder %s321, 0
        %p324 = pnand %p323, %p322
        %p325 = pneg %p324
        %s326 = sadd.s32 %s321, 2
        %s327 = scalar_select %p325, %s326, %s321
        %p328 = scmp.eq.s32.totalorder %s33, 0
        // Predicated region
        $region53: #{double_conv.3} parent=35 // pred_check
          %p329 = pneg %p328
        $region54: #{double_conv.3} parent=35 // pred_check_branch
          %331 = sbr.rel (%p329) target = $region56
        $region55: #{double_conv.3} parent=35 // pred_region
          %332 = vst [vmem:[%s307] sm:$0x1] 0.0
          %333 = vst [vmem:[%s313] sm:$0x1] 0.0
          %s334 = smul.u32 %s33, 8
          %s335 = smul.u32 %s334, 2
          %s336 = smul.u32 %s32, 32
          %s337 = sadd.s32 %s335, %s336
          %s338 = smul.addr %s337, 64
          %s339 = scalar_lea.hbm %s0, %s338
          %s340 = smul.u32 %s327, 10
          %s341 = sadd.s32 1, %s340
          %s342 = smul.addr %s341, 8
          %s343 = scalar_lea.vmem [#allocation2], %s342
          %s344 = smul.u32 %s327, 3
          %s345 = scalar_lea.sflag [#allocation3], %s344
          // Predicated region
          $region57: #{double_conv.3} parent=55 // pred_check
            _
          $region58: #{double_conv.3} parent=55 // pred_check_branch
            %347 = sbr.rel target = $region60
          $region59: #{double_conv.3} parent=55 // pred_region
            %348 = sst [smem:[#allocation18]] [#allocation17]
            %349 = sst [smem:[#allocation19]] [#allocation16]
          $region60: #{double_conv.3} parent=55 // pred_fallthru
            _
          %351 = shalt.err (0)
          %s353 = sshll.u32 %s343, 4
          %s354 = int_to_ptr.vmem [resolvable:$true] %s353
          %356 = dma.hbm_to_vmem [thread:$0]  %s339, 1024, %s354, %s345
          %p357 = scmp.gt.s32.totalorder %s33, 0
          // Predicated region
          $region61: #{double_conv.3} parent=55 // pred_check
            %p358 = pneg %p357
          $region62: #{double_conv.3} parent=55 // pred_check_branch
            %360 = sbr.rel (%p358) target = $region64
          $region63: #{double_conv.3} parent=55 // pred_region
            %s361 = ssub.s32 %s334, 1
            %s362 = smul.u32 %s361, 2
            %s363 = sadd.s32 %s362, %s336
            %s364 = smul.addr %s363, 64
            %s365 = scalar_lea.hbm %s0, %s364
            %s366 = smul.addr %s340, 8
            %s367 = scalar_lea.vmem [#allocation2], %s366
            %s368 = sadd.s32 1, %s344
            %s369 = scalar_lea.sflag [#allocation3], %s368
            // Predicated region
            $region65: #{double_conv.3} parent=63 // pred_check
              _
            $region66: #{double_conv.3} parent=63 // pred_check_branch
              %371 = sbr.rel target = $region68
            $region67: #{double_conv.3} parent=63 // pred_region
              %372 = sst [smem:[#allocation18]] [#allocation21]
              %373 = sst [smem:[#allocation19]] [#allocation20]
            $region68: #{double_conv.3} parent=63 // pred_fallthru
              _
            %375 = shalt.err (0)
            %s377 = sshll.u32 %s367, 4
            %s378 = int_to_ptr.vmem [resolvable:$true] %s377
            %380 = dma.hbm_to_vmem [thread:$0]  %s365, 128, %s378, %s369
          $region64: #{double_conv.3} parent=55 // pred_fallthru
            _
          %p381 = scmp.lt.s32.totalorder %s33, 1
          // Predicated region
          $region69: #{double_conv.3} parent=55 // pred_check
            %p382 = pneg %p381
          $region70: #{double_conv.3} parent=55 // pred_check_branch
            %384 = sbr.rel (%p382) target = $region72
          $region71: #{double_conv.3} parent=55 // pred_region
            %s385 = sadd.s32 %s334, 8
            %s386 = smul.u32 %s385, 2
            %s387 = sadd.s32 %s386, %s336
            %s388 = smul.addr %s387, 64
            %s389 = scalar_lea.hbm %s0, %s388
            %s390 = sadd.s32 9, %s340
            %s391 = smul.addr %s390, 8
            %s392 = scalar_lea.vmem [#allocation2], %s391
            %s393 = sadd.s32 2, %s344
            %s394 = scalar_lea.sflag [#allocation3], %s393
            // Predicated region
            $region73: #{double_conv.3} parent=71 // pred_check
              _
            $region74: #{double_conv.3} parent=71 // pred_check_branch
              %396 = sbr.rel target = $region76
            $region75: #{double_conv.3} parent=71 // pred_region
              %397 = sst [smem:[#allocation18]] [#allocation23]
              %398 = sst [smem:[#allocation19]] [#allocation22]
            $region76: #{double_conv.3} parent=71 // pred_fallthru
              _
            %400 = shalt.err (0)
            %s402 = sshll.u32 %s392, 4
            %s403 = int_to_ptr.vmem [resolvable:$true] %s402
            %405 = dma.hbm_to_vmem [thread:$0]  %s389, 128, %s403, %s394
          $region72: #{double_conv.3} parent=55 // pred_fallthru
            _
        $region56: #{double_conv.3} parent=35 // pred_fallthru
          _
        %s406 = sadd.s32 %s33, 1
        %p407 = scmp.lt.s32.totalorder %s406, 2
        // Predicated region
        $region77: #{double_conv.3} parent=35 // pred_check
          %p408 = pneg %p407
        $region78: #{double_conv.3} parent=35 // pred_check_branch
          %410 = sbr.rel (%p408) target = $region80
        $region79: #{double_conv.3} parent=35 // pred_region
          %s411 = ssub.s32 1, %s327
          %s412 = smul.u32 %s406, 8
          %s413 = smul.u32 %s412, 2
          %s414 = smul.u32 %s32, 32
          %s415 = sadd.s32 %s413, %s414
          %s416 = smul.addr %s415, 64
          %s417 = scalar_lea.hbm %s0, %s416
          %s418 = smul.u32 %s411, 10
          %s419 = sadd.s32 1, %s418
          %s420 = smul.addr %s419, 8
          %s421 = scalar_lea.vmem [#allocation2], %s420
          %s422 = smul.u32 %s411, 3
          %s423 = scalar_lea.sflag [#allocation3], %s422
          // Predicated region
          $region81: #{double_conv.3} parent=79 // pred_check
            _
          $region82: #{double_conv.3} parent=79 // pred_check_branch
            %425 = sbr.rel target = $region84
          $region83: #{double_conv.3} parent=79 // pred_region
            %426 = sst [smem:[#allocation18]] [#allocation25]
            %427 = sst [smem:[#allocation19]] [#allocation24]
          $region84: #{double_conv.3} parent=79 // pred_fallthru
            _
          %429 = shalt.err (0)
          %s431 = sshll.u32 %s421, 4
          %s432 = int_to_ptr.vmem [resolvable:$true] %s431
          %434 = dma.hbm_to_vmem [thread:$0]  %s417, 1024, %s432, %s423
          %p435 = scmp.gt.s32.totalorder %s406, 0
          // Predicated region
          $region85: #{double_conv.3} parent=79 // pred_check
            %p436 = pneg %p435
          $region86: #{double_conv.3} parent=79 // pred_check_branch
            %438 = sbr.rel (%p436) target = $region88
          $region87: #{double_conv.3} parent=79 // pred_region
            %s439 = ssub.s32 %s412, 1
            %s440 = smul.u32 %s439, 2
            %s441 = sadd.s32 %s440, %s414
            %s442 = smul.addr %s441, 64
            %s443 = scalar_lea.hbm %s0, %s442
            %s444 = smul.addr %s418, 8
            %s445 = scalar_lea.vmem [#allocation2], %s444
            %s446 = sadd.s32 1, %s422
            %s447 = scalar_lea.sflag [#allocation3], %s446
            // Predicated region
            $region89: #{double_conv.3} parent=87 // pred_check
              _
            $region90: #{double_conv.3} parent=87 // pred_check_branch
              %449 = sbr.rel target = $region92
            $region91: #{double_conv.3} parent=87 // pred_region
              %450 = sst [smem:[#allocation18]] [#allocation27]
              %451 = sst [smem:[#allocation19]] [#allocation26]
            $region92: #{double_conv.3} parent=87 // pred_fallthru
              _
            %453 = shalt.err (0)
            %s455 = sshll.u32 %s445, 4
            %s456 = int_to_ptr.vmem [resolvable:$true] %s455
            %458 = dma.hbm_to_vmem [thread:$0]  %s443, 128, %s456, %s447
          $region88: #{double_conv.3} parent=79 // pred_fallthru
            _
          %p459 = scmp.lt.s32.totalorder %s406, 1
          // Predicated region
          $region93: #{double_conv.3} parent=79 // pred_check
            %p460 = pneg %p459
          $region94: #{double_conv.3} parent=79 // pred_check_branch
            %462 = sbr.rel (%p460) target = $region96
          $region95: #{double_conv.3} parent=79 // pred_region
            %s463 = sadd.s32 %s412, 8
            %s464 = smul.u32 %s463, 2
            %s465 = sadd.s32 %s464, %s414
            %s466 = smul.addr %s465, 64
            %s467 = scalar_lea.hbm %s0, %s466
            %s468 = sadd.s32 9, %s418
            %s469 = smul.addr %s468, 8
            %s470 = scalar_lea.vmem [#allocation2], %s469
            %s471 = sadd.s32 2, %s422
            %s472 = scalar_lea.sflag [#allocation3], %s471
            // Predicated region
            $region97: #{double_conv.3} parent=95 // pred_check
              _
            $region98: #{double_conv.3} parent=95 // pred_check_branch
              %474 = sbr.rel target = $region100
            $region99: #{double_conv.3} parent=95 // pred_region
              %475 = sst [smem:[#allocation18]] [#allocation29]
              %476 = sst [smem:[#allocation19]] [#allocation28]
            $region100: #{double_conv.3} parent=95 // pred_fallthru
              _
            %478 = shalt.err (0)
            %s480 = sshll.u32 %s470, 4
            %s481 = int_to_ptr.vmem [resolvable:$true] %s480
            %483 = dma.hbm_to_vmem [thread:$0]  %s467, 128, %s481, %s472
          $region96: #{double_conv.3} parent=79 // pred_fallthru
            _
        $region80: #{double_conv.3} parent=35 // pred_fallthru
          _
        %s484 = smul.u32 %s327, 3
        %s485 = scalar_lea.sflag [#allocation3], %s484
        %s486 = smul.u32 4, 8
        %s487 = smul.u32 %s486, 2
        %s488 = smul.u32 %s487, 1
        %s489 = sshll.u32 %s488, 4
        %490 = dma.done %s485, %s489
        %p491 = scmp.gt.s32.totalorder %s33, 0
        // Predicated region
        $region101: #{double_conv.3} parent=35 // pred_check
          %p492 = pneg %p491
        $region102: #{double_conv.3} parent=35 // pred_check_branch
          %494 = sbr.rel (%p492) target = $region104
        $region103: #{double_conv.3} parent=35 // pred_region
          %s495 = sadd.s32 1, %s484
          %s496 = scalar_lea.sflag [#allocation3], %s495
          %s497 = smul.u32 4, 1
          %s498 = smul.u32 %s497, 2
          %s499 = smul.u32 %s498, 1
          %s500 = sshll.u32 %s499, 4
          %501 = dma.done %s496, %s500
        $region104: #{double_conv.3} parent=35 // pred_fallthru
          _
        %p502 = scmp.lt.s32.totalorder %s33, 1
        // Predicated region
        $region105: #{double_conv.3} parent=35 // pred_check
          %p503 = pneg %p502
        $region106: #{double_conv.3} parent=35 // pred_check_branch
          %505 = sbr.rel (%p503) target = $region108
        $region107: #{double_conv.3} parent=35 // pred_region
          %s506 = sadd.s32 2, %s484
          %s507 = scalar_lea.sflag [#allocation3], %s506
          %s508 = smul.u32 4, 1
          %s509 = smul.u32 %s508, 2
          %s510 = smul.u32 %s509, 1
          %s511 = sshll.u32 %s510, 4
          %512 = dma.done %s507, %s511
        $region108: #{double_conv.3} parent=35 // pred_fallthru
          _
        %s513 = smul.u32 %s327, 10
        %s514 = smul.addr %s513, 8
        %s515 = scalar_lea.vmem [#allocation2], %s514
        %v516 = vld [vmem:[%s515] sm:$0xff]
        %v517 = vld [vmem:[%s515 + $0x8] sm:$0xff]
        %v518 = vld [vmem:[%s515 + $0x10] sm:$0xff]
        %v519 = vld [vmem:[%s515 + $0x18] sm:$0xff]
        %v520 = vld [vmem:[%s515 + $0x20] sm:$0xff]
        %v521 = vld [vmem:[%s515 + $0x28] sm:$0xff]
        %v522 = vld [vmem:[%s515 + $0x30] sm:$0xff]
        %v523 = vld [vmem:[%s515 + $0x38] sm:$0xff]
        %v524 = vld [vmem:[%s515 + $0x40] sm:$0xff]
        %v525 = vld [vmem:[%s515 + $0x48] sm:$0xff]
        %s526 = scalar_select %p491, 1, 0
        %v527 = vstv %s526
        %vm528 = vcmp.eq.s32.totalorder %v527, 1
        %s529 = scalar_select %p502, 1, 0
        %v530 = vstv %s529
        %vm531 = vcmp.eq.s32.totalorder %v530, 1
        %v532 = vsel %vm528, 1, 0
        %v533 = vsel %vm531, 1, 0
        %vm534 = vcmp.eq.s32.totalorder %v532, 1
        %vm535 = vcmp.eq.s32.totalorder %v533, 1
        %v536 = vsel %vm534, %v516, 0
        %v537 = vsel 1, %v517, 0
        %v538 = vsel 1, %v518, 0
        %v539 = vsel 1, %v519, 0
        %v540 = vsel 1, %v520, 0
        %v541 = vsel 1, %v521, 0
        %v542 = vsel 1, %v522, 0
        %v543 = vsel 1, %v523, 0
        %v544 = vsel 1, %v524, 0
        %v545 = vsel %vm535, %v525, 0
        %v547 = vshrl.u32 %v536, 16
        %v549 = vrot.slane %v547, 7
        %v550 = vshll.u32 %v536, 16
        %v552 = vor.u32 %v549, %v550
        %v554 = vshrl.u32 %v537, 16
        %v556 = vrot.slane %v554, 7
        %v557 = vshll.u32 %v537, 16
        %v559 = vor.u32 %v556, %v557
        %v561 = vshrl.u32 %v538, 16
        %v563 = vrot.slane %v561, 7
        %v564 = vshll.u32 %v538, 16
        %v566 = vor.u32 %v563, %v564
        %v568 = vshrl.u32 %v539, 16
        %v570 = vrot.slane %v568, 7
        %v571 = vshll.u32 %v539, 16
        %v573 = vor.u32 %v570, %v571
        %v575 = vshrl.u32 %v540, 16
        %v577 = vrot.slane %v575, 7
        %v578 = vshll.u32 %v540, 16
        %v580 = vor.u32 %v577, %v578
        %v582 = vshrl.u32 %v541, 16
        %v584 = vrot.slane %v582, 7
        %v585 = vshll.u32 %v541, 16
        %v587 = vor.u32 %v584, %v585
        %v589 = vshrl.u32 %v542, 16
        %v591 = vrot.slane %v589, 7
        %v592 = vshll.u32 %v542, 16
        %v594 = vor.u32 %v591, %v592
        %v596 = vshrl.u32 %v543, 16
        %v598 = vrot.slane %v596, 7
        %v599 = vshll.u32 %v543, 16
        %v601 = vor.u32 %v598, %v599
        %v603 = vshrl.u32 %v544, 16
        %v605 = vrot.slane %v603, 7
        %v606 = vshll.u32 %v544, 16
        %v608 = vor.u32 %v605, %v606
        %v610 = vshrl.u32 %v545, 16
        %v612 = vrot.slane %v610, 7
        %v613 = vshll.u32 %v545, 16
        %v615 = vor.u32 %v612, %v613
        %vm626 = vcmask 1040384
        %vm627 = vsmask.f32 256
        %vm628 = vmand %vm626, %vm627
        %v629 = vsel %vm628, 0, %v552
        %v630 = vsel %vm628, 0, %v559
        %v631 = vsel %vm628, 0, %v566
        %v632 = vsel %vm628, 0, %v573
        %v633 = vsel %vm628, 0, %v580
        %v634 = vsel %vm628, 0, %v587
        %v635 = vsel %vm628, 0, %v594
        %v636 = vsel %vm628, 0, %v601
        %v637 = vsel %vm628, 0, %v608
        %v638 = vsel %vm628, 0, %v615
        %v639 = vrot.slane %v550, 1
        %v640 = vor.u32 %v547, %v639
        %v641 = vrot.slane %v557, 1
        %v642 = vor.u32 %v554, %v641
        %v643 = vrot.slane %v564, 1
        %v644 = vor.u32 %v561, %v643
        %v645 = vrot.slane %v571, 1
        %v646 = vor.u32 %v568, %v645
        %v647 = vrot.slane %v578, 1
        %v648 = vor.u32 %v575, %v647
        %v649 = vrot.slane %v585, 1
        %v650 = vor.u32 %v582, %v649
        %v651 = vrot.slane %v592, 1
        %v652 = vor.u32 %v589, %v651
        %v653 = vrot.slane %v599, 1
        %v654 = vor.u32 %v596, %v653
        %v655 = vrot.slane %v606, 1
        %v656 = vor.u32 %v603, %v655
        %v657 = vrot.slane %v613, 1
        %v658 = vor.u32 %v610, %v657
        %vm669 = vcmask 1047552
        %vm670 = vsmask.f32 7424
        %vm671 = vmand %vm669, %vm670
        %v672 = vsel %vm671, %v640, 0
        %v673 = vsel %vm671, %v642, 0
        %v674 = vsel %vm671, %v644, 0
        %v675 = vsel %vm671, %v646, 0
        %v676 = vsel %vm671, %v648, 0
        %v677 = vsel %vm671, %v650, 0
        %v678 = vsel %vm671, %v652, 0
        %v679 = vsel %vm671, %v654, 0
        %v680 = vsel %vm671, %v656, 0
        %v681 = vsel %vm671, %v658, 0
        %v682 = vld [vmem:[#allocation4] sm:$0xf]
        %v683 = vld [vmem:[#allocation4 + $0x4] sm:$0xf]
        %v684 = vld [vmem:[#allocation4 + $0x8] sm:$0xf]
        %v685 = vld [vmem:[#allocation4 + $0xc] sm:$0xf]
        %v686 = vld [vmem:[#allocation4 + $0x10] sm:$0xf]
        %v687 = vld [vmem:[#allocation4 + $0x14] sm:$0xf]
        %v688 = vld [vmem:[#allocation4 + $0x18] sm:$0xf]
        %v689 = vld [vmem:[#allocation4 + $0x1c] sm:$0xf]
        %v690 = vld [vmem:[#allocation4 + $0x20] sm:$0xf]
        %v691 = vld [vmem:[#allocation4 + $0x24] sm:$0xf]
        %v692 = vld [vmem:[#allocation4 + $0x28] sm:$0xf]
        %v693 = vld [vmem:[#allocation4 + $0x2c] sm:$0xf]
        %v694 = vld [vmem:[#allocation4 + $0x30] sm:$0xf]
        %v695 = vld [vmem:[#allocation4 + $0x34] sm:$0xf]
        %v696 = vld [vmem:[#allocation4 + $0x38] sm:$0xf]
        %v697 = vld [vmem:[#allocation4 + $0x3c] sm:$0xf]
        %v698 = vld [vmem:[#allocation4 + $0x40] sm:$0xf]
        %v699 = vld [vmem:[#allocation4 + $0x44] sm:$0xf]
        %v700 = vld [vmem:[#allocation4 + $0x48] sm:$0xf]
        %v701 = vld [vmem:[#allocation4 + $0x4c] sm:$0xf]
        %v702 = vld [vmem:[#allocation4 + $0x50] sm:$0xf]
        %v703 = vld [vmem:[#allocation4 + $0x54] sm:$0xf]
        %v704 = vld [vmem:[#allocation4 + $0x58] sm:$0xf]
        %v705 = vld [vmem:[#allocation4 + $0x5c] sm:$0xf]
        %v706 = vld [vmem:[#allocation4 + $0x60] sm:$0xf]
        %v707 = vld [vmem:[#allocation4 + $0x64] sm:$0xf]
        %v708 = vld [vmem:[#allocation4 + $0x68] sm:$0xf]
        %v709 = vld [vmem:[#allocation4 + $0x6c] sm:$0xf]
        %v710 = vld [vmem:[#allocation4 + $0x70] sm:$0xf]
        %v711 = vld [vmem:[#allocation4 + $0x74] sm:$0xf]
        %v712 = vld [vmem:[#allocation4 + $0x78] sm:$0xf]
        %v713 = vld [vmem:[#allocation4 + $0x7c] sm:$0xf]
        %v730 = vunpack.c.l.b16 %v698
        %v731 = vunpack.c.l.b16 %v699
        %v732 = vunpack.c.l.b16 %v700
        %v733 = vunpack.c.l.b16 %v701
        %v734 = vunpack.c.l.b16 %v702
        %v735 = vunpack.c.l.b16 %v703
        %v736 = vunpack.c.l.b16 %v704
        %v737 = vunpack.c.l.b16 %v705
        %v738 = vunpack.c.l.b16 %v706
        %v739 = vunpack.c.l.b16 %v707
        %v740 = vunpack.c.l.b16 %v708
        %v741 = vunpack.c.l.b16 %v709
        %v742 = vunpack.c.l.b16 %v710
        %v743 = vunpack.c.l.b16 %v711
        %v744 = vunpack.c.l.b16 %v712
        %v745 = vunpack.c.l.b16 %v713
        %v746 = vpack.c.b16 %v731, %v730
        %v747 = vpack.c.b16 %v733, %v732
        %v748 = vpack.c.b16 %v735, %v734
        %v749 = vpack.c.b16 %v737, %v736
        %v750 = vpack.c.b16 %v739, %v738
        %v751 = vpack.c.b16 %v741, %v740
        %v752 = vpack.c.b16 %v743, %v742
        %v753 = vpack.c.b16 %v745, %v744
        %762 = vmatprep.subr.bf16.mxu0 0
        %763 = vmatpush1.bf16.msra.mxu0 %v746
        %764 = vmatprep.subr.bf16.mxu0 0
        %765 = vmatpush1.bf16.msra.mxu0 %v747
        %766 = vmatprep.subr.bf16.mxu0 0
        %767 = vmatpush1.bf16.msra.mxu0 %v748
        %768 = vmatprep.subr.bf16.mxu0 0
        %769 = vmatpush1.bf16.msra.mxu0 %v749
        %770 = vmatprep.subr.bf16.mxu0 0
        %771 = vmatpush1.bf16.msra.mxu0 %v750
        %772 = vmatprep.subr.bf16.mxu0 0
        %773 = vmatpush1.bf16.msra.mxu0 %v751
        %774 = vmatprep.subr.bf16.mxu0 0
        %775 = vmatpush1.bf16.msra.mxu0 %v752
        %776 = vmatprep.subr.bf16.mxu0 0
        %777 = vmatpush1.bf16.msra.mxu0 %v753
        %778 = vmatprep.subr.bf16.mxu0 0
        %779 = vmatpush1.bf16.msra.mxu0 0
        %780 = vmatprep.subr.bf16.mxu0 0
        %781 = vmatpush1.bf16.msra.mxu0 0
        %782 = vmatprep.subr.bf16.mxu0 0
        %783 = vmatpush1.bf16.msra.mxu0 0
        %784 = vmatprep.subr.bf16.mxu0 0
        %785 = vmatpush1.bf16.msra.mxu0 0
        %786 = vmatprep.subr.bf16.mxu0 0
        %787 = vmatpush1.bf16.msra.mxu0 0
        %788 = vmatprep.subr.bf16.mxu0 0
        %789 = vmatpush1.bf16.msra.mxu0 0
        %790 = vmatprep.subr.bf16.mxu0 0
        %791 = vmatpush1.bf16.msra.mxu0 0
        %792 = vmatprep.subr.bf16.mxu0 0
        %793 = vmatpush1.bf16.msra.mxu0 0
        %794 = vmatprep.mubr.bf16.mxu0 0
        %795 = vmatmul.mubr.bf16.gmra.mrb[0].mxu0 %v536
        %v796 = vpop.f32.mrb[0].mxu0
        %v797 = vadd.f32 0.0, %v796
        %v798 = vpop.f32.mrb[0].mxu0
        %v799 = vpop.f32.mrb[0].mxu0
        %v800 = vadd.f32 0.0, %v799
        %v801 = vpop.f32.mrb[0].mxu0
        %802 = vmatprep.mubr.bf16.mxu0 0
        %803 = vmatmul.mubr.bf16.gmra.mrb[0].mxu0 %v537
        %v804 = vpop.f32.mrb[0].mxu0
        %v805 = vadd.f32 0.0, %v804
        %v806 = vpop.f32.mrb[0].mxu0
        %v807 = vpop.f32.mrb[0].mxu0
        %v808 = vadd.f32 0.0, %v807
        %v809 = vpop.f32.mrb[0].mxu0
        %810 = vmatprep.mubr.bf16.mxu0 0
        %811 = vmatmul.mubr.bf16.gmra.mrb[0].mxu0 %v538
        %v812 = vpop.f32.mrb[0].mxu0
        %v813 = vadd.f32 0.0, %v812
        %v814 = vpop.f32.mrb[0].mxu0
        %v815 = vpop.f32.mrb[0].mxu0
        %v816 = vadd.f32 0.0, %v815
        %v817 = vpop.f32.mrb[0].mxu0
        %818 = vmatprep.mubr.bf16.mxu0 0
        %819 = vmatmul.mubr.bf16.gmra.mrb[0].mxu0 %v539
        %v820 = vpop.f32.mrb[0].mxu0
        %v821 = vadd.f32 0.0, %v820
        %v822 = vpop.f32.mrb[0].mxu0
        %v823 = vpop.f32.mrb[0].mxu0
        %v824 = vadd.f32 0.0, %v823
        %v825 = vpop.f32.mrb[0].mxu0
        %826 = vmatprep.mubr.bf16.mxu0 0
        %827 = vmatmul.mubr.bf16.gmra.mrb[0].mxu0 %v540
        %v828 = vpop.f32.mrb[0].mxu0
        %v829 = vadd.f32 0.0, %v828
        %v830 = vpop.f32.mrb[0].mxu0
        %v831 = vpop.f32.mrb[0].mxu0
        %v832 = vadd.f32 0.0, %v831
        %v833 = vpop.f32.mrb[0].mxu0
        %834 = vmatprep.mubr.bf16.mxu0 0
        %835 = vmatmul.mubr.bf16.gmra.mrb[0].mxu0 %v541
        %v836 = vpop.f32.mrb[0].mxu0
        %v837 = vadd.f32 0.0, %v836
        %v838 = vpop.f32.mrb[0].mxu0
        %v839 = vpop.f32.mrb[0].mxu0
        %v840 = vadd.f32 0.0, %v839
        %v841 = vpop.f32.mrb[0].mxu0
        %842 = vmatprep.mubr.bf16.mxu0 0
        %843 = vmatmul.mubr.bf16.gmra.mrb[0].mxu0 %v542
        %v844 = vpop.f32.mrb[0].mxu0
        %v845 = vadd.f32 0.0, %v844
        %v846 = vpop.f32.mrb[0].mxu0
        %v847 = vpop.f32.mrb[0].mxu0
        %v848 = vadd.f32 0.0, %v847
        %v849 = vpop.f32.mrb[0].mxu0
        %850 = vmatprep.mubr.bf16.mxu0 0
        %851 = vmatmul.mubr.bf16.gmra.mrb[0].mxu0 %v543
        %v852 = vpop.f32.mrb[0].mxu0
        %v853 = vadd.f32 0.0, %v852
        %v854 = vpop.f32.mrb[0].mxu0
        %v855 = vpop.f32.mrb[0].mxu0
        %v856 = vadd.f32 0.0, %v855
        %v857 = vpop.f32.mrb[0].mxu0
        %858 = vdwg.mxu0
        %v875 = vunpack.c.l.b16 %v682
        %v876 = vunpack.c.l.b16 %v683
        %v877 = vunpack.c.l.b16 %v684
        %v878 = vunpack.c.l.b16 %v685
        %v879 = vunpack.c.l.b16 %v686
        %v880 = vunpack.c.l.b16 %v687
        %v881 = vunpack.c.l.b16 %v688
        %v882 = vunpack.c.l.b16 %v689
        %v883 = vunpack.c.l.b16 %v690
        %v884 = vunpack.c.l.b16 %v691
        %v885 = vunpack.c.l.b16 %v692
        %v886 = vunpack.c.l.b16 %v693
        %v887 = vunpack.c.l.b16 %v694
        %v888 = vunpack.c.l.b16 %v695
        %v889 = vunpack.c.l.b16 %v696
        %v890 = vunpack.c.l.b16 %v697
        %v891 = vpack.c.b16 %v876, %v875
        %v892 = vpack.c.b16 %v878, %v877
        %v893 = vpack.c.b16 %v880, %v879
        %v894 = vpack.c.b16 %v882, %v881
        %v895 = vpack.c.b16 %v884, %v883
        %v896 = vpack.c.b16 %v886, %v885
        %v897 = vpack.c.b16 %v888, %v887
        %v898 = vpack.c.b16 %v890, %v889
        %907 = vmatprep.subr.bf16.mxu0 0
        %908 = vmatpush1.bf16.msra.mxu0 %v891
        %909 = vmatprep.subr.bf16.mxu0 0
        %910 = vmatpush1.bf16.msra.mxu0 %v892
        %911 = vmatprep.subr.bf16.mxu0 0
        %912 = vmatpush1.bf16.msra.mxu0 %v893
        %913 = vmatprep.subr.bf16.mxu0 0
        %914 = vmatpush1.bf16.msra.mxu0 %v894
        %915 = vmatprep.subr.bf16.mxu0 0
        %916 = vmatpush1.bf16.msra.mxu0 %v895
        %917 = vmatprep.subr.bf16.mxu0 0
        %918 = vmatpush1.bf16.msra.mxu0 %v896
        %919 = vmatprep.subr.bf16.mxu0 0
        %920 = vmatpush1.bf16.msra.mxu0 %v897
        %921 = vmatprep.subr.bf16.mxu0 0
        %922 = vmatpush1.bf16.msra.mxu0 %v898
        %923 = vmatprep.subr.bf16.mxu0 0
        %924 = vmatpush1.bf16.msra.mxu0 0
        %925 = vmatprep.subr.bf16.mxu0 0
        %926 = vmatpush1.bf16.msra.mxu0 0
        %927 = vmatprep.subr.bf16.mxu0 0
        %928 = vmatpush1.bf16.msra.mxu0 0
        %929 = vmatprep.subr.bf16.mxu0 0
        %930 = vmatpush1.bf16.msra.mxu0 0
        %931 = vmatprep.subr.bf16.mxu0 0
        %932 = vmatpush1.bf16.msra.mxu0 0
        %933 = vmatprep.subr.bf16.mxu0 0
        %934 = vmatpush1.bf16.msra.mxu0 0
        %935 = vmatprep.subr.bf16.mxu0 0
        %936 = vmatpush1.bf16.msra.mxu0 0
        %937 = vmatprep.subr.bf16.mxu0 0
        %938 = vmatpush1.bf16.msra.mxu0 0
        %939 = vmatprep.mubr.bf16.mxu0 0
        %940 = vmatmul.mubr.bf16.gmra.mrb[0].mxu0 %v629
        %v941 = vpop.f32.mrb[0].mxu0
        %v942 = vadd.f32 %v797, %v941
        %v943 = vpop.f32.mrb[0].mxu0
        %v944 = vpop.f32.mrb[0].mxu0
        %v945 = vadd.f32 %v800, %v944
        %v946 = vpop.f32.mrb[0].mxu0
        %947 = vmatprep.mubr.bf16.mxu0 0
        %948 = vmatmul.mubr.bf16.gmra.mrb[0].mxu0 %v630
        %v949 = vpop.f32.mrb[0].mxu0
        %v950 = vadd.f32 %v805, %v949
        %v951 = vpop.f32.mrb[0].mxu0
        %v952 = vpop.f32.mrb[0].mxu0
        %v953 = vadd.f32 %v808, %v952
        %v954 = vpop.f32.mrb[0].mxu0
        %955 = vmatprep.mubr.bf16.mxu0 0
        %956 = vmatmul.mubr.bf16.gmra.mrb[0].mxu0 %v631
        %v957 = vpop.f32.mrb[0].mxu0
        %v958 = vadd.f32 %v813, %v957
        %v959 = vpop.f32.mrb[0].mxu0
        %v960 = vpop.f32.mrb[0].mxu0
        %v961 = vadd.f32 %v816, %v960
        %v962 = vpop.f32.mrb[0].mxu0
        %963 = vmatprep.mubr.bf16.mxu0 0
        %964 = vmatmul.mubr.bf16.gmra.mrb[0].mxu0 %v632
        %v965 = vpop.f32.mrb[0].mxu0
        %v966 = vadd.f32 %v821, %v965
        %v967 = vpop.f32.mrb[0].mxu0
        %v968 = vpop.f32.mrb[0].mxu0
        %v969 = vadd.f32 %v824, %v968
        %v970 = vpop.f32.mrb[0].mxu0
        %971 = vmatprep.mubr.bf16.mxu0 0
        %972 = vmatmul.mubr.bf16.gmra.mrb[0].mxu0 %v633
        %v973 = vpop.f32.mrb[0].mxu0
        %v974 = vadd.f32 %v829, %v973
        %v975 = vpop.f32.mrb[0].mxu0
        %v976 = vpop.f32.mrb[0].mxu0
        %v977 = vadd.f32 %v832, %v976
        %v978 = vpop.f32.mrb[0].mxu0
        %979 = vmatprep.mubr.bf16.mxu0 0
        %980 = vmatmul.mubr.bf16.gmra.mrb[0].mxu0 %v634
        %v981 = vpop.f32.mrb[0].mxu0
        %v982 = vadd.f32 %v837, %v981
        %v983 = vpop.f32.mrb[0].mxu0
        %v984 = vpop.f32.mrb[0].mxu0
        %v985 = vadd.f32 %v840, %v984
        %v986 = vpop.f32.mrb[0].mxu0
        %987 = vmatprep.mubr.bf16.mxu0 0
        %988 = vmatmul.mubr.bf16.gmra.mrb[0].mxu0 %v635
        %v989 = vpop.f32.mrb[0].mxu0
        %v990 = vadd.f32 %v845, %v989
        %v991 = vpop.f32.mrb[0].mxu0
        %v992 = vpop.f32.mrb[0].mxu0
        %v993 = vadd.f32 %v848, %v992
        %v994 = vpop.f32.mrb[0].mxu0
        %995 = vmatprep.mubr.bf16.mxu0 0
        %996 = vmatmul.mubr.bf16.gmra.mrb[0].mxu0 %v636
        %v997 = vpop.f32.mrb[0].mxu0
        %v998 = vadd.f32 %v853, %v997
        %v999 = vpop.f32.mrb[0].mxu0
        %v1000 = vpop.f32.mrb[0].mxu0
        %v1001 = vadd.f32 %v856, %v1000
        %v1002 = vpop.f32.mrb[0].mxu0
        %1003 = vdwg.mxu0
        %v1004 = vld [vmem:[#allocation4 + $0x80] sm:$0xf]
        %v1005 = vld [vmem:[#allocation4 + $0x84] sm:$0xf]
        %v1006 = vld [vmem:[#allocation4 + $0x88] sm:$0xf]
        %v1007 = vld [vmem:[#allocation4 + $0x8c] sm:$0xf]
        %v1008 = vld [vmem:[#allocation4 + $0x90] sm:$0xf]
        %v1009 = vld [vmem:[#allocation4 + $0x94] sm:$0xf]
        %v1010 = vld [vmem:[#allocation4 + $0x98] sm:$0xf]
        %v1011 = vld [vmem:[#allocation4 + $0x9c] sm:$0xf]
        %v1012 = vld [vmem:[#allocation4 + $0xa0] sm:$0xf]
        %v1013 = vld [vmem:[#allocation4 + $0xa4] sm:$0xf]
        %v1014 = vld [vmem:[#allocation4 + $0xa8] sm:$0xf]
        %v1015 = vld [vmem:[#allocation4 + $0xac] sm:$0xf]
        %v1016 = vld [vmem:[#allocation4 + $0xb0] sm:$0xf]
        %v1017 = vld [vmem:[#allocation4 + $0xb4] sm:$0xf]
        %v1018 = vld [vmem:[#allocation4 + $0xb8] sm:$0xf]
        %v1019 = vld [vmem:[#allocation4 + $0xbc] sm:$0xf]
        %v1036 = vunpack.c.l.b16 %v1004
        %v1037 = vunpack.c.l.b16 %v1005
        %v1038 = vunpack.c.l.b16 %v1006
        %v1039 = vunpack.c.l.b16 %v1007
        %v1040 = vunpack.c.l.b16 %v1008
        %v1041 = vunpack.c.l.b16 %v1009
        %v1042 = vunpack.c.l.b16 %v1010
        %v1043 = vunpack.c.l.b16 %v1011
        %v1044 = vunpack.c.l.b16 %v1012
        %v1045 = vunpack.c.l.b16 %v1013
        %v1046 = vunpack.c.l.b16 %v1014
        %v1047 = vunpack.c.l.b16 %v1015
        %v1048 = vunpack.c.l.b16 %v1016
        %v1049 = vunpack.c.l.b16 %v1017
        %v1050 = vunpack.c.l.b16 %v1018
        %v1051 = vunpack.c.l.b16 %v1019
        %v1052 = vpack.c.b16 %v1037, %v1036
        %v1053 = vpack.c.b16 %v1039, %v1038
        %v1054 = vpack.c.b16 %v1041, %v1040
        %v1055 = vpack.c.b16 %v1043, %v1042
        %v1056 = vpack.c.b16 %v1045, %v1044
        %v1057 = vpack.c.b16 %v1047, %v1046
        %v1058 = vpack.c.b16 %v1049, %v1048
        %v1059 = vpack.c.b16 %v1051, %v1050
        %1068 = vmatprep.subr.bf16.mxu0 0
        %1069 = vmatpush1.bf16.msra.mxu0 %v1052
        %1070 = vmatprep.subr.bf16.mxu0 0
        %1071 = vmatpush1.bf16.msra.mxu0 %v1053
        %1072 = vmatprep.subr.bf16.mxu0 0
        %1073 = vmatpush1.bf16.msra.mxu0 %v1054
        %1074 = vmatprep.subr.bf16.mxu0 0
        %1075 = vmatpush1.bf16.msra.mxu0 %v1055
        %1076 = vmatprep.subr.bf16.mxu0 0
        %1077 = vmatpush1.bf16.msra.mxu0 %v1056
        %1078 = vmatprep.subr.bf16.mxu0 0
        %1079 = vmatpush1.bf16.msra.mxu0 %v1057
        %1080 = vmatprep.subr.bf16.mxu0 0
        %1081 = vmatpush1.bf16.msra.mxu0 %v1058
        %1082 = vmatprep.subr.bf16.mxu0 0
        %1083 = vmatpush1.bf16.msra.mxu0 %v1059
        %1084 = vmatprep.subr.bf16.mxu0 0
        %1085 = vmatpush1.bf16.msra.mxu0 0
        %1086 = vmatprep.subr.bf16.mxu0 0
        %1087 = vmatpush1.bf16.msra.mxu0 0
        %1088 = vmatprep.subr.bf16.mxu0 0
        %1089 = vmatpush1.bf16.msra.mxu0 0
        %1090 = vmatprep.subr.bf16.mxu0 0
        %1091 = vmatpush1.bf16.msra.mxu0 0
        %1092 = vmatprep.subr.bf16.mxu0 0
        %1093 = vmatpush1.bf16.msra.mxu0 0
        %1094 = vmatprep.subr.bf16.mxu0 0
        %1095 = vmatpush1.bf16.msra.mxu0 0
        %1096 = vmatprep.subr.bf16.mxu0 0
        %1097 = vmatpush1.bf16.msra.mxu0 0
        %1098 = vmatprep.subr.bf16.mxu0 0
        %1099 = vmatpush1.bf16.msra.mxu0 0
        %1100 = vmatprep.mubr.bf16.mxu0 0
        %1101 = vmatmul.mubr.bf16.gmra.mrb[0].mxu0 %v672
        %v1102 = vpop.f32.mrb[0].mxu0
        %v1103 = vadd.f32 0.0, %v1102
        %v1104 = vpop.f32.mrb[0].mxu0
        %v1105 = vpop.f32.mrb[0].mxu0
        %v1106 = vadd.f32 0.0, %v1105
        %v1107 = vpop.f32.mrb[0].mxu0
        %1108 = vmatprep.mubr.bf16.mxu0 0
        %1109 = vmatmul.mubr.bf16.gmra.mrb[0].mxu0 %v673
        %v1110 = vpop.f32.mrb[0].mxu0
        %v1111 = vadd.f32 0.0, %v1110
        %v1112 = vpop.f32.mrb[0].mxu0
        %v1113 = vpop.f32.mrb[0].mxu0
        %v1114 = vadd.f32 0.0, %v1113
        %v1115 = vpop.f32.mrb[0].mxu0
        %1116 = vmatprep.mubr.bf16.mxu0 0
        %1117 = vmatmul.mubr.bf16.gmra.mrb[0].mxu0 %v674
        %v1118 = vpop.f32.mrb[0].mxu0
        %v1119 = vadd.f32 0.0, %v1118
        %v1120 = vpop.f32.mrb[0].mxu0
        %v1121 = vpop.f32.mrb[0].mxu0
        %v1122 = vadd.f32 0.0, %v1121
        %v1123 = vpop.f32.mrb[0].mxu0
        %1124 = vmatprep.mubr.bf16.mxu0 0
        %1125 = vmatmul.mubr.bf16.gmra.mrb[0].mxu0 %v675
        %v1126 = vpop.f32.mrb[0].mxu0
        %v1127 = vadd.f32 0.0, %v1126
        %v1128 = vpop.f32.mrb[0].mxu0
        %v1129 = vpop.f32.mrb[0].mxu0
        %v1130 = vadd.f32 0.0, %v1129
        %v1131 = vpop.f32.mrb[0].mxu0
        %1132 = vmatprep.mubr.bf16.mxu0 0
        %1133 = vmatmul.mubr.bf16.gmra.mrb[0].mxu0 %v676
        %v1134 = vpop.f32.mrb[0].mxu0
        %v1135 = vadd.f32 0.0, %v1134
        %v1136 = vpop.f32.mrb[0].mxu0
        %v1137 = vpop.f32.mrb[0].mxu0
        %v1138 = vadd.f32 0.0, %v1137
        %v1139 = vpop.f32.mrb[0].mxu0
        %1140 = vmatprep.mubr.bf16.mxu0 0
        %1141 = vmatmul.mubr.bf16.gmra.mrb[0].mxu0 %v677
        %v1142 = vpop.f32.mrb[0].mxu0
        %v1143 = vadd.f32 0.0, %v1142
        %v1144 = vpop.f32.mrb[0].mxu0
        %v1145 = vpop.f32.mrb[0].mxu0
        %v1146 = vadd.f32 0.0, %v1145
        %v1147 = vpop.f32.mrb[0].mxu0
        %1148 = vmatprep.mubr.bf16.mxu0 0
        %1149 = vmatmul.mubr.bf16.gmra.mrb[0].mxu0 %v678
        %v1150 = vpop.f32.mrb[0].mxu0
        %v1151 = vadd.f32 0.0, %v1150
        %v1152 = vpop.f32.mrb[0].mxu0
        %v1153 = vpop.f32.mrb[0].mxu0
        %v1154 = vadd.f32 0.0, %v1153
        %v1155 = vpop.f32.mrb[0].mxu0
        %1156 = vmatprep.mubr.bf16.mxu0 0
        %1157 = vmatmul.mubr.bf16.gmra.mrb[0].mxu0 %v679
        %v1158 = vpop.f32.mrb[0].mxu0
        %v1159 = vadd.f32 0.0, %v1158
        %v1160 = vpop.f32.mrb[0].mxu0
        %v1161 = vpop.f32.mrb[0].mxu0
        %v1162 = vadd.f32 0.0, %v1161
        %v1163 = vpop.f32.mrb[0].mxu0
        %1164 = vdwg.mxu0
        %v1165 = vadd.f32 %v942, %v1103
        %v1166 = vadd.f32 %v945, %v1106
        %v1167 = vadd.f32 %v950, %v1111
        %v1168 = vadd.f32 %v953, %v1114
        %v1169 = vadd.f32 %v958, %v1119
        %v1170 = vadd.f32 %v961, %v1122
        %v1171 = vadd.f32 %v966, %v1127
        %v1172 = vadd.f32 %v969, %v1130
        %v1173 = vadd.f32 %v974, %v1135
        %v1174 = vadd.f32 %v977, %v1138
        %v1175 = vadd.f32 %v982, %v1143
        %v1176 = vadd.f32 %v985, %v1146
        %v1177 = vadd.f32 %v990, %v1151
        %v1178 = vadd.f32 %v993, %v1154
        %v1179 = vadd.f32 %v998, %v1159
        %v1180 = vadd.f32 %v1001, %v1162
        %v1181 = vld [vmem:[#allocation4 + $0xc0] sm:$0xf]
        %v1182 = vld [vmem:[#allocation4 + $0xc4] sm:$0xf]
        %v1183 = vld [vmem:[#allocation4 + $0xc8] sm:$0xf]
        %v1184 = vld [vmem:[#allocation4 + $0xcc] sm:$0xf]
        %v1185 = vld [vmem:[#allocation4 + $0xd0] sm:$0xf]
        %v1186 = vld [vmem:[#allocation4 + $0xd4] sm:$0xf]
        %v1187 = vld [vmem:[#allocation4 + $0xd8] sm:$0xf]
        %v1188 = vld [vmem:[#allocation4 + $0xdc] sm:$0xf]
        %v1189 = vld [vmem:[#allocation4 + $0xe0] sm:$0xf]
        %v1190 = vld [vmem:[#allocation4 + $0xe4] sm:$0xf]
        %v1191 = vld [vmem:[#allocation4 + $0xe8] sm:$0xf]
        %v1192 = vld [vmem:[#allocation4 + $0xec] sm:$0xf]
        %v1193 = vld [vmem:[#allocation4 + $0xf0] sm:$0xf]
        %v1194 = vld [vmem:[#allocation4 + $0xf4] sm:$0xf]
        %v1195 = vld [vmem:[#allocation4 + $0xf8] sm:$0xf]
        %v1196 = vld [vmem:[#allocation4 + $0xfc] sm:$0xf]
        %v1213 = vunpack.c.l.b16 %v1181
        %v1214 = vunpack.c.l.b16 %v1182
        %v1215 = vunpack.c.l.b16 %v1183
        %v1216 = vunpack.c.l.b16 %v1184
        %v1217 = vunpack.c.l.b16 %v1185
        %v1218 = vunpack.c.l.b16 %v1186
        %v1219 = vunpack.c.l.b16 %v1187
        %v1220 = vunpack.c.l.b16 %v1188
        %v1221 = vunpack.c.l.b16 %v1189
        %v1222 = vunpack.c.l.b16 %v1190
        %v1223 = vunpack.c.l.b16 %v1191
        %v1224 = vunpack.c.l.b16 %v1192
        %v1225 = vunpack.c.l.b16 %v1193
        %v1226 = vunpack.c.l.b16 %v1194
        %v1227 = vunpack.c.l.b16 %v1195
        %v1228 = vunpack.c.l.b16 %v1196
        %v1229 = vpack.c.b16 %v1214, %v1213
        %v1230 = vpack.c.b16 %v1216, %v1215
        %v1231 = vpack.c.b16 %v1218, %v1217
        %v1232 = vpack.c.b16 %v1220, %v1219
        %v1233 = vpack.c.b16 %v1222, %v1221
        %v1234 = vpack.c.b16 %v1224, %v1223
        %v1235 = vpack.c.b16 %v1226, %v1225
        %v1236 = vpack.c.b16 %v1228, %v1227
        %1245 = vmatprep.subr.bf16.mxu0 0
        %1246 = vmatpush1.bf16.msra.mxu0 %v1229
        %1247 = vmatprep.subr.bf16.mxu0 0
        %1248 = vmatpush1.bf16.msra.mxu0 %v1230
        %1249 = vmatprep.subr.bf16.mxu0 0
        %1250 = vmatpush1.bf16.msra.mxu0 %v1231
        %1251 = vmatprep.subr.bf16.mxu0 0
        %1252 = vmatpush1.bf16.msra.mxu0 %v1232
        %1253 = vmatprep.subr.bf16.mxu0 0
        %1254 = vmatpush1.bf16.msra.mxu0 %v1233
        %1255 = vmatprep.subr.bf16.mxu0 0
        %1256 = vmatpush1.bf16.msra.mxu0 %v1234
        %1257 = vmatprep.subr.bf16.mxu0 0
        %1258 = vmatpush1.bf16.msra.mxu0 %v1235
        %1259 = vmatprep.subr.bf16.mxu0 0
        %1260 = vmatpush1.bf16.msra.mxu0 %v1236
        %1261 = vmatprep.subr.bf16.mxu0 0
        %1262 = vmatpush1.bf16.msra.mxu0 0
        %1263 = vmatprep.subr.bf16.mxu0 0
        %1264 = vmatpush1.bf16.msra.mxu0 0
        %1265 = vmatprep.subr.bf16.mxu0 0
        %1266 = vmatpush1.bf16.msra.mxu0 0
        %1267 = vmatprep.subr.bf16.mxu0 0
        %1268 = vmatpush1.bf16.msra.mxu0 0
        %1269 = vmatprep.subr.bf16.mxu0 0
        %1270 = vmatpush1.bf16.msra.mxu0 0
        %1271 = vmatprep.subr.bf16.mxu0 0
        %1272 = vmatpush1.bf16.msra.mxu0 0
        %1273 = vmatprep.subr.bf16.mxu0 0
        %1274 = vmatpush1.bf16.msra.mxu0 0
        %1275 = vmatprep.subr.bf16.mxu0 0
        %1276 = vmatpush1.bf16.msra.mxu0 0
        %1277 = vmatprep.mubr.bf16.mxu0 0
        %1278 = vmatmul.mubr.bf16.gmra.mrb[0].mxu0 %v630
        %v1279 = vpop.f32.mrb[0].mxu0
        %v1280 = vadd.f32 0.0, %v1279
        %v1281 = vpop.f32.mrb[0].mxu0
        %v1282 = vpop.f32.mrb[0].mxu0
        %v1283 = vadd.f32 0.0, %v1282
        %v1284 = vpop.f32.mrb[0].mxu0
        %1285 = vmatprep.mubr.bf16.mxu0 0
        %1286 = vmatmul.mubr.bf16.gmra.mrb[0].mxu0 %v631
        %v1287 = vpop.f32.mrb[0].mxu0
        %v1288 = vadd.f32 0.0, %v1287
        %v1289 = vpop.f32.mrb[0].mxu0
        %v1290 = vpop.f32.mrb[0].mxu0
        %v1291 = vadd.f32 0.0, %v1290
        %v1292 = vpop.f32.mrb[0].mxu0
        %1293 = vmatprep.mubr.bf16.mxu0 0
        %1294 = vmatmul.mubr.bf16.gmra.mrb[0].mxu0 %v632
        %v1295 = vpop.f32.mrb[0].mxu0
        %v1296 = vadd.f32 0.0, %v1295
        %v1297 = vpop.f32.mrb[0].mxu0
        %v1298 = vpop.f32.mrb[0].mxu0
        %v1299 = vadd.f32 0.0, %v1298
        %v1300 = vpop.f32.mrb[0].mxu0
        %1301 = vmatprep.mubr.bf16.mxu0 0
        %1302 = vmatmul.mubr.bf16.gmra.mrb[0].mxu0 %v633
        %v1303 = vpop.f32.mrb[0].mxu0
        %v1304 = vadd.f32 0.0, %v1303
        %v1305 = vpop.f32.mrb[0].mxu0
        %v1306 = vpop.f32.mrb[0].mxu0
        %v1307 = vadd.f32 0.0, %v1306
        %v1308 = vpop.f32.mrb[0].mxu0
        %1309 = vmatprep.mubr.bf16.mxu0 0
        %1310 = vmatmul.mubr.bf16.gmra.mrb[0].mxu0 %v634
        %v1311 = vpop.f32.mrb[0].mxu0
        %v1312 = vadd.f32 0.0, %v1311
        %v1313 = vpop.f32.mrb[0].mxu0
        %v1314 = vpop.f32.mrb[0].mxu0
        %v1315 = vadd.f32 0.0, %v1314
        %v1316 = vpop.f32.mrb[0].mxu0
        %1317 = vmatprep.mubr.bf16.mxu0 0
        %1318 = vmatmul.mubr.bf16.gmra.mrb[0].mxu0 %v635
        %v1319 = vpop.f32.mrb[0].mxu0
        %v1320 = vadd.f32 0.0, %v1319
        %v1321 = vpop.f32.mrb[0].mxu0
        %v1322 = vpop.f32.mrb[0].mxu0
        %v1323 = vadd.f32 0.0, %v1322
        %v1324 = vpop.f32.mrb[0].mxu0
        %1325 = vmatprep.mubr.bf16.mxu0 0
        %1326 = vmatmul.mubr.bf16.gmra.mrb[0].mxu0 %v636
        %v1327 = vpop.f32.mrb[0].mxu0
        %v1328 = vadd.f32 0.0, %v1327
        %v1329 = vpop.f32.mrb[0].mxu0
        %v1330 = vpop.f32.mrb[0].mxu0
        %v1331 = vadd.f32 0.0, %v1330
        %v1332 = vpop.f32.mrb[0].mxu0
        %1333 = vmatprep.mubr.bf16.mxu0 0
        %1334 = vmatmul.mubr.bf16.gmra.mrb[0].mxu0 %v637
        %v1335 = vpop.f32.mrb[0].mxu0
        %v1336 = vadd.f32 0.0, %v1335
        %v1337 = vpop.f32.mrb[0].mxu0
        %v1338 = vpop.f32.mrb[0].mxu0
        %v1339 = vadd.f32 0.0, %v1338
        %v1340 = vpop.f32.mrb[0].mxu0
        %1341 = vdwg.mxu0
        %v1342 = vadd.f32 %v1165, %v1280
        %v1343 = vadd.f32 %v1166, %v1283
        %v1344 = vadd.f32 %v1167, %v1288
        %v1345 = vadd.f32 %v1168, %v1291
        %v1346 = vadd.f32 %v1169, %v1296
        %v1347 = vadd.f32 %v1170, %v1299
        %v1348 = vadd.f32 %v1171, %v1304
        %v1349 = vadd.f32 %v1172, %v1307
        %v1350 = vadd.f32 %v1173, %v1312
        %v1351 = vadd.f32 %v1174, %v1315
        %v1352 = vadd.f32 %v1175, %v1320
        %v1353 = vadd.f32 %v1176, %v1323
        %v1354 = vadd.f32 %v1177, %v1328
        %v1355 = vadd.f32 %v1178, %v1331
        %v1356 = vadd.f32 %v1179, %v1336
        %v1357 = vadd.f32 %v1180, %v1339
        %v1358 = vld [vmem:[#allocation4 + $0x100] sm:$0xf]
        %v1359 = vld [vmem:[#allocation4 + $0x104] sm:$0xf]
        %v1360 = vld [vmem:[#allocation4 + $0x108] sm:$0xf]
        %v1361 = vld [vmem:[#allocation4 + $0x10c] sm:$0xf]
        %v1362 = vld [vmem:[#allocation4 + $0x110] sm:$0xf]
        %v1363 = vld [vmem:[#allocation4 + $0x114] sm:$0xf]
        %v1364 = vld [vmem:[#allocation4 + $0x118] sm:$0xf]
        %v1365 = vld [vmem:[#allocation4 + $0x11c] sm:$0xf]
        %v1366 = vld [vmem:[#allocation4 + $0x120] sm:$0xf]
        %v1367 = vld [vmem:[#allocation4 + $0x124] sm:$0xf]
        %v1368 = vld [vmem:[#allocation4 + $0x128] sm:$0xf]
        %v1369 = vld [vmem:[#allocation4 + $0x12c] sm:$0xf]
        %v1370 = vld [vmem:[#allocation4 + $0x130] sm:$0xf]
        %v1371 = vld [vmem:[#allocation4 + $0x134] sm:$0xf]
        %v1372 = vld [vmem:[#allocation4 + $0x138] sm:$0xf]
        %v1373 = vld [vmem:[#allocation4 + $0x13c] sm:$0xf]
        %v1390 = vunpack.c.l.b16 %v1358
        %v1391 = vunpack.c.l.b16 %v1359
        %v1392 = vunpack.c.l.b16 %v1360
        %v1393 = vunpack.c.l.b16 %v1361
        %v1394 = vunpack.c.l.b16 %v1362
        %v1395 = vunpack.c.l.b16 %v1363
        %v1396 = vunpack.c.l.b16 %v1364
        %v1397 = vunpack.c.l.b16 %v1365
        %v1398 = vunpack.c.l.b16 %v1366
        %v1399 = vunpack.c.l.b16 %v1367
        %v1400 = vunpack.c.l.b16 %v1368
        %v1401 = vunpack.c.l.b16 %v1369
        %v1402 = vunpack.c.l.b16 %v1370
        %v1403 = vunpack.c.l.b16 %v1371
        %v1404 = vunpack.c.l.b16 %v1372
        %v1405 = vunpack.c.l.b16 %v1373
        %v1406 = vpack.c.b16 %v1391, %v1390
        %v1407 = vpack.c.b16 %v1393, %v1392
        %v1408 = vpack.c.b16 %v1395, %v1394
        %v1409 = vpack.c.b16 %v1397, %v1396
        %v1410 = vpack.c.b16 %v1399, %v1398
        %v1411 = vpack.c.b16 %v1401, %v1400
        %v1412 = vpack.c.b16 %v1403, %v1402
        %v1413 = vpack.c.b16 %v1405, %v1404
        %1422 = vmatprep.subr.bf16.mxu0 0
        %1423 = vmatpush1.bf16.msra.mxu0 %v1406
        %1424 = vmatprep.subr.bf16.mxu0 0
        %1425 = vmatpush1.bf16.msra.mxu0 %v1407
        %1426 = vmatprep.subr.bf16.mxu0 0
        %1427 = vmatpush1.bf16.msra.mxu0 %v1408
        %1428 = vmatprep.subr.bf16.mxu0 0
        %1429 = vmatpush1.bf16.msra.mxu0 %v1409
        %1430 = vmatprep.subr.bf16.mxu0 0
        %1431 = vmatpush1.bf16.msra.mxu0 %v1410
        %1432 = vmatprep.subr.bf16.mxu0 0
        %1433 = vmatpush1.bf16.msra.mxu0 %v1411
        %1434 = vmatprep.subr.bf16.mxu0 0
        %1435 = vmatpush1.bf16.msra.mxu0 %v1412
        %1436 = vmatprep.subr.bf16.mxu0 0
        %1437 = vmatpush1.bf16.msra.mxu0 %v1413
        %1438 = vmatprep.subr.bf16.mxu0 0
        %1439 = vmatpush1.bf16.msra.mxu0 0
        %1440 = vmatprep.subr.bf16.mxu0 0
        %1441 = vmatpush1.bf16.msra.mxu0 0
        %1442 = vmatprep.subr.bf16.mxu0 0
        %1443 = vmatpush1.bf16.msra.mxu0 0
        %1444 = vmatprep.subr.bf16.mxu0 0
        %1445 = vmatpush1.bf16.msra.mxu0 0
        %1446 = vmatprep.subr.bf16.mxu0 0
        %1447 = vmatpush1.bf16.msra.mxu0 0
        %1448 = vmatprep.subr.bf16.mxu0 0
        %1449 = vmatpush1.bf16.msra.mxu0 0
        %1450 = vmatprep.subr.bf16.mxu0 0
        %1451 = vmatpush1.bf16.msra.mxu0 0
        %1452 = vmatprep.subr.bf16.mxu0 0
        %1453 = vmatpush1.bf16.msra.mxu0 0
        %1454 = vmatprep.mubr.bf16.mxu0 0
        %1455 = vmatmul.mubr.bf16.gmra.mrb[0].mxu0 %v537
        %v1456 = vpop.f32.mrb[0].mxu0
        %v1457 = vadd.f32 0.0, %v1456
        %v1458 = vpop.f32.mrb[0].mxu0
        %v1459 = vpop.f32.mrb[0].mxu0
        %v1460 = vadd.f32 0.0, %v1459
        %v1461 = vpop.f32.mrb[0].mxu0
        %1462 = vmatprep.mubr.bf16.mxu0 0
        %1463 = vmatmul.mubr.bf16.gmra.mrb[0].mxu0 %v538
        %v1464 = vpop.f32.mrb[0].mxu0
        %v1465 = vadd.f32 0.0, %v1464
        %v1466 = vpop.f32.mrb[0].mxu0
        %v1467 = vpop.f32.mrb[0].mxu0
        %v1468 = vadd.f32 0.0, %v1467
        %v1469 = vpop.f32.mrb[0].mxu0
        %1470 = vmatprep.mubr.bf16.mxu0 0
        %1471 = vmatmul.mubr.bf16.gmra.mrb[0].mxu0 %v539
        %v1472 = vpop.f32.mrb[0].mxu0
        %v1473 = vadd.f32 0.0, %v1472
        %v1474 = vpop.f32.mrb[0].mxu0
        %v1475 = vpop.f32.mrb[0].mxu0
        %v1476 = vadd.f32 0.0, %v1475
        %v1477 = vpop.f32.mrb[0].mxu0
        %1478 = vmatprep.mubr.bf16.mxu0 0
        %1479 = vmatmul.mubr.bf16.gmra.mrb[0].mxu0 %v540
        %v1480 = vpop.f32.mrb[0].mxu0
        %v1481 = vadd.f32 0.0, %v1480
        %v1482 = vpop.f32.mrb[0].mxu0
        %v1483 = vpop.f32.mrb[0].mxu0
        %v1484 = vadd.f32 0.0, %v1483
        %v1485 = vpop.f32.mrb[0].mxu0
        %1486 = vmatprep.mubr.bf16.mxu0 0
        %1487 = vmatmul.mubr.bf16.gmra.mrb[0].mxu0 %v541
        %v1488 = vpop.f32.mrb[0].mxu0
        %v1489 = vadd.f32 0.0, %v1488
        %v1490 = vpop.f32.mrb[0].mxu0
        %v1491 = vpop.f32.mrb[0].mxu0
        %v1492 = vadd.f32 0.0, %v1491
        %v1493 = vpop.f32.mrb[0].mxu0
        %1494 = vmatprep.mubr.bf16.mxu0 0
        %1495 = vmatmul.mubr.bf16.gmra.mrb[0].mxu0 %v542
        %v1496 = vpop.f32.mrb[0].mxu0
        %v1497 = vadd.f32 0.0, %v1496
        %v1498 = vpop.f32.mrb[0].mxu0
        %v1499 = vpop.f32.mrb[0].mxu0
        %v1500 = vadd.f32 0.0, %v1499
        %v1501 = vpop.f32.mrb[0].mxu0
        %1502 = vmatprep.mubr.bf16.mxu0 0
        %1503 = vmatmul.mubr.bf16.gmra.mrb[0].mxu0 %v543
        %v1504 = vpop.f32.mrb[0].mxu0
        %v1505 = vadd.f32 0.0, %v1504
        %v1506 = vpop.f32.mrb[0].mxu0
        %v1507 = vpop.f32.mrb[0].mxu0
        %v1508 = vadd.f32 0.0, %v1507
        %v1509 = vpop.f32.mrb[0].mxu0
        %1510 = vmatprep.mubr.bf16.mxu0 0
        %1511 = vmatmul.mubr.bf16.gmra.mrb[0].mxu0 %v544
        %v1512 = vpop.f32.mrb[0].mxu0
        %v1513 = vadd.f32 0.0, %v1512
        %v1514 = vpop.f32.mrb[0].mxu0
        %v1515 = vpop.f32.mrb[0].mxu0
        %v1516 = vadd.f32 0.0, %v1515
        %v1517 = vpop.f32.mrb[0].mxu0
        %1518 = vdwg.mxu0
        %v1519 = vadd.f32 %v1342, %v1457
        %v1520 = vadd.f32 %v1343, %v1460
        %v1521 = vadd.f32 %v1344, %v1465
        %v1522 = vadd.f32 %v1345, %v1468
        %v1523 = vadd.f32 %v1346, %v1473
        %v1524 = vadd.f32 %v1347, %v1476
        %v1525 = vadd.f32 %v1348, %v1481
        %v1526 = vadd.f32 %v1349, %v1484
        %v1527 = vadd.f32 %v1350, %v1489
        %v1528 = vadd.f32 %v1351, %v1492
        %v1529 = vadd.f32 %v1352, %v1497
        %v1530 = vadd.f32 %v1353, %v1500
        %v1531 = vadd.f32 %v1354, %v1505
        %v1532 = vadd.f32 %v1355, %v1508
        %v1533 = vadd.f32 %v1356, %v1513
        %v1534 = vadd.f32 %v1357, %v1516
        %v1535 = vld [vmem:[#allocation4 + $0x140] sm:$0xf]
        %v1536 = vld [vmem:[#allocation4 + $0x144] sm:$0xf]
        %v1537 = vld [vmem:[#allocation4 + $0x148] sm:$0xf]
        %v1538 = vld [vmem:[#allocation4 + $0x14c] sm:$0xf]
        %v1539 = vld [vmem:[#allocation4 + $0x150] sm:$0xf]
        %v1540 = vld [vmem:[#allocation4 + $0x154] sm:$0xf]
        %v1541 = vld [vmem:[#allocation4 + $0x158] sm:$0xf]
        %v1542 = vld [vmem:[#allocation4 + $0x15c] sm:$0xf]
        %v1543 = vld [vmem:[#allocation4 + $0x160] sm:$0xf]
        %v1544 = vld [vmem:[#allocation4 + $0x164] sm:$0xf]
        %v1545 = vld [vmem:[#allocation4 + $0x168] sm:$0xf]
        %v1546 = vld [vmem:[#allocation4 + $0x16c] sm:$0xf]
        %v1547 = vld [vmem:[#allocation4 + $0x170] sm:$0xf]
        %v1548 = vld [vmem:[#allocation4 + $0x174] sm:$0xf]
        %v1549 = vld [vmem:[#allocation4 + $0x178] sm:$0xf]
        %v1550 = vld [vmem:[#allocation4 + $0x17c] sm:$0xf]
        %v1567 = vunpack.c.l.b16 %v1535
        %v1568 = vunpack.c.l.b16 %v1536
        %v1569 = vunpack.c.l.b16 %v1537
        %v1570 = vunpack.c.l.b16 %v1538
        %v1571 = vunpack.c.l.b16 %v1539
        %v1572 = vunpack.c.l.b16 %v1540
        %v1573 = vunpack.c.l.b16 %v1541
        %v1574 = vunpack.c.l.b16 %v1542
        %v1575 = vunpack.c.l.b16 %v1543
        %v1576 = vunpack.c.l.b16 %v1544
        %v1577 = vunpack.c.l.b16 %v1545
        %v1578 = vunpack.c.l.b16 %v1546
        %v1579 = vunpack.c.l.b16 %v1547
        %v1580 = vunpack.c.l.b16 %v1548
        %v1581 = vunpack.c.l.b16 %v1549
        %v1582 = vunpack.c.l.b16 %v1550
        %v1583 = vpack.c.b16 %v1568, %v1567
        %v1584 = vpack.c.b16 %v1570, %v1569
        %v1585 = vpack.c.b16 %v1572, %v1571
        %v1586 = vpack.c.b16 %v1574, %v1573
        %v1587 = vpack.c.b16 %v1576, %v1575
        %v1588 = vpack.c.b16 %v1578, %v1577
        %v1589 = vpack.c.b16 %v1580, %v1579
        %v1590 = vpack.c.b16 %v1582, %v1581
        %1599 = vmatprep.subr.bf16.mxu0 0
        %1600 = vmatpush1.bf16.msra.mxu0 %v1583
        %1601 = vmatprep.subr.bf16.mxu0 0
        %1602 = vmatpush1.bf16.msra.mxu0 %v1584
        %1603 = vmatprep.subr.bf16.mxu0 0
        %1604 = vmatpush1.bf16.msra.mxu0 %v1585
        %1605 = vmatprep.subr.bf16.mxu0 0
        %1606 = vmatpush1.bf16.msra.mxu0 %v1586
        %1607 = vmatprep.subr.bf16.mxu0 0
        %1608 = vmatpush1.bf16.msra.mxu0 %v1587
        %1609 = vmatprep.subr.bf16.mxu0 0
        %1610 = vmatpush1.bf16.msra.mxu0 %v1588
        %1611 = vmatprep.subr.bf16.mxu0 0
        %1612 = vmatpush1.bf16.msra.mxu0 %v1589
        %1613 = vmatprep.subr.bf16.mxu0 0
        %1614 = vmatpush1.bf16.msra.mxu0 %v1590
        %1615 = vmatprep.subr.bf16.mxu0 0
        %1616 = vmatpush1.bf16.msra.mxu0 0
        %1617 = vmatprep.subr.bf16.mxu0 0
        %1618 = vmatpush1.bf16.msra.mxu0 0
        %1619 = vmatprep.subr.bf16.mxu0 0
        %1620 = vmatpush1.bf16.msra.mxu0 0
        %1621 = vmatprep.subr.bf16.mxu0 0
        %1622 = vmatpush1.bf16.msra.mxu0 0
        %1623 = vmatprep.subr.bf16.mxu0 0
        %1624 = vmatpush1.bf16.msra.mxu0 0
        %1625 = vmatprep.subr.bf16.mxu0 0
        %1626 = vmatpush1.bf16.msra.mxu0 0
        %1627 = vmatprep.subr.bf16.mxu0 0
        %1628 = vmatpush1.bf16.msra.mxu0 0
        %1629 = vmatprep.subr.bf16.mxu0 0
        %1630 = vmatpush1.bf16.msra.mxu0 0
        %1631 = vmatprep.mubr.bf16.mxu0 0
        %1632 = vmatmul.mubr.bf16.gmra.mrb[0].mxu0 %v673
        %v1633 = vpop.f32.mrb[0].mxu0
        %v1634 = vadd.f32 0.0, %v1633
        %v1635 = vpop.f32.mrb[0].mxu0
        %v1636 = vpop.f32.mrb[0].mxu0
        %v1637 = vadd.f32 0.0, %v1636
        %v1638 = vpop.f32.mrb[0].mxu0
        %1639 = vmatprep.mubr.bf16.mxu0 0
        %1640 = vmatmul.mubr.bf16.gmra.mrb[0].mxu0 %v674
        %v1641 = vpop.f32.mrb[0].mxu0
        %v1642 = vadd.f32 0.0, %v1641
        %v1643 = vpop.f32.mrb[0].mxu0
        %v1644 = vpop.f32.mrb[0].mxu0
        %v1645 = vadd.f32 0.0, %v1644
        %v1646 = vpop.f32.mrb[0].mxu0
        %1647 = vmatprep.mubr.bf16.mxu0 0
        %1648 = vmatmul.mubr.bf16.gmra.mrb[0].mxu0 %v675
        %v1649 = vpop.f32.mrb[0].mxu0
        %v1650 = vadd.f32 0.0, %v1649
        %v1651 = vpop.f32.mrb[0].mxu0
        %v1652 = vpop.f32.mrb[0].mxu0
        %v1653 = vadd.f32 0.0, %v1652
        %v1654 = vpop.f32.mrb[0].mxu0
        %1655 = vmatprep.mubr.bf16.mxu0 0
        %1656 = vmatmul.mubr.bf16.gmra.mrb[0].mxu0 %v676
        %v1657 = vpop.f32.mrb[0].mxu0
        %v1658 = vadd.f32 0.0, %v1657
        %v1659 = vpop.f32.mrb[0].mxu0
        %v1660 = vpop.f32.mrb[0].mxu0
        %v1661 = vadd.f32 0.0, %v1660
        %v1662 = vpop.f32.mrb[0].mxu0
        %1663 = vmatprep.mubr.bf16.mxu0 0
        %1664 = vmatmul.mubr.bf16.gmra.mrb[0].mxu0 %v677
        %v1665 = vpop.f32.mrb[0].mxu0
        %v1666 = vadd.f32 0.0, %v1665
        %v1667 = vpop.f32.mrb[0].mxu0
        %v1668 = vpop.f32.mrb[0].mxu0
        %v1669 = vadd.f32 0.0, %v1668
        %v1670 = vpop.f32.mrb[0].mxu0
        %1671 = vmatprep.mubr.bf16.mxu0 0
        %1672 = vmatmul.mubr.bf16.gmra.mrb[0].mxu0 %v678
        %v1673 = vpop.f32.mrb[0].mxu0
        %v1674 = vadd.f32 0.0, %v1673
        %v1675 = vpop.f32.mrb[0].mxu0
        %v1676 = vpop.f32.mrb[0].mxu0
        %v1677 = vadd.f32 0.0, %v1676
        %v1678 = vpop.f32.mrb[0].mxu0
        %1679 = vmatprep.mubr.bf16.mxu0 0
        %1680 = vmatmul.mubr.bf16.gmra.mrb[0].mxu0 %v679
        %v1681 = vpop.f32.mrb[0].mxu0
        %v1682 = vadd.f32 0.0, %v1681
        %v1683 = vpop.f32.mrb[0].mxu0
        %v1684 = vpop.f32.mrb[0].mxu0
        %v1685 = vadd.f32 0.0, %v1684
        %v1686 = vpop.f32.mrb[0].mxu0
        %1687 = vmatprep.mubr.bf16.mxu0 0
        %1688 = vmatmul.mubr.bf16.gmra.mrb[0].mxu0 %v680
        %v1689 = vpop.f32.mrb[0].mxu0
        %v1690 = vadd.f32 0.0, %v1689
        %v1691 = vpop.f32.mrb[0].mxu0
        %v1692 = vpop.f32.mrb[0].mxu0
        %v1693 = vadd.f32 0.0, %v1692
        %v1694 = vpop.f32.mrb[0].mxu0
        %1695 = vdwg.mxu0
        %v1696 = vadd.f32 %v1519, %v1634
        %v1697 = vadd.f32 %v1520, %v1637
        %v1698 = vadd.f32 %v1521, %v1642
        %v1699 = vadd.f32 %v1522, %v1645
        %v1700 = vadd.f32 %v1523, %v1650
        %v1701 = vadd.f32 %v1524, %v1653
        %v1702 = vadd.f32 %v1525, %v1658
        %v1703 = vadd.f32 %v1526, %v1661
        %v1704 = vadd.f32 %v1527, %v1666
        %v1705 = vadd.f32 %v1528, %v1669
        %v1706 = vadd.f32 %v1529, %v1674
        %v1707 = vadd.f32 %v1530, %v1677
        %v1708 = vadd.f32 %v1531, %v1682
        %v1709 = vadd.f32 %v1532, %v1685
        %v1710 = vadd.f32 %v1533, %v1690
        %v1711 = vadd.f32 %v1534, %v1693
        %v1712 = vld [vmem:[#allocation4 + $0x180] sm:$0xf]
        %v1713 = vld [vmem:[#allocation4 + $0x184] sm:$0xf]
        %v1714 = vld [vmem:[#allocation4 + $0x188] sm:$0xf]
        %v1715 = vld [vmem:[#allocation4 + $0x18c] sm:$0xf]
        %v1716 = vld [vmem:[#allocation4 + $0x190] sm:$0xf]
        %v1717 = vld [vmem:[#allocation4 + $0x194] sm:$0xf]
        %v1718 = vld [vmem:[#allocation4 + $0x198] sm:$0xf]
        %v1719 = vld [vmem:[#allocation4 + $0x19c] sm:$0xf]
        %v1720 = vld [vmem:[#allocation4 + $0x1a0] sm:$0xf]
        %v1721 = vld [vmem:[#allocation4 + $0x1a4] sm:$0xf]
        %v1722 = vld [vmem:[#allocation4 + $0x1a8] sm:$0xf]
        %v1723 = vld [vmem:[#allocation4 + $0x1ac] sm:$0xf]
        %v1724 = vld [vmem:[#allocation4 + $0x1b0] sm:$0xf]
        %v1725 = vld [vmem:[#allocation4 + $0x1b4] sm:$0xf]
        %v1726 = vld [vmem:[#allocation4 + $0x1b8] sm:$0xf]
        %v1727 = vld [vmem:[#allocation4 + $0x1bc] sm:$0xf]
        %v1744 = vunpack.c.l.b16 %v1712
        %v1745 = vunpack.c.l.b16 %v1713
        %v1746 = vunpack.c.l.b16 %v1714
        %v1747 = vunpack.c.l.b16 %v1715
        %v1748 = vunpack.c.l.b16 %v1716
        %v1749 = vunpack.c.l.b16 %v1717
        %v1750 = vunpack.c.l.b16 %v1718
        %v1751 = vunpack.c.l.b16 %v1719
        %v1752 = vunpack.c.l.b16 %v1720
        %v1753 = vunpack.c.l.b16 %v1721
        %v1754 = vunpack.c.l.b16 %v1722
        %v1755 = vunpack.c.l.b16 %v1723
        %v1756 = vunpack.c.l.b16 %v1724
        %v1757 = vunpack.c.l.b16 %v1725
        %v1758 = vunpack.c.l.b16 %v1726
        %v1759 = vunpack.c.l.b16 %v1727
        %v1760 = vpack.c.b16 %v1745, %v1744
        %v1761 = vpack.c.b16 %v1747, %v1746
        %v1762 = vpack.c.b16 %v1749, %v1748
        %v1763 = vpack.c.b16 %v1751, %v1750
        %v1764 = vpack.c.b16 %v1753, %v1752
        %v1765 = vpack.c.b16 %v1755, %v1754
        %v1766 = vpack.c.b16 %v1757, %v1756
        %v1767 = vpack.c.b16 %v1759, %v1758
        %1776 = vmatprep.subr.bf16.mxu0 0
        %1777 = vmatpush1.bf16.msra.mxu0 %v1760
        %1778 = vmatprep.subr.bf16.mxu0 0
        %1779 = vmatpush1.bf16.msra.mxu0 %v1761
        %1780 = vmatprep.subr.bf16.mxu0 0
        %1781 = vmatpush1.bf16.msra.mxu0 %v1762
        %1782 = vmatprep.subr.bf16.mxu0 0
        %1783 = vmatpush1.bf16.msra.mxu0 %v1763
        %1784 = vmatprep.subr.bf16.mxu0 0
        %1785 = vmatpush1.bf16.msra.mxu0 %v1764
        %1786 = vmatprep.subr.bf16.mxu0 0
        %1787 = vmatpush1.bf16.msra.mxu0 %v1765
        %1788 = vmatprep.subr.bf16.mxu0 0
        %1789 = vmatpush1.bf16.msra.mxu0 %v1766
        %1790 = vmatprep.subr.bf16.mxu0 0
        %1791 = vmatpush1.bf16.msra.mxu0 %v1767
        %1792 = vmatprep.subr.bf16.mxu0 0
        %1793 = vmatpush1.bf16.msra.mxu0 0
        %1794 = vmatprep.subr.bf16.mxu0 0
        %1795 = vmatpush1.bf16.msra.mxu0 0
        %1796 = vmatprep.subr.bf16.mxu0 0
        %1797 = vmatpush1.bf16.msra.mxu0 0
        %1798 = vmatprep.subr.bf16.mxu0 0
        %1799 = vmatpush1.bf16.msra.mxu0 0
        %1800 = vmatprep.subr.bf16.mxu0 0
        %1801 = vmatpush1.bf16.msra.mxu0 0
        %1802 = vmatprep.subr.bf16.mxu0 0
        %1803 = vmatpush1.bf16.msra.mxu0 0
        %1804 = vmatprep.subr.bf16.mxu0 0
        %1805 = vmatpush1.bf16.msra.mxu0 0
        %1806 = vmatprep.subr.bf16.mxu0 0
        %1807 = vmatpush1.bf16.msra.mxu0 0
        %1808 = vmatprep.mubr.bf16.mxu0 0
        %1809 = vmatmul.mubr.bf16.gmra.mrb[0].mxu0 %v631
        %v1810 = vpop.f32.mrb[0].mxu0
        %v1811 = vadd.f32 0.0, %v1810
        %v1812 = vpop.f32.mrb[0].mxu0
        %v1813 = vpop.f32.mrb[0].mxu0
        %v1814 = vadd.f32 0.0, %v1813
        %v1815 = vpop.f32.mrb[0].mxu0
        %1816 = vmatprep.mubr.bf16.mxu0 0
        %1817 = vmatmul.mubr.bf16.gmra.mrb[0].mxu0 %v632
        %v1818 = vpop.f32.mrb[0].mxu0
        %v1819 = vadd.f32 0.0, %v1818
        %v1820 = vpop.f32.mrb[0].mxu0
        %v1821 = vpop.f32.mrb[0].mxu0
        %v1822 = vadd.f32 0.0, %v1821
        %v1823 = vpop.f32.mrb[0].mxu0
        %1824 = vmatprep.mubr.bf16.mxu0 0
        %1825 = vmatmul.mubr.bf16.gmra.mrb[0].mxu0 %v633
        %v1826 = vpop.f32.mrb[0].mxu0
        %v1827 = vadd.f32 0.0, %v1826
        %v1828 = vpop.f32.mrb[0].mxu0
        %v1829 = vpop.f32.mrb[0].mxu0
        %v1830 = vadd.f32 0.0, %v1829
        %v1831 = vpop.f32.mrb[0].mxu0
        %1832 = vmatprep.mubr.bf16.mxu0 0
        %1833 = vmatmul.mubr.bf16.gmra.mrb[0].mxu0 %v634
        %v1834 = vpop.f32.mrb[0].mxu0
        %v1835 = vadd.f32 0.0, %v1834
        %v1836 = vpop.f32.mrb[0].mxu0
        %v1837 = vpop.f32.mrb[0].mxu0
        %v1838 = vadd.f32 0.0, %v1837
        %v1839 = vpop.f32.mrb[0].mxu0
        %1840 = vmatprep.mubr.bf16.mxu0 0
        %1841 = vmatmul.mubr.bf16.gmra.mrb[0].mxu0 %v635
        %v1842 = vpop.f32.mrb[0].mxu0
        %v1843 = vadd.f32 0.0, %v1842
        %v1844 = vpop.f32.mrb[0].mxu0
        %v1845 = vpop.f32.mrb[0].mxu0
        %v1846 = vadd.f32 0.0, %v1845
        %v1847 = vpop.f32.mrb[0].mxu0
        %1848 = vmatprep.mubr.bf16.mxu0 0
        %1849 = vmatmul.mubr.bf16.gmra.mrb[0].mxu0 %v636
        %v1850 = vpop.f32.mrb[0].mxu0
        %v1851 = vadd.f32 0.0, %v1850
        %v1852 = vpop.f32.mrb[0].mxu0
        %v1853 = vpop.f32.mrb[0].mxu0
        %v1854 = vadd.f32 0.0, %v1853
        %v1855 = vpop.f32.mrb[0].mxu0
        %1856 = vmatprep.mubr.bf16.mxu0 0
        %1857 = vmatmul.mubr.bf16.gmra.mrb[0].mxu0 %v637
        %v1858 = vpop.f32.mrb[0].mxu0
        %v1859 = vadd.f32 0.0, %v1858
        %v1860 = vpop.f32.mrb[0].mxu0
        %v1861 = vpop.f32.mrb[0].mxu0
        %v1862 = vadd.f32 0.0, %v1861
        %v1863 = vpop.f32.mrb[0].mxu0
        %1864 = vmatprep.mubr.bf16.mxu0 0
        %1865 = vmatmul.mubr.bf16.gmra.mrb[0].mxu0 %v638
        %v1866 = vpop.f32.mrb[0].mxu0
        %v1867 = vadd.f32 0.0, %v1866
        %v1868 = vpop.f32.mrb[0].mxu0
        %v1869 = vpop.f32.mrb[0].mxu0
        %v1870 = vadd.f32 0.0, %v1869
        %v1871 = vpop.f32.mrb[0].mxu0
        %1872 = vdwg.mxu0
        %v1873 = vadd.f32 %v1696, %v1811
        %v1874 = vadd.f32 %v1697, %v1814
        %v1875 = vadd.f32 %v1698, %v1819
        %v1876 = vadd.f32 %v1699, %v1822
        %v1877 = vadd.f32 %v1700, %v1827
        %v1878 = vadd.f32 %v1701, %v1830
        %v1879 = vadd.f32 %v1702, %v1835
        %v1880 = vadd.f32 %v1703, %v1838
        %v1881 = vadd.f32 %v1704, %v1843
        %v1882 = vadd.f32 %v1705, %v1846
        %v1883 = vadd.f32 %v1706, %v1851
        %v1884 = vadd.f32 %v1707, %v1854
        %v1885 = vadd.f32 %v1708, %v1859
        %v1886 = vadd.f32 %v1709, %v1862
        %v1887 = vadd.f32 %v1710, %v1867
        %v1888 = vadd.f32 %v1711, %v1870
        %v1889 = vld [vmem:[#allocation4 + $0x1c0] sm:$0xf]
        %v1890 = vld [vmem:[#allocation4 + $0x1c4] sm:$0xf]
        %v1891 = vld [vmem:[#allocation4 + $0x1c8] sm:$0xf]
        %v1892 = vld [vmem:[#allocation4 + $0x1cc] sm:$0xf]
        %v1893 = vld [vmem:[#allocation4 + $0x1d0] sm:$0xf]
        %v1894 = vld [vmem:[#allocation4 + $0x1d4] sm:$0xf]
        %v1895 = vld [vmem:[#allocation4 + $0x1d8] sm:$0xf]
        %v1896 = vld [vmem:[#allocation4 + $0x1dc] sm:$0xf]
        %v1897 = vld [vmem:[#allocation4 + $0x1e0] sm:$0xf]
        %v1898 = vld [vmem:[#allocation4 + $0x1e4] sm:$0xf]
        %v1899 = vld [vmem:[#allocation4 + $0x1e8] sm:$0xf]
        %v1900 = vld [vmem:[#allocation4 + $0x1ec] sm:$0xf]
        %v1901 = vld [vmem:[#allocation4 + $0x1f0] sm:$0xf]
        %v1902 = vld [vmem:[#allocation4 + $0x1f4] sm:$0xf]
        %v1903 = vld [vmem:[#allocation4 + $0x1f8] sm:$0xf]
        %v1904 = vld [vmem:[#allocation4 + $0x1fc] sm:$0xf]
        %v1921 = vunpack.c.l.b16 %v1889
        %v1922 = vunpack.c.l.b16 %v1890
        %v1923 = vunpack.c.l.b16 %v1891
        %v1924 = vunpack.c.l.b16 %v1892
        %v1925 = vunpack.c.l.b16 %v1893
        %v1926 = vunpack.c.l.b16 %v1894
        %v1927 = vunpack.c.l.b16 %v1895
        %v1928 = vunpack.c.l.b16 %v1896
        %v1929 = vunpack.c.l.b16 %v1897
        %v1930 = vunpack.c.l.b16 %v1898
        %v1931 = vunpack.c.l.b16 %v1899
        %v1932 = vunpack.c.l.b16 %v1900
        %v1933 = vunpack.c.l.b16 %v1901
        %v1934 = vunpack.c.l.b16 %v1902
        %v1935 = vunpack.c.l.b16 %v1903
        %v1936 = vunpack.c.l.b16 %v1904
        %v1937 = vpack.c.b16 %v1922, %v1921
        %v1938 = vpack.c.b16 %v1924, %v1923
        %v1939 = vpack.c.b16 %v1926, %v1925
        %v1940 = vpack.c.b16 %v1928, %v1927
        %v1941 = vpack.c.b16 %v1930, %v1929
        %v1942 = vpack.c.b16 %v1932, %v1931
        %v1943 = vpack.c.b16 %v1934, %v1933
        %v1944 = vpack.c.b16 %v1936, %v1935
        %1953 = vmatprep.subr.bf16.mxu0 0
        %1954 = vmatpush1.bf16.msra.mxu0 %v1937
        %1955 = vmatprep.subr.bf16.mxu0 0
        %1956 = vmatpush1.bf16.msra.mxu0 %v1938
        %1957 = vmatprep.subr.bf16.mxu0 0
        %1958 = vmatpush1.bf16.msra.mxu0 %v1939
        %1959 = vmatprep.subr.bf16.mxu0 0
        %1960 = vmatpush1.bf16.msra.mxu0 %v1940
        %1961 = vmatprep.subr.bf16.mxu0 0
        %1962 = vmatpush1.bf16.msra.mxu0 %v1941
        %1963 = vmatprep.subr.bf16.mxu0 0
        %1964 = vmatpush1.bf16.msra.mxu0 %v1942
        %1965 = vmatprep.subr.bf16.mxu0 0
        %1966 = vmatpush1.bf16.msra.mxu0 %v1943
        %1967 = vmatprep.subr.bf16.mxu0 0
        %1968 = vmatpush1.bf16.msra.mxu0 %v1944
        %1969 = vmatprep.subr.bf16.mxu0 0
        %1970 = vmatpush1.bf16.msra.mxu0 0
        %1971 = vmatprep.subr.bf16.mxu0 0
        %1972 = vmatpush1.bf16.msra.mxu0 0
        %1973 = vmatprep.subr.bf16.mxu0 0
        %1974 = vmatpush1.bf16.msra.mxu0 0
        %1975 = vmatprep.subr.bf16.mxu0 0
        %1976 = vmatpush1.bf16.msra.mxu0 0
        %1977 = vmatprep.subr.bf16.mxu0 0
        %1978 = vmatpush1.bf16.msra.mxu0 0
        %1979 = vmatprep.subr.bf16.mxu0 0
        %1980 = vmatpush1.bf16.msra.mxu0 0
        %1981 = vmatprep.subr.bf16.mxu0 0
        %1982 = vmatpush1.bf16.msra.mxu0 0
        %1983 = vmatprep.subr.bf16.mxu0 0
        %1984 = vmatpush1.bf16.msra.mxu0 0
        %1985 = vmatprep.mubr.bf16.mxu0 0
        %1986 = vmatmul.mubr.bf16.gmra.mrb[0].mxu0 %v538
        %v1987 = vpop.f32.mrb[0].mxu0
        %v1988 = vadd.f32 0.0, %v1987
        %v1989 = vpop.f32.mrb[0].mxu0
        %v1990 = vpop.f32.mrb[0].mxu0
        %v1991 = vadd.f32 0.0, %v1990
        %v1992 = vpop.f32.mrb[0].mxu0
        %1993 = vmatprep.mubr.bf16.mxu0 0
        %1994 = vmatmul.mubr.bf16.gmra.mrb[0].mxu0 %v539
        %v1995 = vpop.f32.mrb[0].mxu0
        %v1996 = vadd.f32 0.0, %v1995
        %v1997 = vpop.f32.mrb[0].mxu0
        %v1998 = vpop.f32.mrb[0].mxu0
        %v1999 = vadd.f32 0.0, %v1998
        %v2000 = vpop.f32.mrb[0].mxu0
        %2001 = vmatprep.mubr.bf16.mxu0 0
        %2002 = vmatmul.mubr.bf16.gmra.mrb[0].mxu0 %v540
        %v2003 = vpop.f32.mrb[0].mxu0
        %v2004 = vadd.f32 0.0, %v2003
        %v2005 = vpop.f32.mrb[0].mxu0
        %v2006 = vpop.f32.mrb[0].mxu0
        %v2007 = vadd.f32 0.0, %v2006
        %v2008 = vpop.f32.mrb[0].mxu0
        %2009 = vmatprep.mubr.bf16.mxu0 0
        %2010 = vmatmul.mubr.bf16.gmra.mrb[0].mxu0 %v541
        %v2011 = vpop.f32.mrb[0].mxu0
        %v2012 = vadd.f32 0.0, %v2011
        %v2013 = vpop.f32.mrb[0].mxu0
        %v2014 = vpop.f32.mrb[0].mxu0
        %v2015 = vadd.f32 0.0, %v2014
        %v2016 = vpop.f32.mrb[0].mxu0
        %2017 = vmatprep.mubr.bf16.mxu0 0
        %2018 = vmatmul.mubr.bf16.gmra.mrb[0].mxu0 %v542
        %v2019 = vpop.f32.mrb[0].mxu0
        %v2020 = vadd.f32 0.0, %v2019
        %v2021 = vpop.f32.mrb[0].mxu0
        %v2022 = vpop.f32.mrb[0].mxu0
        %v2023 = vadd.f32 0.0, %v2022
        %v2024 = vpop.f32.mrb[0].mxu0
        %2025 = vmatprep.mubr.bf16.mxu0 0
        %2026 = vmatmul.mubr.bf16.gmra.mrb[0].mxu0 %v543
        %v2027 = vpop.f32.mrb[0].mxu0
        %v2028 = vadd.f32 0.0, %v2027
        %v2029 = vpop.f32.mrb[0].mxu0
        %v2030 = vpop.f32.mrb[0].mxu0
        %v2031 = vadd.f32 0.0, %v2030
        %v2032 = vpop.f32.mrb[0].mxu0
        %2033 = vmatprep.mubr.bf16.mxu0 0
        %2034 = vmatmul.mubr.bf16.gmra.mrb[0].mxu0 %v544
        %v2035 = vpop.f32.mrb[0].mxu0
        %v2036 = vadd.f32 0.0, %v2035
        %v2037 = vpop.f32.mrb[0].mxu0
        %v2038 = vpop.f32.mrb[0].mxu0
        %v2039 = vadd.f32 0.0, %v2038
        %v2040 = vpop.f32.mrb[0].mxu0
        %2041 = vmatprep.mubr.bf16.mxu0 0
        %2042 = vmatmul.mubr.bf16.gmra.mrb[0].mxu0 %v545
        %v2043 = vpop.f32.mrb[0].mxu0
        %v2044 = vadd.f32 0.0, %v2043
        %v2045 = vpop.f32.mrb[0].mxu0
        %v2046 = vpop.f32.mrb[0].mxu0
        %v2047 = vadd.f32 0.0, %v2046
        %v2048 = vpop.f32.mrb[0].mxu0
        %2049 = vdwg.mxu0
        %v2050 = vadd.f32 %v1873, %v1988
        %v2051 = vadd.f32 %v1874, %v1991
        %v2052 = vadd.f32 %v1875, %v1996
        %v2053 = vadd.f32 %v1876, %v1999
        %v2054 = vadd.f32 %v1877, %v2004
        %v2055 = vadd.f32 %v1878, %v2007
        %v2056 = vadd.f32 %v1879, %v2012
        %v2057 = vadd.f32 %v1880, %v2015
        %v2058 = vadd.f32 %v1881, %v2020
        %v2059 = vadd.f32 %v1882, %v2023
        %v2060 = vadd.f32 %v1883, %v2028
        %v2061 = vadd.f32 %v1884, %v2031
        %v2062 = vadd.f32 %v1885, %v2036
        %v2063 = vadd.f32 %v1886, %v2039
        %v2064 = vadd.f32 %v1887, %v2044
        %v2065 = vadd.f32 %v1888, %v2047
        %v2066 = vld [vmem:[#allocation4 + $0x200] sm:$0xf]
        %v2067 = vld [vmem:[#allocation4 + $0x204] sm:$0xf]
        %v2068 = vld [vmem:[#allocation4 + $0x208] sm:$0xf]
        %v2069 = vld [vmem:[#allocation4 + $0x20c] sm:$0xf]
        %v2070 = vld [vmem:[#allocation4 + $0x210] sm:$0xf]
        %v2071 = vld [vmem:[#allocation4 + $0x214] sm:$0xf]
        %v2072 = vld [vmem:[#allocation4 + $0x218] sm:$0xf]
        %v2073 = vld [vmem:[#allocation4 + $0x21c] sm:$0xf]
        %v2074 = vld [vmem:[#allocation4 + $0x220] sm:$0xf]
        %v2075 = vld [vmem:[#allocation4 + $0x224] sm:$0xf]
        %v2076 = vld [vmem:[#allocation4 + $0x228] sm:$0xf]
        %v2077 = vld [vmem:[#allocation4 + $0x22c] sm:$0xf]
        %v2078 = vld [vmem:[#allocation4 + $0x230] sm:$0xf]
        %v2079 = vld [vmem:[#allocation4 + $0x234] sm:$0xf]
        %v2080 = vld [vmem:[#allocation4 + $0x238] sm:$0xf]
        %v2081 = vld [vmem:[#allocation4 + $0x23c] sm:$0xf]
        %v2098 = vunpack.c.l.b16 %v2066
        %v2099 = vunpack.c.l.b16 %v2067
        %v2100 = vunpack.c.l.b16 %v2068
        %v2101 = vunpack.c.l.b16 %v2069
        %v2102 = vunpack.c.l.b16 %v2070
        %v2103 = vunpack.c.l.b16 %v2071
        %v2104 = vunpack.c.l.b16 %v2072
        %v2105 = vunpack.c.l.b16 %v2073
        %v2106 = vunpack.c.l.b16 %v2074
        %v2107 = vunpack.c.l.b16 %v2075
        %v2108 = vunpack.c.l.b16 %v2076
        %v2109 = vunpack.c.l.b16 %v2077
        %v2110 = vunpack.c.l.b16 %v2078
        %v2111 = vunpack.c.l.b16 %v2079
        %v2112 = vunpack.c.l.b16 %v2080
        %v2113 = vunpack.c.l.b16 %v2081
        %v2114 = vpack.c.b16 %v2099, %v2098
        %v2115 = vpack.c.b16 %v2101, %v2100
        %v2116 = vpack.c.b16 %v2103, %v2102
        %v2117 = vpack.c.b16 %v2105, %v2104
        %v2118 = vpack.c.b16 %v2107, %v2106
        %v2119 = vpack.c.b16 %v2109, %v2108
        %v2120 = vpack.c.b16 %v2111, %v2110
        %v2121 = vpack.c.b16 %v2113, %v2112
        %2130 = vmatprep.subr.bf16.mxu0 0
        %2131 = vmatpush1.bf16.msra.mxu0 %v2114
        %2132 = vmatprep.subr.bf16.mxu0 0
        %2133 = vmatpush1.bf16.msra.mxu0 %v2115
        %2134 = vmatprep.subr.bf16.mxu0 0
        %2135 = vmatpush1.bf16.msra.mxu0 %v2116
        %2136 = vmatprep.subr.bf16.mxu0 0
        %2137 = vmatpush1.bf16.msra.mxu0 %v2117
        %2138 = vmatprep.subr.bf16.mxu0 0
        %2139 = vmatpush1.bf16.msra.mxu0 %v2118
        %2140 = vmatprep.subr.bf16.mxu0 0
        %2141 = vmatpush1.bf16.msra.mxu0 %v2119
        %2142 = vmatprep.subr.bf16.mxu0 0
        %2143 = vmatpush1.bf16.msra.mxu0 %v2120
        %2144 = vmatprep.subr.bf16.mxu0 0
        %2145 = vmatpush1.bf16.msra.mxu0 %v2121
        %2146 = vmatprep.subr.bf16.mxu0 0
        %2147 = vmatpush1.bf16.msra.mxu0 0
        %2148 = vmatprep.subr.bf16.mxu0 0
        %2149 = vmatpush1.bf16.msra.mxu0 0
        %2150 = vmatprep.subr.bf16.mxu0 0
        %2151 = vmatpush1.bf16.msra.mxu0 0
        %2152 = vmatprep.subr.bf16.mxu0 0
        %2153 = vmatpush1.bf16.msra.mxu0 0
        %2154 = vmatprep.subr.bf16.mxu0 0
        %2155 = vmatpush1.bf16.msra.mxu0 0
        %2156 = vmatprep.subr.bf16.mxu0 0
        %2157 = vmatpush1.bf16.msra.mxu0 0
        %2158 = vmatprep.subr.bf16.mxu0 0
        %2159 = vmatpush1.bf16.msra.mxu0 0
        %2160 = vmatprep.subr.bf16.mxu0 0
        %2161 = vmatpush1.bf16.msra.mxu0 0
        %2162 = vmatprep.mubr.bf16.mxu0 0
        %2163 = vmatmul.mubr.bf16.gmra.mrb[0].mxu0 %v674
        %v2164 = vpop.f32.mrb[0].mxu0
        %v2165 = vadd.f32 0.0, %v2164
        %v2166 = vpop.f32.mrb[0].mxu0
        %v2167 = vpop.f32.mrb[0].mxu0
        %v2168 = vadd.f32 0.0, %v2167
        %v2169 = vpop.f32.mrb[0].mxu0
        %2170 = vmatprep.mubr.bf16.mxu0 0
        %2171 = vmatmul.mubr.bf16.gmra.mrb[0].mxu0 %v675
        %v2172 = vpop.f32.mrb[0].mxu0
        %v2173 = vadd.f32 0.0, %v2172
        %v2174 = vpop.f32.mrb[0].mxu0
        %v2175 = vpop.f32.mrb[0].mxu0
        %v2176 = vadd.f32 0.0, %v2175
        %v2177 = vpop.f32.mrb[0].mxu0
        %2178 = vmatprep.mubr.bf16.mxu0 0
        %2179 = vmatmul.mubr.bf16.gmra.mrb[0].mxu0 %v676
        %v2180 = vpop.f32.mrb[0].mxu0
        %v2181 = vadd.f32 0.0, %v2180
        %v2182 = vpop.f32.mrb[0].mxu0
        %v2183 = vpop.f32.mrb[0].mxu0
        %v2184 = vadd.f32 0.0, %v2183
        %v2185 = vpop.f32.mrb[0].mxu0
        %2186 = vmatprep.mubr.bf16.mxu0 0
        %2187 = vmatmul.mubr.bf16.gmra.mrb[0].mxu0 %v677
        %v2188 = vpop.f32.mrb[0].mxu0
        %v2189 = vadd.f32 0.0, %v2188
        %v2190 = vpop.f32.mrb[0].mxu0
        %v2191 = vpop.f32.mrb[0].mxu0
        %v2192 = vadd.f32 0.0, %v2191
        %v2193 = vpop.f32.mrb[0].mxu0
        %2194 = vmatprep.mubr.bf16.mxu0 0
        %2195 = vmatmul.mubr.bf16.gmra.mrb[0].mxu0 %v678
        %v2196 = vpop.f32.mrb[0].mxu0
        %v2197 = vadd.f32 0.0, %v2196
        %v2198 = vpop.f32.mrb[0].mxu0
        %v2199 = vpop.f32.mrb[0].mxu0
        %v2200 = vadd.f32 0.0, %v2199
        %v2201 = vpop.f32.mrb[0].mxu0
        %2202 = vmatprep.mubr.bf16.mxu0 0
        %2203 = vmatmul.mubr.bf16.gmra.mrb[0].mxu0 %v679
        %v2204 = vpop.f32.mrb[0].mxu0
        %v2205 = vadd.f32 0.0, %v2204
        %v2206 = vpop.f32.mrb[0].mxu0
        %v2207 = vpop.f32.mrb[0].mxu0
        %v2208 = vadd.f32 0.0, %v2207
        %v2209 = vpop.f32.mrb[0].mxu0
        %2210 = vmatprep.mubr.bf16.mxu0 0
        %2211 = vmatmul.mubr.bf16.gmra.mrb[0].mxu0 %v680
        %v2212 = vpop.f32.mrb[0].mxu0
        %v2213 = vadd.f32 0.0, %v2212
        %v2214 = vpop.f32.mrb[0].mxu0
        %v2215 = vpop.f32.mrb[0].mxu0
        %v2216 = vadd.f32 0.0, %v2215
        %v2217 = vpop.f32.mrb[0].mxu0
        %2218 = vmatprep.mubr.bf16.mxu0 0
        %2219 = vmatmul.mubr.bf16.gmra.mrb[0].mxu0 %v681
        %v2220 = vpop.f32.mrb[0].mxu0
        %v2221 = vadd.f32 0.0, %v2220
        %v2222 = vpop.f32.mrb[0].mxu0
        %v2223 = vpop.f32.mrb[0].mxu0
        %v2224 = vadd.f32 0.0, %v2223
        %v2225 = vpop.f32.mrb[0].mxu0
        %2226 = vdwg.mxu0
        %v2227 = vadd.f32 %v2050, %v2165
        %v2228 = vadd.f32 %v2051, %v2168
        %v2229 = vadd.f32 %v2052, %v2173
        %v2230 = vadd.f32 %v2053, %v2176
        %v2231 = vadd.f32 %v2054, %v2181
        %v2232 = vadd.f32 %v2055, %v2184
        %v2233 = vadd.f32 %v2056, %v2189
        %v2234 = vadd.f32 %v2057, %v2192
        %v2235 = vadd.f32 %v2058, %v2197
        %v2236 = vadd.f32 %v2059, %v2200
        %v2237 = vadd.f32 %v2060, %v2205
        %v2238 = vadd.f32 %v2061, %v2208
        %v2239 = vadd.f32 %v2062, %v2213
        %v2240 = vadd.f32 %v2063, %v2216
        %v2241 = vadd.f32 %v2064, %v2221
        %v2242 = vadd.f32 %v2065, %v2224
        %v2243 = vld [vmem:[#allocation7] sm:$0x1]
        %v2245 = vlaneseq
        %v2246 = vshrl.u32 %v2245, 7
        %v2247 = vsub.s32 0, %v2246
        %v2248 = vrot.slane %v2243, %v2247
        %v2250 = vadd.f32 %v2227, %v2248
        %v2251 = vadd.f32 %v2228, %v2248
        %v2252 = vadd.f32 %v2229, %v2248
        %v2253 = vadd.f32 %v2230, %v2248
        %v2254 = vadd.f32 %v2231, %v2248
        %v2255 = vadd.f32 %v2232, %v2248
        %v2256 = vadd.f32 %v2233, %v2248
        %v2257 = vadd.f32 %v2234, %v2248
        %v2258 = vadd.f32 %v2235, %v2248
        %v2259 = vadd.f32 %v2236, %v2248
        %v2260 = vadd.f32 %v2237, %v2248
        %v2261 = vadd.f32 %v2238, %v2248
        %v2262 = vadd.f32 %v2239, %v2248
        %v2263 = vadd.f32 %v2240, %v2248
        %v2264 = vadd.f32 %v2241, %v2248
        %v2265 = vadd.f32 %v2242, %v2248
        %v2266 = vld [vmem:[%s307] sm:$0x1]
        %v2267 = vadd.f32 %v2250, %v2251
        %v2268 = vadd.f32 %v2267, %v2252
        %v2269 = vadd.f32 %v2268, %v2253
        %v2270 = vadd.f32 %v2269, %v2254
        %v2271 = vadd.f32 %v2270, %v2255
        %v2272 = vadd.f32 %v2271, %v2256
        %v2273 = vadd.f32 %v2272, %v2257
        %v2274 = vadd.f32 %v2273, %v2258
        %v2275 = vadd.f32 %v2274, %v2259
        %v2276 = vadd.f32 %v2275, %v2260
        %v2277 = vadd.f32 %v2276, %v2261
        %v2278 = vadd.f32 %v2277, %v2262
        %v2279 = vadd.f32 %v2278, %v2263
        %v2280 = vadd.f32 %v2279, %v2264
        %v2281 = vadd.f32 %v2280, %v2265
        %v2282 = vrot.slane %v2281, 4
        %v2283 = vadd.f32 %v2281, %v2282
        %v2284 = vrot.slane %v2283, 2
        %v2285 = vadd.f32 %v2283, %v2284
        %v2286 = vrot.slane %v2285, 1
        %v2287 = vadd.f32 %v2285, %v2286
        %v2288 = vadd.f32 %v2266, %v2287
        %2289 = vst [vmem:[%s307] sm:$0x1] %v2288
        %v2290 = vld [vmem:[%s313] sm:$0x1]
        %v2291 = vmul.f32 %v2250, %v2250
        %v2292 = vmul.f32 %v2251, %v2251
        %v2293 = vmul.f32 %v2252, %v2252
        %v2294 = vmul.f32 %v2253, %v2253
        %v2295 = vmul.f32 %v2254, %v2254
        %v2296 = vmul.f32 %v2255, %v2255
        %v2297 = vmul.f32 %v2256, %v2256
        %v2298 = vmul.f32 %v2257, %v2257
        %v2299 = vmul.f32 %v2258, %v2258
        %v2300 = vmul.f32 %v2259, %v2259
        %v2301 = vmul.f32 %v2260, %v2260
        %v2302 = vmul.f32 %v2261, %v2261
        %v2303 = vmul.f32 %v2262, %v2262
        %v2304 = vmul.f32 %v2263, %v2263
        %v2305 = vmul.f32 %v2264, %v2264
        %v2306 = vmul.f32 %v2265, %v2265
        %v2307 = vadd.f32 %v2291, %v2292
        %v2308 = vadd.f32 %v2307, %v2293
        %v2309 = vadd.f32 %v2308, %v2294
        %v2310 = vadd.f32 %v2309, %v2295
        %v2311 = vadd.f32 %v2310, %v2296
        %v2312 = vadd.f32 %v2311, %v2297
        %v2313 = vadd.f32 %v2312, %v2298
        %v2314 = vadd.f32 %v2313, %v2299
        %v2315 = vadd.f32 %v2314, %v2300
        %v2316 = vadd.f32 %v2315, %v2301
        %v2317 = vadd.f32 %v2316, %v2302
        %v2318 = vadd.f32 %v2317, %v2303
        %v2319 = vadd.f32 %v2318, %v2304
        %v2320 = vadd.f32 %v2319, %v2305
        %v2321 = vadd.f32 %v2320, %v2306
        %v2322 = vrot.slane %v2321, 4
        %v2323 = vadd.f32 %v2321, %v2322
        %v2324 = vrot.slane %v2323, 2
        %v2325 = vadd.f32 %v2323, %v2324
        %v2326 = vrot.slane %v2325, 1
        %v2327 = vadd.f32 %v2325, %v2326
        %v2328 = vadd.f32 %v2290, %v2327
        %2329 = vst [vmem:[%s313] sm:$0x1] %v2328
        %v2330 = vpack.c.bf16 %v2251, %v2250
        %v2331 = vpack.c.bf16 %v2253, %v2252
        %v2332 = vpack.c.bf16 %v2255, %v2254
        %v2333 = vpack.c.bf16 %v2257, %v2256
        %v2334 = vpack.c.bf16 %v2259, %v2258
        %v2335 = vpack.c.bf16 %v2261, %v2260
        %v2336 = vpack.c.bf16 %v2263, %v2262
        %v2337 = vpack.c.bf16 %v2265, %v2264
        %v2346 = vunpack.c.l.b16 %v2330
        %v2347 = vunpack.c.h.b16 %v2330
        %v2348 = vunpack.c.l.b16 %v2331
        %v2349 = vunpack.c.h.b16 %v2331
        %v2350 = vunpack.c.l.b16 %v2332
        %v2351 = vunpack.c.h.b16 %v2332
        %v2352 = vunpack.c.l.b16 %v2333
        %v2353 = vunpack.c.h.b16 %v2333
        %v2354 = vunpack.c.l.b16 %v2334
        %v2355 = vunpack.c.h.b16 %v2334
        %v2356 = vunpack.c.l.b16 %v2335
        %v2357 = vunpack.c.h.b16 %v2335
        %v2358 = vunpack.c.l.b16 %v2336
        %v2359 = vunpack.c.h.b16 %v2336
        %v2360 = vunpack.c.l.b16 %v2337
        %v2361 = vunpack.c.h.b16 %v2337
        %v2362 = vpack.c.b16 %v2346, %v2346
        %v2363 = vpack.c.b16 %v2347, %v2347
        %v2364 = vpack.c.b16 %v2348, %v2348
        %v2365 = vpack.c.b16 %v2349, %v2349
        %v2366 = vpack.c.b16 %v2350, %v2350
        %v2367 = vpack.c.b16 %v2351, %v2351
        %v2368 = vpack.c.b16 %v2352, %v2352
        %v2369 = vpack.c.b16 %v2353, %v2353
        %v2370 = vpack.c.b16 %v2354, %v2354
        %v2371 = vpack.c.b16 %v2355, %v2355
        %v2372 = vpack.c.b16 %v2356, %v2356
        %v2373 = vpack.c.b16 %v2357, %v2357
        %v2374 = vpack.c.b16 %v2358, %v2358
        %v2375 = vpack.c.b16 %v2359, %v2359
        %v2376 = vpack.c.b16 %v2360, %v2360
        %v2377 = vpack.c.b16 %v2361, %v2361
        %2394 = vst [vmem:[%s301] sm:$0xf] %v2362
        %2395 = vst [vmem:[%s301 + $0x4] sm:$0xf] %v2363
        %2396 = vst [vmem:[%s301 + $0x8] sm:$0xf] %v2364
        %2397 = vst [vmem:[%s301 + $0xc] sm:$0xf] %v2365
        %2398 = vst [vmem:[%s301 + $0x10] sm:$0xf] %v2366
        %2399 = vst [vmem:[%s301 + $0x14] sm:$0xf] %v2367
        %2400 = vst [vmem:[%s301 + $0x18] sm:$0xf] %v2368
        %2401 = vst [vmem:[%s301 + $0x1c] sm:$0xf] %v2369
        %2402 = vst [vmem:[%s301 + $0x20] sm:$0xf] %v2370
        %2403 = vst [vmem:[%s301 + $0x24] sm:$0xf] %v2371
        %2404 = vst [vmem:[%s301 + $0x28] sm:$0xf] %v2372
        %2405 = vst [vmem:[%s301 + $0x2c] sm:$0xf] %v2373
        %2406 = vst [vmem:[%s301 + $0x30] sm:$0xf] %v2374
        %2407 = vst [vmem:[%s301 + $0x34] sm:$0xf] %v2375
        %2408 = vst [vmem:[%s301 + $0x38] sm:$0xf] %v2376
        %2409 = vst [vmem:[%s301 + $0x3c] sm:$0xf] %v2377
        %s2410 = sand.u32 %s134, 1
        %s2411 = scalar_lea.sflag [#allocation6], %s2410
        %s2412 = sand.u32 %s134, 1
        %s2413 = smul.addr %s2412, 64
        %s2414 = scalar_lea.vmem [#allocation12], %s2413
        %s2415 = sand.u32 %s28, 1
        %s2416 = scalar_lea.sflag [#allocation14], %s2415
        %s2417 = sand.u32 %s160, 1
        %s2418 = scalar_lea.vmem [#allocation13], %s2417
        %s2419 = sand.u32 %s28, 1
        %s2420 = scalar_lea.sflag [#allocation14], %s2419
        %s2421 = sand.u32 %s186, 1
        %s2422 = scalar_lea.vmem [#allocation15], %s2421
        // Predicated region
        $region109: #{double_conv.3} parent=35 // pred_check
          %p2423 = pneg %p144
        $region110: #{double_conv.3} parent=35 // pred_check_branch
          %2425 = sbr.rel (%p2423) target = $region112
        $region111: #{double_conv.3} parent=35 // pred_region
          %s2426 = smul.u32 8, %s33
          %s2428 = ssub.s32 1024, 1024
          %2429 = vsyncadd %s2411, %s2428
          %s2430 = smul.addr %s2426, 2
          %s2431 = smul.addr %s32, 32
          %s2432 = sadd.s32 %s2430, %s2431
          %s2433 = smul.addr %s2432, 64
          %s2434 = scalar_lea.hbm %s5, %s2433
          %s2435 = sshll.u32 %s2414, 4
          %s2436 = int_to_ptr.vmem [resolvable:$true] %s2435
          %2441 = dma.vmem_to_hbm [thread:$0]  %s2436, 1024, %s2434, %s2411, 64, 64, 4
        $region112: #{double_conv.3} parent=35 // pred_fallthru
          _
        // Predicated region
        $region113: #{double_conv.3} parent=35 // pred_check
          %p2442 = pneg %p170
        $region114: #{double_conv.3} parent=35 // pred_check_branch
          %2444 = sbr.rel (%p2442) target = $region116
        $region115: #{double_conv.3} parent=35 // pred_region
          %s2446 = ssub.s32 16, 16
          %2447 = vsyncadd %s2416, %s2446
          %s2448 = smul.addr %s32, 16
          %s2449 = scalar_lea.hbm %s6, %s2448
          %s2451 = sshll.u32 %s2418, 4
          %s2452 = int_to_ptr.vmem [resolvable:$true] %s2451
          %2454 = dma.vmem_to_hbm [thread:$0]  %s2452, 16, %s2449, %s2416
        $region116: #{double_conv.3} parent=35 // pred_fallthru
          _
        // Predicated region
        $region117: #{double_conv.3} parent=35 // pred_check
          %p2455 = pneg %p196
        $region118: #{double_conv.3} parent=35 // pred_check_branch
          %2457 = sbr.rel (%p2455) target = $region120
        $region119: #{double_conv.3} parent=35 // pred_region
          %s2459 = ssub.s32 16, 16
          %2460 = vsyncadd %s2420, %s2459
          %s2461 = smul.addr %s32, 16
          %s2462 = scalar_lea.hbm %s7, %s2461
          %s2464 = sshll.u32 %s2422, 4
          %s2465 = int_to_ptr.vmem [resolvable:$true] %s2464
          %2467 = dma.vmem_to_hbm [thread:$0]  %s2465, 16, %s2462, %s2420
        $region120: #{double_conv.3} parent=35 // pred_fallthru
          _
      $region36: #{double_conv.3} parent=5 // pred_fallthru
        _
      %p2468 = scmp.le.s32.totalorder 2, %s23
      // Predicated region
      $region121: #{double_conv.3} parent=5 // pred_check
        %p2469 = pneg %p2468
      $region122: #{double_conv.3} parent=5 // pred_check_branch
        %2471 = sbr.rel (%p2469) target = $region124
      $region123: #{double_conv.3} parent=5 // pred_region
        %s2472 = ssub.s32 %s23, 2
        // Predicated region
        $region125: #{double_conv.3} parent=123 // pred_check
          %p2473 = pneg %p150
        $region126: #{double_conv.3} parent=123 // pred_check_branch
          %2475 = sbr.rel (%p2473) target = $region128
        $region127: #{double_conv.3} parent=123 // pred_region
          %s2476 = sand.u32 %s135, 1
          %s2477 = scalar_lea.sflag [#allocation6], %s2476
          %s2478 = sand.u32 %s135, 1
          %s2479 = smul.addr %s2478, 64
          %s2480 = scalar_lea.vmem [#allocation12], %s2479
          %2481 = dma.done %s2477, 1024
        $region128: #{double_conv.3} parent=123 // pred_fallthru
          _
        // Predicated region
        $region129: #{double_conv.3} parent=123 // pred_check
          %p2482 = pneg %p176
        $region130: #{double_conv.3} parent=123 // pred_check_branch
          %2484 = sbr.rel (%p2482) target = $region132
        $region131: #{double_conv.3} parent=123 // pred_region
          %s2485 = sand.u32 %s29, 1
          %s2486 = scalar_lea.sflag [#allocation14], %s2485
          %s2487 = sand.u32 %s161, 1
          %s2488 = scalar_lea.vmem [#allocation13], %s2487
          %2489 = dma.done %s2486, 16
        $region132: #{double_conv.3} parent=123 // pred_fallthru
          _
        // Predicated region
        $region133: #{double_conv.3} parent=123 // pred_check
          %p2490 = pneg %p202
        $region134: #{double_conv.3} parent=123 // pred_check_branch
          %2492 = sbr.rel (%p2490) target = $region136
        $region135: #{double_conv.3} parent=123 // pred_region
          %s2493 = sand.u32 %s29, 1
          %s2494 = scalar_lea.sflag [#allocation14], %s2493
          %s2495 = sand.u32 %s187, 1
          %s2496 = scalar_lea.vmem [#allocation15], %s2495
          %2497 = dma.done %s2494, 16
        $region136: #{double_conv.3} parent=123 // pred_fallthru
          _
      $region124: #{double_conv.3} parent=5 // pred_fallthru
        _
    $region6: #{double_conv.3} parent=1 // loop_footer
      %s27 = sadd.s32 1, %s23
    $region7: #{double_conv.3} parent=1 // loop_footer_branch
      %22 = sbr.rel target = $region3
    $region8: #{double_conv.3} parent=1 // loop_exit
      _
    %2498 = vsyncpa [#allocation5], 1
    %s2499 = scalar_lea.sflag [#allocation5], 1
    %2500 = vsyncpa %s2499, 1
    %2501 = vsyncpa [#allocation8], 1
    %2502 = vsyncpa [#allocation11], 1
    %2503 = vsyncpa [#allocation6], 1
    %s2504 = scalar_lea.sflag [#allocation6], 1
    %2505 = vsyncpa %s2504, 1
    %2506 = vsyncpa [#allocation14], 1
    %s2507 = scalar_lea.sflag [#allocation14], 1
    %2508 = vsyncpa %s2507, 1
  %2509 = vsyncmov [#allocation3]
  %s2510 = vpop.sfrf %2509
  %p2511 = scmp.eq.s32.totalorder %s2510, 0
  %p2512 = pneg %p2511
  %2514 = shalt.err (%p2512)
  %s2515 = scalar_lea.sflag [#allocation3], 1
  %2516 = vsyncmov %s2515
  %s2517 = vpop.sfrf %2516
  %p2518 = scmp.eq.s32.totalorder %s2517, 0
  %p2519 = pneg %p2518
  %2521 = shalt.err (%p2519)
  %s2522 = scalar_lea.sflag [#allocation3], 2
  %2523 = vsyncmov %s2522
  %s2524 = vpop.sfrf %2523
  %p2525 = scmp.eq.s32.totalorder %s2524, 0
  %p2526 = pneg %p2525
  %2528 = shalt.err (%p2526)
  %s2529 = scalar_lea.sflag [#allocation3], 3
  %2530 = vsyncmov %s2529
  %s2531 = vpop.sfrf %2530
  %p2532 = scmp.eq.s32.totalorder %s2531, 0
  %p2533 = pneg %p2532
  %2535 = shalt.err (%p2533)
  %s2536 = scalar_lea.sflag [#allocation3], 4
  %2537 = vsyncmov %s2536
  %s2538 = vpop.sfrf %2537
  %p2539 = scmp.eq.s32.totalorder %s2538, 0
  %p2540 = pneg %p2539
  %2542 = shalt.err (%p2540)
  %s2543 = scalar_lea.sflag [#allocation3], 5
  %2544 = vsyncmov %s2543
  %s2545 = vpop.sfrf %2544
  %p2546 = scmp.eq.s32.totalorder %s2545, 0
  %p2547 = pneg %p2546
  %2549 = shalt.err (%p2547)

// kernel: double_conv.4
$region0: #{double_conv.4}
  #allocation0 [shape = 'u32[]', space=smem, size = 0x4, offset = 0x4, fixed_abs, tag = 'smem constant byte address 0x4 - core index']
  #allocation1 [shape = 'u32[144,128]{1,0:T(1,128)}', space=vmem, size = 0x12000, scoped, tag = 'internal scratch']
  #allocation2 [shape = 'bf16[2,10,16,128]{3,2,1,0:T(16,128)(2,1)}', space=vmem, size = 0x14000, scoped, tag = 'scratch operand']
  #allocation3 [shape = 's32[6]{0}', space=sflag, size = 0x18, scoped, tag = 'scratch operand']
  #allocation16 [shape = 's32[]', space=sflag, size = 0x4, offset = 0, fixed_abs, tag = 'sflag constant byte address 0x0 - dummy sync flag']
  #allocation17 [shape = 's32[]', space=sflag, size = 0x4, offset = 0, fixed_abs, tag = 'sflag constant byte address 0x0 - dummy sync flag']
  #allocation18 [shape = 'u32[]', space=smem, size = 0x4, offset = 0x44, fixed_abs, tag = 'smem constant byte address 0x44 - assertion arg 0']
  #allocation19 [shape = 'u32[]', space=smem, size = 0x4, offset = 0x48, fixed_abs, tag = 'smem constant byte address 0x48 - assertion arg 1']
  #allocation20 [shape = 's32[]', space=sflag, size = 0x4, offset = 0, fixed_abs, tag = 'sflag constant byte address 0x0 - dummy sync flag']
  #allocation21 [shape = 's32[]', space=sflag, size = 0x4, offset = 0, fixed_abs, tag = 'sflag constant byte address 0x0 - dummy sync flag']
  #allocation22 [shape = 's32[]', space=sflag, size = 0x4, offset = 0, fixed_abs, tag = 'sflag constant byte address 0x0 - dummy sync flag']
  #allocation23 [shape = 's32[]', space=sflag, size = 0x4, offset = 0, fixed_abs, tag = 'sflag constant byte address 0x0 - dummy sync flag']
  #allocation24 [shape = 's32[]', space=sflag, size = 0x4, offset = 0, fixed_abs, tag = 'sflag constant byte address 0x0 - dummy sync flag']
  #allocation25 [shape = 's32[]', space=sflag, size = 0x4, offset = 0, fixed_abs, tag = 'sflag constant byte address 0x0 - dummy sync flag']
  #allocation26 [shape = 's32[]', space=sflag, size = 0x4, offset = 0, fixed_abs, tag = 'sflag constant byte address 0x0 - dummy sync flag']
  #allocation27 [shape = 's32[]', space=sflag, size = 0x4, offset = 0, fixed_abs, tag = 'sflag constant byte address 0x0 - dummy sync flag']
  #allocation28 [shape = 's32[]', space=sflag, size = 0x4, offset = 0, fixed_abs, tag = 'sflag constant byte address 0x0 - dummy sync flag']
  #allocation29 [shape = 's32[]', space=sflag, size = 0x4, offset = 0, fixed_abs, tag = 'sflag constant byte address 0x0 - dummy sync flag']
  %s0 = inlined_call_operand.hbm [shape: bf16[2,16,16,128], index: 0, kind: input, shape index: {}]
  %s1 = inlined_call_operand.hbm [shape: bf16[1152,128], index: 1, kind: input, shape index: {}]
  %s2 = inlined_call_operand.hbm [shape: f32[1,128], index: 2, kind: input, shape index: {}]
  %s3 = inlined_call_operand.hbm [shape: f32[1,128], index: 3, kind: input, shape index: {}]
  %s4 = inlined_call_operand.hbm [shape: f32[1,128], index: 4, kind: input, shape index: {}]
  %s5 = inlined_call_operand.hbm [shape: bf16[2,16,16,128], index: 5, kind: output, shape index: {0}]
  %s6 = inlined_call_operand.hbm [shape: f32[2,1,128], index: 6, kind: output, shape index: {1}]
  %s7 = inlined_call_operand.hbm [shape: f32[2,1,128], index: 7, kind: output, shape index: {2}]
  %8 = xla_tuple %s5, %s6, %s7
  %s9 = sld [smem:[#allocation0]]
  $region137: #{double_conv.4} parent=0
    _
  %s11 = ssub.s32 1, %s9
  %s12 = scalar_select 0, %s11, %s9
  $region1: #{double_conv.4} parent=0
    #allocation4 [shape = 'u8[294912]{0}', space=vmem, size = 0x48000, scoped, tag = 'input window, operand 1, single buffered']
    #allocation5 [shape = 's32[2]{0}', space=sflag, size = 0x8, scoped, tag = 'scoped memory for double_conv.4']
    #allocation6 [shape = 's32[2]{0}', space=sflag, size = 0x8, scoped, tag = 'scoped memory for double_conv.4']
    #allocation7 [shape = 'u8[512]{0}', space=vmem, size = 0x400, scoped, tag = 'input window, operand 2, single buffered']
    #allocation8 [shape = 's32[1]{0}', space=sflag, size = 0x4, scoped, tag = 'scoped memory for double_conv.4']
    #allocation9 [shape = 'u8[512]{0}', space=vmem, size = 0x400, scoped, tag = 'input window, operand 3, single buffered']
    #allocation10 [shape = 'u8[512]{0}', space=vmem, size = 0x400, scoped, tag = 'input window, operand 4, single buffered']
    #allocation11 [shape = 's32[1]{0}', space=sflag, size = 0x4, scoped, tag = 'scoped memory for double_conv.4']
    #allocation12 [shape = 'u8[65536]{0}', space=vmem, size = 0x10000, scoped, tag = 'output window, operand 0']
    #allocation13 [shape = 'u8[1024]{0}', space=vmem, size = 0x400, scoped, tag = 'output window, operand 1']
    #allocation14 [shape = 's32[2]{0}', space=sflag, size = 0x8, scoped, tag = 'scoped memory for double_conv.4']
    #allocation15 [shape = 'u8[1024]{0}', space=vmem, size = 0x400, scoped, tag = 'output window, operand 2']
    %13 = vsyncpa [#allocation5], 0
    %14 = vsyncpa [#allocation8], 0
    %15 = vsyncpa [#allocation11], 0
    %16 = vsyncpa [#allocation6], 0
    %s17 = scalar_lea.sflag [#allocation6], 1
    %18 = vsyncpa %s17, 0
    %19 = vsyncpa [#allocation14], 0
    %s20 = scalar_lea.sflag [#allocation14], 1
    %21 = vsyncpa %s20, 0
    loop: start=0, step=1, limit=6
    $region2: #{double_conv.4} parent=1 // loop_pre_header
      _
    $region3: #{double_conv.4} parent=1 // loop_header
      %s23 = sphi 0, %s27
      %p24 = scmp.ge.s32.totalorder %s23, 6
      %s30 = sphi 0, %s42
      %s31 = sphi 0, %s38
      %s32 = sphi 0, %s30
      %s33 = sphi 0, %s31
      %s34 = sphi 0, %s32
      %s35 = sphi 0, %s33
      %s43 = sphi 0, %s43
      %s45 = sphi 0, %s43
      %s46 = sphi 0, %s45
      %s60 = sphi 0, %s46
      %s64 = sphi 0, %s64
      %s66 = sphi 0, %s64
      %s67 = sphi 0, %s66
      %s81 = sphi 0, %s67
      %s85 = sphi 0, %s85
      %s87 = sphi 0, %s85
      %s88 = sphi 0, %s87
      %s102 = sphi 0, %s88
      %s106 = sphi 0, %s106
      %s108 = sphi 0, %s106
      %s109 = sphi 0, %s108
      %s123 = sphi 0, %s109
      %s131 = sphi 0, %s133
      %s134 = sphi 0, %s131
      %s135 = sphi 0, %s134
      %s151 = sphi 0, %s135
      %s157 = sphi 0, %s159
      %s160 = sphi 0, %s157
      %s161 = sphi 0, %s160
      %s177 = sphi 0, %s161
      %s183 = sphi 0, %s185
      %s186 = sphi 0, %s183
      %s187 = sphi 0, %s186
      %s203 = sphi 0, %s187
    $region4: #{double_conv.4} parent=1 // loop_header_branch
      %26 = sbr.rel (%p24) target = $region8
    $region5: #{double_conv.4} parent=1 // loop_body
      %s28 = ssub.s32 %s23, 1
      %s29 = ssub.s32 %s23, 2
      %s36 = sadd.s32 1, %s31
      %p37 = scmp.ge.s32.totalorder %s36, 2
      %s38 = scalar_select %p37, 0, %s36
      %s39 = sadd.s32 1, %s30
      %s40 = scalar_select %p37, %s39, %s30
      %p41 = scmp.ge.s32.totalorder %s40, 2
      %s42 = scalar_select %p41, 0, %s40
      %s44 = sadd.s32 %s43, 1
      %p47 = scmp.eq.s32.totalorder %s23, 3
      %p48 = scmp.ne.s32.totalorder %s43, %s45
      %p49 = scmp.eq.s32.totalorder %s23, 0
      %p50 = por %p48, %p49
      %p51 = scmp.ne.s32.totalorder %s43, %s45
      %p52 = scmp.eq.s32.totalorder %s28, 3
      %p53 = por %p51, %p52
      %p54 = scmp.ne.s32.totalorder %s45, %s46
      %p55 = scmp.eq.s32.totalorder %s28, 0
      %p56 = por %p54, %p55
      %p57 = scmp.ne.s32.totalorder %s45, %s46
      %p58 = scmp.eq.s32.totalorder %s29, 3
      %p59 = por %p57, %p58
      %p61 = scmp.ne.s32.totalorder %s46, %s60
      %p62 = scmp.eq.s32.totalorder %s29, 0
      %p63 = por %p61, %p62
      %s65 = sadd.s32 %s64, 1
      %p68 = scmp.eq.s32.totalorder %s23, 3
      %p69 = scmp.ne.s32.totalorder %s64, %s66
      %p70 = scmp.eq.s32.totalorder %s23, 0
      %p71 = por %p69, %p70
      %p72 = scmp.ne.s32.totalorder %s64, %s66
      %p73 = scmp.eq.s32.totalorder %s28, 3
      %p74 = por %p72, %p73
      %p75 = scmp.ne.s32.totalorder %s66, %s67
      %p76 = scmp.eq.s32.totalorder %s28, 0
      %p77 = por %p75, %p76
      %p78 = scmp.ne.s32.totalorder %s66, %s67
      %p79 = scmp.eq.s32.totalorder %s29, 3
      %p80 = por %p78, %p79
      %p82 = scmp.ne.s32.totalorder %s67, %s81
      %p83 = scmp.eq.s32.totalorder %s29, 0
      %p84 = por %p82, %p83
      %s86 = sadd.s32 %s85, 1
      %p89 = scmp.eq.s32.totalorder %s23, 3
      %p90 = scmp.ne.s32.totalorder %s85, %s87
      %p91 = scmp.eq.s32.totalorder %s23, 0
      %p92 = por %p90, %p91
      %p93 = scmp.ne.s32.totalorder %s85, %s87
      %p94 = scmp.eq.s32.totalorder %s28, 3
      %p95 = por %p93, %p94
      %p96 = scmp.ne.s32.totalorder %s87, %s88
      %p97 = scmp.eq.s32.totalorder %s28, 0
      %p98 = por %p96, %p97
      %p99 = scmp.ne.s32.totalorder %s87, %s88
      %p100 = scmp.eq.s32.totalorder %s29, 3
      %p101 = por %p99, %p100
      %p103 = scmp.ne.s32.totalorder %s88, %s102
      %p104 = scmp.eq.s32.totalorder %s29, 0
      %p105 = por %p103, %p104
      %s107 = sadd.s32 %s106, 1
      %p110 = scmp.eq.s32.totalorder %s23, 3
      %p111 = scmp.ne.s32.totalorder %s106, %s108
      %p112 = scmp.eq.s32.totalorder %s23, 0
      %p113 = por %p111, %p112
      %p114 = scmp.ne.s32.totalorder %s106, %s108
      %p115 = scmp.eq.s32.totalorder %s28, 3
      %p116 = por %p114, %p115
      %p117 = scmp.ne.s32.totalorder %s108, %s109
      %p118 = scmp.eq.s32.totalorder %s28, 0
      %p119 = por %p117, %p118
      %p120 = scmp.ne.s32.totalorder %s108, %s109
      %p121 = scmp.eq.s32.totalorder %s29, 3
      %p122 = por %p120, %p121
      %p124 = scmp.ne.s32.totalorder %s109, %s123
      %p125 = scmp.eq.s32.totalorder %s29, 0
      %p126 = por %p124, %p125
      %s127 = ssub.s32 %s30, %s42
      %s128 = ssub.s32 %s31, %s38
      %s129 = sor.u32 %s127, %s128
      %p130 = scmp.eq.s32.totalorder %s129, 0
      %s132 = sadd.s32 %s131, 1
      %s133 = scalar_select %p130, %s131, %s132
      %p136 = pneg %p130
      %p137 = scmp.eq.s32.totalorder %s23, 3
      %p138 = por %p136, %p137
      %p139 = scmp.ne.s32.totalorder %s131, %s134
      %p140 = scmp.eq.s32.totalorder %s23, 0
      %p141 = por %p139, %p140
      %p142 = scmp.ne.s32.totalorder %s131, %s134
      %p143 = scmp.eq.s32.totalorder %s28, 3
      %p144 = por %p142, %p143
      %p145 = scmp.ne.s32.totalorder %s134, %s135
      %p146 = scmp.eq.s32.totalorder %s28, 0
      %p147 = por %p145, %p146
      %p148 = scmp.ne.s32.totalorder %s134, %s135
      %p149 = scmp.eq.s32.totalorder %s29, 3
      %p150 = por %p148, %p149
      %p152 = scmp.ne.s32.totalorder %s135, %s151
      %p153 = scmp.eq.s32.totalorder %s29, 0
      %p154 = por %p152, %p153
      %s155 = ssub.s32 %s30, %s42
      %p156 = scmp.eq.s32.totalorder %s155, 0
      %s158 = sadd.s32 %s157, 1
      %s159 = scalar_select %p156, %s157, %s158
      %p162 = pneg %p156
      %p163 = scmp.eq.s32.totalorder %s23, 3
      %p164 = por %p162, %p163
      %p165 = scmp.ne.s32.totalorder %s157, %s160
      %p166 = scmp.eq.s32.totalorder %s23, 0
      %p167 = por %p165, %p166
      %p168 = scmp.ne.s32.totalorder %s157, %s160
      %p169 = scmp.eq.s32.totalorder %s28, 3
      %p170 = por %p168, %p169
      %p171 = scmp.ne.s32.totalorder %s160, %s161
      %p172 = scmp.eq.s32.totalorder %s28, 0
      %p173 = por %p171, %p172
      %p174 = scmp.ne.s32.totalorder %s160, %s161
      %p175 = scmp.eq.s32.totalorder %s29, 3
      %p176 = por %p174, %p175
      %p178 = scmp.ne.s32.totalorder %s161, %s177
      %p179 = scmp.eq.s32.totalorder %s29, 0
      %p180 = por %p178, %p179
      %s181 = ssub.s32 %s30, %s42
      %p182 = scmp.eq.s32.totalorder %s181, 0
      %s184 = sadd.s32 %s183, 1
      %s185 = scalar_select %p182, %s183, %s184
      %p188 = pneg %p182
      %p189 = scmp.eq.s32.totalorder %s23, 3
      %p190 = por %p188, %p189
      %p191 = scmp.ne.s32.totalorder %s183, %s186
      %p192 = scmp.eq.s32.totalorder %s23, 0
      %p193 = por %p191, %p192
      %p194 = scmp.ne.s32.totalorder %s183, %s186
      %p195 = scmp.eq.s32.totalorder %s28, 3
      %p196 = por %p194, %p195
      %p197 = scmp.ne.s32.totalorder %s186, %s187
      %p198 = scmp.eq.s32.totalorder %s28, 0
      %p199 = por %p197, %p198
      %p200 = scmp.ne.s32.totalorder %s186, %s187
      %p201 = scmp.eq.s32.totalorder %s29, 3
      %p202 = por %p200, %p201
      %p204 = scmp.ne.s32.totalorder %s187, %s203
      %p205 = scmp.eq.s32.totalorder %s29, 0
      %p206 = por %p204, %p205
      %p207 = scmp.le.s32.totalorder 1, %s23
      %p208 = scmp.lt.s32.totalorder %s23, 5
      %p209 = pnand %p207, %p208
      %p210 = pneg %p209
      // Predicated region
      $region9: #{double_conv.4} parent=5 // pred_check
        _
      $region10: #{double_conv.4} parent=5 // pred_check_branch
        %212 = sbr.rel (%p209) target = $region12
      $region11: #{double_conv.4} parent=5 // pred_region
        %s213 = ssub.s32 %s23, 1
        // Predicated region
        $region13: #{double_conv.4} parent=11 // pred_check
          %p214 = pneg %p56
        $region14: #{double_conv.4} parent=11 // pred_check_branch
          %216 = sbr.rel (%p214) target = $region16
        $region15: #{double_conv.4} parent=11 // pred_region
          %s218 = ssub.s32 9216, 9216
          %219 = vsyncadd [#allocation5], %s218
          %s220 = sshll.u32 [#allocation4], 4
          %s221 = int_to_ptr.vmem [resolvable:$true] %s220
          %226 = dma.hbm_to_vmem [thread:$0]  %s1, 9216, %s221, [#allocation5], 64, 64, 4
        $region16: #{double_conv.4} parent=11 // pred_fallthru
          _
        // Predicated region
        $region17: #{double_conv.4} parent=11 // pred_check
          %p227 = pneg %p77
        $region18: #{double_conv.4} parent=11 // pred_check_branch
          %229 = sbr.rel (%p227) target = $region20
        $region19: #{double_conv.4} parent=11 // pred_region
          %s231 = ssub.s32 16, 16
          %232 = vsyncadd [#allocation8], %s231
          %s234 = sshll.u32 [#allocation7], 4
          %s235 = int_to_ptr.vmem [resolvable:$true] %s234
          %237 = dma.hbm_to_vmem [thread:$0]  %s2, 16, %s235, [#allocation8]
        $region20: #{double_conv.4} parent=11 // pred_fallthru
          _
        // Predicated region
        $region21: #{double_conv.4} parent=11 // pred_check
          %p238 = pneg %p98
        $region22: #{double_conv.4} parent=11 // pred_check_branch
          %240 = sbr.rel (%p238) target = $region24
        $region23: #{double_conv.4} parent=11 // pred_region
          %s242 = ssub.s32 16, 16
          %243 = vsyncadd [#allocation8], %s242
          %s245 = sshll.u32 [#allocation9], 4
          %s246 = int_to_ptr.vmem [resolvable:$true] %s245
          %248 = dma.hbm_to_vmem [thread:$0]  %s3, 16, %s246, [#allocation8]
        $region24: #{double_conv.4} parent=11 // pred_fallthru
          _
        // Predicated region
        $region25: #{double_conv.4} parent=11 // pred_check
          %p249 = pneg %p119
        $region26: #{double_conv.4} parent=11 // pred_check_branch
          %251 = sbr.rel (%p249) target = $region28
        $region27: #{double_conv.4} parent=11 // pred_region
          %s253 = ssub.s32 16, 16
          %254 = vsyncadd [#allocation11], %s253
          %s256 = sshll.u32 [#allocation10], 4
          %s257 = int_to_ptr.vmem [resolvable:$true] %s256
          %259 = dma.hbm_to_vmem [thread:$0]  %s4, 16, %s257, [#allocation11]
        $region28: #{double_conv.4} parent=11 // pred_fallthru
          _
      $region12: #{double_conv.4} parent=5 // pred_fallthru
        _
      %p260 = scmp.lt.s32.totalorder %s23, 4
      // Predicated region
      $region29: #{double_conv.4} parent=5 // pred_check
        %p261 = pneg %p260
      $region30: #{double_conv.4} parent=5 // pred_check_branch
        %263 = sbr.rel (%p261) target = $region32
      $region31: #{double_conv.4} parent=5 // pred_region
        _
      $region32: #{double_conv.4} parent=5 // pred_fallthru
        _
      %p264 = scmp.le.s32.totalorder 1, %s23
      %p265 = scmp.lt.s32.totalorder %s23, 5
      %p266 = pnand %p264, %p265
      %p267 = pneg %p266
      // Predicated region
      $region33: #{double_conv.4} parent=5 // pred_check
        _
      $region34: #{double_conv.4} parent=5 // pred_check_branch
        %269 = sbr.rel (%p266) target = $region36
      $region35: #{double_conv.4} parent=5 // pred_region
        %s270 = ssub.s32 %s23, 1
        // Predicated region
        $region37: #{double_conv.4} parent=35 // pred_check
          %p271 = pneg %p56
        $region38: #{double_conv.4} parent=35 // pred_check_branch
          %273 = sbr.rel (%p271) target = $region40
        $region39: #{double_conv.4} parent=35 // pred_region
          %274 = dma.done [#allocation5], 9216
        $region40: #{double_conv.4} parent=35 // pred_fallthru
          _
        // Predicated region
        $region41: #{double_conv.4} parent=35 // pred_check
          %p275 = pneg %p77
        $region42: #{double_conv.4} parent=35 // pred_check_branch
          %277 = sbr.rel (%p275) target = $region44
        $region43: #{double_conv.4} parent=35 // pred_region
          %278 = dma.done [#allocation8], 16
        $region44: #{double_conv.4} parent=35 // pred_fallthru
          _
        // Predicated region
        $region45: #{double_conv.4} parent=35 // pred_check
          %p279 = pneg %p98
        $region46: #{double_conv.4} parent=35 // pred_check_branch
          %281 = sbr.rel (%p279) target = $region48
        $region47: #{double_conv.4} parent=35 // pred_region
          %282 = dma.done [#allocation8], 16
        $region48: #{double_conv.4} parent=35 // pred_fallthru
          _
        // Predicated region
        $region49: #{double_conv.4} parent=35 // pred_check
          %p283 = pneg %p119
        $region50: #{double_conv.4} parent=35 // pred_check_branch
          %285 = sbr.rel (%p283) target = $region52
        $region51: #{double_conv.4} parent=35 // pred_region
          %286 = dma.done [#allocation11], 16
        $region52: #{double_conv.4} parent=35 // pred_fallthru
          _
        %p287 = pneg %p56
        %p288 = pneg %p53
        %p289 = pneg %p77
        %p290 = pneg %p74
        %p291 = pneg %p98
        %p292 = pneg %p95
        %p293 = pneg %p119
        %p294 = pneg %p116
        %p295 = pneg %p147
        %p296 = pneg %p144
        %s297 = sand.u32 %s134, 1
        %s298 = scalar_lea.sflag [#allocation6], %s297
        %s299 = sand.u32 %s134, 1
        %s300 = smul.addr %s299, 64
        %s301 = scalar_lea.vmem [#allocation12], %s300
        %p302 = pneg %p173
        %p303 = pneg %p170
        %s304 = sand.u32 %s28, 1
        %s305 = scalar_lea.sflag [#allocation14], %s304
        %s306 = sand.u32 %s160, 1
        %s307 = scalar_lea.vmem [#allocation13], %s306
        %p308 = pneg %p199
        %p309 = pneg %p196
        %s310 = sand.u32 %s28, 1
        %s311 = scalar_lea.sflag [#allocation14], %s310
        %s312 = sand.u32 %s186, 1
        %s313 = scalar_lea.vmem [#allocation15], %s312
        %s314 = smul.u32 8, %s33
        %p316 = scmp.lt.s32.totalorder %s33, 0
        %s317 = ssub.s32 0, %s33
        %s318 = scalar_select %p316, %s317, %s33
        %s319 = sand.u32 %s318, 1
        %s320 = ssub.s32 0, %s319
        %s321 = scalar_select %p316, %s320, %s319
        %p322 = scmp.ne.s32.totalorder %s321, 0
        %p323 = scmp.lt.s32.totalorder %s321, 0
        %p324 = pnand %p323, %p322
        %p325 = pneg %p324
        %s326 = sadd.s32 %s321, 2
        %s327 = scalar_select %p325, %s326, %s321
        %p328 = scmp.eq.s32.totalorder %s33, 0
        // Predicated region
        $region53: #{double_conv.4} parent=35 // pred_check
          %p329 = pneg %p328
        $region54: #{double_conv.4} parent=35 // pred_check_branch
          %331 = sbr.rel (%p329) target = $region56
        $region55: #{double_conv.4} parent=35 // pred_region
          %332 = vst [vmem:[%s307] sm:$0x1] 0.0
          %333 = vst [vmem:[%s313] sm:$0x1] 0.0
          %s334 = smul.u32 %s33, 8
          %s335 = smul.u32 %s334, 2
          %s336 = smul.u32 %s32, 32
          %s337 = sadd.s32 %s335, %s336
          %s338 = smul.addr %s337, 64
          %s339 = scalar_lea.hbm %s0, %s338
          %s340 = smul.u32 %s327, 10
          %s341 = sadd.s32 1, %s340
          %s342 = smul.addr %s341, 8
          %s343 = scalar_lea.vmem [#allocation2], %s342
          %s344 = smul.u32 %s327, 3
          %s345 = scalar_lea.sflag [#allocation3], %s344
          // Predicated region
          $region57: #{double_conv.4} parent=55 // pred_check
            _
          $region58: #{double_conv.4} parent=55 // pred_check_branch
            %347 = sbr.rel target = $region60
          $region59: #{double_conv.4} parent=55 // pred_region
            %348 = sst [smem:[#allocation18]] [#allocation17]
            %349 = sst [smem:[#allocation19]] [#allocation16]
          $region60: #{double_conv.4} parent=55 // pred_fallthru
            _
          %351 = shalt.err (0)
          %s353 = sshll.u32 %s343, 4
          %s354 = int_to_ptr.vmem [resolvable:$true] %s353
          %356 = dma.hbm_to_vmem [thread:$0]  %s339, 1024, %s354, %s345
          %p357 = scmp.gt.s32.totalorder %s33, 0
          // Predicated region
          $region61: #{double_conv.4} parent=55 // pred_check
            %p358 = pneg %p357
          $region62: #{double_conv.4} parent=55 // pred_check_branch
            %360 = sbr.rel (%p358) target = $region64
          $region63: #{double_conv.4} parent=55 // pred_region
            %s361 = ssub.s32 %s334, 1
            %s362 = smul.u32 %s361, 2
            %s363 = sadd.s32 %s362, %s336
            %s364 = smul.addr %s363, 64
            %s365 = scalar_lea.hbm %s0, %s364
            %s366 = smul.addr %s340, 8
            %s367 = scalar_lea.vmem [#allocation2], %s366
            %s368 = sadd.s32 1, %s344
            %s369 = scalar_lea.sflag [#allocation3], %s368
            // Predicated region
            $region65: #{double_conv.4} parent=63 // pred_check
              _
            $region66: #{double_conv.4} parent=63 // pred_check_branch
              %371 = sbr.rel target = $region68
            $region67: #{double_conv.4} parent=63 // pred_region
              %372 = sst [smem:[#allocation18]] [#allocation21]
              %373 = sst [smem:[#allocation19]] [#allocation20]
            $region68: #{double_conv.4} parent=63 // pred_fallthru
              _
            %375 = shalt.err (0)
            %s377 = sshll.u32 %s367, 4
            %s378 = int_to_ptr.vmem [resolvable:$true] %s377
            %380 = dma.hbm_to_vmem [thread:$0]  %s365, 128, %s378, %s369
          $region64: #{double_conv.4} parent=55 // pred_fallthru
            _
          %p381 = scmp.lt.s32.totalorder %s33, 1
          // Predicated region
          $region69: #{double_conv.4} parent=55 // pred_check
            %p382 = pneg %p381
          $region70: #{double_conv.4} parent=55 // pred_check_branch
            %384 = sbr.rel (%p382) target = $region72
          $region71: #{double_conv.4} parent=55 // pred_region
            %s385 = sadd.s32 %s334, 8
            %s386 = smul.u32 %s385, 2
            %s387 = sadd.s32 %s386, %s336
            %s388 = smul.addr %s387, 64
            %s389 = scalar_lea.hbm %s0, %s388
            %s390 = sadd.s32 9, %s340
            %s391 = smul.addr %s390, 8
            %s392 = scalar_lea.vmem [#allocation2], %s391
            %s393 = sadd.s32 2, %s344
            %s394 = scalar_lea.sflag [#allocation3], %s393
            // Predicated region
            $region73: #{double_conv.4} parent=71 // pred_check
              _
            $region74: #{double_conv.4} parent=71 // pred_check_branch
              %396 = sbr.rel target = $region76
            $region75: #{double_conv.4} parent=71 // pred_region
              %397 = sst [smem:[#allocation18]] [#allocation23]
              %398 = sst [smem:[#allocation19]] [#allocation22]
            $region76: #{double_conv.4} parent=71 // pred_fallthru
              _
            %400 = shalt.err (0)
            %s402 = sshll.u32 %s392, 4
            %s403 = int_to_ptr.vmem [resolvable:$true] %s402
            %405 = dma.hbm_to_vmem [thread:$0]  %s389, 128, %s403, %s394
          $region72: #{double_conv.4} parent=55 // pred_fallthru
            _
        $region56: #{double_conv.4} parent=35 // pred_fallthru
          _
        %s406 = sadd.s32 %s33, 1
        %p407 = scmp.lt.s32.totalorder %s406, 2
        // Predicated region
        $region77: #{double_conv.4} parent=35 // pred_check
          %p408 = pneg %p407
        $region78: #{double_conv.4} parent=35 // pred_check_branch
          %410 = sbr.rel (%p408) target = $region80
        $region79: #{double_conv.4} parent=35 // pred_region
          %s411 = ssub.s32 1, %s327
          %s412 = smul.u32 %s406, 8
          %s413 = smul.u32 %s412, 2
          %s414 = smul.u32 %s32, 32
          %s415 = sadd.s32 %s413, %s414
          %s416 = smul.addr %s415, 64
          %s417 = scalar_lea.hbm %s0, %s416
          %s418 = smul.u32 %s411, 10
          %s419 = sadd.s32 1, %s418
          %s420 = smul.addr %s419, 8
          %s421 = scalar_lea.vmem [#allocation2], %s420
          %s422 = smul.u32 %s411, 3
          %s423 = scalar_lea.sflag [#allocation3], %s422
          // Predicated region
          $region81: #{double_conv.4} parent=79 // pred_check
            _
          $region82: #{double_conv.4} parent=79 // pred_check_branch
            %425 = sbr.rel target = $region84
          $region83: #{double_conv.4} parent=79 // pred_region
            %426 = sst [smem:[#allocation18]] [#allocation25]
            %427 = sst [smem:[#allocation19]] [#allocation24]
          $region84: #{double_conv.4} parent=79 // pred_fallthru
            _
          %429 = shalt.err (0)
          %s431 = sshll.u32 %s421, 4
          %s432 = int_to_ptr.vmem [resolvable:$true] %s431
          %434 = dma.hbm_to_vmem [thread:$0]  %s417, 1024, %s432, %s423
          %p435 = scmp.gt.s32.totalorder %s406, 0
          // Predicated region
          $region85: #{double_conv.4} parent=79 // pred_check
            %p436 = pneg %p435
          $region86: #{double_conv.4} parent=79 // pred_check_branch
            %438 = sbr.rel (%p436) target = $region88
          $region87: #{double_conv.4} parent=79 // pred_region
            %s439 = ssub.s32 %s412, 1
            %s440 = smul.u32 %s439, 2
            %s441 = sadd.s32 %s440, %s414
            %s442 = smul.addr %s441, 64
            %s443 = scalar_lea.hbm %s0, %s442
            %s444 = smul.addr %s418, 8
            %s445 = scalar_lea.vmem [#allocation2], %s444
            %s446 = sadd.s32 1, %s422
            %s447 = scalar_lea.sflag [#allocation3], %s446
            // Predicated region
            $region89: #{double_conv.4} parent=87 // pred_check
              _
            $region90: #{double_conv.4} parent=87 // pred_check_branch
              %449 = sbr.rel target = $region92
            $region91: #{double_conv.4} parent=87 // pred_region
              %450 = sst [smem:[#allocation18]] [#allocation27]
              %451 = sst [smem:[#allocation19]] [#allocation26]
            $region92: #{double_conv.4} parent=87 // pred_fallthru
              _
            %453 = shalt.err (0)
            %s455 = sshll.u32 %s445, 4
            %s456 = int_to_ptr.vmem [resolvable:$true] %s455
            %458 = dma.hbm_to_vmem [thread:$0]  %s443, 128, %s456, %s447
          $region88: #{double_conv.4} parent=79 // pred_fallthru
            _
          %p459 = scmp.lt.s32.totalorder %s406, 1
          // Predicated region
          $region93: #{double_conv.4} parent=79 // pred_check
            %p460 = pneg %p459
          $region94: #{double_conv.4} parent=79 // pred_check_branch
            %462 = sbr.rel (%p460) target = $region96
          $region95: #{double_conv.4} parent=79 // pred_region
            %s463 = sadd.s32 %s412, 8
            %s464 = smul.u32 %s463, 2
            %s465 = sadd.s32 %s464, %s414
            %s466 = smul.addr %s465, 64
            %s467 = scalar_lea.hbm %s0, %s466
            %s468 = sadd.s32 9, %s418
            %s469 = smul.addr %s468, 8
            %s470 = scalar_lea.vmem [#allocation2], %s469
            %s471 = sadd.s32 2, %s422
            %s472 = scalar_lea.sflag [#allocation3], %s471
            // Predicated region
            $region97: #{double_conv.4} parent=95 // pred_check
              _
            $region98: #{double_conv.4} parent=95 // pred_check_branch
              %474 = sbr.rel target = $region100
            $region99: #{double_conv.4} parent=95 // pred_region
              %475 = sst [smem:[#allocation18]] [#allocation29]
              %476 = sst [smem:[#allocation19]] [#allocation28]
            $region100: #{double_conv.4} parent=95 // pred_fallthru
              _
            %478 = shalt.err (0)
            %s480 = sshll.u32 %s470, 4
            %s481 = int_to_ptr.vmem [resolvable:$true] %s480
            %483 = dma.hbm_to_vmem [thread:$0]  %s467, 128, %s481, %s472
          $region96: #{double_conv.4} parent=79 // pred_fallthru
            _
        $region80: #{double_conv.4} parent=35 // pred_fallthru
          _
        %s484 = smul.u32 %s327, 3
        %s485 = scalar_lea.sflag [#allocation3], %s484
        %s486 = smul.u32 4, 8
        %s487 = smul.u32 %s486, 2
        %s488 = smul.u32 %s487, 1
        %s489 = sshll.u32 %s488, 4
        %490 = dma.done %s485, %s489
        %p491 = scmp.gt.s32.totalorder %s33, 0
        // Predicated region
        $region101: #{double_conv.4} parent=35 // pred_check
          %p492 = pneg %p491
        $region102: #{double_conv.4} parent=35 // pred_check_branch
          %494 = sbr.rel (%p492) target = $region104
        $region103: #{double_conv.4} parent=35 // pred_region
          %s495 = sadd.s32 1, %s484
          %s496 = scalar_lea.sflag [#allocation3], %s495
          %s497 = smul.u32 4, 1
          %s498 = smul.u32 %s497, 2
          %s499 = smul.u32 %s498, 1
          %s500 = sshll.u32 %s499, 4
          %501 = dma.done %s496, %s500
        $region104: #{double_conv.4} parent=35 // pred_fallthru
          _
        %p502 = scmp.lt.s32.totalorder %s33, 1
        // Predicated region
        $region105: #{double_conv.4} parent=35 // pred_check
          %p503 = pneg %p502
        $region106: #{double_conv.4} parent=35 // pred_check_branch
          %505 = sbr.rel (%p503) target = $region108
        $region107: #{double_conv.4} parent=35 // pred_region
          %s506 = sadd.s32 2, %s484
          %s507 = scalar_lea.sflag [#allocation3], %s506
          %s508 = smul.u32 4, 1
          %s509 = smul.u32 %s508, 2
          %s510 = smul.u32 %s509, 1
          %s511 = sshll.u32 %s510, 4
          %512 = dma.done %s507, %s511
        $region108: #{double_conv.4} parent=35 // pred_fallthru
          _
        %s513 = smul.u32 %s327, 10
        %s514 = smul.addr %s513, 8
        %s515 = scalar_lea.vmem [#allocation2], %s514
        %v516 = vld [vmem:[%s515] sm:$0xff]
        %v517 = vld [vmem:[%s515 + $0x8] sm:$0xff]
        %v518 = vld [vmem:[%s515 + $0x10] sm:$0xff]
        %v519 = vld [vmem:[%s515 + $0x18] sm:$0xff]
        %v520 = vld [vmem:[%s515 + $0x20] sm:$0xff]
        %v521 = vld [vmem:[%s515 + $0x28] sm:$0xff]
        %v522 = vld [vmem:[%s515 + $0x30] sm:$0xff]
        %v523 = vld [vmem:[%s515 + $0x38] sm:$0xff]
        %v524 = vld [vmem:[%s515 + $0x40] sm:$0xff]
        %v525 = vld [vmem:[%s515 + $0x48] sm:$0xff]
        %s526 = scalar_select %p491, 1, 0
        %v527 = vstv %s526
        %vm528 = vcmp.eq.s32.totalorder %v527, 1
        %s529 = scalar_select %p502, 1, 0
        %v530 = vstv %s529
        %vm531 = vcmp.eq.s32.totalorder %v530, 1
        %v532 = vunpack.c.l.bf16 %v516
        %v533 = vunpack.c.h.bf16 %v516
        %v534 = vunpack.c.l.bf16 %v517
        %v535 = vunpack.c.h.bf16 %v517
        %v536 = vunpack.c.l.bf16 %v518
        %v537 = vunpack.c.h.bf16 %v518
        %v538 = vunpack.c.l.bf16 %v519
        %v539 = vunpack.c.h.bf16 %v519
        %v540 = vunpack.c.l.bf16 %v520
        %v541 = vunpack.c.h.bf16 %v520
        %v542 = vunpack.c.l.bf16 %v521
        %v543 = vunpack.c.h.bf16 %v521
        %v544 = vunpack.c.l.bf16 %v522
        %v545 = vunpack.c.h.bf16 %v522
        %v546 = vunpack.c.l.bf16 %v523
        %v547 = vunpack.c.h.bf16 %v523
        %v548 = vunpack.c.l.bf16 %v524
        %v549 = vunpack.c.h.bf16 %v524
        %v550 = vunpack.c.l.bf16 %v525
        %v551 = vunpack.c.h.bf16 %v525
        %v552 = vld [vmem:[#allocation9] sm:$0x1]
        %v554 = vlaneseq
        %v555 = vshrl.u32 %v554, 7
        %v556 = vsub.s32 0, %v555
        %v557 = vrot.slane %v552, %v556
        %v559 = vmul.f32 %v532, %v557
        %v560 = vmul.f32 %v533, %v557
        %v561 = vmul.f32 %v534, %v557
        %v562 = vmul.f32 %v535, %v557
        %v563 = vmul.f32 %v536, %v557
        %v564 = vmul.f32 %v537, %v557
        %v565 = vmul.f32 %v538, %v557
        %v566 = vmul.f32 %v539, %v557
        %v567 = vmul.f32 %v540, %v557
        %v568 = vmul.f32 %v541, %v557
        %v569 = vmul.f32 %v542, %v557
        %v570 = vmul.f32 %v543, %v557
        %v571 = vmul.f32 %v544, %v557
        %v572 = vmul.f32 %v545, %v557
        %v573 = vmul.f32 %v546, %v557
        %v574 = vmul.f32 %v547, %v557
        %v575 = vmul.f32 %v548, %v557
        %v576 = vmul.f32 %v549, %v557
        %v577 = vmul.f32 %v550, %v557
        %v578 = vmul.f32 %v551, %v557
        %v579 = vld [vmem:[#allocation10] sm:$0x1]
        %v581 = vlaneseq
        %v582 = vshrl.u32 %v581, 7
        %v583 = vsub.s32 0, %v582
        %v584 = vrot.slane %v579, %v583
        %v586 = vadd.f32 %v559, %v584
        %v587 = vadd.f32 %v560, %v584
        %v588 = vadd.f32 %v561, %v584
        %v589 = vadd.f32 %v562, %v584
        %v590 = vadd.f32 %v563, %v584
        %v591 = vadd.f32 %v564, %v584
        %v592 = vadd.f32 %v565, %v584
        %v593 = vadd.f32 %v566, %v584
        %v594 = vadd.f32 %v567, %v584
        %v595 = vadd.f32 %v568, %v584
        %v596 = vadd.f32 %v569, %v584
        %v597 = vadd.f32 %v570, %v584
        %v598 = vadd.f32 %v571, %v584
        %v599 = vadd.f32 %v572, %v584
        %v600 = vadd.f32 %v573, %v584
        %v601 = vadd.f32 %v574, %v584
        %v602 = vadd.f32 %v575, %v584
        %v603 = vadd.f32 %v576, %v584
        %v604 = vadd.f32 %v577, %v584
        %v605 = vadd.f32 %v578, %v584
        %v606 = vmax.f32 %v586, 0.0
        %v607 = vmax.f32 %v587, 0.0
        %v608 = vmax.f32 %v588, 0.0
        %v609 = vmax.f32 %v589, 0.0
        %v610 = vmax.f32 %v590, 0.0
        %v611 = vmax.f32 %v591, 0.0
        %v612 = vmax.f32 %v592, 0.0
        %v613 = vmax.f32 %v593, 0.0
        %v614 = vmax.f32 %v594, 0.0
        %v615 = vmax.f32 %v595, 0.0
        %v616 = vmax.f32 %v596, 0.0
        %v617 = vmax.f32 %v597, 0.0
        %v618 = vmax.f32 %v598, 0.0
        %v619 = vmax.f32 %v599, 0.0
        %v620 = vmax.f32 %v600, 0.0
        %v621 = vmax.f32 %v601, 0.0
        %v622 = vmax.f32 %v602, 0.0
        %v623 = vmax.f32 %v603, 0.0
        %v624 = vmax.f32 %v604, 0.0
        %v625 = vmax.f32 %v605, 0.0
        %v626 = vsel %vm528, 1, 0
        %v627 = vsel %vm531, 1, 0
        %vm628 = vcmp.eq.s32.totalorder %v626, 1
        %vm629 = vcmp.eq.s32.totalorder %v627, 1
        %v630 = vsel %vm628, %v606, 0.0
        %v631 = vsel %vm628, %v607, 0.0
        %v632 = vsel 1, %v608, 0.0
        %v633 = vsel 1, %v609, 0.0
        %v634 = vsel 1, %v610, 0.0
        %v635 = vsel 1, %v611, 0.0
        %v636 = vsel 1, %v612, 0.0
        %v637 = vsel 1, %v613, 0.0
        %v638 = vsel 1, %v614, 0.0
        %v639 = vsel 1, %v615, 0.0
        %v640 = vsel 1, %v616, 0.0
        %v641 = vsel 1, %v617, 0.0
        %v642 = vsel 1, %v618, 0.0
        %v643 = vsel 1, %v619, 0.0
        %v644 = vsel 1, %v620, 0.0
        %v645 = vsel 1, %v621, 0.0
        %v646 = vsel 1, %v622, 0.0
        %v647 = vsel 1, %v623, 0.0
        %v648 = vsel %vm629, %v624, 0.0
        %v649 = vsel %vm629, %v625, 0.0
        %v650 = vpack.c.bf16 %v631, %v630
        %v651 = vpack.c.bf16 %v633, %v632
        %v652 = vpack.c.bf16 %v635, %v634
        %v653 = vpack.c.bf16 %v637, %v636
        %v654 = vpack.c.bf16 %v639, %v638
        %v655 = vpack.c.bf16 %v641, %v640
        %v656 = vpack.c.bf16 %v643, %v642
        %v657 = vpack.c.bf16 %v645, %v644
        %v658 = vpack.c.bf16 %v647, %v646
        %v659 = vpack.c.bf16 %v649, %v648
        %v661 = vshrl.u32 %v650, 16
        %v663 = vrot.slane %v661, 7
        %v664 = vshll.u32 %v650, 16
        %v666 = vor.u32 %v663, %v664
        %v668 = vshrl.u32 %v651, 16
        %v670 = vrot.slane %v668, 7
        %v671 = vshll.u32 %v651, 16
        %v673 = vor.u32 %v670, %v671
        %v675 = vshrl.u32 %v652, 16
        %v677 = vrot.slane %v675, 7
        %v678 = vshll.u32 %v652, 16
        %v680 = vor.u32 %v677, %v678
        %v682 = vshrl.u32 %v653, 16
        %v684 = vrot.slane %v682, 7
        %v685 = vshll.u32 %v653, 16
        %v687 = vor.u32 %v684, %v685
        %v689 = vshrl.u32 %v654, 16
        %v691 = vrot.slane %v689, 7
        %v692 = vshll.u32 %v654, 16
        %v694 = vor.u32 %v691, %v692
        %v696 = vshrl.u32 %v655, 16
        %v698 = vrot.slane %v696, 7
        %v699 = vshll.u32 %v655, 16
        %v701 = vor.u32 %v698, %v699
        %v703 = vshrl.u32 %v656, 16
        %v705 = vrot.slane %v703, 7
        %v706 = vshll.u32 %v656, 16
        %v708 = vor.u32 %v705, %v706
        %v710 = vshrl.u32 %v657, 16
        %v712 = vrot.slane %v710, 7
        %v713 = vshll.u32 %v657, 16
        %v715 = vor.u32 %v712, %v713
        %v717 = vshrl.u32 %v658, 16
        %v719 = vrot.slane %v717, 7
        %v720 = vshll.u32 %v658, 16
        %v722 = vor.u32 %v719, %v720
        %v724 = vshrl.u32 %v659, 16
        %v726 = vrot.slane %v724, 7
        %v727 = vshll.u32 %v659, 16
        %v729 = vor.u32 %v726, %v727
        %vm740 = vcmask 1040384
        %vm741 = vsmask.f32 256
        %vm742 = vmand %vm740, %vm741
        %v743 = vsel %vm742, 0, %v666
        %v744 = vsel %vm742, 0, %v673
        %v745 = vsel %vm742, 0, %v680
        %v746 = vsel %vm742, 0, %v687
        %v747 = vsel %vm742, 0, %v694
        %v748 = vsel %vm742, 0, %v701
        %v749 = vsel %vm742, 0, %v708
        %v750 = vsel %vm742, 0, %v715
        %v751 = vsel %vm742, 0, %v722
        %v752 = vsel %vm742, 0, %v729
        %v753 = vrot.slane %v664, 1
        %v754 = vor.u32 %v661, %v753
        %v755 = vrot.slane %v671, 1
        %v756 = vor.u32 %v668, %v755
        %v757 = vrot.slane %v678, 1
        %v758 = vor.u32 %v675, %v757
        %v759 = vrot.slane %v685, 1
        %v760 = vor.u32 %v682, %v759
        %v761 = vrot.slane %v692, 1
        %v762 = vor.u32 %v689, %v761
        %v763 = vrot.slane %v699, 1
        %v764 = vor.u32 %v696, %v763
        %v765 = vrot.slane %v706, 1
        %v766 = vor.u32 %v703, %v765
        %v767 = vrot.slane %v713, 1
        %v768 = vor.u32 %v710, %v767
        %v769 = vrot.slane %v720, 1
        %v770 = vor.u32 %v717, %v769
        %v771 = vrot.slane %v727, 1
        %v772 = vor.u32 %v724, %v771
        %vm783 = vcmask 1047552
        %vm784 = vsmask.f32 7424
        %vm785 = vmand %vm783, %vm784
        %v786 = vsel %vm785, %v754, 0
        %v787 = vsel %vm785, %v756, 0
        %v788 = vsel %vm785, %v758, 0
        %v789 = vsel %vm785, %v760, 0
        %v790 = vsel %vm785, %v762, 0
        %v791 = vsel %vm785, %v764, 0
        %v792 = vsel %vm785, %v766, 0
        %v793 = vsel %vm785, %v768, 0
        %v794 = vsel %vm785, %v770, 0
        %v795 = vsel %vm785, %v772, 0
        %v796 = vld [vmem:[#allocation4] sm:$0xf]
        %v797 = vld [vmem:[#allocation4 + $0x4] sm:$0xf]
        %v798 = vld [vmem:[#allocation4 + $0x8] sm:$0xf]
        %v799 = vld [vmem:[#allocation4 + $0xc] sm:$0xf]
        %v800 = vld [vmem:[#allocation4 + $0x10] sm:$0xf]
        %v801 = vld [vmem:[#allocation4 + $0x14] sm:$0xf]
        %v802 = vld [vmem:[#allocation4 + $0x18] sm:$0xf]
        %v803 = vld [vmem:[#allocation4 + $0x1c] sm:$0xf]
        %v804 = vld [vmem:[#allocation4 + $0x20] sm:$0xf]
        %v805 = vld [vmem:[#allocation4 + $0x24] sm:$0xf]
        %v806 = vld [vmem:[#allocation4 + $0x28] sm:$0xf]
        %v807 = vld [vmem:[#allocation4 + $0x2c] sm:$0xf]
        %v808 = vld [vmem:[#allocation4 + $0x30] sm:$0xf]
        %v809 = vld [vmem:[#allocation4 + $0x34] sm:$0xf]
        %v810 = vld [vmem:[#allocation4 + $0x38] sm:$0xf]
        %v811 = vld [vmem:[#allocation4 + $0x3c] sm:$0xf]
        %v812 = vld [vmem:[#allocation4 + $0x40] sm:$0xf]
        %v813 = vld [vmem:[#allocation4 + $0x44] sm:$0xf]
        %v814 = vld [vmem:[#allocation4 + $0x48] sm:$0xf]
        %v815 = vld [vmem:[#allocation4 + $0x4c] sm:$0xf]
        %v816 = vld [vmem:[#allocation4 + $0x50] sm:$0xf]
        %v817 = vld [vmem:[#allocation4 + $0x54] sm:$0xf]
        %v818 = vld [vmem:[#allocation4 + $0x58] sm:$0xf]
        %v819 = vld [vmem:[#allocation4 + $0x5c] sm:$0xf]
        %v820 = vld [vmem:[#allocation4 + $0x60] sm:$0xf]
        %v821 = vld [vmem:[#allocation4 + $0x64] sm:$0xf]
        %v822 = vld [vmem:[#allocation4 + $0x68] sm:$0xf]
        %v823 = vld [vmem:[#allocation4 + $0x6c] sm:$0xf]
        %v824 = vld [vmem:[#allocation4 + $0x70] sm:$0xf]
        %v825 = vld [vmem:[#allocation4 + $0x74] sm:$0xf]
        %v826 = vld [vmem:[#allocation4 + $0x78] sm:$0xf]
        %v827 = vld [vmem:[#allocation4 + $0x7c] sm:$0xf]
        %v844 = vunpack.c.l.b16 %v812
        %v845 = vunpack.c.l.b16 %v813
        %v846 = vunpack.c.l.b16 %v814
        %v847 = vunpack.c.l.b16 %v815
        %v848 = vunpack.c.l.b16 %v816
        %v849 = vunpack.c.l.b16 %v817
        %v850 = vunpack.c.l.b16 %v818
        %v851 = vunpack.c.l.b16 %v819
        %v852 = vunpack.c.l.b16 %v820
        %v853 = vunpack.c.l.b16 %v821
        %v854 = vunpack.c.l.b16 %v822
        %v855 = vunpack.c.l.b16 %v823
        %v856 = vunpack.c.l.b16 %v824
        %v857 = vunpack.c.l.b16 %v825
        %v858 = vunpack.c.l.b16 %v826
        %v859 = vunpack.c.l.b16 %v827
        %v860 = vpack.c.b16 %v845, %v844
        %v861 = vpack.c.b16 %v847, %v846
        %v862 = vpack.c.b16 %v849, %v848
        %v863 = vpack.c.b16 %v851, %v850
        %v864 = vpack.c.b16 %v853, %v852
        %v865 = vpack.c.b16 %v855, %v854
        %v866 = vpack.c.b16 %v857, %v856
        %v867 = vpack.c.b16 %v859, %v858
        %876 = vmatprep.subr.bf16.mxu0 0
        %877 = vmatpush1.bf16.msra.mxu0 %v860
        %878 = vmatprep.subr.bf16.mxu0 0
        %879 = vmatpush1.bf16.msra.mxu0 %v861
        %880 = vmatprep.subr.bf16.mxu0 0
        %881 = vmatpush1.bf16.msra.mxu0 %v862
        %882 = vmatprep.subr.bf16.mxu0 0
        %883 = vmatpush1.bf16.msra.mxu0 %v863
        %884 = vmatprep.subr.bf16.mxu0 0
        %885 = vmatpush1.bf16.msra.mxu0 %v864
        %886 = vmatprep.subr.bf16.mxu0 0
        %887 = vmatpush1.bf16.msra.mxu0 %v865
        %888 = vmatprep.subr.bf16.mxu0 0
        %889 = vmatpush1.bf16.msra.mxu0 %v866
        %890 = vmatprep.subr.bf16.mxu0 0
        %891 = vmatpush1.bf16.msra.mxu0 %v867
        %892 = vmatprep.subr.bf16.mxu0 0
        %893 = vmatpush1.bf16.msra.mxu0 0
        %894 = vmatprep.subr.bf16.mxu0 0
        %895 = vmatpush1.bf16.msra.mxu0 0
        %896 = vmatprep.subr.bf16.mxu0 0
        %897 = vmatpush1.bf16.msra.mxu0 0
        %898 = vmatprep.subr.bf16.mxu0 0
        %899 = vmatpush1.bf16.msra.mxu0 0
        %900 = vmatprep.subr.bf16.mxu0 0
        %901 = vmatpush1.bf16.msra.mxu0 0
        %902 = vmatprep.subr.bf16.mxu0 0
        %903 = vmatpush1.bf16.msra.mxu0 0
        %904 = vmatprep.subr.bf16.mxu0 0
        %905 = vmatpush1.bf16.msra.mxu0 0
        %906 = vmatprep.subr.bf16.mxu0 0
        %907 = vmatpush1.bf16.msra.mxu0 0
        %908 = vmatprep.mubr.bf16.mxu0 0
        %909 = vmatmul.mubr.bf16.gmra.mrb[0].mxu0 %v650
        %v910 = vpop.f32.mrb[0].mxu0
        %v911 = vadd.f32 0.0, %v910
        %v912 = vpop.f32.mrb[0].mxu0
        %v913 = vpop.f32.mrb[0].mxu0
        %v914 = vadd.f32 0.0, %v913
        %v915 = vpop.f32.mrb[0].mxu0
        %916 = vmatprep.mubr.bf16.mxu0 0
        %917 = vmatmul.mubr.bf16.gmra.mrb[0].mxu0 %v651
        %v918 = vpop.f32.mrb[0].mxu0
        %v919 = vadd.f32 0.0, %v918
        %v920 = vpop.f32.mrb[0].mxu0
        %v921 = vpop.f32.mrb[0].mxu0
        %v922 = vadd.f32 0.0, %v921
        %v923 = vpop.f32.mrb[0].mxu0
        %924 = vmatprep.mubr.bf16.mxu0 0
        %925 = vmatmul.mubr.bf16.gmra.mrb[0].mxu0 %v652
        %v926 = vpop.f32.mrb[0].mxu0
        %v927 = vadd.f32 0.0, %v926
        %v928 = vpop.f32.mrb[0].mxu0
        %v929 = vpop.f32.mrb[0].mxu0
        %v930 = vadd.f32 0.0, %v929
        %v931 = vpop.f32.mrb[0].mxu0
        %932 = vmatprep.mubr.bf16.mxu0 0
        %933 = vmatmul.mubr.bf16.gmra.mrb[0].mxu0 %v653
        %v934 = vpop.f32.mrb[0].mxu0
        %v935 = vadd.f32 0.0, %v934
        %v936 = vpop.f32.mrb[0].mxu0
        %v937 = vpop.f32.mrb[0].mxu0
        %v938 = vadd.f32 0.0, %v937
        %v939 = vpop.f32.mrb[0].mxu0
        %940 = vmatprep.mubr.bf16.mxu0 0
        %941 = vmatmul.mubr.bf16.gmra.mrb[0].mxu0 %v654
        %v942 = vpop.f32.mrb[0].mxu0
        %v943 = vadd.f32 0.0, %v942
        %v944 = vpop.f32.mrb[0].mxu0
        %v945 = vpop.f32.mrb[0].mxu0
        %v946 = vadd.f32 0.0, %v945
        %v947 = vpop.f32.mrb[0].mxu0
        %948 = vmatprep.mubr.bf16.mxu0 0
        %949 = vmatmul.mubr.bf16.gmra.mrb[0].mxu0 %v655
        %v950 = vpop.f32.mrb[0].mxu0
        %v951 = vadd.f32 0.0, %v950
        %v952 = vpop.f32.mrb[0].mxu0
        %v953 = vpop.f32.mrb[0].mxu0
        %v954 = vadd.f32 0.0, %v953
        %v955 = vpop.f32.mrb[0].mxu0
        %956 = vmatprep.mubr.bf16.mxu0 0
        %957 = vmatmul.mubr.bf16.gmra.mrb[0].mxu0 %v656
        %v958 = vpop.f32.mrb[0].mxu0
        %v959 = vadd.f32 0.0, %v958
        %v960 = vpop.f32.mrb[0].mxu0
        %v961 = vpop.f32.mrb[0].mxu0
        %v962 = vadd.f32 0.0, %v961
        %v963 = vpop.f32.mrb[0].mxu0
        %964 = vmatprep.mubr.bf16.mxu0 0
        %965 = vmatmul.mubr.bf16.gmra.mrb[0].mxu0 %v657
        %v966 = vpop.f32.mrb[0].mxu0
        %v967 = vadd.f32 0.0, %v966
        %v968 = vpop.f32.mrb[0].mxu0
        %v969 = vpop.f32.mrb[0].mxu0
        %v970 = vadd.f32 0.0, %v969
        %v971 = vpop.f32.mrb[0].mxu0
        %972 = vdwg.mxu0
        %v989 = vunpack.c.l.b16 %v796
        %v990 = vunpack.c.l.b16 %v797
        %v991 = vunpack.c.l.b16 %v798
        %v992 = vunpack.c.l.b16 %v799
        %v993 = vunpack.c.l.b16 %v800
        %v994 = vunpack.c.l.b16 %v801
        %v995 = vunpack.c.l.b16 %v802
        %v996 = vunpack.c.l.b16 %v803
        %v997 = vunpack.c.l.b16 %v804
        %v998 = vunpack.c.l.b16 %v805
        %v999 = vunpack.c.l.b16 %v806
        %v1000 = vunpack.c.l.b16 %v807
        %v1001 = vunpack.c.l.b16 %v808
        %v1002 = vunpack.c.l.b16 %v809
        %v1003 = vunpack.c.l.b16 %v810
        %v1004 = vunpack.c.l.b16 %v811
        %v1005 = vpack.c.b16 %v990, %v989
        %v1006 = vpack.c.b16 %v992, %v991
        %v1007 = vpack.c.b16 %v994, %v993
        %v1008 = vpack.c.b16 %v996, %v995
        %v1009 = vpack.c.b16 %v998, %v997
        %v1010 = vpack.c.b16 %v1000, %v999
        %v1011 = vpack.c.b16 %v1002, %v1001
        %v1012 = vpack.c.b16 %v1004, %v1003
        %1021 = vmatprep.subr.bf16.mxu0 0
        %1022 = vmatpush1.bf16.msra.mxu0 %v1005
        %1023 = vmatprep.subr.bf16.mxu0 0
        %1024 = vmatpush1.bf16.msra.mxu0 %v1006
        %1025 = vmatprep.subr.bf16.mxu0 0
        %1026 = vmatpush1.bf16.msra.mxu0 %v1007
        %1027 = vmatprep.subr.bf16.mxu0 0
        %1028 = vmatpush1.bf16.msra.mxu0 %v1008
        %1029 = vmatprep.subr.bf16.mxu0 0
        %1030 = vmatpush1.bf16.msra.mxu0 %v1009
        %1031 = vmatprep.subr.bf16.mxu0 0
        %1032 = vmatpush1.bf16.msra.mxu0 %v1010
        %1033 = vmatprep.subr.bf16.mxu0 0
        %1034 = vmatpush1.bf16.msra.mxu0 %v1011
        %1035 = vmatprep.subr.bf16.mxu0 0
        %1036 = vmatpush1.bf16.msra.mxu0 %v1012
        %1037 = vmatprep.subr.bf16.mxu0 0
        %1038 = vmatpush1.bf16.msra.mxu0 0
        %1039 = vmatprep.subr.bf16.mxu0 0
        %1040 = vmatpush1.bf16.msra.mxu0 0
        %1041 = vmatprep.subr.bf16.mxu0 0
        %1042 = vmatpush1.bf16.msra.mxu0 0
        %1043 = vmatprep.subr.bf16.mxu0 0
        %1044 = vmatpush1.bf16.msra.mxu0 0
        %1045 = vmatprep.subr.bf16.mxu0 0
        %1046 = vmatpush1.bf16.msra.mxu0 0
        %1047 = vmatprep.subr.bf16.mxu0 0
        %1048 = vmatpush1.bf16.msra.mxu0 0
        %1049 = vmatprep.subr.bf16.mxu0 0
        %1050 = vmatpush1.bf16.msra.mxu0 0
        %1051 = vmatprep.subr.bf16.mxu0 0
        %1052 = vmatpush1.bf16.msra.mxu0 0
        %1053 = vmatprep.mubr.bf16.mxu0 0
        %1054 = vmatmul.mubr.bf16.gmra.mrb[0].mxu0 %v743
        %v1055 = vpop.f32.mrb[0].mxu0
        %v1056 = vadd.f32 %v911, %v1055
        %v1057 = vpop.f32.mrb[0].mxu0
        %v1058 = vpop.f32.mrb[0].mxu0
        %v1059 = vadd.f32 %v914, %v1058
        %v1060 = vpop.f32.mrb[0].mxu0
        %1061 = vmatprep.mubr.bf16.mxu0 0
        %1062 = vmatmul.mubr.bf16.gmra.mrb[0].mxu0 %v744
        %v1063 = vpop.f32.mrb[0].mxu0
        %v1064 = vadd.f32 %v919, %v1063
        %v1065 = vpop.f32.mrb[0].mxu0
        %v1066 = vpop.f32.mrb[0].mxu0
        %v1067 = vadd.f32 %v922, %v1066
        %v1068 = vpop.f32.mrb[0].mxu0
        %1069 = vmatprep.mubr.bf16.mxu0 0
        %1070 = vmatmul.mubr.bf16.gmra.mrb[0].mxu0 %v745
        %v1071 = vpop.f32.mrb[0].mxu0
        %v1072 = vadd.f32 %v927, %v1071
        %v1073 = vpop.f32.mrb[0].mxu0
        %v1074 = vpop.f32.mrb[0].mxu0
        %v1075 = vadd.f32 %v930, %v1074
        %v1076 = vpop.f32.mrb[0].mxu0
        %1077 = vmatprep.mubr.bf16.mxu0 0
        %1078 = vmatmul.mubr.bf16.gmra.mrb[0].mxu0 %v746
        %v1079 = vpop.f32.mrb[0].mxu0
        %v1080 = vadd.f32 %v935, %v1079
        %v1081 = vpop.f32.mrb[0].mxu0
        %v1082 = vpop.f32.mrb[0].mxu0
        %v1083 = vadd.f32 %v938, %v1082
        %v1084 = vpop.f32.mrb[0].mxu0
        %1085 = vmatprep.mubr.bf16.mxu0 0
        %1086 = vmatmul.mubr.bf16.gmra.mrb[0].mxu0 %v747
        %v1087 = vpop.f32.mrb[0].mxu0
        %v1088 = vadd.f32 %v943, %v1087
        %v1089 = vpop.f32.mrb[0].mxu0
        %v1090 = vpop.f32.mrb[0].mxu0
        %v1091 = vadd.f32 %v946, %v1090
        %v1092 = vpop.f32.mrb[0].mxu0
        %1093 = vmatprep.mubr.bf16.mxu0 0
        %1094 = vmatmul.mubr.bf16.gmra.mrb[0].mxu0 %v748
        %v1095 = vpop.f32.mrb[0].mxu0
        %v1096 = vadd.f32 %v951, %v1095
        %v1097 = vpop.f32.mrb[0].mxu0
        %v1098 = vpop.f32.mrb[0].mxu0
        %v1099 = vadd.f32 %v954, %v1098
        %v1100 = vpop.f32.mrb[0].mxu0
        %1101 = vmatprep.mubr.bf16.mxu0 0
        %1102 = vmatmul.mubr.bf16.gmra.mrb[0].mxu0 %v749
        %v1103 = vpop.f32.mrb[0].mxu0
        %v1104 = vadd.f32 %v959, %v1103
        %v1105 = vpop.f32.mrb[0].mxu0
        %v1106 = vpop.f32.mrb[0].mxu0
        %v1107 = vadd.f32 %v962, %v1106
        %v1108 = vpop.f32.mrb[0].mxu0
        %1109 = vmatprep.mubr.bf16.mxu0 0
        %1110 = vmatmul.mubr.bf16.gmra.mrb[0].mxu0 %v750
        %v1111 = vpop.f32.mrb[0].mxu0
        %v1112 = vadd.f32 %v967, %v1111
        %v1113 = vpop.f32.mrb[0].mxu0
        %v1114 = vpop.f32.mrb[0].mxu0
        %v1115 = vadd.f32 %v970, %v1114
        %v1116 = vpop.f32.mrb[0].mxu0
        %1117 = vdwg.mxu0
        %v1118 = vld [vmem:[#allocation4 + $0x80] sm:$0xf]
        %v1119 = vld [vmem:[#allocation4 + $0x84] sm:$0xf]
        %v1120 = vld [vmem:[#allocation4 + $0x88] sm:$0xf]
        %v1121 = vld [vmem:[#allocation4 + $0x8c] sm:$0xf]
        %v1122 = vld [vmem:[#allocation4 + $0x90] sm:$0xf]
        %v1123 = vld [vmem:[#allocation4 + $0x94] sm:$0xf]
        %v1124 = vld [vmem:[#allocation4 + $0x98] sm:$0xf]
        %v1125 = vld [vmem:[#allocation4 + $0x9c] sm:$0xf]
        %v1126 = vld [vmem:[#allocation4 + $0xa0] sm:$0xf]
        %v1127 = vld [vmem:[#allocation4 + $0xa4] sm:$0xf]
        %v1128 = vld [vmem:[#allocation4 + $0xa8] sm:$0xf]
        %v1129 = vld [vmem:[#allocation4 + $0xac] sm:$0xf]
        %v1130 = vld [vmem:[#allocation4 + $0xb0] sm:$0xf]
        %v1131 = vld [vmem:[#allocation4 + $0xb4] sm:$0xf]
        %v1132 = vld [vmem:[#allocation4 + $0xb8] sm:$0xf]
        %v1133 = vld [vmem:[#allocation4 + $0xbc] sm:$0xf]
        %v1150 = vunpack.c.l.b16 %v1118
        %v1151 = vunpack.c.l.b16 %v1119
        %v1152 = vunpack.c.l.b16 %v1120
        %v1153 = vunpack.c.l.b16 %v1121
        %v1154 = vunpack.c.l.b16 %v1122
        %v1155 = vunpack.c.l.b16 %v1123
        %v1156 = vunpack.c.l.b16 %v1124
        %v1157 = vunpack.c.l.b16 %v1125
        %v1158 = vunpack.c.l.b16 %v1126
        %v1159 = vunpack.c.l.b16 %v1127
        %v1160 = vunpack.c.l.b16 %v1128
        %v1161 = vunpack.c.l.b16 %v1129
        %v1162 = vunpack.c.l.b16 %v1130
        %v1163 = vunpack.c.l.b16 %v1131
        %v1164 = vunpack.c.l.b16 %v1132
        %v1165 = vunpack.c.l.b16 %v1133
        %v1166 = vpack.c.b16 %v1151, %v1150
        %v1167 = vpack.c.b16 %v1153, %v1152
        %v1168 = vpack.c.b16 %v1155, %v1154
        %v1169 = vpack.c.b16 %v1157, %v1156
        %v1170 = vpack.c.b16 %v1159, %v1158
        %v1171 = vpack.c.b16 %v1161, %v1160
        %v1172 = vpack.c.b16 %v1163, %v1162
        %v1173 = vpack.c.b16 %v1165, %v1164
        %1182 = vmatprep.subr.bf16.mxu0 0
        %1183 = vmatpush1.bf16.msra.mxu0 %v1166
        %1184 = vmatprep.subr.bf16.mxu0 0
        %1185 = vmatpush1.bf16.msra.mxu0 %v1167
        %1186 = vmatprep.subr.bf16.mxu0 0
        %1187 = vmatpush1.bf16.msra.mxu0 %v1168
        %1188 = vmatprep.subr.bf16.mxu0 0
        %1189 = vmatpush1.bf16.msra.mxu0 %v1169
        %1190 = vmatprep.subr.bf16.mxu0 0
        %1191 = vmatpush1.bf16.msra.mxu0 %v1170
        %1192 = vmatprep.subr.bf16.mxu0 0
        %1193 = vmatpush1.bf16.msra.mxu0 %v1171
        %1194 = vmatprep.subr.bf16.mxu0 0
        %1195 = vmatpush1.bf16.msra.mxu0 %v1172
        %1196 = vmatprep.subr.bf16.mxu0 0
        %1197 = vmatpush1.bf16.msra.mxu0 %v1173
        %1198 = vmatprep.subr.bf16.mxu0 0
        %1199 = vmatpush1.bf16.msra.mxu0 0
        %1200 = vmatprep.subr.bf16.mxu0 0
        %1201 = vmatpush1.bf16.msra.mxu0 0
        %1202 = vmatprep.subr.bf16.mxu0 0
        %1203 = vmatpush1.bf16.msra.mxu0 0
        %1204 = vmatprep.subr.bf16.mxu0 0
        %1205 = vmatpush1.bf16.msra.mxu0 0
        %1206 = vmatprep.subr.bf16.mxu0 0
        %1207 = vmatpush1.bf16.msra.mxu0 0
        %1208 = vmatprep.subr.bf16.mxu0 0
        %1209 = vmatpush1.bf16.msra.mxu0 0
        %1210 = vmatprep.subr.bf16.mxu0 0
        %1211 = vmatpush1.bf16.msra.mxu0 0
        %1212 = vmatprep.subr.bf16.mxu0 0
        %1213 = vmatpush1.bf16.msra.mxu0 0
        %1214 = vmatprep.mubr.bf16.mxu0 0
        %1215 = vmatmul.mubr.bf16.gmra.mrb[0].mxu0 %v786
        %v1216 = vpop.f32.mrb[0].mxu0
        %v1217 = vadd.f32 0.0, %v1216
        %v1218 = vpop.f32.mrb[0].mxu0
        %v1219 = vpop.f32.mrb[0].mxu0
        %v1220 = vadd.f32 0.0, %v1219
        %v1221 = vpop.f32.mrb[0].mxu0
        %1222 = vmatprep.mubr.bf16.mxu0 0
        %1223 = vmatmul.mubr.bf16.gmra.mrb[0].mxu0 %v787
        %v1224 = vpop.f32.mrb[0].mxu0
        %v1225 = vadd.f32 0.0, %v1224
        %v1226 = vpop.f32.mrb[0].mxu0
        %v1227 = vpop.f32.mrb[0].mxu0
        %v1228 = vadd.f32 0.0, %v1227
        %v1229 = vpop.f32.mrb[0].mxu0
        %1230 = vmatprep.mubr.bf16.mxu0 0
        %1231 = vmatmul.mubr.bf16.gmra.mrb[0].mxu0 %v788
        %v1232 = vpop.f32.mrb[0].mxu0
        %v1233 = vadd.f32 0.0, %v1232
        %v1234 = vpop.f32.mrb[0].mxu0
        %v1235 = vpop.f32.mrb[0].mxu0
        %v1236 = vadd.f32 0.0, %v1235
        %v1237 = vpop.f32.mrb[0].mxu0
        %1238 = vmatprep.mubr.bf16.mxu0 0
        %1239 = vmatmul.mubr.bf16.gmra.mrb[0].mxu0 %v789
        %v1240 = vpop.f32.mrb[0].mxu0
        %v1241 = vadd.f32 0.0, %v1240
        %v1242 = vpop.f32.mrb[0].mxu0
        %v1243 = vpop.f32.mrb[0].mxu0
        %v1244 = vadd.f32 0.0, %v1243
        %v1245 = vpop.f32.mrb[0].mxu0
        %1246 = vmatprep.mubr.bf16.mxu0 0
        %1247 = vmatmul.mubr.bf16.gmra.mrb[0].mxu0 %v790
        %v1248 = vpop.f32.mrb[0].mxu0
        %v1249 = vadd.f32 0.0, %v1248
        %v1250 = vpop.f32.mrb[0].mxu0
        %v1251 = vpop.f32.mrb[0].mxu0
        %v1252 = vadd.f32 0.0, %v1251
        %v1253 = vpop.f32.mrb[0].mxu0
        %1254 = vmatprep.mubr.bf16.mxu0 0
        %1255 = vmatmul.mubr.bf16.gmra.mrb[0].mxu0 %v791
        %v1256 = vpop.f32.mrb[0].mxu0
        %v1257 = vadd.f32 0.0, %v1256
        %v1258 = vpop.f32.mrb[0].mxu0
        %v1259 = vpop.f32.mrb[0].mxu0
        %v1260 = vadd.f32 0.0, %v1259
        %v1261 = vpop.f32.mrb[0].mxu0
        %1262 = vmatprep.mubr.bf16.mxu0 0
        %1263 = vmatmul.mubr.bf16.gmra.mrb[0].mxu0 %v792
        %v1264 = vpop.f32.mrb[0].mxu0
        %v1265 = vadd.f32 0.0, %v1264
        %v1266 = vpop.f32.mrb[0].mxu0
        %v1267 = vpop.f32.mrb[0].mxu0
        %v1268 = vadd.f32 0.0, %v1267
        %v1269 = vpop.f32.mrb[0].mxu0
        %1270 = vmatprep.mubr.bf16.mxu0 0
        %1271 = vmatmul.mubr.bf16.gmra.mrb[0].mxu0 %v793
        %v1272 = vpop.f32.mrb[0].mxu0
        %v1273 = vadd.f32 0.0, %v1272
        %v1274 = vpop.f32.mrb[0].mxu0
        %v1275 = vpop.f32.mrb[0].mxu0
        %v1276 = vadd.f32 0.0, %v1275
        %v1277 = vpop.f32.mrb[0].mxu0
        %1278 = vdwg.mxu0
        %v1279 = vadd.f32 %v1056, %v1217
        %v1280 = vadd.f32 %v1059, %v1220
        %v1281 = vadd.f32 %v1064, %v1225
        %v1282 = vadd.f32 %v1067, %v1228
        %v1283 = vadd.f32 %v1072, %v1233
        %v1284 = vadd.f32 %v1075, %v1236
        %v1285 = vadd.f32 %v1080, %v1241
        %v1286 = vadd.f32 %v1083, %v1244
        %v1287 = vadd.f32 %v1088, %v1249
        %v1288 = vadd.f32 %v1091, %v1252
        %v1289 = vadd.f32 %v1096, %v1257
        %v1290 = vadd.f32 %v1099, %v1260
        %v1291 = vadd.f32 %v1104, %v1265
        %v1292 = vadd.f32 %v1107, %v1268
        %v1293 = vadd.f32 %v1112, %v1273
        %v1294 = vadd.f32 %v1115, %v1276
        %v1295 = vld [vmem:[#allocation4 + $0xc0] sm:$0xf]
        %v1296 = vld [vmem:[#allocation4 + $0xc4] sm:$0xf]
        %v1297 = vld [vmem:[#allocation4 + $0xc8] sm:$0xf]
        %v1298 = vld [vmem:[#allocation4 + $0xcc] sm:$0xf]
        %v1299 = vld [vmem:[#allocation4 + $0xd0] sm:$0xf]
        %v1300 = vld [vmem:[#allocation4 + $0xd4] sm:$0xf]
        %v1301 = vld [vmem:[#allocation4 + $0xd8] sm:$0xf]
        %v1302 = vld [vmem:[#allocation4 + $0xdc] sm:$0xf]
        %v1303 = vld [vmem:[#allocation4 + $0xe0] sm:$0xf]
        %v1304 = vld [vmem:[#allocation4 + $0xe4] sm:$0xf]
        %v1305 = vld [vmem:[#allocation4 + $0xe8] sm:$0xf]
        %v1306 = vld [vmem:[#allocation4 + $0xec] sm:$0xf]
        %v1307 = vld [vmem:[#allocation4 + $0xf0] sm:$0xf]
        %v1308 = vld [vmem:[#allocation4 + $0xf4] sm:$0xf]
        %v1309 = vld [vmem:[#allocation4 + $0xf8] sm:$0xf]
        %v1310 = vld [vmem:[#allocation4 + $0xfc] sm:$0xf]
        %v1327 = vunpack.c.l.b16 %v1295
        %v1328 = vunpack.c.l.b16 %v1296
        %v1329 = vunpack.c.l.b16 %v1297
        %v1330 = vunpack.c.l.b16 %v1298
        %v1331 = vunpack.c.l.b16 %v1299
        %v1332 = vunpack.c.l.b16 %v1300
        %v1333 = vunpack.c.l.b16 %v1301
        %v1334 = vunpack.c.l.b16 %v1302
        %v1335 = vunpack.c.l.b16 %v1303
        %v1336 = vunpack.c.l.b16 %v1304
        %v1337 = vunpack.c.l.b16 %v1305
        %v1338 = vunpack.c.l.b16 %v1306
        %v1339 = vunpack.c.l.b16 %v1307
        %v1340 = vunpack.c.l.b16 %v1308
        %v1341 = vunpack.c.l.b16 %v1309
        %v1342 = vunpack.c.l.b16 %v1310
        %v1343 = vpack.c.b16 %v1328, %v1327
        %v1344 = vpack.c.b16 %v1330, %v1329
        %v1345 = vpack.c.b16 %v1332, %v1331
        %v1346 = vpack.c.b16 %v1334, %v1333
        %v1347 = vpack.c.b16 %v1336, %v1335
        %v1348 = vpack.c.b16 %v1338, %v1337
        %v1349 = vpack.c.b16 %v1340, %v1339
        %v1350 = vpack.c.b16 %v1342, %v1341
        %1359 = vmatprep.subr.bf16.mxu0 0
        %1360 = vmatpush1.bf16.msra.mxu0 %v1343
        %1361 = vmatprep.subr.bf16.mxu0 0
        %1362 = vmatpush1.bf16.msra.mxu0 %v1344
        %1363 = vmatprep.subr.bf16.mxu0 0
        %1364 = vmatpush1.bf16.msra.mxu0 %v1345
        %1365 = vmatprep.subr.bf16.mxu0 0
        %1366 = vmatpush1.bf16.msra.mxu0 %v1346
        %1367 = vmatprep.subr.bf16.mxu0 0
        %1368 = vmatpush1.bf16.msra.mxu0 %v1347
        %1369 = vmatprep.subr.bf16.mxu0 0
        %1370 = vmatpush1.bf16.msra.mxu0 %v1348
        %1371 = vmatprep.subr.bf16.mxu0 0
        %1372 = vmatpush1.bf16.msra.mxu0 %v1349
        %1373 = vmatprep.subr.bf16.mxu0 0
        %1374 = vmatpush1.bf16.msra.mxu0 %v1350
        %1375 = vmatprep.subr.bf16.mxu0 0
        %1376 = vmatpush1.bf16.msra.mxu0 0
        %1377 = vmatprep.subr.bf16.mxu0 0
        %1378 = vmatpush1.bf16.msra.mxu0 0
        %1379 = vmatprep.subr.bf16.mxu0 0
        %1380 = vmatpush1.bf16.msra.mxu0 0
        %1381 = vmatprep.subr.bf16.mxu0 0
        %1382 = vmatpush1.bf16.msra.mxu0 0
        %1383 = vmatprep.subr.bf16.mxu0 0
        %1384 = vmatpush1.bf16.msra.mxu0 0
        %1385 = vmatprep.subr.bf16.mxu0 0
        %1386 = vmatpush1.bf16.msra.mxu0 0
        %1387 = vmatprep.subr.bf16.mxu0 0
        %1388 = vmatpush1.bf16.msra.mxu0 0
        %1389 = vmatprep.subr.bf16.mxu0 0
        %1390 = vmatpush1.bf16.msra.mxu0 0
        %1391 = vmatprep.mubr.bf16.mxu0 0
        %1392 = vmatmul.mubr.bf16.gmra.mrb[0].mxu0 %v744
        %v1393 = vpop.f32.mrb[0].mxu0
        %v1394 = vadd.f32 0.0, %v1393
        %v1395 = vpop.f32.mrb[0].mxu0
        %v1396 = vpop.f32.mrb[0].mxu0
        %v1397 = vadd.f32 0.0, %v1396
        %v1398 = vpop.f32.mrb[0].mxu0
        %1399 = vmatprep.mubr.bf16.mxu0 0
        %1400 = vmatmul.mubr.bf16.gmra.mrb[0].mxu0 %v745
        %v1401 = vpop.f32.mrb[0].mxu0
        %v1402 = vadd.f32 0.0, %v1401
        %v1403 = vpop.f32.mrb[0].mxu0
        %v1404 = vpop.f32.mrb[0].mxu0
        %v1405 = vadd.f32 0.0, %v1404
        %v1406 = vpop.f32.mrb[0].mxu0
        %1407 = vmatprep.mubr.bf16.mxu0 0
        %1408 = vmatmul.mubr.bf16.gmra.mrb[0].mxu0 %v746
        %v1409 = vpop.f32.mrb[0].mxu0
        %v1410 = vadd.f32 0.0, %v1409
        %v1411 = vpop.f32.mrb[0].mxu0
        %v1412 = vpop.f32.mrb[0].mxu0
        %v1413 = vadd.f32 0.0, %v1412
        %v1414 = vpop.f32.mrb[0].mxu0
        %1415 = vmatprep.mubr.bf16.mxu0 0
        %1416 = vmatmul.mubr.bf16.gmra.mrb[0].mxu0 %v747
        %v1417 = vpop.f32.mrb[0].mxu0
        %v1418 = vadd.f32 0.0, %v1417
        %v1419 = vpop.f32.mrb[0].mxu0
        %v1420 = vpop.f32.mrb[0].mxu0
        %v1421 = vadd.f32 0.0, %v1420
        %v1422 = vpop.f32.mrb[0].mxu0
        %1423 = vmatprep.mubr.bf16.mxu0 0
        %1424 = vmatmul.mubr.bf16.gmra.mrb[0].mxu0 %v748
        %v1425 = vpop.f32.mrb[0].mxu0
        %v1426 = vadd.f32 0.0, %v1425
        %v1427 = vpop.f32.mrb[0].mxu0
        %v1428 = vpop.f32.mrb[0].mxu0
        %v1429 = vadd.f32 0.0, %v1428
        %v1430 = vpop.f32.mrb[0].mxu0
        %1431 = vmatprep.mubr.bf16.mxu0 0
        %1432 = vmatmul.mubr.bf16.gmra.mrb[0].mxu0 %v749
        %v1433 = vpop.f32.mrb[0].mxu0
        %v1434 = vadd.f32 0.0, %v1433
        %v1435 = vpop.f32.mrb[0].mxu0
        %v1436 = vpop.f32.mrb[0].mxu0
        %v1437 = vadd.f32 0.0, %v1436
        %v1438 = vpop.f32.mrb[0].mxu0
        %1439 = vmatprep.mubr.bf16.mxu0 0
        %1440 = vmatmul.mubr.bf16.gmra.mrb[0].mxu0 %v750
        %v1441 = vpop.f32.mrb[0].mxu0
        %v1442 = vadd.f32 0.0, %v1441
        %v1443 = vpop.f32.mrb[0].mxu0
        %v1444 = vpop.f32.mrb[0].mxu0
        %v1445 = vadd.f32 0.0, %v1444
        %v1446 = vpop.f32.mrb[0].mxu0
        %1447 = vmatprep.mubr.bf16.mxu0 0
        %1448 = vmatmul.mubr.bf16.gmra.mrb[0].mxu0 %v751
        %v1449 = vpop.f32.mrb[0].mxu0
        %v1450 = vadd.f32 0.0, %v1449
        %v1451 = vpop.f32.mrb[0].mxu0
        %v1452 = vpop.f32.mrb[0].mxu0
        %v1453 = vadd.f32 0.0, %v1452
        %v1454 = vpop.f32.mrb[0].mxu0
        %1455 = vdwg.mxu0
        %v1456 = vadd.f32 %v1279, %v1394
        %v1457 = vadd.f32 %v1280, %v1397
        %v1458 = vadd.f32 %v1281, %v1402
        %v1459 = vadd.f32 %v1282, %v1405
        %v1460 = vadd.f32 %v1283, %v1410
        %v1461 = vadd.f32 %v1284, %v1413
        %v1462 = vadd.f32 %v1285, %v1418
        %v1463 = vadd.f32 %v1286, %v1421
        %v1464 = vadd.f32 %v1287, %v1426
        %v1465 = vadd.f32 %v1288, %v1429
        %v1466 = vadd.f32 %v1289, %v1434
        %v1467 = vadd.f32 %v1290, %v1437
        %v1468 = vadd.f32 %v1291, %v1442
        %v1469 = vadd.f32 %v1292, %v1445
        %v1470 = vadd.f32 %v1293, %v1450
        %v1471 = vadd.f32 %v1294, %v1453
        %v1472 = vld [vmem:[#allocation4 + $0x100] sm:$0xf]
        %v1473 = vld [vmem:[#allocation4 + $0x104] sm:$0xf]
        %v1474 = vld [vmem:[#allocation4 + $0x108] sm:$0xf]
        %v1475 = vld [vmem:[#allocation4 + $0x10c] sm:$0xf]
        %v1476 = vld [vmem:[#allocation4 + $0x110] sm:$0xf]
        %v1477 = vld [vmem:[#allocation4 + $0x114] sm:$0xf]
        %v1478 = vld [vmem:[#allocation4 + $0x118] sm:$0xf]
        %v1479 = vld [vmem:[#allocation4 + $0x11c] sm:$0xf]
        %v1480 = vld [vmem:[#allocation4 + $0x120] sm:$0xf]
        %v1481 = vld [vmem:[#allocation4 + $0x124] sm:$0xf]
        %v1482 = vld [vmem:[#allocation4 + $0x128] sm:$0xf]
        %v1483 = vld [vmem:[#allocation4 + $0x12c] sm:$0xf]
        %v1484 = vld [vmem:[#allocation4 + $0x130] sm:$0xf]
        %v1485 = vld [vmem:[#allocation4 + $0x134] sm:$0xf]
        %v1486 = vld [vmem:[#allocation4 + $0x138] sm:$0xf]
        %v1487 = vld [vmem:[#allocation4 + $0x13c] sm:$0xf]
        %v1504 = vunpack.c.l.b16 %v1472
        %v1505 = vunpack.c.l.b16 %v1473
        %v1506 = vunpack.c.l.b16 %v1474
        %v1507 = vunpack.c.l.b16 %v1475
        %v1508 = vunpack.c.l.b16 %v1476
        %v1509 = vunpack.c.l.b16 %v1477
        %v1510 = vunpack.c.l.b16 %v1478
        %v1511 = vunpack.c.l.b16 %v1479
        %v1512 = vunpack.c.l.b16 %v1480
        %v1513 = vunpack.c.l.b16 %v1481
        %v1514 = vunpack.c.l.b16 %v1482
        %v1515 = vunpack.c.l.b16 %v1483
        %v1516 = vunpack.c.l.b16 %v1484
        %v1517 = vunpack.c.l.b16 %v1485
        %v1518 = vunpack.c.l.b16 %v1486
        %v1519 = vunpack.c.l.b16 %v1487
        %v1520 = vpack.c.b16 %v1505, %v1504
        %v1521 = vpack.c.b16 %v1507, %v1506
        %v1522 = vpack.c.b16 %v1509, %v1508
        %v1523 = vpack.c.b16 %v1511, %v1510
        %v1524 = vpack.c.b16 %v1513, %v1512
        %v1525 = vpack.c.b16 %v1515, %v1514
        %v1526 = vpack.c.b16 %v1517, %v1516
        %v1527 = vpack.c.b16 %v1519, %v1518
        %1536 = vmatprep.subr.bf16.mxu0 0
        %1537 = vmatpush1.bf16.msra.mxu0 %v1520
        %1538 = vmatprep.subr.bf16.mxu0 0
        %1539 = vmatpush1.bf16.msra.mxu0 %v1521
        %1540 = vmatprep.subr.bf16.mxu0 0
        %1541 = vmatpush1.bf16.msra.mxu0 %v1522
        %1542 = vmatprep.subr.bf16.mxu0 0
        %1543 = vmatpush1.bf16.msra.mxu0 %v1523
        %1544 = vmatprep.subr.bf16.mxu0 0
        %1545 = vmatpush1.bf16.msra.mxu0 %v1524
        %1546 = vmatprep.subr.bf16.mxu0 0
        %1547 = vmatpush1.bf16.msra.mxu0 %v1525
        %1548 = vmatprep.subr.bf16.mxu0 0
        %1549 = vmatpush1.bf16.msra.mxu0 %v1526
        %1550 = vmatprep.subr.bf16.mxu0 0
        %1551 = vmatpush1.bf16.msra.mxu0 %v1527
        %1552 = vmatprep.subr.bf16.mxu0 0
        %1553 = vmatpush1.bf16.msra.mxu0 0
        %1554 = vmatprep.subr.bf16.mxu0 0
        %1555 = vmatpush1.bf16.msra.mxu0 0
        %1556 = vmatprep.subr.bf16.mxu0 0
        %1557 = vmatpush1.bf16.msra.mxu0 0
        %1558 = vmatprep.subr.bf16.mxu0 0
        %1559 = vmatpush1.bf16.msra.mxu0 0
        %1560 = vmatprep.subr.bf16.mxu0 0
        %1561 = vmatpush1.bf16.msra.mxu0 0
        %1562 = vmatprep.subr.bf16.mxu0 0
        %1563 = vmatpush1.bf16.msra.mxu0 0
        %1564 = vmatprep.subr.bf16.mxu0 0
        %1565 = vmatpush1.bf16.msra.mxu0 0
        %1566 = vmatprep.subr.bf16.mxu0 0
        %1567 = vmatpush1.bf16.msra.mxu0 0
        %1568 = vmatprep.mubr.bf16.mxu0 0
        %1569 = vmatmul.mubr.bf16.gmra.mrb[0].mxu0 %v651
        %v1570 = vpop.f32.mrb[0].mxu0
        %v1571 = vadd.f32 0.0, %v1570
        %v1572 = vpop.f32.mrb[0].mxu0
        %v1573 = vpop.f32.mrb[0].mxu0
        %v1574 = vadd.f32 0.0, %v1573
        %v1575 = vpop.f32.mrb[0].mxu0
        %1576 = vmatprep.mubr.bf16.mxu0 0
        %1577 = vmatmul.mubr.bf16.gmra.mrb[0].mxu0 %v652
        %v1578 = vpop.f32.mrb[0].mxu0
        %v1579 = vadd.f32 0.0, %v1578
        %v1580 = vpop.f32.mrb[0].mxu0
        %v1581 = vpop.f32.mrb[0].mxu0
        %v1582 = vadd.f32 0.0, %v1581
        %v1583 = vpop.f32.mrb[0].mxu0
        %1584 = vmatprep.mubr.bf16.mxu0 0
        %1585 = vmatmul.mubr.bf16.gmra.mrb[0].mxu0 %v653
        %v1586 = vpop.f32.mrb[0].mxu0
        %v1587 = vadd.f32 0.0, %v1586
        %v1588 = vpop.f32.mrb[0].mxu0
        %v1589 = vpop.f32.mrb[0].mxu0
        %v1590 = vadd.f32 0.0, %v1589
        %v1591 = vpop.f32.mrb[0].mxu0
        %1592 = vmatprep.mubr.bf16.mxu0 0
        %1593 = vmatmul.mubr.bf16.gmra.mrb[0].mxu0 %v654
        %v1594 = vpop.f32.mrb[0].mxu0
        %v1595 = vadd.f32 0.0, %v1594
        %v1596 = vpop.f32.mrb[0].mxu0
        %v1597 = vpop.f32.mrb[0].mxu0
        %v1598 = vadd.f32 0.0, %v1597
        %v1599 = vpop.f32.mrb[0].mxu0
        %1600 = vmatprep.mubr.bf16.mxu0 0
        %1601 = vmatmul.mubr.bf16.gmra.mrb[0].mxu0 %v655
        %v1602 = vpop.f32.mrb[0].mxu0
        %v1603 = vadd.f32 0.0, %v1602
        %v1604 = vpop.f32.mrb[0].mxu0
        %v1605 = vpop.f32.mrb[0].mxu0
        %v1606 = vadd.f32 0.0, %v1605
        %v1607 = vpop.f32.mrb[0].mxu0
        %1608 = vmatprep.mubr.bf16.mxu0 0
        %1609 = vmatmul.mubr.bf16.gmra.mrb[0].mxu0 %v656
        %v1610 = vpop.f32.mrb[0].mxu0
        %v1611 = vadd.f32 0.0, %v1610
        %v1612 = vpop.f32.mrb[0].mxu0
        %v1613 = vpop.f32.mrb[0].mxu0
        %v1614 = vadd.f32 0.0, %v1613
        %v1615 = vpop.f32.mrb[0].mxu0
        %1616 = vmatprep.mubr.bf16.mxu0 0
        %1617 = vmatmul.mubr.bf16.gmra.mrb[0].mxu0 %v657
        %v1618 = vpop.f32.mrb[0].mxu0
        %v1619 = vadd.f32 0.0, %v1618
        %v1620 = vpop.f32.mrb[0].mxu0
        %v1621 = vpop.f32.mrb[0].mxu0
        %v1622 = vadd.f32 0.0, %v1621
        %v1623 = vpop.f32.mrb[0].mxu0
        %1624 = vmatprep.mubr.bf16.mxu0 0
        %1625 = vmatmul.mubr.bf16.gmra.mrb[0].mxu0 %v658
        %v1626 = vpop.f32.mrb[0].mxu0
        %v1627 = vadd.f32 0.0, %v1626
        %v1628 = vpop.f32.mrb[0].mxu0
        %v1629 = vpop.f32.mrb[0].mxu0
        %v1630 = vadd.f32 0.0, %v1629
        %v1631 = vpop.f32.mrb[0].mxu0
        %1632 = vdwg.mxu0
        %v1633 = vadd.f32 %v1456, %v1571
        %v1634 = vadd.f32 %v1457, %v1574
        %v1635 = vadd.f32 %v1458, %v1579
        %v1636 = vadd.f32 %v1459, %v1582
        %v1637 = vadd.f32 %v1460, %v1587
        %v1638 = vadd.f32 %v1461, %v1590
        %v1639 = vadd.f32 %v1462, %v1595
        %v1640 = vadd.f32 %v1463, %v1598
        %v1641 = vadd.f32 %v1464, %v1603
        %v1642 = vadd.f32 %v1465, %v1606
        %v1643 = vadd.f32 %v1466, %v1611
        %v1644 = vadd.f32 %v1467, %v1614
        %v1645 = vadd.f32 %v1468, %v1619
        %v1646 = vadd.f32 %v1469, %v1622
        %v1647 = vadd.f32 %v1470, %v1627
        %v1648 = vadd.f32 %v1471, %v1630
        %v1649 = vld [vmem:[#allocation4 + $0x140] sm:$0xf]
        %v1650 = vld [vmem:[#allocation4 + $0x144] sm:$0xf]
        %v1651 = vld [vmem:[#allocation4 + $0x148] sm:$0xf]
        %v1652 = vld [vmem:[#allocation4 + $0x14c] sm:$0xf]
        %v1653 = vld [vmem:[#allocation4 + $0x150] sm:$0xf]
        %v1654 = vld [vmem:[#allocation4 + $0x154] sm:$0xf]
        %v1655 = vld [vmem:[#allocation4 + $0x158] sm:$0xf]
        %v1656 = vld [vmem:[#allocation4 + $0x15c] sm:$0xf]
        %v1657 = vld [vmem:[#allocation4 + $0x160] sm:$0xf]
        %v1658 = vld [vmem:[#allocation4 + $0x164] sm:$0xf]
        %v1659 = vld [vmem:[#allocation4 + $0x168] sm:$0xf]
        %v1660 = vld [vmem:[#allocation4 + $0x16c] sm:$0xf]
        %v1661 = vld [vmem:[#allocation4 + $0x170] sm:$0xf]
        %v1662 = vld [vmem:[#allocation4 + $0x174] sm:$0xf]
        %v1663 = vld [vmem:[#allocation4 + $0x178] sm:$0xf]
        %v1664 = vld [vmem:[#allocation4 + $0x17c] sm:$0xf]
        %v1681 = vunpack.c.l.b16 %v1649
        %v1682 = vunpack.c.l.b16 %v1650
        %v1683 = vunpack.c.l.b16 %v1651
        %v1684 = vunpack.c.l.b16 %v1652
        %v1685 = vunpack.c.l.b16 %v1653
        %v1686 = vunpack.c.l.b16 %v1654
        %v1687 = vunpack.c.l.b16 %v1655
        %v1688 = vunpack.c.l.b16 %v1656
        %v1689 = vunpack.c.l.b16 %v1657
        %v1690 = vunpack.c.l.b16 %v1658
        %v1691 = vunpack.c.l.b16 %v1659
        %v1692 = vunpack.c.l.b16 %v1660
        %v1693 = vunpack.c.l.b16 %v1661
        %v1694 = vunpack.c.l.b16 %v1662
        %v1695 = vunpack.c.l.b16 %v1663
        %v1696 = vunpack.c.l.b16 %v1664
        %v1697 = vpack.c.b16 %v1682, %v1681
        %v1698 = vpack.c.b16 %v1684, %v1683
        %v1699 = vpack.c.b16 %v1686, %v1685
        %v1700 = vpack.c.b16 %v1688, %v1687
        %v1701 = vpack.c.b16 %v1690, %v1689
        %v1702 = vpack.c.b16 %v1692, %v1691
        %v1703 = vpack.c.b16 %v1694, %v1693
        %v1704 = vpack.c.b16 %v1696, %v1695
        %1713 = vmatprep.subr.bf16.mxu0 0
        %1714 = vmatpush1.bf16.msra.mxu0 %v1697
        %1715 = vmatprep.subr.bf16.mxu0 0
        %1716 = vmatpush1.bf16.msra.mxu0 %v1698
        %1717 = vmatprep.subr.bf16.mxu0 0
        %1718 = vmatpush1.bf16.msra.mxu0 %v1699
        %1719 = vmatprep.subr.bf16.mxu0 0
        %1720 = vmatpush1.bf16.msra.mxu0 %v1700
        %1721 = vmatprep.subr.bf16.mxu0 0
        %1722 = vmatpush1.bf16.msra.mxu0 %v1701
        %1723 = vmatprep.subr.bf16.mxu0 0
        %1724 = vmatpush1.bf16.msra.mxu0 %v1702
        %1725 = vmatprep.subr.bf16.mxu0 0
        %1726 = vmatpush1.bf16.msra.mxu0 %v1703
        %1727 = vmatprep.subr.bf16.mxu0 0
        %1728 = vmatpush1.bf16.msra.mxu0 %v1704
        %1729 = vmatprep.subr.bf16.mxu0 0
        %1730 = vmatpush1.bf16.msra.mxu0 0
        %1731 = vmatprep.subr.bf16.mxu0 0
        %1732 = vmatpush1.bf16.msra.mxu0 0
        %1733 = vmatprep.subr.bf16.mxu0 0
        %1734 = vmatpush1.bf16.msra.mxu0 0
        %1735 = vmatprep.subr.bf16.mxu0 0
        %1736 = vmatpush1.bf16.msra.mxu0 0
        %1737 = vmatprep.subr.bf16.mxu0 0
        %1738 = vmatpush1.bf16.msra.mxu0 0
        %1739 = vmatprep.subr.bf16.mxu0 0
        %1740 = vmatpush1.bf16.msra.mxu0 0
        %1741 = vmatprep.subr.bf16.mxu0 0
        %1742 = vmatpush1.bf16.msra.mxu0 0
        %1743 = vmatprep.subr.bf16.mxu0 0
        %1744 = vmatpush1.bf16.msra.mxu0 0
        %1745 = vmatprep.mubr.bf16.mxu0 0
        %1746 = vmatmul.mubr.bf16.gmra.mrb[0].mxu0 %v787
        %v1747 = vpop.f32.mrb[0].mxu0
        %v1748 = vadd.f32 0.0, %v1747
        %v1749 = vpop.f32.mrb[0].mxu0
        %v1750 = vpop.f32.mrb[0].mxu0
        %v1751 = vadd.f32 0.0, %v1750
        %v1752 = vpop.f32.mrb[0].mxu0
        %1753 = vmatprep.mubr.bf16.mxu0 0
        %1754 = vmatmul.mubr.bf16.gmra.mrb[0].mxu0 %v788
        %v1755 = vpop.f32.mrb[0].mxu0
        %v1756 = vadd.f32 0.0, %v1755
        %v1757 = vpop.f32.mrb[0].mxu0
        %v1758 = vpop.f32.mrb[0].mxu0
        %v1759 = vadd.f32 0.0, %v1758
        %v1760 = vpop.f32.mrb[0].mxu0
        %1761 = vmatprep.mubr.bf16.mxu0 0
        %1762 = vmatmul.mubr.bf16.gmra.mrb[0].mxu0 %v789
        %v1763 = vpop.f32.mrb[0].mxu0
        %v1764 = vadd.f32 0.0, %v1763
        %v1765 = vpop.f32.mrb[0].mxu0
        %v1766 = vpop.f32.mrb[0].mxu0
        %v1767 = vadd.f32 0.0, %v1766
        %v1768 = vpop.f32.mrb[0].mxu0
        %1769 = vmatprep.mubr.bf16.mxu0 0
        %1770 = vmatmul.mubr.bf16.gmra.mrb[0].mxu0 %v790
        %v1771 = vpop.f32.mrb[0].mxu0
        %v1772 = vadd.f32 0.0, %v1771
        %v1773 = vpop.f32.mrb[0].mxu0
        %v1774 = vpop.f32.mrb[0].mxu0
        %v1775 = vadd.f32 0.0, %v1774
        %v1776 = vpop.f32.mrb[0].mxu0
        %1777 = vmatprep.mubr.bf16.mxu0 0
        %1778 = vmatmul.mubr.bf16.gmra.mrb[0].mxu0 %v791
        %v1779 = vpop.f32.mrb[0].mxu0
        %v1780 = vadd.f32 0.0, %v1779
        %v1781 = vpop.f32.mrb[0].mxu0
        %v1782 = vpop.f32.mrb[0].mxu0
        %v1783 = vadd.f32 0.0, %v1782
        %v1784 = vpop.f32.mrb[0].mxu0
        %1785 = vmatprep.mubr.bf16.mxu0 0
        %1786 = vmatmul.mubr.bf16.gmra.mrb[0].mxu0 %v792
        %v1787 = vpop.f32.mrb[0].mxu0
        %v1788 = vadd.f32 0.0, %v1787
        %v1789 = vpop.f32.mrb[0].mxu0
        %v1790 = vpop.f32.mrb[0].mxu0
        %v1791 = vadd.f32 0.0, %v1790
        %v1792 = vpop.f32.mrb[0].mxu0
        %1793 = vmatprep.mubr.bf16.mxu0 0
        %1794 = vmatmul.mubr.bf16.gmra.mrb[0].mxu0 %v793
        %v1795 = vpop.f32.mrb[0].mxu0
        %v1796 = vadd.f32 0.0, %v1795
        %v1797 = vpop.f32.mrb[0].mxu0
        %v1798 = vpop.f32.mrb[0].mxu0
        %v1799 = vadd.f32 0.0, %v1798
        %v1800 = vpop.f32.mrb[0].mxu0
        %1801 = vmatprep.mubr.bf16.mxu0 0
        %1802 = vmatmul.mubr.bf16.gmra.mrb[0].mxu0 %v794
        %v1803 = vpop.f32.mrb[0].mxu0
        %v1804 = vadd.f32 0.0, %v1803
        %v1805 = vpop.f32.mrb[0].mxu0
        %v1806 = vpop.f32.mrb[0].mxu0
        %v1807 = vadd.f32 0.0, %v1806
        %v1808 = vpop.f32.mrb[0].mxu0
        %1809 = vdwg.mxu0
        %v1810 = vadd.f32 %v1633, %v1748
        %v1811 = vadd.f32 %v1634, %v1751
        %v1812 = vadd.f32 %v1635, %v1756
        %v1813 = vadd.f32 %v1636, %v1759
        %v1814 = vadd.f32 %v1637, %v1764
        %v1815 = vadd.f32 %v1638, %v1767
        %v1816 = vadd.f32 %v1639, %v1772
        %v1817 = vadd.f32 %v1640, %v1775
        %v1818 = vadd.f32 %v1641, %v1780
        %v1819 = vadd.f32 %v1642, %v1783
        %v1820 = vadd.f32 %v1643, %v1788
        %v1821 = vadd.f32 %v1644, %v1791
        %v1822 = vadd.f32 %v1645, %v1796
        %v1823 = vadd.f32 %v1646, %v1799
        %v1824 = vadd.f32 %v1647, %v1804
        %v1825 = vadd.f32 %v1648, %v1807
        %v1826 = vld [vmem:[#allocation4 + $0x180] sm:$0xf]
        %v1827 = vld [vmem:[#allocation4 + $0x184] sm:$0xf]
        %v1828 = vld [vmem:[#allocation4 + $0x188] sm:$0xf]
        %v1829 = vld [vmem:[#allocation4 + $0x18c] sm:$0xf]
        %v1830 = vld [vmem:[#allocation4 + $0x190] sm:$0xf]
        %v1831 = vld [vmem:[#allocation4 + $0x194] sm:$0xf]
        %v1832 = vld [vmem:[#allocation4 + $0x198] sm:$0xf]
        %v1833 = vld [vmem:[#allocation4 + $0x19c] sm:$0xf]
        %v1834 = vld [vmem:[#allocation4 + $0x1a0] sm:$0xf]
        %v1835 = vld [vmem:[#allocation4 + $0x1a4] sm:$0xf]
        %v1836 = vld [vmem:[#allocation4 + $0x1a8] sm:$0xf]
        %v1837 = vld [vmem:[#allocation4 + $0x1ac] sm:$0xf]
        %v1838 = vld [vmem:[#allocation4 + $0x1b0] sm:$0xf]
        %v1839 = vld [vmem:[#allocation4 + $0x1b4] sm:$0xf]
        %v1840 = vld [vmem:[#allocation4 + $0x1b8] sm:$0xf]
        %v1841 = vld [vmem:[#allocation4 + $0x1bc] sm:$0xf]
        %v1858 = vunpack.c.l.b16 %v1826
        %v1859 = vunpack.c.l.b16 %v1827
        %v1860 = vunpack.c.l.b16 %v1828
        %v1861 = vunpack.c.l.b16 %v1829
        %v1862 = vunpack.c.l.b16 %v1830
        %v1863 = vunpack.c.l.b16 %v1831
        %v1864 = vunpack.c.l.b16 %v1832
        %v1865 = vunpack.c.l.b16 %v1833
        %v1866 = vunpack.c.l.b16 %v1834
        %v1867 = vunpack.c.l.b16 %v1835
        %v1868 = vunpack.c.l.b16 %v1836
        %v1869 = vunpack.c.l.b16 %v1837
        %v1870 = vunpack.c.l.b16 %v1838
        %v1871 = vunpack.c.l.b16 %v1839
        %v1872 = vunpack.c.l.b16 %v1840
        %v1873 = vunpack.c.l.b16 %v1841
        %v1874 = vpack.c.b16 %v1859, %v1858
        %v1875 = vpack.c.b16 %v1861, %v1860
        %v1876 = vpack.c.b16 %v1863, %v1862
        %v1877 = vpack.c.b16 %v1865, %v1864
        %v1878 = vpack.c.b16 %v1867, %v1866
        %v1879 = vpack.c.b16 %v1869, %v1868
        %v1880 = vpack.c.b16 %v1871, %v1870
        %v1881 = vpack.c.b16 %v1873, %v1872
        %1890 = vmatprep.subr.bf16.mxu0 0
        %1891 = vmatpush1.bf16.msra.mxu0 %v1874
        %1892 = vmatprep.subr.bf16.mxu0 0
        %1893 = vmatpush1.bf16.msra.mxu0 %v1875
        %1894 = vmatprep.subr.bf16.mxu0 0
        %1895 = vmatpush1.bf16.msra.mxu0 %v1876
        %1896 = vmatprep.subr.bf16.mxu0 0
        %1897 = vmatpush1.bf16.msra.mxu0 %v1877
        %1898 = vmatprep.subr.bf16.mxu0 0
        %1899 = vmatpush1.bf16.msra.mxu0 %v1878
        %1900 = vmatprep.subr.bf16.mxu0 0
        %1901 = vmatpush1.bf16.msra.mxu0 %v1879
        %1902 = vmatprep.subr.bf16.mxu0 0
        %1903 = vmatpush1.bf16.msra.mxu0 %v1880
        %1904 = vmatprep.subr.bf16.mxu0 0
        %1905 = vmatpush1.bf16.msra.mxu0 %v1881
        %1906 = vmatprep.subr.bf16.mxu0 0
        %1907 = vmatpush1.bf16.msra.mxu0 0
        %1908 = vmatprep.subr.bf16.mxu0 0
        %1909 = vmatpush1.bf16.msra.mxu0 0
        %1910 = vmatprep.subr.bf16.mxu0 0
        %1911 = vmatpush1.bf16.msra.mxu0 0
        %1912 = vmatprep.subr.bf16.mxu0 0
        %1913 = vmatpush1.bf16.msra.mxu0 0
        %1914 = vmatprep.subr.bf16.mxu0 0
        %1915 = vmatpush1.bf16.msra.mxu0 0
        %1916 = vmatprep.subr.bf16.mxu0 0
        %1917 = vmatpush1.bf16.msra.mxu0 0
        %1918 = vmatprep.subr.bf16.mxu0 0
        %1919 = vmatpush1.bf16.msra.mxu0 0
        %1920 = vmatprep.subr.bf16.mxu0 0
        %1921 = vmatpush1.bf16.msra.mxu0 0
        %1922 = vmatprep.mubr.bf16.mxu0 0
        %1923 = vmatmul.mubr.bf16.gmra.mrb[0].mxu0 %v745
        %v1924 = vpop.f32.mrb[0].mxu0
        %v1925 = vadd.f32 0.0, %v1924
        %v1926 = vpop.f32.mrb[0].mxu0
        %v1927 = vpop.f32.mrb[0].mxu0
        %v1928 = vadd.f32 0.0, %v1927
        %v1929 = vpop.f32.mrb[0].mxu0
        %1930 = vmatprep.mubr.bf16.mxu0 0
        %1931 = vmatmul.mubr.bf16.gmra.mrb[0].mxu0 %v746
        %v1932 = vpop.f32.mrb[0].mxu0
        %v1933 = vadd.f32 0.0, %v1932
        %v1934 = vpop.f32.mrb[0].mxu0
        %v1935 = vpop.f32.mrb[0].mxu0
        %v1936 = vadd.f32 0.0, %v1935
        %v1937 = vpop.f32.mrb[0].mxu0
        %1938 = vmatprep.mubr.bf16.mxu0 0
        %1939 = vmatmul.mubr.bf16.gmra.mrb[0].mxu0 %v747
        %v1940 = vpop.f32.mrb[0].mxu0
        %v1941 = vadd.f32 0.0, %v1940
        %v1942 = vpop.f32.mrb[0].mxu0
        %v1943 = vpop.f32.mrb[0].mxu0
        %v1944 = vadd.f32 0.0, %v1943
        %v1945 = vpop.f32.mrb[0].mxu0
        %1946 = vmatprep.mubr.bf16.mxu0 0
        %1947 = vmatmul.mubr.bf16.gmra.mrb[0].mxu0 %v748
        %v1948 = vpop.f32.mrb[0].mxu0
        %v1949 = vadd.f32 0.0, %v1948
        %v1950 = vpop.f32.mrb[0].mxu0
        %v1951 = vpop.f32.mrb[0].mxu0
        %v1952 = vadd.f32 0.0, %v1951
        %v1953 = vpop.f32.mrb[0].mxu0
        %1954 = vmatprep.mubr.bf16.mxu0 0
        %1955 = vmatmul.mubr.bf16.gmra.mrb[0].mxu0 %v749
        %v1956 = vpop.f32.mrb[0].mxu0
        %v1957 = vadd.f32 0.0, %v1956
        %v1958 = vpop.f32.mrb[0].mxu0
        %v1959 = vpop.f32.mrb[0].mxu0
        %v1960 = vadd.f32 0.0, %v1959
        %v1961 = vpop.f32.mrb[0].mxu0
        %1962 = vmatprep.mubr.bf16.mxu0 0
        %1963 = vmatmul.mubr.bf16.gmra.mrb[0].mxu0 %v750
        %v1964 = vpop.f32.mrb[0].mxu0
        %v1965 = vadd.f32 0.0, %v1964
        %v1966 = vpop.f32.mrb[0].mxu0
        %v1967 = vpop.f32.mrb[0].mxu0
        %v1968 = vadd.f32 0.0, %v1967
        %v1969 = vpop.f32.mrb[0].mxu0
        %1970 = vmatprep.mubr.bf16.mxu0 0
        %1971 = vmatmul.mubr.bf16.gmra.mrb[0].mxu0 %v751
        %v1972 = vpop.f32.mrb[0].mxu0
        %v1973 = vadd.f32 0.0, %v1972
        %v1974 = vpop.f32.mrb[0].mxu0
        %v1975 = vpop.f32.mrb[0].mxu0
        %v1976 = vadd.f32 0.0, %v1975
        %v1977 = vpop.f32.mrb[0].mxu0
        %1978 = vmatprep.mubr.bf16.mxu0 0
        %1979 = vmatmul.mubr.bf16.gmra.mrb[0].mxu0 %v752
        %v1980 = vpop.f32.mrb[0].mxu0
        %v1981 = vadd.f32 0.0, %v1980
        %v1982 = vpop.f32.mrb[0].mxu0
        %v1983 = vpop.f32.mrb[0].mxu0
        %v1984 = vadd.f32 0.0, %v1983
        %v1985 = vpop.f32.mrb[0].mxu0
        %1986 = vdwg.mxu0
        %v1987 = vadd.f32 %v1810, %v1925
        %v1988 = vadd.f32 %v1811, %v1928
        %v1989 = vadd.f32 %v1812, %v1933
        %v1990 = vadd.f32 %v1813, %v1936
        %v1991 = vadd.f32 %v1814, %v1941
        %v1992 = vadd.f32 %v1815, %v1944
        %v1993 = vadd.f32 %v1816, %v1949
        %v1994 = vadd.f32 %v1817, %v1952
        %v1995 = vadd.f32 %v1818, %v1957
        %v1996 = vadd.f32 %v1819, %v1960
        %v1997 = vadd.f32 %v1820, %v1965
        %v1998 = vadd.f32 %v1821, %v1968
        %v1999 = vadd.f32 %v1822, %v1973
        %v2000 = vadd.f32 %v1823, %v1976
        %v2001 = vadd.f32 %v1824, %v1981
        %v2002 = vadd.f32 %v1825, %v1984
        %v2003 = vld [vmem:[#allocation4 + $0x1c0] sm:$0xf]
        %v2004 = vld [vmem:[#allocation4 + $0x1c4] sm:$0xf]
        %v2005 = vld [vmem:[#allocation4 + $0x1c8] sm:$0xf]
        %v2006 = vld [vmem:[#allocation4 + $0x1cc] sm:$0xf]
        %v2007 = vld [vmem:[#allocation4 + $0x1d0] sm:$0xf]
        %v2008 = vld [vmem:[#allocation4 + $0x1d4] sm:$0xf]
        %v2009 = vld [vmem:[#allocation4 + $0x1d8] sm:$0xf]
        %v2010 = vld [vmem:[#allocation4 + $0x1dc] sm:$0xf]
        %v2011 = vld [vmem:[#allocation4 + $0x1e0] sm:$0xf]
        %v2012 = vld [vmem:[#allocation4 + $0x1e4] sm:$0xf]
        %v2013 = vld [vmem:[#allocation4 + $0x1e8] sm:$0xf]
        %v2014 = vld [vmem:[#allocation4 + $0x1ec] sm:$0xf]
        %v2015 = vld [vmem:[#allocation4 + $0x1f0] sm:$0xf]
        %v2016 = vld [vmem:[#allocation4 + $0x1f4] sm:$0xf]
        %v2017 = vld [vmem:[#allocation4 + $0x1f8] sm:$0xf]
        %v2018 = vld [vmem:[#allocation4 + $0x1fc] sm:$0xf]
        %v2035 = vunpack.c.l.b16 %v2003
        %v2036 = vunpack.c.l.b16 %v2004
        %v2037 = vunpack.c.l.b16 %v2005
        %v2038 = vunpack.c.l.b16 %v2006
        %v2039 = vunpack.c.l.b16 %v2007
        %v2040 = vunpack.c.l.b16 %v2008
        %v2041 = vunpack.c.l.b16 %v2009
        %v2042 = vunpack.c.l.b16 %v2010
        %v2043 = vunpack.c.l.b16 %v2011
        %v2044 = vunpack.c.l.b16 %v2012
        %v2045 = vunpack.c.l.b16 %v2013
        %v2046 = vunpack.c.l.b16 %v2014
        %v2047 = vunpack.c.l.b16 %v2015
        %v2048 = vunpack.c.l.b16 %v2016
        %v2049 = vunpack.c.l.b16 %v2017
        %v2050 = vunpack.c.l.b16 %v2018
        %v2051 = vpack.c.b16 %v2036, %v2035
        %v2052 = vpack.c.b16 %v2038, %v2037
        %v2053 = vpack.c.b16 %v2040, %v2039
        %v2054 = vpack.c.b16 %v2042, %v2041
        %v2055 = vpack.c.b16 %v2044, %v2043
        %v2056 = vpack.c.b16 %v2046, %v2045
        %v2057 = vpack.c.b16 %v2048, %v2047
        %v2058 = vpack.c.b16 %v2050, %v2049
        %2067 = vmatprep.subr.bf16.mxu0 0
        %2068 = vmatpush1.bf16.msra.mxu0 %v2051
        %2069 = vmatprep.subr.bf16.mxu0 0
        %2070 = vmatpush1.bf16.msra.mxu0 %v2052
        %2071 = vmatprep.subr.bf16.mxu0 0
        %2072 = vmatpush1.bf16.msra.mxu0 %v2053
        %2073 = vmatprep.subr.bf16.mxu0 0
        %2074 = vmatpush1.bf16.msra.mxu0 %v2054
        %2075 = vmatprep.subr.bf16.mxu0 0
        %2076 = vmatpush1.bf16.msra.mxu0 %v2055
        %2077 = vmatprep.subr.bf16.mxu0 0
        %2078 = vmatpush1.bf16.msra.mxu0 %v2056
        %2079 = vmatprep.subr.bf16.mxu0 0
        %2080 = vmatpush1.bf16.msra.mxu0 %v2057
        %2081 = vmatprep.subr.bf16.mxu0 0
        %2082 = vmatpush1.bf16.msra.mxu0 %v2058
        %2083 = vmatprep.subr.bf16.mxu0 0
        %2084 = vmatpush1.bf16.msra.mxu0 0
        %2085 = vmatprep.subr.bf16.mxu0 0
        %2086 = vmatpush1.bf16.msra.mxu0 0
        %2087 = vmatprep.subr.bf16.mxu0 0
        %2088 = vmatpush1.bf16.msra.mxu0 0
        %2089 = vmatprep.subr.bf16.mxu0 0
        %2090 = vmatpush1.bf16.msra.mxu0 0
        %2091 = vmatprep.subr.bf16.mxu0 0
        %2092 = vmatpush1.bf16.msra.mxu0 0
        %2093 = vmatprep.subr.bf16.mxu0 0
        %2094 = vmatpush1.bf16.msra.mxu0 0
        %2095 = vmatprep.subr.bf16.mxu0 0
        %2096 = vmatpush1.bf16.msra.mxu0 0
        %2097 = vmatprep.subr.bf16.mxu0 0
        %2098 = vmatpush1.bf16.msra.mxu0 0
        %2099 = vmatprep.mubr.bf16.mxu0 0
        %2100 = vmatmul.mubr.bf16.gmra.mrb[0].mxu0 %v652
        %v2101 = vpop.f32.mrb[0].mxu0
        %v2102 = vadd.f32 0.0, %v2101
        %v2103 = vpop.f32.mrb[0].mxu0
        %v2104 = vpop.f32.mrb[0].mxu0
        %v2105 = vadd.f32 0.0, %v2104
        %v2106 = vpop.f32.mrb[0].mxu0
        %2107 = vmatprep.mubr.bf16.mxu0 0
        %2108 = vmatmul.mubr.bf16.gmra.mrb[0].mxu0 %v653
        %v2109 = vpop.f32.mrb[0].mxu0
        %v2110 = vadd.f32 0.0, %v2109
        %v2111 = vpop.f32.mrb[0].mxu0
        %v2112 = vpop.f32.mrb[0].mxu0
        %v2113 = vadd.f32 0.0, %v2112
        %v2114 = vpop.f32.mrb[0].mxu0
        %2115 = vmatprep.mubr.bf16.mxu0 0
        %2116 = vmatmul.mubr.bf16.gmra.mrb[0].mxu0 %v654
        %v2117 = vpop.f32.mrb[0].mxu0
        %v2118 = vadd.f32 0.0, %v2117
        %v2119 = vpop.f32.mrb[0].mxu0
        %v2120 = vpop.f32.mrb[0].mxu0
        %v2121 = vadd.f32 0.0, %v2120
        %v2122 = vpop.f32.mrb[0].mxu0
        %2123 = vmatprep.mubr.bf16.mxu0 0
        %2124 = vmatmul.mubr.bf16.gmra.mrb[0].mxu0 %v655
        %v2125 = vpop.f32.mrb[0].mxu0
        %v2126 = vadd.f32 0.0, %v2125
        %v2127 = vpop.f32.mrb[0].mxu0
        %v2128 = vpop.f32.mrb[0].mxu0
        %v2129 = vadd.f32 0.0, %v2128
        %v2130 = vpop.f32.mrb[0].mxu0
        %2131 = vmatprep.mubr.bf16.mxu0 0
        %2132 = vmatmul.mubr.bf16.gmra.mrb[0].mxu0 %v656
        %v2133 = vpop.f32.mrb[0].mxu0
        %v2134 = vadd.f32 0.0, %v2133
        %v2135 = vpop.f32.mrb[0].mxu0
        %v2136 = vpop.f32.mrb[0].mxu0
        %v2137 = vadd.f32 0.0, %v2136
        %v2138 = vpop.f32.mrb[0].mxu0
        %2139 = vmatprep.mubr.bf16.mxu0 0
        %2140 = vmatmul.mubr.bf16.gmra.mrb[0].mxu0 %v657
        %v2141 = vpop.f32.mrb[0].mxu0
        %v2142 = vadd.f32 0.0, %v2141
        %v2143 = vpop.f32.mrb[0].mxu0
        %v2144 = vpop.f32.mrb[0].mxu0
        %v2145 = vadd.f32 0.0, %v2144
        %v2146 = vpop.f32.mrb[0].mxu0
        %2147 = vmatprep.mubr.bf16.mxu0 0
        %2148 = vmatmul.mubr.bf16.gmra.mrb[0].mxu0 %v658
        %v2149 = vpop.f32.mrb[0].mxu0
        %v2150 = vadd.f32 0.0, %v2149
        %v2151 = vpop.f32.mrb[0].mxu0
        %v2152 = vpop.f32.mrb[0].mxu0
        %v2153 = vadd.f32 0.0, %v2152
        %v2154 = vpop.f32.mrb[0].mxu0
        %2155 = vmatprep.mubr.bf16.mxu0 0
        %2156 = vmatmul.mubr.bf16.gmra.mrb[0].mxu0 %v659
        %v2157 = vpop.f32.mrb[0].mxu0
        %v2158 = vadd.f32 0.0, %v2157
        %v2159 = vpop.f32.mrb[0].mxu0
        %v2160 = vpop.f32.mrb[0].mxu0
        %v2161 = vadd.f32 0.0, %v2160
        %v2162 = vpop.f32.mrb[0].mxu0
        %2163 = vdwg.mxu0
        %v2164 = vadd.f32 %v1987, %v2102
        %v2165 = vadd.f32 %v1988, %v2105
        %v2166 = vadd.f32 %v1989, %v2110
        %v2167 = vadd.f32 %v1990, %v2113
        %v2168 = vadd.f32 %v1991, %v2118
        %v2169 = vadd.f32 %v1992, %v2121
        %v2170 = vadd.f32 %v1993, %v2126
        %v2171 = vadd.f32 %v1994, %v2129
        %v2172 = vadd.f32 %v1995, %v2134
        %v2173 = vadd.f32 %v1996, %v2137
        %v2174 = vadd.f32 %v1997, %v2142
        %v2175 = vadd.f32 %v1998, %v2145
        %v2176 = vadd.f32 %v1999, %v2150
        %v2177 = vadd.f32 %v2000, %v2153
        %v2178 = vadd.f32 %v2001, %v2158
        %v2179 = vadd.f32 %v2002, %v2161
        %v2180 = vld [vmem:[#allocation4 + $0x200] sm:$0xf]
        %v2181 = vld [vmem:[#allocation4 + $0x204] sm:$0xf]
        %v2182 = vld [vmem:[#allocation4 + $0x208] sm:$0xf]
        %v2183 = vld [vmem:[#allocation4 + $0x20c] sm:$0xf]
        %v2184 = vld [vmem:[#allocation4 + $0x210] sm:$0xf]
        %v2185 = vld [vmem:[#allocation4 + $0x214] sm:$0xf]
        %v2186 = vld [vmem:[#allocation4 + $0x218] sm:$0xf]
        %v2187 = vld [vmem:[#allocation4 + $0x21c] sm:$0xf]
        %v2188 = vld [vmem:[#allocation4 + $0x220] sm:$0xf]
        %v2189 = vld [vmem:[#allocation4 + $0x224] sm:$0xf]
        %v2190 = vld [vmem:[#allocation4 + $0x228] sm:$0xf]
        %v2191 = vld [vmem:[#allocation4 + $0x22c] sm:$0xf]
        %v2192 = vld [vmem:[#allocation4 + $0x230] sm:$0xf]
        %v2193 = vld [vmem:[#allocation4 + $0x234] sm:$0xf]
        %v2194 = vld [vmem:[#allocation4 + $0x238] sm:$0xf]
        %v2195 = vld [vmem:[#allocation4 + $0x23c] sm:$0xf]
        %v2212 = vunpack.c.l.b16 %v2180
        %v2213 = vunpack.c.l.b16 %v2181
        %v2214 = vunpack.c.l.b16 %v2182
        %v2215 = vunpack.c.l.b16 %v2183
        %v2216 = vunpack.c.l.b16 %v2184
        %v2217 = vunpack.c.l.b16 %v2185
        %v2218 = vunpack.c.l.b16 %v2186
        %v2219 = vunpack.c.l.b16 %v2187
        %v2220 = vunpack.c.l.b16 %v2188
        %v2221 = vunpack.c.l.b16 %v2189
        %v2222 = vunpack.c.l.b16 %v2190
        %v2223 = vunpack.c.l.b16 %v2191
        %v2224 = vunpack.c.l.b16 %v2192
        %v2225 = vunpack.c.l.b16 %v2193
        %v2226 = vunpack.c.l.b16 %v2194
        %v2227 = vunpack.c.l.b16 %v2195
        %v2228 = vpack.c.b16 %v2213, %v2212
        %v2229 = vpack.c.b16 %v2215, %v2214
        %v2230 = vpack.c.b16 %v2217, %v2216
        %v2231 = vpack.c.b16 %v2219, %v2218
        %v2232 = vpack.c.b16 %v2221, %v2220
        %v2233 = vpack.c.b16 %v2223, %v2222
        %v2234 = vpack.c.b16 %v2225, %v2224
        %v2235 = vpack.c.b16 %v2227, %v2226
        %2244 = vmatprep.subr.bf16.mxu0 0
        %2245 = vmatpush1.bf16.msra.mxu0 %v2228
        %2246 = vmatprep.subr.bf16.mxu0 0
        %2247 = vmatpush1.bf16.msra.mxu0 %v2229
        %2248 = vmatprep.subr.bf16.mxu0 0
        %2249 = vmatpush1.bf16.msra.mxu0 %v2230
        %2250 = vmatprep.subr.bf16.mxu0 0
        %2251 = vmatpush1.bf16.msra.mxu0 %v2231
        %2252 = vmatprep.subr.bf16.mxu0 0
        %2253 = vmatpush1.bf16.msra.mxu0 %v2232
        %2254 = vmatprep.subr.bf16.mxu0 0
        %2255 = vmatpush1.bf16.msra.mxu0 %v2233
        %2256 = vmatprep.subr.bf16.mxu0 0
        %2257 = vmatpush1.bf16.msra.mxu0 %v2234
        %2258 = vmatprep.subr.bf16.mxu0 0
        %2259 = vmatpush1.bf16.msra.mxu0 %v2235
        %2260 = vmatprep.subr.bf16.mxu0 0
        %2261 = vmatpush1.bf16.msra.mxu0 0
        %2262 = vmatprep.subr.bf16.mxu0 0
        %2263 = vmatpush1.bf16.msra.mxu0 0
        %2264 = vmatprep.subr.bf16.mxu0 0
        %2265 = vmatpush1.bf16.msra.mxu0 0
        %2266 = vmatprep.subr.bf16.mxu0 0
        %2267 = vmatpush1.bf16.msra.mxu0 0
        %2268 = vmatprep.subr.bf16.mxu0 0
        %2269 = vmatpush1.bf16.msra.mxu0 0
        %2270 = vmatprep.subr.bf16.mxu0 0
        %2271 = vmatpush1.bf16.msra.mxu0 0
        %2272 = vmatprep.subr.bf16.mxu0 0
        %2273 = vmatpush1.bf16.msra.mxu0 0
        %2274 = vmatprep.subr.bf16.mxu0 0
        %2275 = vmatpush1.bf16.msra.mxu0 0
        %2276 = vmatprep.mubr.bf16.mxu0 0
        %2277 = vmatmul.mubr.bf16.gmra.mrb[0].mxu0 %v788
        %v2278 = vpop.f32.mrb[0].mxu0
        %v2279 = vadd.f32 0.0, %v2278
        %v2280 = vpop.f32.mrb[0].mxu0
        %v2281 = vpop.f32.mrb[0].mxu0
        %v2282 = vadd.f32 0.0, %v2281
        %v2283 = vpop.f32.mrb[0].mxu0
        %2284 = vmatprep.mubr.bf16.mxu0 0
        %2285 = vmatmul.mubr.bf16.gmra.mrb[0].mxu0 %v789
        %v2286 = vpop.f32.mrb[0].mxu0
        %v2287 = vadd.f32 0.0, %v2286
        %v2288 = vpop.f32.mrb[0].mxu0
        %v2289 = vpop.f32.mrb[0].mxu0
        %v2290 = vadd.f32 0.0, %v2289
        %v2291 = vpop.f32.mrb[0].mxu0
        %2292 = vmatprep.mubr.bf16.mxu0 0
        %2293 = vmatmul.mubr.bf16.gmra.mrb[0].mxu0 %v790
        %v2294 = vpop.f32.mrb[0].mxu0
        %v2295 = vadd.f32 0.0, %v2294
        %v2296 = vpop.f32.mrb[0].mxu0
        %v2297 = vpop.f32.mrb[0].mxu0
        %v2298 = vadd.f32 0.0, %v2297
        %v2299 = vpop.f32.mrb[0].mxu0
        %2300 = vmatprep.mubr.bf16.mxu0 0
        %2301 = vmatmul.mubr.bf16.gmra.mrb[0].mxu0 %v791
        %v2302 = vpop.f32.mrb[0].mxu0
        %v2303 = vadd.f32 0.0, %v2302
        %v2304 = vpop.f32.mrb[0].mxu0
        %v2305 = vpop.f32.mrb[0].mxu0
        %v2306 = vadd.f32 0.0, %v2305
        %v2307 = vpop.f32.mrb[0].mxu0
        %2308 = vmatprep.mubr.bf16.mxu0 0
        %2309 = vmatmul.mubr.bf16.gmra.mrb[0].mxu0 %v792
        %v2310 = vpop.f32.mrb[0].mxu0
        %v2311 = vadd.f32 0.0, %v2310
        %v2312 = vpop.f32.mrb[0].mxu0
        %v2313 = vpop.f32.mrb[0].mxu0
        %v2314 = vadd.f32 0.0, %v2313
        %v2315 = vpop.f32.mrb[0].mxu0
        %2316 = vmatprep.mubr.bf16.mxu0 0
        %2317 = vmatmul.mubr.bf16.gmra.mrb[0].mxu0 %v793
        %v2318 = vpop.f32.mrb[0].mxu0
        %v2319 = vadd.f32 0.0, %v2318
        %v2320 = vpop.f32.mrb[0].mxu0
        %v2321 = vpop.f32.mrb[0].mxu0
        %v2322 = vadd.f32 0.0, %v2321
        %v2323 = vpop.f32.mrb[0].mxu0
        %2324 = vmatprep.mubr.bf16.mxu0 0
        %2325 = vmatmul.mubr.bf16.gmra.mrb[0].mxu0 %v794
        %v2326 = vpop.f32.mrb[0].mxu0
        %v2327 = vadd.f32 0.0, %v2326
        %v2328 = vpop.f32.mrb[0].mxu0
        %v2329 = vpop.f32.mrb[0].mxu0
        %v2330 = vadd.f32 0.0, %v2329
        %v2331 = vpop.f32.mrb[0].mxu0
        %2332 = vmatprep.mubr.bf16.mxu0 0
        %2333 = vmatmul.mubr.bf16.gmra.mrb[0].mxu0 %v795
        %v2334 = vpop.f32.mrb[0].mxu0
        %v2335 = vadd.f32 0.0, %v2334
        %v2336 = vpop.f32.mrb[0].mxu0
        %v2337 = vpop.f32.mrb[0].mxu0
        %v2338 = vadd.f32 0.0, %v2337
        %v2339 = vpop.f32.mrb[0].mxu0
        %2340 = vdwg.mxu0
        %v2341 = vadd.f32 %v2164, %v2279
        %v2342 = vadd.f32 %v2165, %v2282
        %v2343 = vadd.f32 %v2166, %v2287
        %v2344 = vadd.f32 %v2167, %v2290
        %v2345 = vadd.f32 %v2168, %v2295
        %v2346 = vadd.f32 %v2169, %v2298
        %v2347 = vadd.f32 %v2170, %v2303
        %v2348 = vadd.f32 %v2171, %v2306
        %v2349 = vadd.f32 %v2172, %v2311
        %v2350 = vadd.f32 %v2173, %v2314
        %v2351 = vadd.f32 %v2174, %v2319
        %v2352 = vadd.f32 %v2175, %v2322
        %v2353 = vadd.f32 %v2176, %v2327
        %v2354 = vadd.f32 %v2177, %v2330
        %v2355 = vadd.f32 %v2178, %v2335
        %v2356 = vadd.f32 %v2179, %v2338
        %v2357 = vld [vmem:[#allocation7] sm:$0x1]
        %v2359 = vlaneseq
        %v2360 = vshrl.u32 %v2359, 7
        %v2361 = vsub.s32 0, %v2360
        %v2362 = vrot.slane %v2357, %v2361
        %v2364 = vadd.f32 %v2341, %v2362
        %v2365 = vadd.f32 %v2342, %v2362
        %v2366 = vadd.f32 %v2343, %v2362
        %v2367 = vadd.f32 %v2344, %v2362
        %v2368 = vadd.f32 %v2345, %v2362
        %v2369 = vadd.f32 %v2346, %v2362
        %v2370 = vadd.f32 %v2347, %v2362
        %v2371 = vadd.f32 %v2348, %v2362
        %v2372 = vadd.f32 %v2349, %v2362
        %v2373 = vadd.f32 %v2350, %v2362
        %v2374 = vadd.f32 %v2351, %v2362
        %v2375 = vadd.f32 %v2352, %v2362
        %v2376 = vadd.f32 %v2353, %v2362
        %v2377 = vadd.f32 %v2354, %v2362
        %v2378 = vadd.f32 %v2355, %v2362
        %v2379 = vadd.f32 %v2356, %v2362
        %v2380 = vld [vmem:[%s307] sm:$0x1]
        %v2381 = vadd.f32 %v2364, %v2365
        %v2382 = vadd.f32 %v2381, %v2366
        %v2383 = vadd.f32 %v2382, %v2367
        %v2384 = vadd.f32 %v2383, %v2368
        %v2385 = vadd.f32 %v2384, %v2369
        %v2386 = vadd.f32 %v2385, %v2370
        %v2387 = vadd.f32 %v2386, %v2371
        %v2388 = vadd.f32 %v2387, %v2372
        %v2389 = vadd.f32 %v2388, %v2373
        %v2390 = vadd.f32 %v2389, %v2374
        %v2391 = vadd.f32 %v2390, %v2375
        %v2392 = vadd.f32 %v2391, %v2376
        %v2393 = vadd.f32 %v2392, %v2377
        %v2394 = vadd.f32 %v2393, %v2378
        %v2395 = vadd.f32 %v2394, %v2379
        %v2396 = vrot.slane %v2395, 4
        %v2397 = vadd.f32 %v2395, %v2396
        %v2398 = vrot.slane %v2397, 2
        %v2399 = vadd.f32 %v2397, %v2398
        %v2400 = vrot.slane %v2399, 1
        %v2401 = vadd.f32 %v2399, %v2400
        %v2402 = vadd.f32 %v2380, %v2401
        %2403 = vst [vmem:[%s307] sm:$0x1] %v2402
        %v2404 = vld [vmem:[%s313] sm:$0x1]
        %v2405 = vmul.f32 %v2364, %v2364
        %v2406 = vmul.f32 %v2365, %v2365
        %v2407 = vmul.f32 %v2366, %v2366
        %v2408 = vmul.f32 %v2367, %v2367
        %v2409 = vmul.f32 %v2368, %v2368
        %v2410 = vmul.f32 %v2369, %v2369
        %v2411 = vmul.f32 %v2370, %v2370
        %v2412 = vmul.f32 %v2371, %v2371
        %v2413 = vmul.f32 %v2372, %v2372
        %v2414 = vmul.f32 %v2373, %v2373
        %v2415 = vmul.f32 %v2374, %v2374
        %v2416 = vmul.f32 %v2375, %v2375
        %v2417 = vmul.f32 %v2376, %v2376
        %v2418 = vmul.f32 %v2377, %v2377
        %v2419 = vmul.f32 %v2378, %v2378
        %v2420 = vmul.f32 %v2379, %v2379
        %v2421 = vadd.f32 %v2405, %v2406
        %v2422 = vadd.f32 %v2421, %v2407
        %v2423 = vadd.f32 %v2422, %v2408
        %v2424 = vadd.f32 %v2423, %v2409
        %v2425 = vadd.f32 %v2424, %v2410
        %v2426 = vadd.f32 %v2425, %v2411
        %v2427 = vadd.f32 %v2426, %v2412
        %v2428 = vadd.f32 %v2427, %v2413
        %v2429 = vadd.f32 %v2428, %v2414
        %v2430 = vadd.f32 %v2429, %v2415
        %v2431 = vadd.f32 %v2430, %v2416
        %v2432 = vadd.f32 %v2431, %v2417
        %v2433 = vadd.f32 %v2432, %v2418
        %v2434 = vadd.f32 %v2433, %v2419
        %v2435 = vadd.f32 %v2434, %v2420
        %v2436 = vrot.slane %v2435, 4
        %v2437 = vadd.f32 %v2435, %v2436
        %v2438 = vrot.slane %v2437, 2
        %v2439 = vadd.f32 %v2437, %v2438
        %v2440 = vrot.slane %v2439, 1
        %v2441 = vadd.f32 %v2439, %v2440
        %v2442 = vadd.f32 %v2404, %v2441
        %2443 = vst [vmem:[%s313] sm:$0x1] %v2442
        %v2444 = vpack.c.bf16 %v2365, %v2364
        %v2445 = vpack.c.bf16 %v2367, %v2366
        %v2446 = vpack.c.bf16 %v2369, %v2368
        %v2447 = vpack.c.bf16 %v2371, %v2370
        %v2448 = vpack.c.bf16 %v2373, %v2372
        %v2449 = vpack.c.bf16 %v2375, %v2374
        %v2450 = vpack.c.bf16 %v2377, %v2376
        %v2451 = vpack.c.bf16 %v2379, %v2378
        %v2460 = vunpack.c.l.b16 %v2444
        %v2461 = vunpack.c.h.b16 %v2444
        %v2462 = vunpack.c.l.b16 %v2445
        %v2463 = vunpack.c.h.b16 %v2445
        %v2464 = vunpack.c.l.b16 %v2446
        %v2465 = vunpack.c.h.b16 %v2446
        %v2466 = vunpack.c.l.b16 %v2447
        %v2467 = vunpack.c.h.b16 %v2447
        %v2468 = vunpack.c.l.b16 %v2448
        %v2469 = vunpack.c.h.b16 %v2448
        %v2470 = vunpack.c.l.b16 %v2449
        %v2471 = vunpack.c.h.b16 %v2449
        %v2472 = vunpack.c.l.b16 %v2450
        %v2473 = vunpack.c.h.b16 %v2450
        %v2474 = vunpack.c.l.b16 %v2451
        %v2475 = vunpack.c.h.b16 %v2451
        %v2476 = vpack.c.b16 %v2460, %v2460
        %v2477 = vpack.c.b16 %v2461, %v2461
        %v2478 = vpack.c.b16 %v2462, %v2462
        %v2479 = vpack.c.b16 %v2463, %v2463
        %v2480 = vpack.c.b16 %v2464, %v2464
        %v2481 = vpack.c.b16 %v2465, %v2465
        %v2482 = vpack.c.b16 %v2466, %v2466
        %v2483 = vpack.c.b16 %v2467, %v2467
        %v2484 = vpack.c.b16 %v2468, %v2468
        %v2485 = vpack.c.b16 %v2469, %v2469
        %v2486 = vpack.c.b16 %v2470, %v2470
        %v2487 = vpack.c.b16 %v2471, %v2471
        %v2488 = vpack.c.b16 %v2472, %v2472
        %v2489 = vpack.c.b16 %v2473, %v2473
        %v2490 = vpack.c.b16 %v2474, %v2474
        %v2491 = vpack.c.b16 %v2475, %v2475
        %2508 = vst [vmem:[%s301] sm:$0xf] %v2476
        %2509 = vst [vmem:[%s301 + $0x4] sm:$0xf] %v2477
        %2510 = vst [vmem:[%s301 + $0x8] sm:$0xf] %v2478
        %2511 = vst [vmem:[%s301 + $0xc] sm:$0xf] %v2479
        %2512 = vst [vmem:[%s301 + $0x10] sm:$0xf] %v2480
        %2513 = vst [vmem:[%s301 + $0x14] sm:$0xf] %v2481
        %2514 = vst [vmem:[%s301 + $0x18] sm:$0xf] %v2482
        %2515 = vst [vmem:[%s301 + $0x1c] sm:$0xf] %v2483
        %2516 = vst [vmem:[%s301 + $0x20] sm:$0xf] %v2484
        %2517 = vst [vmem:[%s301 + $0x24] sm:$0xf] %v2485
        %2518 = vst [vmem:[%s301 + $0x28] sm:$0xf] %v2486
        %2519 = vst [vmem:[%s301 + $0x2c] sm:$0xf] %v2487
        %2520 = vst [vmem:[%s301 + $0x30] sm:$0xf] %v2488
        %2521 = vst [vmem:[%s301 + $0x34] sm:$0xf] %v2489
        %2522 = vst [vmem:[%s301 + $0x38] sm:$0xf] %v2490
        %2523 = vst [vmem:[%s301 + $0x3c] sm:$0xf] %v2491
        %s2524 = sand.u32 %s134, 1
        %s2525 = scalar_lea.sflag [#allocation6], %s2524
        %s2526 = sand.u32 %s134, 1
        %s2527 = smul.addr %s2526, 64
        %s2528 = scalar_lea.vmem [#allocation12], %s2527
        %s2529 = sand.u32 %s28, 1
        %s2530 = scalar_lea.sflag [#allocation14], %s2529
        %s2531 = sand.u32 %s160, 1
        %s2532 = scalar_lea.vmem [#allocation13], %s2531
        %s2533 = sand.u32 %s28, 1
        %s2534 = scalar_lea.sflag [#allocation14], %s2533
        %s2535 = sand.u32 %s186, 1
        %s2536 = scalar_lea.vmem [#allocation15], %s2535
        // Predicated region
        $region109: #{double_conv.4} parent=35 // pred_check
          %p2537 = pneg %p144
        $region110: #{double_conv.4} parent=35 // pred_check_branch
          %2539 = sbr.rel (%p2537) target = $region112
        $region111: #{double_conv.4} parent=35 // pred_region
          %s2540 = smul.u32 8, %s33
          %s2542 = ssub.s32 1024, 1024
          %2543 = vsyncadd %s2525, %s2542
          %s2544 = smul.addr %s2540, 2
          %s2545 = smul.addr %s32, 32
          %s2546 = sadd.s32 %s2544, %s2545
          %s2547 = smul.addr %s2546, 64
          %s2548 = scalar_lea.hbm %s5, %s2547
          %s2549 = sshll.u32 %s2528, 4
          %s2550 = int_to_ptr.vmem [resolvable:$true] %s2549
          %2555 = dma.vmem_to_hbm [thread:$0]  %s2550, 1024, %s2548, %s2525, 64, 64, 4
        $region112: #{double_conv.4} parent=35 // pred_fallthru
          _
        // Predicated region
        $region113: #{double_conv.4} parent=35 // pred_check
          %p2556 = pneg %p170
        $region114: #{double_conv.4} parent=35 // pred_check_branch
          %2558 = sbr.rel (%p2556) target = $region116
        $region115: #{double_conv.4} parent=35 // pred_region
          %s2560 = ssub.s32 16, 16
          %2561 = vsyncadd %s2530, %s2560
          %s2562 = smul.addr %s32, 16
          %s2563 = scalar_lea.hbm %s6, %s2562
          %s2565 = sshll.u32 %s2532, 4
          %s2566 = int_to_ptr.vmem [resolvable:$true] %s2565
          %2568 = dma.vmem_to_hbm [thread:$0]  %s2566, 16, %s2563, %s2530
        $region116: #{double_conv.4} parent=35 // pred_fallthru
          _
        // Predicated region
        $region117: #{double_conv.4} parent=35 // pred_check
          %p2569 = pneg %p196
        $region118: #{double_conv.4} parent=35 // pred_check_branch
          %2571 = sbr.rel (%p2569) target = $region120
        $region119: #{double_conv.4} parent=35 // pred_region
          %s2573 = ssub.s32 16, 16
          %2574 = vsyncadd %s2534, %s2573
          %s2575 = smul.addr %s32, 16
          %s2576 = scalar_lea.hbm %s7, %s2575
          %s2578 = sshll.u32 %s2536, 4
          %s2579 = int_to_ptr.vmem [resolvable:$true] %s2578
          %2581 = dma.vmem_to_hbm [thread:$0]  %s2579, 16, %s2576, %s2534
        $region120: #{double_conv.4} parent=35 // pred_fallthru
          _
      $region36: #{double_conv.4} parent=5 // pred_fallthru
        _
      %p2582 = scmp.le.s32.totalorder 2, %s23
      // Predicated region
      $region121: #{double_conv.4} parent=5 // pred_check
        %p2583 = pneg %p2582
      $region122: #{double_conv.4} parent=5 // pred_check_branch
        %2585 = sbr.rel (%p2583) target = $region124
      $region123: #{double_conv.4} parent=5 // pred_region
        %s2586 = ssub.s32 %s23, 2
        // Predicated region
        $region125: #{double_conv.4} parent=123 // pred_check
          %p2587 = pneg %p150
        $region126: #{double_conv.4} parent=123 // pred_check_branch
          %2589 = sbr.rel (%p2587) target = $region128
        $region127: #{double_conv.4} parent=123 // pred_region
          %s2590 = sand.u32 %s135, 1
          %s2591 = scalar_lea.sflag [#allocation6], %s2590
          %s2592 = sand.u32 %s135, 1
          %s2593 = smul.addr %s2592, 64
          %s2594 = scalar_lea.vmem [#allocation12], %s2593
          %2595 = dma.done %s2591, 1024
        $region128: #{double_conv.4} parent=123 // pred_fallthru
          _
        // Predicated region
        $region129: #{double_conv.4} parent=123 // pred_check
          %p2596 = pneg %p176
        $region130: #{double_conv.4} parent=123 // pred_check_branch
          %2598 = sbr.rel (%p2596) target = $region132
        $region131: #{double_conv.4} parent=123 // pred_region
          %s2599 = sand.u32 %s29, 1
          %s2600 = scalar_lea.sflag [#allocation14], %s2599
          %s2601 = sand.u32 %s161, 1
          %s2602 = scalar_lea.vmem [#allocation13], %s2601
          %2603 = dma.done %s2600, 16
        $region132: #{double_conv.4} parent=123 // pred_fallthru
          _
        // Predicated region
        $region133: #{double_conv.4} parent=123 // pred_check
          %p2604 = pneg %p202
        $region134: #{double_conv.4} parent=123 // pred_check_branch
          %2606 = sbr.rel (%p2604) target = $region136
        $region135: #{double_conv.4} parent=123 // pred_region
          %s2607 = sand.u32 %s29, 1
          %s2608 = scalar_lea.sflag [#allocation14], %s2607
          %s2609 = sand.u32 %s187, 1
          %s2610 = scalar_lea.vmem [#allocation15], %s2609
          %2611 = dma.done %s2608, 16
        $region136: #{double_conv.4} parent=123 // pred_fallthru
          _
      $region124: #{double_conv.4} parent=5 // pred_fallthru
        _
    $region6: #{double_conv.4} parent=1 // loop_footer
      %s27 = sadd.s32 1, %s23
    $region7: #{double_conv.4} parent=1 // loop_footer_branch
      %22 = sbr.rel target = $region3
    $region8: #{double_conv.4} parent=1 // loop_exit
      _
    %2612 = vsyncpa [#allocation5], 1
    %s2613 = scalar_lea.sflag [#allocation5], 1
    %2614 = vsyncpa %s2613, 1
    %2615 = vsyncpa [#allocation8], 1
    %2616 = vsyncpa [#allocation11], 1
    %2617 = vsyncpa [#allocation6], 1
    %s2618 = scalar_lea.sflag [#allocation6], 1
    %2619 = vsyncpa %s2618, 1
    %2620 = vsyncpa [#allocation14], 1
    %s2621 = scalar_lea.sflag [#allocation14], 1
    %2622 = vsyncpa %s2621, 1
  %2623 = vsyncmov [#allocation3]
  %s2624 = vpop.sfrf %2623
  %p2625 = scmp.eq.s32.totalorder %s2624, 0
  %p2626 = pneg %p2625
  %2628 = shalt.err (%p2626)
  %s2629 = scalar_lea.sflag [#allocation3], 1
  %2630 = vsyncmov %s2629
  %s2631 = vpop.sfrf %2630
  %p2632 = scmp.eq.s32.totalorder %s2631, 0
  %p2633 = pneg %p2632
  %2635 = shalt.err (%p2633)
  %s2636 = scalar_lea.sflag [#allocation3], 2
  %2637 = vsyncmov %s2636
  %s2638 = vpop.sfrf %2637
  %p2639 = scmp.eq.s32.totalorder %s2638, 0
  %p2640 = pneg %p2639
  %2642 = shalt.err (%p2640)
  %s2643 = scalar_lea.sflag [#allocation3], 3
  %2644 = vsyncmov %s2643
  %s2645 = vpop.sfrf %2644
  %p2646 = scmp.eq.s32.totalorder %s2645, 0
  %p2647 = pneg %p2646
  %2649 = shalt.err (%p2647)
  %s2650 = scalar_lea.sflag [#allocation3], 4
  %2651 = vsyncmov %s2650
  %s2652 = vpop.sfrf %2651
  %p2653 = scmp.eq.s32.totalorder %s2652, 0
  %p2654 = pneg %p2653
  %2656 = shalt.err (%p2654)
  %s2657 = scalar_lea.sflag [#allocation3], 5
  %2658 = vsyncmov %s2657
  %s2659 = vpop.sfrf %2658
  %p2660 = scmp.eq.s32.totalorder %s2659, 0
  %p2661 = pneg %p2660
  %2663 = shalt.err (%p2661)

</llo_original>
